<compile_context>
chip_gen: v7x
topology: tpu7x:2x2x1
jax: 0.10.0
libtpu: 0.0.40
codegen_flags: <defaults>
</compile_context>

<pallas_src>
import math
import functools

import jax
import jax.numpy as jnp
from jax.experimental import pallas as pl
from jax.experimental.pallas import tpu as pltpu

LN_EPS = 1e-5


# ----------------------------- fused Pallas kernel ---------------------------

def _fused_forward_kernel(x_ref, emb_w_ref, in_w_ref, in_b_ref, op_w_ref,
                          ff1_w_ref, ff1_b_ref, ff2_w_ref, vec_ref,
                          out_w_ref, out_b_ref, o_ref,
                          *, num_layers, num_heads):
    f32 = jnp.float32
    bf16 = jnp.bfloat16

    x = x_ref[...]                                   # [Bt, T, F] f32
    Bt, T, F = x.shape
    D = emb_w_ref.shape[1]
    H = num_heads
    dh = D // H
    R = Bt * T                                       # batch folded into matmul M

    vecs = vec_ref[...]                              # [1 + 6L, D] f32 packed slab
    emb_b = vecs[0:1]

    def layernorm(z, g, b):
        # one-pass: var = E[z^2] - mu^2
        mu = jnp.mean(z, axis=-1, keepdims=True)
        var = jnp.mean(z * z, axis=-1, keepdims=True) - mu * mu
        return (z - mu) * jax.lax.rsqrt(var + LN_EPS) * g + b

    # Linear embedding (bf16 MXU operands, f32 accumulation)
    h = jnp.dot(x.reshape(R, F).astype(bf16), emb_w_ref[...],
                preferred_element_type=f32) + emb_b                       # [R, D]

    for li in range(num_layers):
        base = 1 + 6 * li
        op_b = vecs[base + 0:base + 1]
        ff2_b = vecs[base + 1:base + 2]
        ln1_g = vecs[base + 2:base + 3]
        ln1_b = vecs[base + 3:base + 4]
        ln2_g = vecs[base + 4:base + 5]
        ln2_b = vecs[base + 5:base + 6]

        # ---- multi-head self-attention ----
        # single [R, 3D] projection; Q weights/bias were pre-scaled by 1/sqrt(dh)
        qkv = jnp.dot(h.astype(bf16), in_w_ref[li],
                      preferred_element_type=f32) + in_b_ref[li]          # [R, 3D]
        # heads to the leading (batch) dim: the ONE relayout in the attention path
        qkv = jnp.swapaxes(qkv.astype(bf16).reshape(R, 3 * H, dh), 0, 1)  # [3H, R, dh]
        # leading-dim-only slices / reshapes (free): group index g = h*Bt + b
        qg = qkv[0:H].reshape(H * Bt, T, dh)
        kg = qkv[H:2 * H].reshape(H * Bt, T, dh)
        vg = qkv[2 * H:3 * H].reshape(H * Bt, T, dh)

        s = jnp.einsum("gqd,gkd->gqk", qg, kg,
                       preferred_element_type=f32)                        # [G, T, T]
        s = s - jnp.max(s, axis=-1, keepdims=True)
        e = jnp.exp(s)
        p = e * pl.reciprocal(jnp.sum(e, axis=-1, keepdims=True), approx=True)
        o = jnp.einsum("gqk,gkd->gqd", p.astype(bf16), vg,
                       preferred_element_type=f32)                        # [G, T, dh]

        # head merge folded into the output projection: sum_h o_h @ W_o[h]
        o = o.reshape(H, R, dh).astype(bf16)                              # free reshape
        attn = jnp.einsum("hrd,hde->hre", o, op_w_ref[li],
                          preferred_element_type=f32)                     # [H, R, D]
        attn = jnp.sum(attn, axis=0) + op_b                               # [R, D]

        h = layernorm(h + attn, ln1_g, ln1_b)

        # ---- feed-forward (ReLU); single bf16 cast of the wide intermediate ----
        ff = jnp.dot(h.astype(bf16), ff1_w_ref[li],
                     preferred_element_type=f32) + ff1_b_ref[li]          # [R, dff] f32
        ff = jnp.maximum(ff, 0.0)
        ff = jnp.dot(ff.astype(bf16), ff2_w_ref[li],
                     preferred_element_type=f32) + ff2_b                  # [R, D]

        h = layernorm(h + ff, ln2_g, ln2_b)

    # mean over time folded into out_w (1/T pre-multiplied at init)
    hs = jnp.sum(h.reshape(Bt, T, D), axis=1)                             # [Bt, D]
    out = jnp.dot(hs.astype(bf16), out_w_ref[...],
                  preferred_element_type=f32) + out_b_ref[...]            # [Bt, dout]
    o_ref[...] = out.astype(o_ref.dtype)


# ------------------------------- wrapper --------------------------------------

def _const_spec(arr):
    # Whole array resident in VMEM with a constant block index; the pipeliner
    # does not re-fetch blocks whose index does not change across grid steps.
    zeros = (0,) * arr.ndim
    return pl.BlockSpec(arr.shape, lambda b: zeros)


@functools.partial(jax.jit, static_argnames=("num_heads", "batch_tiles"))
def classical_transformer_forward(x, params, num_heads, batch_tiles=None):
    B, T, F = x.shape
    dout = params["out_w"].shape[1]
    num_layers = int(params["in_w"].shape[0])
    if batch_tiles is None:
        # 2 grid steps keep both v7x TensorCores busy ("parallel"); on 1-TC
        # chips the extra step costs <1 us.  The rest of the batch is folded
        # into the matmul M dimension inside each step.
        batch_tiles = 2 if (B % 2 == 0) else 1
    assert B % batch_tiles == 0
    Bt = B // batch_tiles

    weights = [params["emb_w"], params["in_w"], params["in_b"], params["op_w"],
               params["ff1_w"], params["ff1_b"], params["ff2_w"], params["vec"],
               params["out_w"], params["out_b"]]

    out = pl.pallas_call(
        functools.partial(_fused_forward_kernel,
                          num_layers=num_layers, num_heads=num_heads),
        out_shape=jax.ShapeDtypeStruct((batch_tiles, Bt, dout), jnp.float32),
        grid=(batch_tiles,),
        in_specs=[pl.BlockSpec((Bt, T, F), lambda b: (b, 0, 0))]
                + [_const_spec(w) for w in weights],
        out_specs=pl.BlockSpec((None, Bt, dout), lambda b: (b, 0, 0)),
        compiler_params=pltpu.CompilerParams(
            dimension_semantics=("parallel",)),
    )(x, *weights)
    return out.reshape(B, dout)


# ----------------------------- parameter init -------------------------------

def init_params(key, feature_dim, d_model, num_heads, num_layers, dff,
                output_dim, n_timesteps):
    """Returns (packed, raw).

    `packed` feeds the Pallas kernel: bf16 weights, Q projection pre-scaled by
    1/sqrt(dh), out_proj pre-split per head, 1/T folded into out_w, and all
    tiny [1, D] vectors packed into one [1+6L, D] slab.
    `raw` keeps torch-layout float32 tensors for the pure-JAX reference.
    """
    H, dh = num_heads, d_model // num_heads
    scale = 1.0 / math.sqrt(dh)
    bf16 = jnp.bfloat16

    def uni(k, shape, fan_in):
        bound = 1.0 / math.sqrt(fan_in)
        return jax.random.uniform(k, shape, jnp.float32, -bound, bound)

    keys = jax.random.split(key, 2 + num_layers)
    k1, k2 = jax.random.split(keys[0])
    emb_w = uni(k1, (d_model, feature_dim), feature_dim)        # torch [out, in]
    emb_b = uni(k2, (d_model,), feature_dim)
    k1, k2 = jax.random.split(keys[1])
    out_w = uni(k1, (output_dim, d_model), d_model)
    out_b = uni(k2, (output_dim,), d_model)

    raw = dict(emb_w=emb_w, emb_b=emb_b, out_w=out_w, out_b=out_b, layers=[])
    in_w_l, in_b_l, op_w_l, ff1_w_l, ff1_b_l, ff2_w_l = [], [], [], [], [], []
    ones = jnp.ones((1, d_model), jnp.float32)
    zeros = jnp.zeros((1, d_model), jnp.float32)
    vec_rows = [emb_b.reshape(1, d_model)]

    for li in range(num_layers):
        lk = jax.random.split(keys[2 + li], 8)
        # TODO(synk): torch nn.MultiheadAttention uses xavier_uniform for
        # in_proj_weight and zero in_proj_bias; plain uniform(+-1/sqrt(fan_in))
        # is used here (irrelevant when loading real torch weights).
        in_w = uni(lk[0], (3 * d_model, d_model), d_model)
        in_b = uni(lk[1], (3 * d_model,), d_model)
        op_w = uni(lk[2], (d_model, d_model), d_model)
        op_b = uni(lk[3], (d_model,), d_model)
        f1_w = uni(lk[4], (dff, d_model), d_model)
        f1_b = uni(lk[5], (dff,), d_model)
        f2_w = uni(lk[6], (d_model, dff), dff)
        f2_b = uni(lk[7], (d_model,), dff)
        raw["layers"].append(dict(in_w=in_w, in_b=in_b, op_w=op_w, op_b=op_b,
                                  ff1_w=f1_w, ff1_b=f1_b, ff2_w=f2_w, ff2_b=f2_b))

        # fold the 1/sqrt(dh) attention scale into the Q projection
        in_w_s = in_w.at[:d_model].multiply(scale)
        in_b_s = in_b.at[:d_model].multiply(scale)
        in_w_l.append(in_w_s.T.astype(bf16))                    # [D, 3D]
        in_b_l.append(in_b_s.reshape(1, 3 * d_model))           # f32
        # out_proj pre-split per head: attn_out = sum_h o_h @ op_w[h]
        op_w_l.append(op_w.T.reshape(H, dh, d_model).astype(bf16))
        ff1_w_l.append(f1_w.T.astype(bf16))                     # [D, dff]
        ff1_b_l.append(f1_b.reshape(1, dff))
        ff2_w_l.append(f2_w.T.astype(bf16))                     # [dff, D]
        vec_rows += [op_b.reshape(1, d_model), f2_b.reshape(1, d_model),
                     ones, zeros, ones, zeros]                  # ln1_g/b, ln2_g/b

    packed = dict(
        emb_w=emb_w.T.astype(bf16),                             # [F, D]
        in_w=jnp.stack(in_w_l), in_b=jnp.stack(in_b_l),
        op_w=jnp.stack(op_w_l),
        ff1_w=jnp.stack(ff1_w_l), ff1_b=jnp.stack(ff1_b_l),
        ff2_w=jnp.stack(ff2_w_l),
        vec=jnp.concatenate(vec_rows, axis=0),                  # [1 + 6L, D]
        out_w=(out_w.T / float(n_timesteps)).astype(bf16),      # 1/T (mean) folded
        out_b=out_b.reshape(1, output_dim),
    )
    return packed, raw


# ----------------------------- pure-JAX reference ----------------------------

def reference_forward(x, raw, num_heads):
    """Float32 reference of the PyTorch module (weights bf16-quantized so it
    matches the parameters the kernel actually stores)."""
    q = lambda w: w.astype(jnp.bfloat16).astype(jnp.float32)

    def ln(z):
        mu = z.mean(-1, keepdims=True)
        var = ((z - mu) ** 2).mean(-1, keepdims=True)
        return (z - mu) / jnp.sqrt(var + LN_EPS)

    B, T, _ = x.shape
    h = x @ q(raw["emb_w"]).T + raw["emb_b"]
    D = h.shape[-1]
    H, dh = num_heads, D // num_heads
    for lr in raw["layers"]:
        qkv = h @ q(lr["in_w"]).T + lr["in_b"]
        qh, kh, vh = jnp.split(qkv, 3, axis=-1)
        split = lambda z: z.reshape(B, T, H, dh).transpose(0, 2, 1, 3)
        s = jnp.einsum("bhqd,bhkd->bhqk", split(qh) / math.sqrt(dh), split(kh))
        p = jax.nn.softmax(s, axis=-1)
        o = jnp.einsum("bhqk,bhkd->bhqd", p, split(vh))
        o = o.transpose(0, 2, 1, 3).reshape(B, T, D)
        h = ln(h + o @ q(lr["op_w"]).T + lr["op_b"])
        ff = jax.nn.relu(h @ q(lr["ff1_w"]).T + lr["ff1_b"]) @ q(lr["ff2_w"]).T + lr["ff2_b"]
        h = ln(h + ff)
    return h.mean(axis=1) @ q(raw["out_w"]).T + raw["out_b"]


# --------------------------------- main --------------------------------------

if __name__ == "__main__":
    # Module hyper-parameters (consistent with the torch module).
    n_qubits = 4
    num_layers = 2
    num_heads = 4
    feature_dim = 8
    n_timesteps = 8
    output_dim = 4
    batch = 8            # folded into the matmul M dimension (2 grid steps x 4)

    n_rots = 4 * n_qubits * num_layers   # d_model = 32
    dff = 2048                           # torch TransformerEncoderLayer default

    key = jax.random.PRNGKey(0)
    kx, kp = jax.random.split(key)
    x = jax.random.normal(kx, (batch, n_timesteps, feature_dim), jnp.float32)
    packed, raw = init_params(kp, feature_dim, n_rots, num_heads, num_layers,
                              dff, output_dim, n_timesteps)

    out = classical_transformer_forward(x, packed, num_heads)
    out = jax.block_until_ready(out)
    assert out.shape == (batch, output_dim)
    assert bool(jnp.all(jnp.isfinite(out)))

    # correctness vs a pure-JAX float32 reference (bf16 operand casts and the
    # approx softmax reciprocal account for the small tolerance)
    ref = reference_forward(x, raw, num_heads)
    max_err = float(jnp.max(jnp.abs(out - ref)))
    assert max_err < 7e-2, f"kernel/reference mismatch: {max_err}"

    print("KERNEL_OK")
</pallas_src>

<mosaic_0001>
module attributes {stable_mosaic.version = 11 : i64} {
  func.func @_fused_forward_kernel(%arg0: i32, %arg1: memref<4x8x8xf32, #tpu.memory_space<vmem>>, %arg2: memref<8x32xbf16, #tpu.memory_space<vmem>>, %arg3: memref<2x32x96xbf16, #tpu.memory_space<vmem>>, %arg4: memref<2x1x96xf32, #tpu.memory_space<vmem>>, %arg5: memref<2x4x8x32xbf16, #tpu.memory_space<vmem>>, %arg6: memref<2x32x2048xbf16, #tpu.memory_space<vmem>>, %arg7: memref<2x1x2048xf32, #tpu.memory_space<vmem>>, %arg8: memref<2x2048x32xbf16, #tpu.memory_space<vmem>>, %arg9: memref<13x32xf32, #tpu.memory_space<vmem>>, %arg10: memref<32x4xbf16, #tpu.memory_space<vmem>>, %arg11: memref<1x4xf32, #tpu.memory_space<vmem>>, %arg12: memref<1x4x4xf32, #tpu.memory_space<vmem>>) attributes {dimension_semantics = [#tpu.dimension_semantics<parallel>], iteration_bounds = array<i64: 2>, scalar_prefetch = 0 : i64, scratch_operands = 0 : i64, tpu.core_type = #tpu.core_type<tc>, window_params = [{transform_indices = @transform_0, window_bounds = array<i64: 4, 8, 8>}, {pipeline_mode = #tpu.pipeline_mode<synchronous>, transform_indices = @transform_1, window_bounds = array<i64: 8, 32>}, {pipeline_mode = #tpu.pipeline_mode<synchronous>, transform_indices = @transform_2, window_bounds = array<i64: 2, 32, 96>}, {pipeline_mode = #tpu.pipeline_mode<synchronous>, transform_indices = @transform_3, window_bounds = array<i64: 2, 1, 96>}, {pipeline_mode = #tpu.pipeline_mode<synchronous>, transform_indices = @transform_4, window_bounds = array<i64: 2, 4, 8, 32>}, {pipeline_mode = #tpu.pipeline_mode<synchronous>, transform_indices = @transform_5, window_bounds = array<i64: 2, 32, 2048>}, {pipeline_mode = #tpu.pipeline_mode<synchronous>, transform_indices = @transform_6, window_bounds = array<i64: 2, 1, 2048>}, {pipeline_mode = #tpu.pipeline_mode<synchronous>, transform_indices = @transform_7, window_bounds = array<i64: 2, 2048, 32>}, {pipeline_mode = #tpu.pipeline_mode<synchronous>, transform_indices = @transform_8, window_bounds = array<i64: 13, 32>}, {pipeline_mode = #tpu.pipeline_mode<synchronous>, transform_indices = @transform_9, window_bounds = array<i64: 32, 4>}, {pipeline_mode = #tpu.pipeline_mode<synchronous>, transform_indices = @transform_10, window_bounds = array<i64: 1, 4>}, {transform_indices = @transform_11, window_bounds = array<i64: 1, 4, 4>}]} {
    %c0 = arith.constant 0 : index
    %c0_0 = arith.constant 0 : index
    %c0_1 = arith.constant 0 : index
    %0 = vector.load %arg1[%c0, %c0_0, %c0_1] : memref<4x8x8xf32, #tpu.memory_space<vmem>>, vector<4x8x8xf32>
    %c0_2 = arith.constant 0 : index
    %c0_3 = arith.constant 0 : index
    %1 = vector.load %arg9[%c0_2, %c0_3] : memref<13x32xf32, #tpu.memory_space<vmem>>, vector<13x32xf32>
    %2 = vector.extract_strided_slice %1 {offsets = [0, 0], sizes = [1, 32], strides = [1, 1]} : vector<13x32xf32> to vector<1x32xf32>
    %3 = vector.shape_cast %0 : vector<4x8x8xf32> to vector<32x8xf32>
    %4 = arith.truncf %3 : vector<32x8xf32> to vector<32x8xbf16>
    %c0_4 = arith.constant 0 : index
    %c0_5 = arith.constant 0 : index
    %5 = vector.load %arg2[%c0_4, %c0_5] : memref<8x32xbf16, #tpu.memory_space<vmem>>, vector<8x32xbf16>
    %cst = arith.constant dense<0.000000e+00> : vector<32x32xf32>
    %6 = tpu.matmul %4, %5, %cst {dimension_numbers = #tpu.dot_dimension_numbers<[1], [0], [0], [1], [0, 0, 1, 1], [], []>} : vector<32x8xbf16>, vector<8x32xbf16>, vector<32x32xf32> -> vector<32x32xf32>
    %7 = vector.broadcast %2 : vector<1x32xf32> to vector<32x32xf32>
    %8 = arith.addf %6, %7 : vector<32x32xf32>
    %9 = vector.extract_strided_slice %1 {offsets = [1, 0], sizes = [1, 32], strides = [1, 1]} : vector<13x32xf32> to vector<1x32xf32>
    %10 = vector.extract_strided_slice %1 {offsets = [2, 0], sizes = [1, 32], strides = [1, 1]} : vector<13x32xf32> to vector<1x32xf32>
    %11 = vector.extract_strided_slice %1 {offsets = [3, 0], sizes = [1, 32], strides = [1, 1]} : vector<13x32xf32> to vector<1x32xf32>
    %12 = vector.extract_strided_slice %1 {offsets = [4, 0], sizes = [1, 32], strides = [1, 1]} : vector<13x32xf32> to vector<1x32xf32>
    %13 = vector.extract_strided_slice %1 {offsets = [5, 0], sizes = [1, 32], strides = [1, 1]} : vector<13x32xf32> to vector<1x32xf32>
    %14 = vector.extract_strided_slice %1 {offsets = [6, 0], sizes = [1, 32], strides = [1, 1]} : vector<13x32xf32> to vector<1x32xf32>
    %15 = arith.truncf %8 : vector<32x32xf32> to vector<32x32xbf16>
    %c0_6 = arith.constant 0 : index
    %c0_7 = arith.constant 0 : index
    %c0_8 = arith.constant 0 : index
    %16 = vector.load %arg3[%c0_6, %c0_7, %c0_8] : memref<2x32x96xbf16, #tpu.memory_space<vmem>>, vector<1x32x96xbf16>
    %17 = vector.shape_cast %16 : vector<1x32x96xbf16> to vector<32x96xbf16>
    %cst_9 = arith.constant dense<0.000000e+00> : vector<32x96xf32>
    %18 = tpu.matmul %15, %17, %cst_9 {dimension_numbers = #tpu.dot_dimension_numbers<[1], [0], [0], [1], [0, 0, 1, 1], [], []>} : vector<32x32xbf16>, vector<32x96xbf16>, vector<32x96xf32> -> vector<32x96xf32>
    %c0_10 = arith.constant 0 : index
    %c0_11 = arith.constant 0 : index
    %c0_12 = arith.constant 0 : index
    %19 = vector.load %arg4[%c0_10, %c0_11, %c0_12] : memref<2x1x96xf32, #tpu.memory_space<vmem>>, vector<1x1x96xf32>
    %20 = vector.shape_cast %19 : vector<1x1x96xf32> to vector<1x96xf32>
    %21 = vector.broadcast %20 : vector<1x96xf32> to vector<32x96xf32>
    %22 = arith.addf %18, %21 : vector<32x96xf32>
    %23 = arith.truncf %22 : vector<32x96xf32> to vector<32x96xbf16>
    %24 = vector.shape_cast %23 : vector<32x96xbf16> to vector<32x12x8xbf16>
    %25 = tpu.transpose %24, [1, 0, 2] : vector<32x12x8xbf16> -> vector<12x32x8xbf16>
    %26 = vector.extract_strided_slice %25 {offsets = [0, 0, 0], sizes = [4, 32, 8], strides = [1, 1, 1]} : vector<12x32x8xbf16> to vector<4x32x8xbf16>
    %27 = vector.shape_cast %26 : vector<4x32x8xbf16> to vector<16x8x8xbf16>
    %28 = vector.extract_strided_slice %25 {offsets = [4, 0, 0], sizes = [4, 32, 8], strides = [1, 1, 1]} : vector<12x32x8xbf16> to vector<4x32x8xbf16>
    %29 = vector.shape_cast %28 : vector<4x32x8xbf16> to vector<16x8x8xbf16>
    %30 = vector.extract_strided_slice %25 {offsets = [8, 0, 0], sizes = [4, 32, 8], strides = [1, 1, 1]} : vector<12x32x8xbf16> to vector<4x32x8xbf16>
    %31 = vector.shape_cast %30 : vector<4x32x8xbf16> to vector<16x8x8xbf16>
    "tpu.trace_start"() <{level = 10 : i32, message = "gqd,gkd->gqk"}> : () -> ()
    %cst_13 = arith.constant dense<0.000000e+00> : vector<16x8x8xf32>
    %32 = tpu.matmul %27, %29, %cst_13 {dimension_numbers = #tpu.dot_dimension_numbers<[2], [2], [1], [1], [0, 0, 0, 1, 1, 1], [0], [0]>} : vector<16x8x8xbf16>, vector<16x8x8xbf16>, vector<16x8x8xf32> -> vector<16x8x8xf32>
    "tpu.trace_stop"() : () -> ()
    %cst_14 = arith.constant dense<0xFF800000> : vector<16x8xf32>
    %33 = vector.multi_reduction <maximumf>, %32, %cst_14 [2] : vector<16x8x8xf32> to vector<16x8xf32>
    %34 = vector.shape_cast %33 : vector<16x8xf32> to vector<16x8x1xf32>
    %35 = vector.broadcast %34 : vector<16x8x1xf32> to vector<16x8x8xf32>
    %36 = arith.subf %32, %35 : vector<16x8x8xf32>
    %37 = math.exp %36 : vector<16x8x8xf32>
    %cst_15 = arith.constant dense<0.000000e+00> : vector<16x8xf32>
    %38 = vector.multi_reduction <add>, %37, %cst_15 [2] : vector<16x8x8xf32> to vector<16x8xf32>
    %39 = vector.shape_cast %38 : vector<16x8xf32> to vector<16x8x1xf32>
    %40 = tpu.reciprocal %39 {approx = true} : vector<16x8x1xf32> -> vector<16x8x1xf32>
    %41 = vector.broadcast %40 : vector<16x8x1xf32> to vector<16x8x8xf32>
    %42 = arith.mulf %37, %41 : vector<16x8x8xf32>
    %43 = arith.truncf %42 : vector<16x8x8xf32> to vector<16x8x8xbf16>
    "tpu.trace_start"() <{level = 10 : i32, message = "gqk,gkd->gqd"}> : () -> ()
    %cst_16 = arith.constant dense<0.000000e+00> : vector<16x8x8xf32>
    %44 = tpu.matmul %43, %31, %cst_16 {dimension_numbers = #tpu.dot_dimension_numbers<[2], [1], [1], [2], [0, 0, 0, 1, 1, 2], [0], [0]>} : vector<16x8x8xbf16>, vector<16x8x8xbf16>, vector<16x8x8xf32> -> vector<16x8x8xf32>
    "tpu.trace_stop"() : () -> ()
    %45 = vector.shape_cast %44 : vector<16x8x8xf32> to vector<4x32x8xf32>
    %46 = arith.truncf %45 : vector<4x32x8xf32> to vector<4x32x8xbf16>
    %c0_17 = arith.constant 0 : index
    %c0_18 = arith.constant 0 : index
    %c0_19 = arith.constant 0 : index
    %c0_20 = arith.constant 0 : index
    %47 = vector.load %arg5[%c0_17, %c0_18, %c0_19, %c0_20] : memref<2x4x8x32xbf16, #tpu.memory_space<vmem>>, vector<1x4x8x32xbf16>
    %48 = vector.shape_cast %47 : vector<1x4x8x32xbf16> to vector<4x8x32xbf16>
    "tpu.trace_start"() <{level = 10 : i32, message = "hrd,hde->hre"}> : () -> ()
    %cst_21 = arith.constant dense<0.000000e+00> : vector<4x32x32xf32>
    %49 = tpu.matmul %46, %48, %cst_21 {dimension_numbers = #tpu.dot_dimension_numbers<[2], [1], [1], [2], [0, 0, 0, 1, 1, 2], [0], [0]>} : vector<4x32x8xbf16>, vector<4x8x32xbf16>, vector<4x32x32xf32> -> vector<4x32x32xf32>
    "tpu.trace_stop"() : () -> ()
    %cst_22 = arith.constant dense<0.000000e+00> : vector<32x32xf32>
    %50 = vector.multi_reduction <add>, %49, %cst_22 [0] : vector<4x32x32xf32> to vector<32x32xf32>
    %51 = vector.broadcast %9 : vector<1x32xf32> to vector<32x32xf32>
    %52 = arith.addf %50, %51 : vector<32x32xf32>
    %53 = arith.addf %8, %52 : vector<32x32xf32>
    %cst_23 = arith.constant dense<0.000000e+00> : vector<32xf32>
    %54 = vector.multi_reduction <add>, %53, %cst_23 [1] : vector<32x32xf32> to vector<32xf32>
    %55 = vector.shape_cast %54 : vector<32xf32> to vector<32x1xf32>
    %cst_24 = arith.constant 3.200000e+01 : f32
    %56 = vector.broadcast %cst_24 : f32 to vector<32x1xf32>
    %57 = arith.divf %55, %56 : vector<32x1xf32>
    %58 = arith.mulf %53, %53 : vector<32x32xf32>
    %cst_25 = arith.constant dense<0.000000e+00> : vector<32xf32>
    %59 = vector.multi_reduction <add>, %58, %cst_25 [1] : vector<32x32xf32> to vector<32xf32>
    %60 = vector.shape_cast %59 : vector<32xf32> to vector<32x1xf32>
    %cst_26 = arith.constant 3.200000e+01 : f32
    %61 = vector.broadcast %cst_26 : f32 to vector<32x1xf32>
    %62 = arith.divf %60, %61 : vector<32x1xf32>
    %63 = arith.mulf %57, %57 : vector<32x1xf32>
    %64 = arith.subf %62, %63 : vector<32x1xf32>
    %65 = vector.broadcast %57 : vector<32x1xf32> to vector<32x32xf32>
    %66 = arith.subf %53, %65 : vector<32x32xf32>
    %cst_27 = arith.constant 9.99999974E-6 : f32
    %67 = vector.broadcast %cst_27 : f32 to vector<32x1xf32>
    %68 = arith.addf %64, %67 : vector<32x1xf32>
    %69 = math.rsqrt %68 : vector<32x1xf32>
    %70 = vector.broadcast %69 : vector<32x1xf32> to vector<32x32xf32>
    %71 = arith.mulf %66, %70 : vector<32x32xf32>
    %72 = vector.broadcast %11 : vector<1x32xf32> to vector<32x32xf32>
    %73 = arith.mulf %71, %72 : vector<32x32xf32>
    %74 = vector.broadcast %12 : vector<1x32xf32> to vector<32x32xf32>
    %75 = arith.addf %73, %74 : vector<32x32xf32>
    %76 = arith.truncf %75 : vector<32x32xf32> to vector<32x32xbf16>
    %c0_28 = arith.constant 0 : index
    %c0_29 = arith.constant 0 : index
    %c0_30 = arith.constant 0 : index
    %77 = vector.load %arg6[%c0_28, %c0_29, %c0_30] : memref<2x32x2048xbf16, #tpu.memory_space<vmem>>, vector<1x32x2048xbf16>
    %78 = vector.shape_cast %77 : vector<1x32x2048xbf16> to vector<32x2048xbf16>
    %cst_31 = arith.constant dense<0.000000e+00> : vector<32x2048xf32>
    %79 = tpu.matmul %76, %78, %cst_31 {dimension_numbers = #tpu.dot_dimension_numbers<[1], [0], [0], [1], [0, 0, 1, 1], [], []>} : vector<32x32xbf16>, vector<32x2048xbf16>, vector<32x2048xf32> -> vector<32x2048xf32>
    %c0_32 = arith.constant 0 : index
    %c0_33 = arith.constant 0 : index
    %c0_34 = arith.constant 0 : index
    %80 = vector.load %arg7[%c0_32, %c0_33, %c0_34] : memref<2x1x2048xf32, #tpu.memory_space<vmem>>, vector<1x1x2048xf32>
    %81 = vector.shape_cast %80 : vector<1x1x2048xf32> to vector<1x2048xf32>
    %82 = vector.broadcast %81 : vector<1x2048xf32> to vector<32x2048xf32>
    %83 = arith.addf %79, %82 : vector<32x2048xf32>
    %cst_35 = arith.constant 0.000000e+00 : f32
    %84 = vector.broadcast %cst_35 : f32 to vector<32x2048xf32>
    %85 = arith.maximumf %83, %84 : vector<32x2048xf32>
    %86 = arith.truncf %85 : vector<32x2048xf32> to vector<32x2048xbf16>
    %c0_36 = arith.constant 0 : index
    %c0_37 = arith.constant 0 : index
    %c0_38 = arith.constant 0 : index
    %87 = vector.load %arg8[%c0_36, %c0_37, %c0_38] : memref<2x2048x32xbf16, #tpu.memory_space<vmem>>, vector<1x2048x32xbf16>
    %88 = vector.shape_cast %87 : vector<1x2048x32xbf16> to vector<2048x32xbf16>
    %cst_39 = arith.constant dense<0.000000e+00> : vector<32x32xf32>
    %89 = tpu.matmul %86, %88, %cst_39 {dimension_numbers = #tpu.dot_dimension_numbers<[1], [0], [0], [1], [0, 0, 1, 1], [], []>} : vector<32x2048xbf16>, vector<2048x32xbf16>, vector<32x32xf32> -> vector<32x32xf32>
    %90 = vector.broadcast %10 : vector<1x32xf32> to vector<32x32xf32>
    %91 = arith.addf %89, %90 : vector<32x32xf32>
    %92 = arith.addf %75, %91 : vector<32x32xf32>
    %cst_40 = arith.constant dense<0.000000e+00> : vector<32xf32>
    %93 = vector.multi_reduction <add>, %92, %cst_40 [1] : vector<32x32xf32> to vector<32xf32>
    %94 = vector.shape_cast %93 : vector<32xf32> to vector<32x1xf32>
    %cst_41 = arith.constant 3.200000e+01 : f32
    %95 = vector.broadcast %cst_41 : f32 to vector<32x1xf32>
    %96 = arith.divf %94, %95 : vector<32x1xf32>
    %97 = arith.mulf %92, %92 : vector<32x32xf32>
    %cst_42 = arith.constant dense<0.000000e+00> : vector<32xf32>
    %98 = vector.multi_reduction <add>, %97, %cst_42 [1] : vector<32x32xf32> to vector<32xf32>
    %99 = vector.shape_cast %98 : vector<32xf32> to vector<32x1xf32>
    %cst_43 = arith.constant 3.200000e+01 : f32
    %100 = vector.broadcast %cst_43 : f32 to vector<32x1xf32>
    %101 = arith.divf %99, %100 : vector<32x1xf32>
    %102 = arith.mulf %96, %96 : vector<32x1xf32>
    %103 = arith.subf %101, %102 : vector<32x1xf32>
    %104 = vector.broadcast %96 : vector<32x1xf32> to vector<32x32xf32>
    %105 = arith.subf %92, %104 : vector<32x32xf32>
    %cst_44 = arith.constant 9.99999974E-6 : f32
    %106 = vector.broadcast %cst_44 : f32 to vector<32x1xf32>
    %107 = arith.addf %103, %106 : vector<32x1xf32>
    %108 = math.rsqrt %107 : vector<32x1xf32>
    %109 = vector.broadcast %108 : vector<32x1xf32> to vector<32x32xf32>
    %110 = arith.mulf %105, %109 : vector<32x32xf32>
    %111 = vector.broadcast %13 : vector<1x32xf32> to vector<32x32xf32>
    %112 = arith.mulf %110, %111 : vector<32x32xf32>
    %113 = vector.broadcast %14 : vector<1x32xf32> to vector<32x32xf32>
    %114 = arith.addf %112, %113 : vector<32x32xf32>
    %115 = vector.extract_strided_slice %1 {offsets = [7, 0], sizes = [1, 32], strides = [1, 1]} : vector<13x32xf32> to vector<1x32xf32>
    %116 = vector.extract_strided_slice %1 {offsets = [8, 0], sizes = [1, 32], strides = [1, 1]} : vector<13x32xf32> to vector<1x32xf32>
    %117 = vector.extract_strided_slice %1 {offsets = [9, 0], sizes = [1, 32], strides = [1, 1]} : vector<13x32xf32> to vector<1x32xf32>
    %118 = vector.extract_strided_slice %1 {offsets = [10, 0], sizes = [1, 32], strides = [1, 1]} : vector<13x32xf32> to vector<1x32xf32>
    %119 = vector.extract_strided_slice %1 {offsets = [11, 0], sizes = [1, 32], strides = [1, 1]} : vector<13x32xf32> to vector<1x32xf32>
    %120 = vector.extract_strided_slice %1 {offsets = [12, 0], sizes = [1, 32], strides = [1, 1]} : vector<13x32xf32> to vector<1x32xf32>
    %121 = arith.truncf %114 : vector<32x32xf32> to vector<32x32xbf16>
    %c1 = arith.constant 1 : index
    %c0_45 = arith.constant 0 : index
    %c0_46 = arith.constant 0 : index
    %122 = vector.load %arg3[%c1, %c0_45, %c0_46] : memref<2x32x96xbf16, #tpu.memory_space<vmem>>, vector<1x32x96xbf16>
    %123 = vector.shape_cast %122 : vector<1x32x96xbf16> to vector<32x96xbf16>
    %cst_47 = arith.constant dense<0.000000e+00> : vector<32x96xf32>
    %124 = tpu.matmul %121, %123, %cst_47 {dimension_numbers = #tpu.dot_dimension_numbers<[1], [0], [0], [1], [0, 0, 1, 1], [], []>} : vector<32x32xbf16>, vector<32x96xbf16>, vector<32x96xf32> -> vector<32x96xf32>
    %c1_48 = arith.constant 1 : index
    %c0_49 = arith.constant 0 : index
    %c0_50 = arith.constant 0 : index
    %125 = vector.load %arg4[%c1_48, %c0_49, %c0_50] : memref<2x1x96xf32, #tpu.memory_space<vmem>>, vector<1x1x96xf32>
    %126 = vector.shape_cast %125 : vector<1x1x96xf32> to vector<1x96xf32>
    %127 = vector.broadcast %126 : vector<1x96xf32> to vector<32x96xf32>
    %128 = arith.addf %124, %127 : vector<32x96xf32>
    %129 = arith.truncf %128 : vector<32x96xf32> to vector<32x96xbf16>
    %130 = vector.shape_cast %129 : vector<32x96xbf16> to vector<32x12x8xbf16>
    %131 = tpu.transpose %130, [1, 0, 2] : vector<32x12x8xbf16> -> vector<12x32x8xbf16>
    %132 = vector.extract_strided_slice %131 {offsets = [0, 0, 0], sizes = [4, 32, 8], strides = [1, 1, 1]} : vector<12x32x8xbf16> to vector<4x32x8xbf16>
    %133 = vector.shape_cast %132 : vector<4x32x8xbf16> to vector<16x8x8xbf16>
    %134 = vector.extract_strided_slice %131 {offsets = [4, 0, 0], sizes = [4, 32, 8], strides = [1, 1, 1]} : vector<12x32x8xbf16> to vector<4x32x8xbf16>
    %135 = vector.shape_cast %134 : vector<4x32x8xbf16> to vector<16x8x8xbf16>
    %136 = vector.extract_strided_slice %131 {offsets = [8, 0, 0], sizes = [4, 32, 8], strides = [1, 1, 1]} : vector<12x32x8xbf16> to vector<4x32x8xbf16>
    %137 = vector.shape_cast %136 : vector<4x32x8xbf16> to vector<16x8x8xbf16>
    "tpu.trace_start"() <{level = 10 : i32, message = "gqd,gkd->gqk"}> : () -> ()
    %cst_51 = arith.constant dense<0.000000e+00> : vector<16x8x8xf32>
    %138 = tpu.matmul %133, %135, %cst_51 {dimension_numbers = #tpu.dot_dimension_numbers<[2], [2], [1], [1], [0, 0, 0, 1, 1, 1], [0], [0]>} : vector<16x8x8xbf16>, vector<16x8x8xbf16>, vector<16x8x8xf32> -> vector<16x8x8xf32>
    "tpu.trace_stop"() : () -> ()
    %cst_52 = arith.constant dense<0xFF800000> : vector<16x8xf32>
    %139 = vector.multi_reduction <maximumf>, %138, %cst_52 [2] : vector<16x8x8xf32> to vector<16x8xf32>
    %140 = vector.shape_cast %139 : vector<16x8xf32> to vector<16x8x1xf32>
    %141 = vector.broadcast %140 : vector<16x8x1xf32> to vector<16x8x8xf32>
    %142 = arith.subf %138, %141 : vector<16x8x8xf32>
    %143 = math.exp %142 : vector<16x8x8xf32>
    %cst_53 = arith.constant dense<0.000000e+00> : vector<16x8xf32>
    %144 = vector.multi_reduction <add>, %143, %cst_53 [2] : vector<16x8x8xf32> to vector<16x8xf32>
    %145 = vector.shape_cast %144 : vector<16x8xf32> to vector<16x8x1xf32>
    %146 = tpu.reciprocal %145 {approx = true} : vector<16x8x1xf32> -> vector<16x8x1xf32>
    %147 = vector.broadcast %146 : vector<16x8x1xf32> to vector<16x8x8xf32>
    %148 = arith.mulf %143, %147 : vector<16x8x8xf32>
    %149 = arith.truncf %148 : vector<16x8x8xf32> to vector<16x8x8xbf16>
    "tpu.trace_start"() <{level = 10 : i32, message = "gqk,gkd->gqd"}> : () -> ()
    %cst_54 = arith.constant dense<0.000000e+00> : vector<16x8x8xf32>
    %150 = tpu.matmul %149, %137, %cst_54 {dimension_numbers = #tpu.dot_dimension_numbers<[2], [1], [1], [2], [0, 0, 0, 1, 1, 2], [0], [0]>} : vector<16x8x8xbf16>, vector<16x8x8xbf16>, vector<16x8x8xf32> -> vector<16x8x8xf32>
    "tpu.trace_stop"() : () -> ()
    %151 = vector.shape_cast %150 : vector<16x8x8xf32> to vector<4x32x8xf32>
    %152 = arith.truncf %151 : vector<4x32x8xf32> to vector<4x32x8xbf16>
    %c1_55 = arith.constant 1 : index
    %c0_56 = arith.constant 0 : index
    %c0_57 = arith.constant 0 : index
    %c0_58 = arith.constant 0 : index
    %153 = vector.load %arg5[%c1_55, %c0_56, %c0_57, %c0_58] : memref<2x4x8x32xbf16, #tpu.memory_space<vmem>>, vector<1x4x8x32xbf16>
    %154 = vector.shape_cast %153 : vector<1x4x8x32xbf16> to vector<4x8x32xbf16>
    "tpu.trace_start"() <{level = 10 : i32, message = "hrd,hde->hre"}> : () -> ()
    %cst_59 = arith.constant dense<0.000000e+00> : vector<4x32x32xf32>
    %155 = tpu.matmul %152, %154, %cst_59 {dimension_numbers = #tpu.dot_dimension_numbers<[2], [1], [1], [2], [0, 0, 0, 1, 1, 2], [0], [0]>} : vector<4x32x8xbf16>, vector<4x8x32xbf16>, vector<4x32x32xf32> -> vector<4x32x32xf32>
    "tpu.trace_stop"() : () -> ()
    %cst_60 = arith.constant dense<0.000000e+00> : vector<32x32xf32>
    %156 = vector.multi_reduction <add>, %155, %cst_60 [0] : vector<4x32x32xf32> to vector<32x32xf32>
    %157 = vector.broadcast %115 : vector<1x32xf32> to vector<32x32xf32>
    %158 = arith.addf %156, %157 : vector<32x32xf32>
    %159 = arith.addf %114, %158 : vector<32x32xf32>
    %cst_61 = arith.constant dense<0.000000e+00> : vector<32xf32>
    %160 = vector.multi_reduction <add>, %159, %cst_61 [1] : vector<32x32xf32> to vector<32xf32>
    %161 = vector.shape_cast %160 : vector<32xf32> to vector<32x1xf32>
    %cst_62 = arith.constant 3.200000e+01 : f32
    %162 = vector.broadcast %cst_62 : f32 to vector<32x1xf32>
    %163 = arith.divf %161, %162 : vector<32x1xf32>
    %164 = arith.mulf %159, %159 : vector<32x32xf32>
    %cst_63 = arith.constant dense<0.000000e+00> : vector<32xf32>
    %165 = vector.multi_reduction <add>, %164, %cst_63 [1] : vector<32x32xf32> to vector<32xf32>
    %166 = vector.shape_cast %165 : vector<32xf32> to vector<32x1xf32>
    %cst_64 = arith.constant 3.200000e+01 : f32
    %167 = vector.broadcast %cst_64 : f32 to vector<32x1xf32>
    %168 = arith.divf %166, %167 : vector<32x1xf32>
    %169 = arith.mulf %163, %163 : vector<32x1xf32>
    %170 = arith.subf %168, %169 : vector<32x1xf32>
    %171 = vector.broadcast %163 : vector<32x1xf32> to vector<32x32xf32>
    %172 = arith.subf %159, %171 : vector<32x32xf32>
    %cst_65 = arith.constant 9.99999974E-6 : f32
    %173 = vector.broadcast %cst_65 : f32 to vector<32x1xf32>
    %174 = arith.addf %170, %173 : vector<32x1xf32>
    %175 = math.rsqrt %174 : vector<32x1xf32>
    %176 = vector.broadcast %175 : vector<32x1xf32> to vector<32x32xf32>
    %177 = arith.mulf %172, %176 : vector<32x32xf32>
    %178 = vector.broadcast %117 : vector<1x32xf32> to vector<32x32xf32>
    %179 = arith.mulf %177, %178 : vector<32x32xf32>
    %180 = vector.broadcast %118 : vector<1x32xf32> to vector<32x32xf32>
    %181 = arith.addf %179, %180 : vector<32x32xf32>
    %182 = arith.truncf %181 : vector<32x32xf32> to vector<32x32xbf16>
    %c1_66 = arith.constant 1 : index
    %c0_67 = arith.constant 0 : index
    %c0_68 = arith.constant 0 : index
    %183 = vector.load %arg6[%c1_66, %c0_67, %c0_68] : memref<2x32x2048xbf16, #tpu.memory_space<vmem>>, vector<1x32x2048xbf16>
    %184 = vector.shape_cast %183 : vector<1x32x2048xbf16> to vector<32x2048xbf16>
    %cst_69 = arith.constant dense<0.000000e+00> : vector<32x2048xf32>
    %185 = tpu.matmul %182, %184, %cst_69 {dimension_numbers = #tpu.dot_dimension_numbers<[1], [0], [0], [1], [0, 0, 1, 1], [], []>} : vector<32x32xbf16>, vector<32x2048xbf16>, vector<32x2048xf32> -> vector<32x2048xf32>
    %c1_70 = arith.constant 1 : index
    %c0_71 = arith.constant 0 : index
    %c0_72 = arith.constant 0 : index
    %186 = vector.load %arg7[%c1_70, %c0_71, %c0_72] : memref<2x1x2048xf32, #tpu.memory_space<vmem>>, vector<1x1x2048xf32>
    %187 = vector.shape_cast %186 : vector<1x1x2048xf32> to vector<1x2048xf32>
    %188 = vector.broadcast %187 : vector<1x2048xf32> to vector<32x2048xf32>
    %189 = arith.addf %185, %188 : vector<32x2048xf32>
    %cst_73 = arith.constant 0.000000e+00 : f32
    %190 = vector.broadcast %cst_73 : f32 to vector<32x2048xf32>
    %191 = arith.maximumf %189, %190 : vector<32x2048xf32>
    %192 = arith.truncf %191 : vector<32x2048xf32> to vector<32x2048xbf16>
    %c1_74 = arith.constant 1 : index
    %c0_75 = arith.constant 0 : index
    %c0_76 = arith.constant 0 : index
    %193 = vector.load %arg8[%c1_74, %c0_75, %c0_76] : memref<2x2048x32xbf16, #tpu.memory_space<vmem>>, vector<1x2048x32xbf16>
    %194 = vector.shape_cast %193 : vector<1x2048x32xbf16> to vector<2048x32xbf16>
    %cst_77 = arith.constant dense<0.000000e+00> : vector<32x32xf32>
    %195 = tpu.matmul %192, %194, %cst_77 {dimension_numbers = #tpu.dot_dimension_numbers<[1], [0], [0], [1], [0, 0, 1, 1], [], []>} : vector<32x2048xbf16>, vector<2048x32xbf16>, vector<32x32xf32> -> vector<32x32xf32>
    %196 = vector.broadcast %116 : vector<1x32xf32> to vector<32x32xf32>
    %197 = arith.addf %195, %196 : vector<32x32xf32>
    %198 = arith.addf %181, %197 : vector<32x32xf32>
    %cst_78 = arith.constant dense<0.000000e+00> : vector<32xf32>
    %199 = vector.multi_reduction <add>, %198, %cst_78 [1] : vector<32x32xf32> to vector<32xf32>
    %200 = vector.shape_cast %199 : vector<32xf32> to vector<32x1xf32>
    %cst_79 = arith.constant 3.200000e+01 : f32
    %201 = vector.broadcast %cst_79 : f32 to vector<32x1xf32>
    %202 = arith.divf %200, %201 : vector<32x1xf32>
    %203 = arith.mulf %198, %198 : vector<32x32xf32>
    %cst_80 = arith.constant dense<0.000000e+00> : vector<32xf32>
    %204 = vector.multi_reduction <add>, %203, %cst_80 [1] : vector<32x32xf32> to vector<32xf32>
    %205 = vector.shape_cast %204 : vector<32xf32> to vector<32x1xf32>
    %cst_81 = arith.constant 3.200000e+01 : f32
    %206 = vector.broadcast %cst_81 : f32 to vector<32x1xf32>
    %207 = arith.divf %205, %206 : vector<32x1xf32>
    %208 = arith.mulf %202, %202 : vector<32x1xf32>
    %209 = arith.subf %207, %208 : vector<32x1xf32>
    %210 = vector.broadcast %202 : vector<32x1xf32> to vector<32x32xf32>
    %211 = arith.subf %198, %210 : vector<32x32xf32>
    %cst_82 = arith.constant 9.99999974E-6 : f32
    %212 = vector.broadcast %cst_82 : f32 to vector<32x1xf32>
    %213 = arith.addf %209, %212 : vector<32x1xf32>
    %214 = math.rsqrt %213 : vector<32x1xf32>
    %215 = vector.broadcast %214 : vector<32x1xf32> to vector<32x32xf32>
    %216 = arith.mulf %211, %215 : vector<32x32xf32>
    %217 = vector.broadcast %119 : vector<1x32xf32> to vector<32x32xf32>
    %218 = arith.mulf %216, %217 : vector<32x32xf32>
    %219 = vector.broadcast %120 : vector<1x32xf32> to vector<32x32xf32>
    %220 = arith.addf %218, %219 : vector<32x32xf32>
    %221 = vector.shape_cast %220 : vector<32x32xf32> to vector<4x8x32xf32>
    %cst_83 = arith.constant dense<0.000000e+00> : vector<4x32xf32>
    %222 = vector.multi_reduction <add>, %221, %cst_83 [1] : vector<4x8x32xf32> to vector<4x32xf32>
    %223 = arith.truncf %222 : vector<4x32xf32> to vector<4x32xbf16>
    %c0_84 = arith.constant 0 : index
    %c0_85 = arith.constant 0 : index
    %224 = vector.load %arg10[%c0_84, %c0_85] : memref<32x4xbf16, #tpu.memory_space<vmem>>, vector<32x4xbf16>
    %cst_86 = arith.constant dense<0.000000e+00> : vector<4x4xf32>
    %225 = tpu.matmul %223, %224, %cst_86 {dimension_numbers = #tpu.dot_dimension_numbers<[1], [0], [0], [1], [0, 0, 1, 1], [], []>} : vector<4x32xbf16>, vector<32x4xbf16>, vector<4x4xf32> -> vector<4x4xf32>
    %c0_87 = arith.constant 0 : index
    %c0_88 = arith.constant 0 : index
    %226 = vector.load %arg11[%c0_87, %c0_88] : memref<1x4xf32, #tpu.memory_space<vmem>>, vector<1x4xf32>
    %227 = vector.broadcast %226 : vector<1x4xf32> to vector<4x4xf32>
    %228 = arith.addf %225, %227 : vector<4x4xf32>
    %c0_89 = arith.constant 0 : index
    %c0_90 = arith.constant 0 : index
    %c0_91 = arith.constant 0 : index
    %229 = vector.load %arg12[%c0_89, %c0_90, %c0_91] : memref<1x4x4xf32, #tpu.memory_space<vmem>>, vector<1x4x4xf32>
    %230 = vector.shape_cast %229 : vector<1x4x4xf32> to vector<4x4xf32>
    %231 = vector.shape_cast %228 : vector<4x4xf32> to vector<1x4x4xf32>
    tpu.vector_store %arg12[%c0_89, %c0_90, %c0_91], %231 {strides = array<i32>} : memref<1x4x4xf32, #tpu.memory_space<vmem>>, vector<1x4x4xf32>,
    return
  }
  func.func @transform_0(%arg0: i32) -> (i32, i32, i32) {
    %c0_i32 = arith.constant 0 : i32
    %c0_i32_0 = arith.constant 0 : i32
    %c0_i32_1 = arith.constant 0 : i32
    return %arg0, %c0_i32, %c0_i32_0 : i32, i32, i32
  }
  func.func @transform_1(%arg0: i32) -> (i32, i32) {
    %c0_i32 = arith.constant 0 : i32
    %c0_i32_0 = arith.constant 0 : i32
    %c0_i32_1 = arith.constant 0 : i32
    return %c0_i32, %c0_i32_0 : i32, i32
  }
  func.func @transform_2(%arg0: i32) -> (i32, i32, i32) {
    %c0_i32 = arith.constant 0 : i32
    %c0_i32_0 = arith.constant 0 : i32
    %c0_i32_1 = arith.constant 0 : i32
    %c0_i32_2 = arith.constant 0 : i32
    return %c0_i32, %c0_i32_0, %c0_i32_1 : i32, i32, i32
  }
  func.func @transform_3(%arg0: i32) -> (i32, i32, i32) {
    %c0_i32 = arith.constant 0 : i32
    %c0_i32_0 = arith.constant 0 : i32
    %c0_i32_1 = arith.constant 0 : i32
    %c0_i32_2 = arith.constant 0 : i32
    return %c0_i32, %c0_i32_0, %c0_i32_1 : i32, i32, i32
  }
  func.func @transform_4(%arg0: i32) -> (i32, i32, i32, i32) {
    %c0_i32 = arith.constant 0 : i32
    %c0_i32_0 = arith.constant 0 : i32
    %c0_i32_1 = arith.constant 0 : i32
    %c0_i32_2 = arith.constant 0 : i32
    %c0_i32_3 = arith.constant 0 : i32
    return %c0_i32, %c0_i32_0, %c0_i32_1, %c0_i32_2 : i32, i32, i32, i32
  }
  func.func @transform_5(%arg0: i32) -> (i32, i32, i32) {
    %c0_i32 = arith.constant 0 : i32
    %c0_i32_0 = arith.constant 0 : i32
    %c0_i32_1 = arith.constant 0 : i32
    %c0_i32_2 = arith.constant 0 : i32
    return %c0_i32, %c0_i32_0, %c0_i32_1 : i32, i32, i32
  }
  func.func @transform_6(%arg0: i32) -> (i32, i32, i32) {
    %c0_i32 = arith.constant 0 : i32
    %c0_i32_0 = arith.constant 0 : i32
    %c0_i32_1 = arith.constant 0 : i32
    %c0_i32_2 = arith.constant 0 : i32
    return %c0_i32, %c0_i32_0, %c0_i32_1 : i32, i32, i32
  }
  func.func @transform_7(%arg0: i32) -> (i32, i32, i32) {
    %c0_i32 = arith.constant 0 : i32
    %c0_i32_0 = arith.constant 0 : i32
    %c0_i32_1 = arith.constant 0 : i32
    %c0_i32_2 = arith.constant 0 : i32
    return %c0_i32, %c0_i32_0, %c0_i32_1 : i32, i32, i32
  }
  func.func @transform_8(%arg0: i32) -> (i32, i32) {
    %c0_i32 = arith.constant 0 : i32
    %c0_i32_0 = arith.constant 0 : i32
    %c0_i32_1 = arith.constant 0 : i32
    return %c0_i32, %c0_i32_0 : i32, i32
  }
  func.func @transform_9(%arg0: i32) -> (i32, i32) {
    %c0_i32 = arith.constant 0 : i32
    %c0_i32_0 = arith.constant 0 : i32
    %c0_i32_1 = arith.constant 0 : i32
    return %c0_i32, %c0_i32_0 : i32, i32
  }
  func.func @transform_10(%arg0: i32) -> (i32, i32) {
    %c0_i32 = arith.constant 0 : i32
    %c0_i32_0 = arith.constant 0 : i32
    %c0_i32_1 = arith.constant 0 : i32
    return %c0_i32, %c0_i32_0 : i32, i32
  }
  func.func @transform_11(%arg0: i32) -> (i32, i32, i32) {
    %c0_i32 = arith.constant 0 : i32
    %c0_i32_0 = arith.constant 0 : i32
    %c0_i32_1 = arith.constant 0 : i32
    return %arg0, %c0_i32, %c0_i32_0 : i32, i32, i32
  }
}

</mosaic_0001>

<llo_original>
// kernel: classical_transformer_forward.1
$region0: #{classical_transformer_forward.1}
  #allocation0 [shape = 'u32[]', space=smem, size = 0x4, offset = 0x4, fixed_abs, tag = 'smem constant byte address 0x4 - core index']
  #allocation1 [shape = 'u32[144,128]{1,0:T(1,128)}', space=vmem, size = 0x12000, scoped, tag = 'internal scratch']
  %s0 = inlined_call_operand.vmem [shape: f32[8,8,8], index: 0, kind: input, shape index: {}]
  %s1 = inlined_call_operand.vmem [shape: bf16[8,32], index: 1, kind: input, shape index: {}]
  %s2 = inlined_call_operand.vmem [shape: bf16[2,32,96], index: 2, kind: input, shape index: {}]
  %s3 = inlined_call_operand.vmem [shape: f32[2,1,96], index: 3, kind: input, shape index: {}]
  %s4 = inlined_call_operand.vmem [shape: bf16[2,4,8,32], index: 4, kind: input, shape index: {}]
  %s5 = inlined_call_operand.vmem [shape: bf16[2,32,2048], index: 5, kind: input, shape index: {}]
  %s6 = inlined_call_operand.vmem [shape: f32[2,1,2048], index: 6, kind: input, shape index: {}]
  %s7 = inlined_call_operand.vmem [shape: bf16[2,2048,32], index: 7, kind: input, shape index: {}]
  %s8 = inlined_call_operand.vmem [shape: f32[13,32], index: 8, kind: input, shape index: {}]
  %s9 = inlined_call_operand.vmem [shape: bf16[32,4], index: 9, kind: input, shape index: {}]
  %s10 = inlined_call_operand.vmem [shape: f32[1,4], index: 10, kind: input, shape index: {}]
  %s11 = inlined_call_operand.vmem [shape: f32[2,4,4], index: 11, kind: output, shape index: {}]
  %s12 = sld [smem:[#allocation0]]
  $region77: #{classical_transformer_forward.1} parent=0
    _
  %s14 = ssub.s32 1, %s12
  %s15 = scalar_select 0, %s14, %s12
  loop: start=0, step=1, limit=4
  $region2: #{classical_transformer_forward.1} parent=0 // loop_pre_header
    _
  $region3: #{classical_transformer_forward.1} parent=0 // loop_header
    %s17 = sphi 0, %s21
    %p18 = scmp.ge.s32.totalorder %s17, 4
    %s27 = sphi 0, %s29
    %s30 = sphi 0, %s27
    %s31 = sphi 0, %s30
    %s47 = sphi 0, %s31
    %s51 = sphi 0, %s51
    %s53 = sphi 0, %s51
    %s54 = sphi 0, %s53
    %s68 = sphi 0, %s54
    %s72 = sphi 0, %s72
    %s74 = sphi 0, %s72
    %s75 = sphi 0, %s74
    %s89 = sphi 0, %s75
    %s93 = sphi 0, %s93
    %s95 = sphi 0, %s93
    %s96 = sphi 0, %s95
    %s110 = sphi 0, %s96
    %s114 = sphi 0, %s114
    %s116 = sphi 0, %s114
    %s117 = sphi 0, %s116
    %s131 = sphi 0, %s117
    %s135 = sphi 0, %s135
    %s137 = sphi 0, %s135
    %s138 = sphi 0, %s137
    %s152 = sphi 0, %s138
    %s156 = sphi 0, %s156
    %s158 = sphi 0, %s156
    %s159 = sphi 0, %s158
    %s173 = sphi 0, %s159
    %s177 = sphi 0, %s177
    %s179 = sphi 0, %s177
    %s180 = sphi 0, %s179
    %s194 = sphi 0, %s180
    %s198 = sphi 0, %s198
    %s200 = sphi 0, %s198
    %s201 = sphi 0, %s200
    %s215 = sphi 0, %s201
    %s219 = sphi 0, %s219
    %s221 = sphi 0, %s219
    %s222 = sphi 0, %s221
    %s236 = sphi 0, %s222
    %s240 = sphi 0, %s240
    %s242 = sphi 0, %s240
    %s243 = sphi 0, %s242
    %s257 = sphi 0, %s243
    %s263 = sphi 0, %s265
    %s266 = sphi 0, %s263
    %s267 = sphi 0, %s266
    %s283 = sphi 0, %s267
  $region4: #{classical_transformer_forward.1} parent=0 // loop_header_branch
    %20 = sbr.rel (%p18) target = $region8
  $region5: #{classical_transformer_forward.1} parent=0 // loop_body
    %s22 = ssub.s32 %s17, 1
    %s23 = ssub.s32 %s17, 2
    %s24 = sadd.s32 %s17, 1
    %s25 = ssub.s32 %s17, %s24
    %p26 = scmp.eq.s32.totalorder %s25, 0
    %s28 = sadd.s32 %s27, 1
    %s29 = scalar_select %p26, %s27, %s28
    %p32 = pneg %p26
    %p33 = scmp.eq.s32.totalorder %s17, 1
    %p34 = por %p32, %p33
    %p35 = scmp.ne.s32.totalorder %s27, %s30
    %p36 = scmp.eq.s32.totalorder %s17, 0
    %p37 = por %p35, %p36
    %p38 = scmp.ne.s32.totalorder %s27, %s30
    %p39 = scmp.eq.s32.totalorder %s22, 1
    %p40 = por %p38, %p39
    %p41 = scmp.ne.s32.totalorder %s30, %s31
    %p42 = scmp.eq.s32.totalorder %s22, 0
    %p43 = por %p41, %p42
    %p44 = scmp.ne.s32.totalorder %s30, %s31
    %p45 = scmp.eq.s32.totalorder %s23, 1
    %p46 = por %p44, %p45
    %p48 = scmp.ne.s32.totalorder %s31, %s47
    %p49 = scmp.eq.s32.totalorder %s23, 0
    %p50 = por %p48, %p49
    %s52 = sadd.s32 %s51, 1
    %p55 = scmp.eq.s32.totalorder %s17, 1
    %p56 = scmp.ne.s32.totalorder %s51, %s53
    %p57 = scmp.eq.s32.totalorder %s17, 0
    %p58 = por %p56, %p57
    %p59 = scmp.ne.s32.totalorder %s51, %s53
    %p60 = scmp.eq.s32.totalorder %s22, 1
    %p61 = por %p59, %p60
    %p62 = scmp.ne.s32.totalorder %s53, %s54
    %p63 = scmp.eq.s32.totalorder %s22, 0
    %p64 = por %p62, %p63
    %p65 = scmp.ne.s32.totalorder %s53, %s54
    %p66 = scmp.eq.s32.totalorder %s23, 1
    %p67 = por %p65, %p66
    %p69 = scmp.ne.s32.totalorder %s54, %s68
    %p70 = scmp.eq.s32.totalorder %s23, 0
    %p71 = por %p69, %p70
    %s73 = sadd.s32 %s72, 1
    %p76 = scmp.eq.s32.totalorder %s17, 1
    %p77 = scmp.ne.s32.totalorder %s72, %s74
    %p78 = scmp.eq.s32.totalorder %s17, 0
    %p79 = por %p77, %p78
    %p80 = scmp.ne.s32.totalorder %s72, %s74
    %p81 = scmp.eq.s32.totalorder %s22, 1
    %p82 = por %p80, %p81
    %p83 = scmp.ne.s32.totalorder %s74, %s75
    %p84 = scmp.eq.s32.totalorder %s22, 0
    %p85 = por %p83, %p84
    %p86 = scmp.ne.s32.totalorder %s74, %s75
    %p87 = scmp.eq.s32.totalorder %s23, 1
    %p88 = por %p86, %p87
    %p90 = scmp.ne.s32.totalorder %s75, %s89
    %p91 = scmp.eq.s32.totalorder %s23, 0
    %p92 = por %p90, %p91
    %s94 = sadd.s32 %s93, 1
    %p97 = scmp.eq.s32.totalorder %s17, 1
    %p98 = scmp.ne.s32.totalorder %s93, %s95
    %p99 = scmp.eq.s32.totalorder %s17, 0
    %p100 = por %p98, %p99
    %p101 = scmp.ne.s32.totalorder %s93, %s95
    %p102 = scmp.eq.s32.totalorder %s22, 1
    %p103 = por %p101, %p102
    %p104 = scmp.ne.s32.totalorder %s95, %s96
    %p105 = scmp.eq.s32.totalorder %s22, 0
    %p106 = por %p104, %p105
    %p107 = scmp.ne.s32.totalorder %s95, %s96
    %p108 = scmp.eq.s32.totalorder %s23, 1
    %p109 = por %p107, %p108
    %p111 = scmp.ne.s32.totalorder %s96, %s110
    %p112 = scmp.eq.s32.totalorder %s23, 0
    %p113 = por %p111, %p112
    %s115 = sadd.s32 %s114, 1
    %p118 = scmp.eq.s32.totalorder %s17, 1
    %p119 = scmp.ne.s32.totalorder %s114, %s116
    %p120 = scmp.eq.s32.totalorder %s17, 0
    %p121 = por %p119, %p120
    %p122 = scmp.ne.s32.totalorder %s114, %s116
    %p123 = scmp.eq.s32.totalorder %s22, 1
    %p124 = por %p122, %p123
    %p125 = scmp.ne.s32.totalorder %s116, %s117
    %p126 = scmp.eq.s32.totalorder %s22, 0
    %p127 = por %p125, %p126
    %p128 = scmp.ne.s32.totalorder %s116, %s117
    %p129 = scmp.eq.s32.totalorder %s23, 1
    %p130 = por %p128, %p129
    %p132 = scmp.ne.s32.totalorder %s117, %s131
    %p133 = scmp.eq.s32.totalorder %s23, 0
    %p134 = por %p132, %p133
    %s136 = sadd.s32 %s135, 1
    %p139 = scmp.eq.s32.totalorder %s17, 1
    %p140 = scmp.ne.s32.totalorder %s135, %s137
    %p141 = scmp.eq.s32.totalorder %s17, 0
    %p142 = por %p140, %p141
    %p143 = scmp.ne.s32.totalorder %s135, %s137
    %p144 = scmp.eq.s32.totalorder %s22, 1
    %p145 = por %p143, %p144
    %p146 = scmp.ne.s32.totalorder %s137, %s138
    %p147 = scmp.eq.s32.totalorder %s22, 0
    %p148 = por %p146, %p147
    %p149 = scmp.ne.s32.totalorder %s137, %s138
    %p150 = scmp.eq.s32.totalorder %s23, 1
    %p151 = por %p149, %p150
    %p153 = scmp.ne.s32.totalorder %s138, %s152
    %p154 = scmp.eq.s32.totalorder %s23, 0
    %p155 = por %p153, %p154
    %s157 = sadd.s32 %s156, 1
    %p160 = scmp.eq.s32.totalorder %s17, 1
    %p161 = scmp.ne.s32.totalorder %s156, %s158
    %p162 = scmp.eq.s32.totalorder %s17, 0
    %p163 = por %p161, %p162
    %p164 = scmp.ne.s32.totalorder %s156, %s158
    %p165 = scmp.eq.s32.totalorder %s22, 1
    %p166 = por %p164, %p165
    %p167 = scmp.ne.s32.totalorder %s158, %s159
    %p168 = scmp.eq.s32.totalorder %s22, 0
    %p169 = por %p167, %p168
    %p170 = scmp.ne.s32.totalorder %s158, %s159
    %p171 = scmp.eq.s32.totalorder %s23, 1
    %p172 = por %p170, %p171
    %p174 = scmp.ne.s32.totalorder %s159, %s173
    %p175 = scmp.eq.s32.totalorder %s23, 0
    %p176 = por %p174, %p175
    %s178 = sadd.s32 %s177, 1
    %p181 = scmp.eq.s32.totalorder %s17, 1
    %p182 = scmp.ne.s32.totalorder %s177, %s179
    %p183 = scmp.eq.s32.totalorder %s17, 0
    %p184 = por %p182, %p183
    %p185 = scmp.ne.s32.totalorder %s177, %s179
    %p186 = scmp.eq.s32.totalorder %s22, 1
    %p187 = por %p185, %p186
    %p188 = scmp.ne.s32.totalorder %s179, %s180
    %p189 = scmp.eq.s32.totalorder %s22, 0
    %p190 = por %p188, %p189
    %p191 = scmp.ne.s32.totalorder %s179, %s180
    %p192 = scmp.eq.s32.totalorder %s23, 1
    %p193 = por %p191, %p192
    %p195 = scmp.ne.s32.totalorder %s180, %s194
    %p196 = scmp.eq.s32.totalorder %s23, 0
    %p197 = por %p195, %p196
    %s199 = sadd.s32 %s198, 1
    %p202 = scmp.eq.s32.totalorder %s17, 1
    %p203 = scmp.ne.s32.totalorder %s198, %s200
    %p204 = scmp.eq.s32.totalorder %s17, 0
    %p205 = por %p203, %p204
    %p206 = scmp.ne.s32.totalorder %s198, %s200
    %p207 = scmp.eq.s32.totalorder %s22, 1
    %p208 = por %p206, %p207
    %p209 = scmp.ne.s32.totalorder %s200, %s201
    %p210 = scmp.eq.s32.totalorder %s22, 0
    %p211 = por %p209, %p210
    %p212 = scmp.ne.s32.totalorder %s200, %s201
    %p213 = scmp.eq.s32.totalorder %s23, 1
    %p214 = por %p212, %p213
    %p216 = scmp.ne.s32.totalorder %s201, %s215
    %p217 = scmp.eq.s32.totalorder %s23, 0
    %p218 = por %p216, %p217
    %s220 = sadd.s32 %s219, 1
    %p223 = scmp.eq.s32.totalorder %s17, 1
    %p224 = scmp.ne.s32.totalorder %s219, %s221
    %p225 = scmp.eq.s32.totalorder %s17, 0
    %p226 = por %p224, %p225
    %p227 = scmp.ne.s32.totalorder %s219, %s221
    %p228 = scmp.eq.s32.totalorder %s22, 1
    %p229 = por %p227, %p228
    %p230 = scmp.ne.s32.totalorder %s221, %s222
    %p231 = scmp.eq.s32.totalorder %s22, 0
    %p232 = por %p230, %p231
    %p233 = scmp.ne.s32.totalorder %s221, %s222
    %p234 = scmp.eq.s32.totalorder %s23, 1
    %p235 = por %p233, %p234
    %p237 = scmp.ne.s32.totalorder %s222, %s236
    %p238 = scmp.eq.s32.totalorder %s23, 0
    %p239 = por %p237, %p238
    %s241 = sadd.s32 %s240, 1
    %p244 = scmp.eq.s32.totalorder %s17, 1
    %p245 = scmp.ne.s32.totalorder %s240, %s242
    %p246 = scmp.eq.s32.totalorder %s17, 0
    %p247 = por %p245, %p246
    %p248 = scmp.ne.s32.totalorder %s240, %s242
    %p249 = scmp.eq.s32.totalorder %s22, 1
    %p250 = por %p248, %p249
    %p251 = scmp.ne.s32.totalorder %s242, %s243
    %p252 = scmp.eq.s32.totalorder %s22, 0
    %p253 = por %p251, %p252
    %p254 = scmp.ne.s32.totalorder %s242, %s243
    %p255 = scmp.eq.s32.totalorder %s23, 1
    %p256 = por %p254, %p255
    %p258 = scmp.ne.s32.totalorder %s243, %s257
    %p259 = scmp.eq.s32.totalorder %s23, 0
    %p260 = por %p258, %p259
    %s261 = ssub.s32 %s17, %s24
    %p262 = scmp.eq.s32.totalorder %s261, 0
    %s264 = sadd.s32 %s263, 1
    %s265 = scalar_select %p262, %s263, %s264
    %p268 = pneg %p262
    %p269 = scmp.eq.s32.totalorder %s17, 1
    %p270 = por %p268, %p269
    %p271 = scmp.ne.s32.totalorder %s263, %s266
    %p272 = scmp.eq.s32.totalorder %s17, 0
    %p273 = por %p271, %p272
    %p274 = scmp.ne.s32.totalorder %s263, %s266
    %p275 = scmp.eq.s32.totalorder %s22, 1
    %p276 = por %p274, %p275
    %p277 = scmp.ne.s32.totalorder %s266, %s267
    %p278 = scmp.eq.s32.totalorder %s22, 0
    %p279 = por %p277, %p278
    %p280 = scmp.ne.s32.totalorder %s266, %s267
    %p281 = scmp.eq.s32.totalorder %s23, 1
    %p282 = por %p280, %p281
    %p284 = scmp.ne.s32.totalorder %s267, %s283
    %p285 = scmp.eq.s32.totalorder %s23, 0
    %p286 = por %p284, %p285
    %p287 = scmp.le.s32.totalorder 1, %s17
    %p288 = scmp.lt.s32.totalorder %s17, 3
    %p289 = pnand %p287, %p288
    %p290 = pneg %p289
    // Predicated region
    $region9: #{classical_transformer_forward.1} parent=5 // pred_check
      _
    $region10: #{classical_transformer_forward.1} parent=5 // pred_check_branch
      %292 = sbr.rel (%p289) target = $region12
    $region11: #{classical_transformer_forward.1} parent=5 // pred_region
      %s293 = ssub.s32 %s17, 1
      // Predicated region
      $region13: #{classical_transformer_forward.1} parent=11 // pred_check
        %p294 = pneg %p64
      $region14: #{classical_transformer_forward.1} parent=11 // pred_check_branch
        %296 = sbr.rel (%p294) target = $region16
      $region15: #{classical_transformer_forward.1} parent=11 // pred_region
        _
      $region16: #{classical_transformer_forward.1} parent=11 // pred_fallthru
        _
      // Predicated region
      $region17: #{classical_transformer_forward.1} parent=11 // pred_check
        %p297 = pneg %p85
      $region18: #{classical_transformer_forward.1} parent=11 // pred_check_branch
        %299 = sbr.rel (%p297) target = $region20
      $region19: #{classical_transformer_forward.1} parent=11 // pred_region
        _
      $region20: #{classical_transformer_forward.1} parent=11 // pred_fallthru
        _
      // Predicated region
      $region21: #{classical_transformer_forward.1} parent=11 // pred_check
        %p300 = pneg %p106
      $region22: #{classical_transformer_forward.1} parent=11 // pred_check_branch
        %302 = sbr.rel (%p300) target = $region24
      $region23: #{classical_transformer_forward.1} parent=11 // pred_region
        _
      $region24: #{classical_transformer_forward.1} parent=11 // pred_fallthru
        _
      // Predicated region
      $region25: #{classical_transformer_forward.1} parent=11 // pred_check
        %p303 = pneg %p127
      $region26: #{classical_transformer_forward.1} parent=11 // pred_check_branch
        %305 = sbr.rel (%p303) target = $region28
      $region27: #{classical_transformer_forward.1} parent=11 // pred_region
        _
      $region28: #{classical_transformer_forward.1} parent=11 // pred_fallthru
        _
      // Predicated region
      $region29: #{classical_transformer_forward.1} parent=11 // pred_check
        %p306 = pneg %p148
      $region30: #{classical_transformer_forward.1} parent=11 // pred_check_branch
        %308 = sbr.rel (%p306) target = $region32
      $region31: #{classical_transformer_forward.1} parent=11 // pred_region
        _
      $region32: #{classical_transformer_forward.1} parent=11 // pred_fallthru
        _
      // Predicated region
      $region33: #{classical_transformer_forward.1} parent=11 // pred_check
        %p309 = pneg %p169
      $region34: #{classical_transformer_forward.1} parent=11 // pred_check_branch
        %311 = sbr.rel (%p309) target = $region36
      $region35: #{classical_transformer_forward.1} parent=11 // pred_region
        _
      $region36: #{classical_transformer_forward.1} parent=11 // pred_fallthru
        _
      // Predicated region
      $region37: #{classical_transformer_forward.1} parent=11 // pred_check
        %p312 = pneg %p190
      $region38: #{classical_transformer_forward.1} parent=11 // pred_check_branch
        %314 = sbr.rel (%p312) target = $region40
      $region39: #{classical_transformer_forward.1} parent=11 // pred_region
        _
      $region40: #{classical_transformer_forward.1} parent=11 // pred_fallthru
        _
      // Predicated region
      $region41: #{classical_transformer_forward.1} parent=11 // pred_check
        %p315 = pneg %p211
      $region42: #{classical_transformer_forward.1} parent=11 // pred_check_branch
        %317 = sbr.rel (%p315) target = $region44
      $region43: #{classical_transformer_forward.1} parent=11 // pred_region
        _
      $region44: #{classical_transformer_forward.1} parent=11 // pred_fallthru
        _
      // Predicated region
      $region45: #{classical_transformer_forward.1} parent=11 // pred_check
        %p318 = pneg %p232
      $region46: #{classical_transformer_forward.1} parent=11 // pred_check_branch
        %320 = sbr.rel (%p318) target = $region48
      $region47: #{classical_transformer_forward.1} parent=11 // pred_region
        _
      $region48: #{classical_transformer_forward.1} parent=11 // pred_fallthru
        _
      // Predicated region
      $region49: #{classical_transformer_forward.1} parent=11 // pred_check
        %p321 = pneg %p253
      $region50: #{classical_transformer_forward.1} parent=11 // pred_check_branch
        %323 = sbr.rel (%p321) target = $region52
      $region51: #{classical_transformer_forward.1} parent=11 // pred_region
        _
      $region52: #{classical_transformer_forward.1} parent=11 // pred_fallthru
        _
    $region12: #{classical_transformer_forward.1} parent=5 // pred_fallthru
      _
    %p324 = scmp.lt.s32.totalorder %s17, 2
    // Predicated region
    $region53: #{classical_transformer_forward.1} parent=5 // pred_check
      %p325 = pneg %p324
    $region54: #{classical_transformer_forward.1} parent=5 // pred_check_branch
      %327 = sbr.rel (%p325) target = $region56
    $region55: #{classical_transformer_forward.1} parent=5 // pred_region
      // Predicated region
      $region57: #{classical_transformer_forward.1} parent=55 // pred_check
        %p328 = pneg %p37
      $region58: #{classical_transformer_forward.1} parent=55 // pred_check_branch
        %330 = sbr.rel (%p328) target = $region60
      $region59: #{classical_transformer_forward.1} parent=55 // pred_region
        %s331 = smul.u32 4, %s17
        %p332 = scmp.lt.s32.totalorder %s331, 7
        %s333 = scalar_select %p332, %s331, 7
        %s334 = smul.addr %s333, 8
        %s335 = scalar_lea.vmem %s0, %s334
        %s336 = smul.u32 4, %s17
      $region60: #{classical_transformer_forward.1} parent=55 // pred_fallthru
        _
    $region56: #{classical_transformer_forward.1} parent=5 // pred_fallthru
      _
    %p337 = scmp.le.s32.totalorder 1, %s17
    %p338 = scmp.lt.s32.totalorder %s17, 3
    %p339 = pnand %p337, %p338
    %p340 = pneg %p339
    // Predicated region
    $region61: #{classical_transformer_forward.1} parent=5 // pred_check
      _
    $region62: #{classical_transformer_forward.1} parent=5 // pred_check_branch
      %342 = sbr.rel (%p339) target = $region64
    $region63: #{classical_transformer_forward.1} parent=5 // pred_region
      %s343 = ssub.s32 %s17, 1
      %s344 = smul.u32 4, %s22
      %p345 = scmp.lt.s32.totalorder %s344, 7
      %s346 = scalar_select %p345, %s344, 7
      %s347 = smul.addr %s346, 8
      %s348 = scalar_lea.vmem %s0, %s347
      %p349 = pneg %p43
      %p350 = pneg %p40
      %p351 = pneg %p64
      %p352 = pneg %p61
      %p353 = pneg %p85
      %p354 = pneg %p82
      %p355 = pneg %p106
      %p356 = pneg %p103
      %p357 = pneg %p127
      %p358 = pneg %p124
      %p359 = pneg %p148
      %p360 = pneg %p145
      %p361 = pneg %p169
      %p362 = pneg %p166
      %p363 = pneg %p190
      %p364 = pneg %p187
      %p365 = pneg %p211
      %p366 = pneg %p208
      %p367 = pneg %p232
      %p368 = pneg %p229
      %p369 = pneg %p253
      %p370 = pneg %p250
      %p371 = pneg %p279
      %p372 = pneg %p276
      %p373 = scmp.lt.s32.totalorder %s22, 1
      %s374 = scalar_select %p373, %s22, 1
      %s375 = smul.addr %s374, 4
      %s376 = scalar_lea.vmem %s11, %s375
      %s377 = smul.u32 4, %s22
      %p378 = scmp.lt.s32.totalorder %s377, 7
      %s379 = scalar_select %p378, %s377, 7
      %s380 = smul.addr %s379, 8
      %s381 = scalar_lea.vmem %s0, %s380
      %s382 = smul.u32 4, %s22
      %p383 = scmp.lt.s32.totalorder %s22, 1
      %s384 = scalar_select %p383, %s22, 1
      %s385 = smul.addr %s384, 4
      %s386 = scalar_lea.vmem %s11, %s385
      %v388 = vld [vmem:[%s381] sm:$0xff]
      %v389 = vld [vmem:[%s381 + $0x8] sm:$0xff]
      %v390 = vld [vmem:[%s381 + $0x10] sm:$0xff]
      %v391 = vld [vmem:[%s381 + $0x18] sm:$0xff]
      %v392 = vld [vmem:[%s8] sm:$0xff]
      %v393 = vld [vmem:[%s8 + $0x8] sm:$0x1f]
      %v394 = vpack.c.bf16 %v389, %v388
      %v395 = vpack.c.bf16 %v391, %v390
      %v396 = vld [vmem:[%s1] sm:$0xf]
      %v397 = vlaneseq
      %v398 = vshrl.u32 %v397, 7
      %v399 = vsub.s32 0, %v398
      %v400 = vrot.slane %v392, %v399
      %vm401 = vcmask 64512
      %v403 = vsel %vm401, %v394, 0
      %v406 = vsel %vm401, %v395, 0
      %vm408 = vcmask 1043456
      %v410 = vsel %vm408, %v396, 0
      %412 = vmatprep.subr.bf16.mxu0 0
      %413 = vmatpush1.bf16.msra.mxu0 %v410
      %414 = vmatprep.subr.bf16.mxu0 0
      %415 = vmatpush1.bf16.msra.mxu0 0
      %416 = vmatprep.subr.bf16.mxu0 0
      %417 = vmatpush1.bf16.msra.mxu0 0
      %418 = vmatprep.subr.bf16.mxu0 0
      %419 = vmatpush1.bf16.msra.mxu0 0
      %420 = vmatprep.subr.bf16.mxu0 0
      %421 = vmatpush1.bf16.msra.mxu0 0
      %422 = vmatprep.subr.bf16.mxu0 0
      %423 = vmatpush1.bf16.msra.mxu0 0
      %424 = vmatprep.subr.bf16.mxu0 0
      %425 = vmatpush1.bf16.msra.mxu0 0
      %426 = vmatprep.subr.bf16.mxu0 0
      %427 = vmatpush1.bf16.msra.mxu0 0
      %428 = vmatprep.subr.bf16.mxu0 0
      %429 = vmatpush1.bf16.msra.mxu0 0
      %430 = vmatprep.subr.bf16.mxu0 0
      %431 = vmatpush1.bf16.msra.mxu0 0
      %432 = vmatprep.subr.bf16.mxu0 0
      %433 = vmatpush1.bf16.msra.mxu0 0
      %434 = vmatprep.subr.bf16.mxu0 0
      %435 = vmatpush1.bf16.msra.mxu0 0
      %436 = vmatprep.subr.bf16.mxu0 0
      %437 = vmatpush1.bf16.msra.mxu0 0
      %438 = vmatprep.subr.bf16.mxu0 0
      %439 = vmatpush1.bf16.msra.mxu0 0
      %440 = vmatprep.subr.bf16.mxu0 0
      %441 = vmatpush1.bf16.msra.mxu0 0
      %442 = vmatprep.subr.bf16.mxu0 0
      %443 = vmatpush1.bf16.msra.mxu0 0
      %444 = vmatprep.mubr.bf16.mxu0 0
      %445 = vmatmul.mubr.bf16.gmra.mrb[0].mxu0 %v403
      %v446 = vpop.f32.mrb[0].mxu0
      %v447 = vadd.f32 %v400, %v446
      %v448 = vpop.f32.mrb[0].mxu0
      %v449 = vpop.f32.mrb[0].mxu0
      %v450 = vadd.f32 %v400, %v449
      %v451 = vpop.f32.mrb[0].mxu0
      %452 = vmatprep.mubr.bf16.mxu0 0
      %453 = vmatmul.mubr.bf16.gmra.mrb[0].mxu0 %v406
      %v454 = vpop.f32.mrb[0].mxu0
      %v455 = vadd.f32 %v400, %v454
      %v456 = vpop.f32.mrb[0].mxu0
      %v457 = vpop.f32.mrb[0].mxu0
      %v458 = vadd.f32 %v400, %v457
      %v459 = vpop.f32.mrb[0].mxu0
      %460 = vdwg.mxu0
      %v461 = vpack.c.bf16 %v450, %v447
      %v462 = vpack.c.bf16 %v458, %v455
      %v463 = vld [vmem:[%s2] sm:$0xf]
      %v464 = vld [vmem:[%s2 + $0x4] sm:$0xf]
      %v465 = vld [vmem:[%s2 + $0x8] sm:$0xf]
      %v466 = vld [vmem:[%s2 + $0xc] sm:$0xf]
      %v467 = vld [vmem:[%s3] sm:$0x1]
      %v469 = vlaneseq
      %v470 = vshrl.u32 %v469, 7
      %v471 = vsub.s32 0, %v470
      %v472 = vrot.slane %v467, %v471
      %v478 = vunpack.c.l.b16 %v463
      %v479 = vunpack.c.l.b16 %v464
      %v480 = vunpack.c.l.b16 %v465
      %v481 = vunpack.c.l.b16 %v466
      %v482 = vpack.c.b16 %v479, %v478
      %v483 = vpack.c.b16 %v481, %v480
      %vm486 = vcmask 261120
      %v488 = vsel %vm486, %v461, 0
      %v491 = vsel %vm486, %v462, 0
      %493 = vmatprep.subr.bf16.mxu0 0
      %494 = vmatpush1.bf16.msra.mxu0 %v482
      %495 = vmatprep.subr.bf16.mxu0 0
      %496 = vmatpush1.bf16.msra.mxu0 %v483
      %497 = vmatprep.subr.bf16.mxu0 0
      %498 = vmatpush1.bf16.msra.mxu0 0
      %499 = vmatprep.subr.bf16.mxu0 0
      %500 = vmatpush1.bf16.msra.mxu0 0
      %501 = vmatprep.subr.bf16.mxu0 0
      %502 = vmatpush1.bf16.msra.mxu0 0
      %503 = vmatprep.subr.bf16.mxu0 0
      %504 = vmatpush1.bf16.msra.mxu0 0
      %505 = vmatprep.subr.bf16.mxu0 0
      %506 = vmatpush1.bf16.msra.mxu0 0
      %507 = vmatprep.subr.bf16.mxu0 0
      %508 = vmatpush1.bf16.msra.mxu0 0
      %509 = vmatprep.subr.bf16.mxu0 0
      %510 = vmatpush1.bf16.msra.mxu0 0
      %511 = vmatprep.subr.bf16.mxu0 0
      %512 = vmatpush1.bf16.msra.mxu0 0
      %513 = vmatprep.subr.bf16.mxu0 0
      %514 = vmatpush1.bf16.msra.mxu0 0
      %515 = vmatprep.subr.bf16.mxu0 0
      %516 = vmatpush1.bf16.msra.mxu0 0
      %517 = vmatprep.subr.bf16.mxu0 0
      %518 = vmatpush1.bf16.msra.mxu0 0
      %519 = vmatprep.subr.bf16.mxu0 0
      %520 = vmatpush1.bf16.msra.mxu0 0
      %521 = vmatprep.subr.bf16.mxu0 0
      %522 = vmatpush1.bf16.msra.mxu0 0
      %523 = vmatprep.subr.bf16.mxu0 0
      %524 = vmatpush1.bf16.msra.mxu0 0
      %525 = vmatprep.mubr.bf16.mxu0 0
      %526 = vmatmul.mubr.bf16.gmra.mrb[0].mxu0 %v488
      %v527 = vpop.f32.mrb[0].mxu0
      %v528 = vadd.f32 %v472, %v527
      %v529 = vpop.f32.mrb[0].mxu0
      %v530 = vpop.f32.mrb[0].mxu0
      %v531 = vadd.f32 %v472, %v530
      %v532 = vpop.f32.mrb[0].mxu0
      %533 = vmatprep.mubr.bf16.mxu0 0
      %534 = vmatmul.mubr.bf16.gmra.mrb[0].mxu0 %v491
      %v535 = vpop.f32.mrb[0].mxu0
      %v536 = vadd.f32 %v472, %v535
      %v537 = vpop.f32.mrb[0].mxu0
      %v538 = vpop.f32.mrb[0].mxu0
      %v539 = vadd.f32 %v472, %v538
      %v540 = vpop.f32.mrb[0].mxu0
      %541 = vdwg.mxu0
      %v542 = vpack.c.bf16 %v531, %v528
      %v543 = vpack.c.bf16 %v539, %v536
      %546 = vrot.lane.b32.xlu0 %v542, 120
      %v547 = vpop.permute.xlu0 %546
      %548 = vrot.lane.b32.xlu0 %v543, 120
      %v549 = vpop.permute.xlu0 %548
      %550 = vrot.lane.b32.xlu0 %v542, 112
      %v551 = vpop.permute.xlu0 %550
      %552 = vrot.lane.b32.xlu0 %v543, 112
      %v553 = vpop.permute.xlu0 %552
      %554 = vrot.lane.b32.xlu0 %v542, 104
      %v555 = vpop.permute.xlu0 %554
      %556 = vrot.lane.b32.xlu0 %v543, 104
      %v557 = vpop.permute.xlu0 %556
      %558 = vrot.lane.b32.xlu0 %v542, 96
      %v559 = vpop.permute.xlu0 %558
      %560 = vrot.lane.b32.xlu0 %v543, 96
      %v561 = vpop.permute.xlu0 %560
      %562 = vrot.lane.b32.xlu0 %v542, 88
      %v563 = vpop.permute.xlu0 %562
      %564 = vrot.lane.b32.xlu0 %v543, 88
      %v565 = vpop.permute.xlu0 %564
      %566 = vrot.lane.b32.xlu0 %v542, 80
      %v567 = vpop.permute.xlu0 %566
      %568 = vrot.lane.b32.xlu0 %v543, 80
      %v569 = vpop.permute.xlu0 %568
      %570 = vrot.lane.b32.xlu0 %v542, 72
      %v571 = vpop.permute.xlu0 %570
      %572 = vrot.lane.b32.xlu0 %v543, 72
      %v573 = vpop.permute.xlu0 %572
      %574 = vrot.lane.b32.xlu0 %v542, 64
      %v575 = vpop.permute.xlu0 %574
      %576 = vrot.lane.b32.xlu0 %v543, 64
      %v577 = vpop.permute.xlu0 %576
      %578 = vrot.lane.b32.xlu0 %v542, 56
      %v579 = vpop.permute.xlu0 %578
      %580 = vrot.lane.b32.xlu0 %v543, 56
      %v581 = vpop.permute.xlu0 %580
      %582 = vrot.lane.b32.xlu0 %v542, 48
      %v583 = vpop.permute.xlu0 %582
      %584 = vrot.lane.b32.xlu0 %v543, 48
      %v585 = vpop.permute.xlu0 %584
      %586 = vrot.lane.b32.xlu0 %v542, 40
      %v587 = vpop.permute.xlu0 %586
      %588 = vrot.lane.b32.xlu0 %v543, 40
      %v589 = vpop.permute.xlu0 %588
      %v592 = vpack.i.b16 %v547, %v542
      %v594 = vshrl.u32 %v542, 16
      %v595 = vshrl.u32 %v547, 16
      %v596 = vpack.i.b16 %v595, %v594
      %v600 = vpack.i.b16 %v555, %v551
      %v602 = vshrl.u32 %v551, 16
      %v603 = vshrl.u32 %v555, 16
      %v604 = vpack.i.b16 %v603, %v602
      %v608 = vpack.i.b16 %v563, %v559
      %v610 = vshrl.u32 %v559, 16
      %v611 = vshrl.u32 %v563, 16
      %v612 = vpack.i.b16 %v611, %v610
      %v616 = vpack.i.b16 %v571, %v567
      %v618 = vshrl.u32 %v567, 16
      %v619 = vshrl.u32 %v571, 16
      %v620 = vpack.i.b16 %v619, %v618
      %v624 = vpack.i.b16 %v579, %v575
      %v626 = vshrl.u32 %v575, 16
      %v627 = vshrl.u32 %v579, 16
      %v628 = vpack.i.b16 %v627, %v626
      %v632 = vpack.i.b16 %v587, %v583
      %v634 = vshrl.u32 %v583, 16
      %v635 = vshrl.u32 %v587, 16
      %v636 = vpack.i.b16 %v635, %v634
      %v639 = vpack.i.b16 0, 0
      %v641 = vshrl.u32 0, 16
      %v642 = vpack.i.b16 %v641, %v641
      %v646 = vpack.i.b16 %v549, %v543
      %v648 = vshrl.u32 %v543, 16
      %v649 = vshrl.u32 %v549, 16
      %v650 = vpack.i.b16 %v649, %v648
      %v654 = vpack.i.b16 %v557, %v553
      %v656 = vshrl.u32 %v553, 16
      %v657 = vshrl.u32 %v557, 16
      %v658 = vpack.i.b16 %v657, %v656
      %v662 = vpack.i.b16 %v565, %v561
      %v664 = vshrl.u32 %v561, 16
      %v665 = vshrl.u32 %v565, 16
      %v666 = vpack.i.b16 %v665, %v664
      %v670 = vpack.i.b16 %v573, %v569
      %v672 = vshrl.u32 %v569, 16
      %v673 = vshrl.u32 %v573, 16
      %v674 = vpack.i.b16 %v673, %v672
      %v678 = vpack.i.b16 %v581, %v577
      %v680 = vshrl.u32 %v577, 16
      %v681 = vshrl.u32 %v581, 16
      %v682 = vpack.i.b16 %v681, %v680
      %v686 = vpack.i.b16 %v589, %v585
      %v688 = vshrl.u32 %v585, 16
      %v689 = vshrl.u32 %v589, 16
      %v690 = vpack.i.b16 %v689, %v688
      %v692 = vcombine.low %v592, %v608
      %v693 = vcombine.high %v592, %v608
      %v695 = vunpack.c.l.s4 1983009808
      %v696 = vunpack.c.0.s8 %v695
      %v697 = vlaneseq
      %v698 = vshrl.u32 %v697, 7
      %v699 = vsub.s32 %v696, %v698
      %v700 = vrot.slane %v692, %v699
      %v702 = vunpack.c.l.s4 1983009808
      %v703 = vunpack.c.0.s8 %v702
      %v704 = vlaneseq
      %v705 = vshrl.u32 %v704, 7
      %v706 = vsub.s32 %v703, %v705
      %v707 = vrot.slane %v693, %v706
      %v708 = vcombine.low %v600, %v616
      %v709 = vcombine.high %v600, %v616
      %v711 = vunpack.c.l.s4 1983009808
      %v712 = vunpack.c.0.s8 %v711
      %v713 = vlaneseq
      %v714 = vshrl.u32 %v713, 7
      %v715 = vsub.s32 %v712, %v714
      %v716 = vrot.slane %v708, %v715
      %v718 = vunpack.c.l.s4 1983009808
      %v719 = vunpack.c.0.s8 %v718
      %v720 = vlaneseq
      %v721 = vshrl.u32 %v720, 7
      %v722 = vsub.s32 %v719, %v721
      %v723 = vrot.slane %v709, %v722
      %v724 = vcombine.high %v624, %v639
      %v726 = vunpack.c.l.s4 1983009808
      %v727 = vunpack.c.0.s8 %v726
      %v728 = vlaneseq
      %v729 = vshrl.u32 %v728, 7
      %v730 = vsub.s32 %v727, %v729
      %v731 = vrot.slane %v624, %v730
      %v733 = vunpack.c.l.s4 1983009808
      %v734 = vunpack.c.0.s8 %v733
      %v735 = vlaneseq
      %v736 = vshrl.u32 %v735, 7
      %v737 = vsub.s32 %v734, %v736
      %v738 = vrot.slane %v724, %v737
      %v739 = vcombine.high %v632, %v639
      %v741 = vunpack.c.l.s4 1983009808
      %v742 = vunpack.c.0.s8 %v741
      %v743 = vlaneseq
      %v744 = vshrl.u32 %v743, 7
      %v745 = vsub.s32 %v742, %v744
      %v746 = vrot.slane %v632, %v745
      %v748 = vunpack.c.l.s4 1983009808
      %v749 = vunpack.c.0.s8 %v748
      %v750 = vlaneseq
      %v751 = vshrl.u32 %v750, 7
      %v752 = vsub.s32 %v749, %v751
      %v753 = vrot.slane %v739, %v752
      %v754 = vcombine.low %v700, %v716
      %v755 = vcombine.high %v700, %v716
      %v757 = vunpack.c.l.s4 1934713408
      %v758 = vunpack.c.0.s8 %v757
      %v759 = vlaneseq
      %v760 = vshrl.u32 %v759, 7
      %v761 = vsub.s32 %v758, %v760
      %v762 = vrot.slane %v754, %v761
      %v764 = vunpack.c.l.s4 1934713408
      %v765 = vunpack.c.0.s8 %v764
      %v766 = vlaneseq
      %v767 = vshrl.u32 %v766, 7
      %v768 = vsub.s32 %v765, %v767
      %v769 = vrot.slane %v755, %v768
      %v770 = vcombine.low %v707, %v723
      %v771 = vcombine.high %v707, %v723
      %v773 = vunpack.c.l.s4 1934713408
      %v774 = vunpack.c.0.s8 %v773
      %v775 = vlaneseq
      %v776 = vshrl.u32 %v775, 7
      %v777 = vsub.s32 %v774, %v776
      %v778 = vrot.slane %v770, %v777
      %v780 = vunpack.c.l.s4 1934713408
      %v781 = vunpack.c.0.s8 %v780
      %v782 = vlaneseq
      %v783 = vshrl.u32 %v782, 7
      %v784 = vsub.s32 %v781, %v783
      %v785 = vrot.slane %v771, %v784
      %v786 = vcombine.low %v731, %v746
      %v787 = vcombine.high %v731, %v746
      %v789 = vunpack.c.l.s4 1934713408
      %v790 = vunpack.c.0.s8 %v789
      %v791 = vlaneseq
      %v792 = vshrl.u32 %v791, 7
      %v793 = vsub.s32 %v790, %v792
      %v794 = vrot.slane %v786, %v793
      %v796 = vunpack.c.l.s4 1934713408
      %v797 = vunpack.c.0.s8 %v796
      %v798 = vlaneseq
      %v799 = vshrl.u32 %v798, 7
      %v800 = vsub.s32 %v797, %v799
      %v801 = vrot.slane %v787, %v800
      %v802 = vcombine.low %v738, %v753
      %v803 = vcombine.high %v738, %v753
      %v805 = vunpack.c.l.s4 1934713408
      %v806 = vunpack.c.0.s8 %v805
      %v807 = vlaneseq
      %v808 = vshrl.u32 %v807, 7
      %v809 = vsub.s32 %v806, %v808
      %v810 = vrot.slane %v802, %v809
      %v812 = vunpack.c.l.s4 1934713408
      %v813 = vunpack.c.0.s8 %v812
      %v814 = vlaneseq
      %v815 = vshrl.u32 %v814, 7
      %v816 = vsub.s32 %v813, %v815
      %v817 = vrot.slane %v803, %v816
      %v818 = vcombine.low %v762, %v794
      %v819 = vcombine.high %v762, %v794
      %v820 = vcombine.low %v769, %v801
      %v821 = vcombine.high %v769, %v801
      %v822 = vcombine.low %v778, %v810
      %v823 = vcombine.high %v778, %v810
      %v824 = vcombine.low %v785, %v817
      %v825 = vcombine.high %v785, %v817
      %v826 = vcombine.low %v596, %v612
      %v827 = vcombine.high %v596, %v612
      %v829 = vunpack.c.l.s4 1983009808
      %v830 = vunpack.c.0.s8 %v829
      %v831 = vlaneseq
      %v832 = vshrl.u32 %v831, 7
      %v833 = vsub.s32 %v830, %v832
      %v834 = vrot.slane %v826, %v833
      %v836 = vunpack.c.l.s4 1983009808
      %v837 = vunpack.c.0.s8 %v836
      %v838 = vlaneseq
      %v839 = vshrl.u32 %v838, 7
      %v840 = vsub.s32 %v837, %v839
      %v841 = vrot.slane %v827, %v840
      %v842 = vcombine.low %v604, %v620
      %v843 = vcombine.high %v604, %v620
      %v845 = vunpack.c.l.s4 1983009808
      %v846 = vunpack.c.0.s8 %v845
      %v847 = vlaneseq
      %v848 = vshrl.u32 %v847, 7
      %v849 = vsub.s32 %v846, %v848
      %v850 = vrot.slane %v842, %v849
      %v852 = vunpack.c.l.s4 1983009808
      %v853 = vunpack.c.0.s8 %v852
      %v854 = vlaneseq
      %v855 = vshrl.u32 %v854, 7
      %v856 = vsub.s32 %v853, %v855
      %v857 = vrot.slane %v843, %v856
      %v858 = vcombine.high %v628, %v642
      %v860 = vunpack.c.l.s4 1983009808
      %v861 = vunpack.c.0.s8 %v860
      %v862 = vlaneseq
      %v863 = vshrl.u32 %v862, 7
      %v864 = vsub.s32 %v861, %v863
      %v865 = vrot.slane %v628, %v864
      %v867 = vunpack.c.l.s4 1983009808
      %v868 = vunpack.c.0.s8 %v867
      %v869 = vlaneseq
      %v870 = vshrl.u32 %v869, 7
      %v871 = vsub.s32 %v868, %v870
      %v872 = vrot.slane %v858, %v871
      %v873 = vcombine.high %v636, %v642
      %v875 = vunpack.c.l.s4 1983009808
      %v876 = vunpack.c.0.s8 %v875
      %v877 = vlaneseq
      %v878 = vshrl.u32 %v877, 7
      %v879 = vsub.s32 %v876, %v878
      %v880 = vrot.slane %v636, %v879
      %v882 = vunpack.c.l.s4 1983009808
      %v883 = vunpack.c.0.s8 %v882
      %v884 = vlaneseq
      %v885 = vshrl.u32 %v884, 7
      %v886 = vsub.s32 %v883, %v885
      %v887 = vrot.slane %v873, %v886
      %v888 = vcombine.low %v834, %v850
      %v889 = vcombine.high %v834, %v850
      %v891 = vunpack.c.l.s4 1934713408
      %v892 = vunpack.c.0.s8 %v891
      %v893 = vlaneseq
      %v894 = vshrl.u32 %v893, 7
      %v895 = vsub.s32 %v892, %v894
      %v896 = vrot.slane %v888, %v895
      %v898 = vunpack.c.l.s4 1934713408
      %v899 = vunpack.c.0.s8 %v898
      %v900 = vlaneseq
      %v901 = vshrl.u32 %v900, 7
      %v902 = vsub.s32 %v899, %v901
      %v903 = vrot.slane %v889, %v902
      %v904 = vcombine.low %v841, %v857
      %v905 = vcombine.high %v841, %v857
      %v907 = vunpack.c.l.s4 1934713408
      %v908 = vunpack.c.0.s8 %v907
      %v909 = vlaneseq
      %v910 = vshrl.u32 %v909, 7
      %v911 = vsub.s32 %v908, %v910
      %v912 = vrot.slane %v904, %v911
      %v914 = vunpack.c.l.s4 1934713408
      %v915 = vunpack.c.0.s8 %v914
      %v916 = vlaneseq
      %v917 = vshrl.u32 %v916, 7
      %v918 = vsub.s32 %v915, %v917
      %v919 = vrot.slane %v905, %v918
      %v920 = vcombine.low %v865, %v880
      %v921 = vcombine.high %v865, %v880
      %v923 = vunpack.c.l.s4 1934713408
      %v924 = vunpack.c.0.s8 %v923
      %v925 = vlaneseq
      %v926 = vshrl.u32 %v925, 7
      %v927 = vsub.s32 %v924, %v926
      %v928 = vrot.slane %v920, %v927
      %v930 = vunpack.c.l.s4 1934713408
      %v931 = vunpack.c.0.s8 %v930
      %v932 = vlaneseq
      %v933 = vshrl.u32 %v932, 7
      %v934 = vsub.s32 %v931, %v933
      %v935 = vrot.slane %v921, %v934
      %v936 = vcombine.low %v872, %v887
      %v937 = vcombine.high %v872, %v887
      %v939 = vunpack.c.l.s4 1934713408
      %v940 = vunpack.c.0.s8 %v939
      %v941 = vlaneseq
      %v942 = vshrl.u32 %v941, 7
      %v943 = vsub.s32 %v940, %v942
      %v944 = vrot.slane %v936, %v943
      %v946 = vunpack.c.l.s4 1934713408
      %v947 = vunpack.c.0.s8 %v946
      %v948 = vlaneseq
      %v949 = vshrl.u32 %v948, 7
      %v950 = vsub.s32 %v947, %v949
      %v951 = vrot.slane %v937, %v950
      %v952 = vcombine.low %v896, %v928
      %v953 = vcombine.high %v896, %v928
      %v954 = vcombine.low %v903, %v935
      %v955 = vcombine.high %v903, %v935
      %v956 = vcombine.low %v912, %v944
      %v957 = vcombine.high %v912, %v944
      %v958 = vcombine.low %v919, %v951
      %v959 = vcombine.high %v919, %v951
      %v960 = vcombine.low %v646, %v662
      %v961 = vcombine.high %v646, %v662
      %v963 = vunpack.c.l.s4 1983009808
      %v964 = vunpack.c.0.s8 %v963
      %v965 = vlaneseq
      %v966 = vshrl.u32 %v965, 7
      %v967 = vsub.s32 %v964, %v966
      %v968 = vrot.slane %v960, %v967
      %v970 = vunpack.c.l.s4 1983009808
      %v971 = vunpack.c.0.s8 %v970
      %v972 = vlaneseq
      %v973 = vshrl.u32 %v972, 7
      %v974 = vsub.s32 %v971, %v973
      %v975 = vrot.slane %v961, %v974
      %v976 = vcombine.low %v654, %v670
      %v977 = vcombine.high %v654, %v670
      %v979 = vunpack.c.l.s4 1983009808
      %v980 = vunpack.c.0.s8 %v979
      %v981 = vlaneseq
      %v982 = vshrl.u32 %v981, 7
      %v983 = vsub.s32 %v980, %v982
      %v984 = vrot.slane %v976, %v983
      %v986 = vunpack.c.l.s4 1983009808
      %v987 = vunpack.c.0.s8 %v986
      %v988 = vlaneseq
      %v989 = vshrl.u32 %v988, 7
      %v990 = vsub.s32 %v987, %v989
      %v991 = vrot.slane %v977, %v990
      %v992 = vcombine.high %v678, %v639
      %v994 = vunpack.c.l.s4 1983009808
      %v995 = vunpack.c.0.s8 %v994
      %v996 = vlaneseq
      %v997 = vshrl.u32 %v996, 7
      %v998 = vsub.s32 %v995, %v997
      %v999 = vrot.slane %v678, %v998
      %v1001 = vunpack.c.l.s4 1983009808
      %v1002 = vunpack.c.0.s8 %v1001
      %v1003 = vlaneseq
      %v1004 = vshrl.u32 %v1003, 7
      %v1005 = vsub.s32 %v1002, %v1004
      %v1006 = vrot.slane %v992, %v1005
      %v1007 = vcombine.high %v686, %v639
      %v1009 = vunpack.c.l.s4 1983009808
      %v1010 = vunpack.c.0.s8 %v1009
      %v1011 = vlaneseq
      %v1012 = vshrl.u32 %v1011, 7
      %v1013 = vsub.s32 %v1010, %v1012
      %v1014 = vrot.slane %v686, %v1013
      %v1016 = vunpack.c.l.s4 1983009808
      %v1017 = vunpack.c.0.s8 %v1016
      %v1018 = vlaneseq
      %v1019 = vshrl.u32 %v1018, 7
      %v1020 = vsub.s32 %v1017, %v1019
      %v1021 = vrot.slane %v1007, %v1020
      %v1022 = vcombine.low %v968, %v984
      %v1023 = vcombine.high %v968, %v984
      %v1025 = vunpack.c.l.s4 1934713408
      %v1026 = vunpack.c.0.s8 %v1025
      %v1027 = vlaneseq
      %v1028 = vshrl.u32 %v1027, 7
      %v1029 = vsub.s32 %v1026, %v1028
      %v1030 = vrot.slane %v1022, %v1029
      %v1032 = vunpack.c.l.s4 1934713408
      %v1033 = vunpack.c.0.s8 %v1032
      %v1034 = vlaneseq
      %v1035 = vshrl.u32 %v1034, 7
      %v1036 = vsub.s32 %v1033, %v1035
      %v1037 = vrot.slane %v1023, %v1036
      %v1038 = vcombine.low %v975, %v991
      %v1039 = vcombine.high %v975, %v991
      %v1041 = vunpack.c.l.s4 1934713408
      %v1042 = vunpack.c.0.s8 %v1041
      %v1043 = vlaneseq
      %v1044 = vshrl.u32 %v1043, 7
      %v1045 = vsub.s32 %v1042, %v1044
      %v1046 = vrot.slane %v1038, %v1045
      %v1048 = vunpack.c.l.s4 1934713408
      %v1049 = vunpack.c.0.s8 %v1048
      %v1050 = vlaneseq
      %v1051 = vshrl.u32 %v1050, 7
      %v1052 = vsub.s32 %v1049, %v1051
      %v1053 = vrot.slane %v1039, %v1052
      %v1054 = vcombine.low %v999, %v1014
      %v1055 = vcombine.high %v999, %v1014
      %v1057 = vunpack.c.l.s4 1934713408
      %v1058 = vunpack.c.0.s8 %v1057
      %v1059 = vlaneseq
      %v1060 = vshrl.u32 %v1059, 7
      %v1061 = vsub.s32 %v1058, %v1060
      %v1062 = vrot.slane %v1054, %v1061
      %v1064 = vunpack.c.l.s4 1934713408
      %v1065 = vunpack.c.0.s8 %v1064
      %v1066 = vlaneseq
      %v1067 = vshrl.u32 %v1066, 7
      %v1068 = vsub.s32 %v1065, %v1067
      %v1069 = vrot.slane %v1055, %v1068
      %v1070 = vcombine.low %v1006, %v1021
      %v1071 = vcombine.high %v1006, %v1021
      %v1073 = vunpack.c.l.s4 1934713408
      %v1074 = vunpack.c.0.s8 %v1073
      %v1075 = vlaneseq
      %v1076 = vshrl.u32 %v1075, 7
      %v1077 = vsub.s32 %v1074, %v1076
      %v1078 = vrot.slane %v1070, %v1077
      %v1080 = vunpack.c.l.s4 1934713408
      %v1081 = vunpack.c.0.s8 %v1080
      %v1082 = vlaneseq
      %v1083 = vshrl.u32 %v1082, 7
      %v1084 = vsub.s32 %v1081, %v1083
      %v1085 = vrot.slane %v1071, %v1084
      %v1086 = vcombine.low %v1030, %v1062
      %v1087 = vcombine.high %v1030, %v1062
      %v1088 = vcombine.low %v1037, %v1069
      %v1089 = vcombine.high %v1037, %v1069
      %v1090 = vcombine.low %v1046, %v1078
      %v1091 = vcombine.high %v1046, %v1078
      %v1092 = vcombine.low %v1053, %v1085
      %v1093 = vcombine.high %v1053, %v1085
      %v1094 = vcombine.low %v650, %v666
      %v1095 = vcombine.high %v650, %v666
      %v1097 = vunpack.c.l.s4 1983009808
      %v1098 = vunpack.c.0.s8 %v1097
      %v1099 = vlaneseq
      %v1100 = vshrl.u32 %v1099, 7
      %v1101 = vsub.s32 %v1098, %v1100
      %v1102 = vrot.slane %v1094, %v1101
      %v1104 = vunpack.c.l.s4 1983009808
      %v1105 = vunpack.c.0.s8 %v1104
      %v1106 = vlaneseq
      %v1107 = vshrl.u32 %v1106, 7
      %v1108 = vsub.s32 %v1105, %v1107
      %v1109 = vrot.slane %v1095, %v1108
      %v1110 = vcombine.low %v658, %v674
      %v1111 = vcombine.high %v658, %v674
      %v1113 = vunpack.c.l.s4 1983009808
      %v1114 = vunpack.c.0.s8 %v1113
      %v1115 = vlaneseq
      %v1116 = vshrl.u32 %v1115, 7
      %v1117 = vsub.s32 %v1114, %v1116
      %v1118 = vrot.slane %v1110, %v1117
      %v1120 = vunpack.c.l.s4 1983009808
      %v1121 = vunpack.c.0.s8 %v1120
      %v1122 = vlaneseq
      %v1123 = vshrl.u32 %v1122, 7
      %v1124 = vsub.s32 %v1121, %v1123
      %v1125 = vrot.slane %v1111, %v1124
      %v1126 = vcombine.high %v682, %v642
      %v1128 = vunpack.c.l.s4 1983009808
      %v1129 = vunpack.c.0.s8 %v1128
      %v1130 = vlaneseq
      %v1131 = vshrl.u32 %v1130, 7
      %v1132 = vsub.s32 %v1129, %v1131
      %v1133 = vrot.slane %v682, %v1132
      %v1135 = vunpack.c.l.s4 1983009808
      %v1136 = vunpack.c.0.s8 %v1135
      %v1137 = vlaneseq
      %v1138 = vshrl.u32 %v1137, 7
      %v1139 = vsub.s32 %v1136, %v1138
      %v1140 = vrot.slane %v1126, %v1139
      %v1141 = vcombine.high %v690, %v642
      %v1143 = vunpack.c.l.s4 1983009808
      %v1144 = vunpack.c.0.s8 %v1143
      %v1145 = vlaneseq
      %v1146 = vshrl.u32 %v1145, 7
      %v1147 = vsub.s32 %v1144, %v1146
      %v1148 = vrot.slane %v690, %v1147
      %v1150 = vunpack.c.l.s4 1983009808
      %v1151 = vunpack.c.0.s8 %v1150
      %v1152 = vlaneseq
      %v1153 = vshrl.u32 %v1152, 7
      %v1154 = vsub.s32 %v1151, %v1153
      %v1155 = vrot.slane %v1141, %v1154
      %v1156 = vcombine.low %v1102, %v1118
      %v1157 = vcombine.high %v1102, %v1118
      %v1159 = vunpack.c.l.s4 1934713408
      %v1160 = vunpack.c.0.s8 %v1159
      %v1161 = vlaneseq
      %v1162 = vshrl.u32 %v1161, 7
      %v1163 = vsub.s32 %v1160, %v1162
      %v1164 = vrot.slane %v1156, %v1163
      %v1166 = vunpack.c.l.s4 1934713408
      %v1167 = vunpack.c.0.s8 %v1166
      %v1168 = vlaneseq
      %v1169 = vshrl.u32 %v1168, 7
      %v1170 = vsub.s32 %v1167, %v1169
      %v1171 = vrot.slane %v1157, %v1170
      %v1172 = vcombine.low %v1109, %v1125
      %v1173 = vcombine.high %v1109, %v1125
      %v1175 = vunpack.c.l.s4 1934713408
      %v1176 = vunpack.c.0.s8 %v1175
      %v1177 = vlaneseq
      %v1178 = vshrl.u32 %v1177, 7
      %v1179 = vsub.s32 %v1176, %v1178
      %v1180 = vrot.slane %v1172, %v1179
      %v1182 = vunpack.c.l.s4 1934713408
      %v1183 = vunpack.c.0.s8 %v1182
      %v1184 = vlaneseq
      %v1185 = vshrl.u32 %v1184, 7
      %v1186 = vsub.s32 %v1183, %v1185
      %v1187 = vrot.slane %v1173, %v1186
      %v1188 = vcombine.low %v1133, %v1148
      %v1189 = vcombine.high %v1133, %v1148
      %v1191 = vunpack.c.l.s4 1934713408
      %v1192 = vunpack.c.0.s8 %v1191
      %v1193 = vlaneseq
      %v1194 = vshrl.u32 %v1193, 7
      %v1195 = vsub.s32 %v1192, %v1194
      %v1196 = vrot.slane %v1188, %v1195
      %v1198 = vunpack.c.l.s4 1934713408
      %v1199 = vunpack.c.0.s8 %v1198
      %v1200 = vlaneseq
      %v1201 = vshrl.u32 %v1200, 7
      %v1202 = vsub.s32 %v1199, %v1201
      %v1203 = vrot.slane %v1189, %v1202
      %v1204 = vcombine.low %v1140, %v1155
      %v1205 = vcombine.high %v1140, %v1155
      %v1207 = vunpack.c.l.s4 1934713408
      %v1208 = vunpack.c.0.s8 %v1207
      %v1209 = vlaneseq
      %v1210 = vshrl.u32 %v1209, 7
      %v1211 = vsub.s32 %v1208, %v1210
      %v1212 = vrot.slane %v1204, %v1211
      %v1214 = vunpack.c.l.s4 1934713408
      %v1215 = vunpack.c.0.s8 %v1214
      %v1216 = vlaneseq
      %v1217 = vshrl.u32 %v1216, 7
      %v1218 = vsub.s32 %v1215, %v1217
      %v1219 = vrot.slane %v1205, %v1218
      %v1220 = vcombine.low %v1164, %v1196
      %v1221 = vcombine.high %v1164, %v1196
      %v1222 = vcombine.low %v1171, %v1203
      %v1223 = vcombine.high %v1171, %v1203
      %v1224 = vcombine.low %v1180, %v1212
      %v1225 = vcombine.high %v1180, %v1212
      %v1226 = vcombine.low %v1187, %v1219
      %v1227 = vcombine.high %v1187, %v1219
      %v1228 = vcombine.low %v818, %v820
      %v1229 = vcombine.high %v818, %v820
      %v1231 = vunpack.c.l.s4 1983009808
      %v1232 = vunpack.c.0.s8 %v1231
      %v1233 = vlaneseq
      %v1234 = vshrl.u32 %v1233, 7
      %v1235 = vsub.s32 %v1232, %v1234
      %v1236 = vrot.slane %v1228, %v1235
      %v1238 = vunpack.c.l.s4 1983009808
      %v1239 = vunpack.c.0.s8 %v1238
      %v1240 = vlaneseq
      %v1241 = vshrl.u32 %v1240, 7
      %v1242 = vsub.s32 %v1239, %v1241
      %v1243 = vrot.slane %v1229, %v1242
      %v1244 = vcombine.low %v819, %v821
      %v1245 = vcombine.high %v819, %v821
      %v1247 = vunpack.c.l.s4 1983009808
      %v1248 = vunpack.c.0.s8 %v1247
      %v1249 = vlaneseq
      %v1250 = vshrl.u32 %v1249, 7
      %v1251 = vsub.s32 %v1248, %v1250
      %v1252 = vrot.slane %v1244, %v1251
      %v1254 = vunpack.c.l.s4 1983009808
      %v1255 = vunpack.c.0.s8 %v1254
      %v1256 = vlaneseq
      %v1257 = vshrl.u32 %v1256, 7
      %v1258 = vsub.s32 %v1255, %v1257
      %v1259 = vrot.slane %v1245, %v1258
      %v1260 = vcombine.low %v822, %v824
      %v1261 = vcombine.high %v822, %v824
      %v1263 = vunpack.c.l.s4 1983009808
      %v1264 = vunpack.c.0.s8 %v1263
      %v1265 = vlaneseq
      %v1266 = vshrl.u32 %v1265, 7
      %v1267 = vsub.s32 %v1264, %v1266
      %v1268 = vrot.slane %v1260, %v1267
      %v1270 = vunpack.c.l.s4 1983009808
      %v1271 = vunpack.c.0.s8 %v1270
      %v1272 = vlaneseq
      %v1273 = vshrl.u32 %v1272, 7
      %v1274 = vsub.s32 %v1271, %v1273
      %v1275 = vrot.slane %v1261, %v1274
      %v1276 = vcombine.low %v823, %v825
      %v1277 = vcombine.high %v823, %v825
      %v1279 = vunpack.c.l.s4 1983009808
      %v1280 = vunpack.c.0.s8 %v1279
      %v1281 = vlaneseq
      %v1282 = vshrl.u32 %v1281, 7
      %v1283 = vsub.s32 %v1280, %v1282
      %v1284 = vrot.slane %v1276, %v1283
      %v1286 = vunpack.c.l.s4 1983009808
      %v1287 = vunpack.c.0.s8 %v1286
      %v1288 = vlaneseq
      %v1289 = vshrl.u32 %v1288, 7
      %v1290 = vsub.s32 %v1287, %v1289
      %v1291 = vrot.slane %v1277, %v1290
      %v1292 = vcombine.low %v1236, %v1252
      %v1293 = vcombine.high %v1236, %v1252
      %v1295 = vunpack.c.l.s4 1934713408
      %v1296 = vunpack.c.0.s8 %v1295
      %v1297 = vlaneseq
      %v1298 = vshrl.u32 %v1297, 7
      %v1299 = vsub.s32 %v1296, %v1298
      %v1300 = vrot.slane %v1292, %v1299
      %v1302 = vunpack.c.l.s4 1934713408
      %v1303 = vunpack.c.0.s8 %v1302
      %v1304 = vlaneseq
      %v1305 = vshrl.u32 %v1304, 7
      %v1306 = vsub.s32 %v1303, %v1305
      %v1307 = vrot.slane %v1293, %v1306
      %v1308 = vcombine.low %v1243, %v1259
      %v1310 = vunpack.c.l.s4 1934713408
      %v1311 = vunpack.c.0.s8 %v1310
      %v1312 = vlaneseq
      %v1313 = vshrl.u32 %v1312, 7
      %v1314 = vsub.s32 %v1311, %v1313
      %v1315 = vrot.slane %v1308, %v1314
      %v1316 = vcombine.low %v1268, %v1284
      %v1317 = vcombine.high %v1268, %v1284
      %v1319 = vunpack.c.l.s4 1934713408
      %v1320 = vunpack.c.0.s8 %v1319
      %v1321 = vlaneseq
      %v1322 = vshrl.u32 %v1321, 7
      %v1323 = vsub.s32 %v1320, %v1322
      %v1324 = vrot.slane %v1316, %v1323
      %v1326 = vunpack.c.l.s4 1934713408
      %v1327 = vunpack.c.0.s8 %v1326
      %v1328 = vlaneseq
      %v1329 = vshrl.u32 %v1328, 7
      %v1330 = vsub.s32 %v1327, %v1329
      %v1331 = vrot.slane %v1317, %v1330
      %v1332 = vcombine.low %v1275, %v1291
      %v1334 = vunpack.c.l.s4 1934713408
      %v1335 = vunpack.c.0.s8 %v1334
      %v1336 = vlaneseq
      %v1337 = vshrl.u32 %v1336, 7
      %v1338 = vsub.s32 %v1335, %v1337
      %v1339 = vrot.slane %v1332, %v1338
      %v1340 = vcombine.low %v1300, %v1324
      %v1341 = vcombine.high %v1300, %v1324
      %v1342 = vcombine.low %v1307, %v1331
      %v1343 = vcombine.high %v1307, %v1331
      %v1344 = vcombine.low %v1315, %v1339
      %v1345 = vcombine.high %v1315, %v1339
      %v1346 = vcombine.low %v952, %v954
      %v1347 = vcombine.high %v952, %v954
      %v1349 = vunpack.c.l.s4 1983009808
      %v1350 = vunpack.c.0.s8 %v1349
      %v1351 = vlaneseq
      %v1352 = vshrl.u32 %v1351, 7
      %v1353 = vsub.s32 %v1350, %v1352
      %v1354 = vrot.slane %v1346, %v1353
      %v1356 = vunpack.c.l.s4 1983009808
      %v1357 = vunpack.c.0.s8 %v1356
      %v1358 = vlaneseq
      %v1359 = vshrl.u32 %v1358, 7
      %v1360 = vsub.s32 %v1357, %v1359
      %v1361 = vrot.slane %v1347, %v1360
      %v1362 = vcombine.low %v953, %v955
      %v1363 = vcombine.high %v953, %v955
      %v1365 = vunpack.c.l.s4 1983009808
      %v1366 = vunpack.c.0.s8 %v1365
      %v1367 = vlaneseq
      %v1368 = vshrl.u32 %v1367, 7
      %v1369 = vsub.s32 %v1366, %v1368
      %v1370 = vrot.slane %v1362, %v1369
      %v1372 = vunpack.c.l.s4 1983009808
      %v1373 = vunpack.c.0.s8 %v1372
      %v1374 = vlaneseq
      %v1375 = vshrl.u32 %v1374, 7
      %v1376 = vsub.s32 %v1373, %v1375
      %v1377 = vrot.slane %v1363, %v1376
      %v1378 = vcombine.low %v956, %v958
      %v1379 = vcombine.high %v956, %v958
      %v1381 = vunpack.c.l.s4 1983009808
      %v1382 = vunpack.c.0.s8 %v1381
      %v1383 = vlaneseq
      %v1384 = vshrl.u32 %v1383, 7
      %v1385 = vsub.s32 %v1382, %v1384
      %v1386 = vrot.slane %v1378, %v1385
      %v1388 = vunpack.c.l.s4 1983009808
      %v1389 = vunpack.c.0.s8 %v1388
      %v1390 = vlaneseq
      %v1391 = vshrl.u32 %v1390, 7
      %v1392 = vsub.s32 %v1389, %v1391
      %v1393 = vrot.slane %v1379, %v1392
      %v1394 = vcombine.low %v957, %v959
      %v1395 = vcombine.high %v957, %v959
      %v1397 = vunpack.c.l.s4 1983009808
      %v1398 = vunpack.c.0.s8 %v1397
      %v1399 = vlaneseq
      %v1400 = vshrl.u32 %v1399, 7
      %v1401 = vsub.s32 %v1398, %v1400
      %v1402 = vrot.slane %v1394, %v1401
      %v1404 = vunpack.c.l.s4 1983009808
      %v1405 = vunpack.c.0.s8 %v1404
      %v1406 = vlaneseq
      %v1407 = vshrl.u32 %v1406, 7
      %v1408 = vsub.s32 %v1405, %v1407
      %v1409 = vrot.slane %v1395, %v1408
      %v1410 = vcombine.low %v1354, %v1370
      %v1411 = vcombine.high %v1354, %v1370
      %v1413 = vunpack.c.l.s4 1934713408
      %v1414 = vunpack.c.0.s8 %v1413
      %v1415 = vlaneseq
      %v1416 = vshrl.u32 %v1415, 7
      %v1417 = vsub.s32 %v1414, %v1416
      %v1418 = vrot.slane %v1410, %v1417
      %v1420 = vunpack.c.l.s4 1934713408
      %v1421 = vunpack.c.0.s8 %v1420
      %v1422 = vlaneseq
      %v1423 = vshrl.u32 %v1422, 7
      %v1424 = vsub.s32 %v1421, %v1423
      %v1425 = vrot.slane %v1411, %v1424
      %v1426 = vcombine.low %v1361, %v1377
      %v1428 = vunpack.c.l.s4 1934713408
      %v1429 = vunpack.c.0.s8 %v1428
      %v1430 = vlaneseq
      %v1431 = vshrl.u32 %v1430, 7
      %v1432 = vsub.s32 %v1429, %v1431
      %v1433 = vrot.slane %v1426, %v1432
      %v1434 = vcombine.low %v1386, %v1402
      %v1435 = vcombine.high %v1386, %v1402
      %v1437 = vunpack.c.l.s4 1934713408
      %v1438 = vunpack.c.0.s8 %v1437
      %v1439 = vlaneseq
      %v1440 = vshrl.u32 %v1439, 7
      %v1441 = vsub.s32 %v1438, %v1440
      %v1442 = vrot.slane %v1434, %v1441
      %v1444 = vunpack.c.l.s4 1934713408
      %v1445 = vunpack.c.0.s8 %v1444
      %v1446 = vlaneseq
      %v1447 = vshrl.u32 %v1446, 7
      %v1448 = vsub.s32 %v1445, %v1447
      %v1449 = vrot.slane %v1435, %v1448
      %v1450 = vcombine.low %v1393, %v1409
      %v1452 = vunpack.c.l.s4 1934713408
      %v1453 = vunpack.c.0.s8 %v1452
      %v1454 = vlaneseq
      %v1455 = vshrl.u32 %v1454, 7
      %v1456 = vsub.s32 %v1453, %v1455
      %v1457 = vrot.slane %v1450, %v1456
      %v1458 = vcombine.low %v1418, %v1442
      %v1459 = vcombine.high %v1418, %v1442
      %v1460 = vcombine.low %v1425, %v1449
      %v1461 = vcombine.high %v1425, %v1449
      %v1462 = vcombine.low %v1433, %v1457
      %v1463 = vcombine.high %v1433, %v1457
      %v1464 = vcombine.low %v1086, %v1088
      %v1465 = vcombine.high %v1086, %v1088
      %v1467 = vunpack.c.l.s4 1983009808
      %v1468 = vunpack.c.0.s8 %v1467
      %v1469 = vlaneseq
      %v1470 = vshrl.u32 %v1469, 7
      %v1471 = vsub.s32 %v1468, %v1470
      %v1472 = vrot.slane %v1464, %v1471
      %v1474 = vunpack.c.l.s4 1983009808
      %v1475 = vunpack.c.0.s8 %v1474
      %v1476 = vlaneseq
      %v1477 = vshrl.u32 %v1476, 7
      %v1478 = vsub.s32 %v1475, %v1477
      %v1479 = vrot.slane %v1465, %v1478
      %v1480 = vcombine.low %v1087, %v1089
      %v1481 = vcombine.high %v1087, %v1089
      %v1483 = vunpack.c.l.s4 1983009808
      %v1484 = vunpack.c.0.s8 %v1483
      %v1485 = vlaneseq
      %v1486 = vshrl.u32 %v1485, 7
      %v1487 = vsub.s32 %v1484, %v1486
      %v1488 = vrot.slane %v1480, %v1487
      %v1490 = vunpack.c.l.s4 1983009808
      %v1491 = vunpack.c.0.s8 %v1490
      %v1492 = vlaneseq
      %v1493 = vshrl.u32 %v1492, 7
      %v1494 = vsub.s32 %v1491, %v1493
      %v1495 = vrot.slane %v1481, %v1494
      %v1496 = vcombine.low %v1090, %v1092
      %v1497 = vcombine.high %v1090, %v1092
      %v1499 = vunpack.c.l.s4 1983009808
      %v1500 = vunpack.c.0.s8 %v1499
      %v1501 = vlaneseq
      %v1502 = vshrl.u32 %v1501, 7
      %v1503 = vsub.s32 %v1500, %v1502
      %v1504 = vrot.slane %v1496, %v1503
      %v1506 = vunpack.c.l.s4 1983009808
      %v1507 = vunpack.c.0.s8 %v1506
      %v1508 = vlaneseq
      %v1509 = vshrl.u32 %v1508, 7
      %v1510 = vsub.s32 %v1507, %v1509
      %v1511 = vrot.slane %v1497, %v1510
      %v1512 = vcombine.low %v1091, %v1093
      %v1513 = vcombine.high %v1091, %v1093
      %v1515 = vunpack.c.l.s4 1983009808
      %v1516 = vunpack.c.0.s8 %v1515
      %v1517 = vlaneseq
      %v1518 = vshrl.u32 %v1517, 7
      %v1519 = vsub.s32 %v1516, %v1518
      %v1520 = vrot.slane %v1512, %v1519
      %v1522 = vunpack.c.l.s4 1983009808
      %v1523 = vunpack.c.0.s8 %v1522
      %v1524 = vlaneseq
      %v1525 = vshrl.u32 %v1524, 7
      %v1526 = vsub.s32 %v1523, %v1525
      %v1527 = vrot.slane %v1513, %v1526
      %v1528 = vcombine.low %v1472, %v1488
      %v1529 = vcombine.high %v1472, %v1488
      %v1531 = vunpack.c.l.s4 1934713408
      %v1532 = vunpack.c.0.s8 %v1531
      %v1533 = vlaneseq
      %v1534 = vshrl.u32 %v1533, 7
      %v1535 = vsub.s32 %v1532, %v1534
      %v1536 = vrot.slane %v1528, %v1535
      %v1538 = vunpack.c.l.s4 1934713408
      %v1539 = vunpack.c.0.s8 %v1538
      %v1540 = vlaneseq
      %v1541 = vshrl.u32 %v1540, 7
      %v1542 = vsub.s32 %v1539, %v1541
      %v1543 = vrot.slane %v1529, %v1542
      %v1544 = vcombine.low %v1479, %v1495
      %v1546 = vunpack.c.l.s4 1934713408
      %v1547 = vunpack.c.0.s8 %v1546
      %v1548 = vlaneseq
      %v1549 = vshrl.u32 %v1548, 7
      %v1550 = vsub.s32 %v1547, %v1549
      %v1551 = vrot.slane %v1544, %v1550
      %v1552 = vcombine.low %v1504, %v1520
      %v1553 = vcombine.high %v1504, %v1520
      %v1555 = vunpack.c.l.s4 1934713408
      %v1556 = vunpack.c.0.s8 %v1555
      %v1557 = vlaneseq
      %v1558 = vshrl.u32 %v1557, 7
      %v1559 = vsub.s32 %v1556, %v1558
      %v1560 = vrot.slane %v1552, %v1559
      %v1562 = vunpack.c.l.s4 1934713408
      %v1563 = vunpack.c.0.s8 %v1562
      %v1564 = vlaneseq
      %v1565 = vshrl.u32 %v1564, 7
      %v1566 = vsub.s32 %v1563, %v1565
      %v1567 = vrot.slane %v1553, %v1566
      %v1568 = vcombine.low %v1511, %v1527
      %v1570 = vunpack.c.l.s4 1934713408
      %v1571 = vunpack.c.0.s8 %v1570
      %v1572 = vlaneseq
      %v1573 = vshrl.u32 %v1572, 7
      %v1574 = vsub.s32 %v1571, %v1573
      %v1575 = vrot.slane %v1568, %v1574
      %v1576 = vcombine.low %v1536, %v1560
      %v1577 = vcombine.high %v1536, %v1560
      %v1578 = vcombine.low %v1543, %v1567
      %v1579 = vcombine.high %v1543, %v1567
      %v1580 = vcombine.low %v1551, %v1575
      %v1581 = vcombine.high %v1551, %v1575
      %v1582 = vcombine.low %v1220, %v1222
      %v1583 = vcombine.high %v1220, %v1222
      %v1585 = vunpack.c.l.s4 1983009808
      %v1586 = vunpack.c.0.s8 %v1585
      %v1587 = vlaneseq
      %v1588 = vshrl.u32 %v1587, 7
      %v1589 = vsub.s32 %v1586, %v1588
      %v1590 = vrot.slane %v1582, %v1589
      %v1592 = vunpack.c.l.s4 1983009808
      %v1593 = vunpack.c.0.s8 %v1592
      %v1594 = vlaneseq
      %v1595 = vshrl.u32 %v1594, 7
      %v1596 = vsub.s32 %v1593, %v1595
      %v1597 = vrot.slane %v1583, %v1596
      %v1598 = vcombine.low %v1221, %v1223
      %v1599 = vcombine.high %v1221, %v1223
      %v1601 = vunpack.c.l.s4 1983009808
      %v1602 = vunpack.c.0.s8 %v1601
      %v1603 = vlaneseq
      %v1604 = vshrl.u32 %v1603, 7
      %v1605 = vsub.s32 %v1602, %v1604
      %v1606 = vrot.slane %v1598, %v1605
      %v1608 = vunpack.c.l.s4 1983009808
      %v1609 = vunpack.c.0.s8 %v1608
      %v1610 = vlaneseq
      %v1611 = vshrl.u32 %v1610, 7
      %v1612 = vsub.s32 %v1609, %v1611
      %v1613 = vrot.slane %v1599, %v1612
      %v1614 = vcombine.low %v1224, %v1226
      %v1615 = vcombine.high %v1224, %v1226
      %v1617 = vunpack.c.l.s4 1983009808
      %v1618 = vunpack.c.0.s8 %v1617
      %v1619 = vlaneseq
      %v1620 = vshrl.u32 %v1619, 7
      %v1621 = vsub.s32 %v1618, %v1620
      %v1622 = vrot.slane %v1614, %v1621
      %v1624 = vunpack.c.l.s4 1983009808
      %v1625 = vunpack.c.0.s8 %v1624
      %v1626 = vlaneseq
      %v1627 = vshrl.u32 %v1626, 7
      %v1628 = vsub.s32 %v1625, %v1627
      %v1629 = vrot.slane %v1615, %v1628
      %v1630 = vcombine.low %v1225, %v1227
      %v1631 = vcombine.high %v1225, %v1227
      %v1633 = vunpack.c.l.s4 1983009808
      %v1634 = vunpack.c.0.s8 %v1633
      %v1635 = vlaneseq
      %v1636 = vshrl.u32 %v1635, 7
      %v1637 = vsub.s32 %v1634, %v1636
      %v1638 = vrot.slane %v1630, %v1637
      %v1640 = vunpack.c.l.s4 1983009808
      %v1641 = vunpack.c.0.s8 %v1640
      %v1642 = vlaneseq
      %v1643 = vshrl.u32 %v1642, 7
      %v1644 = vsub.s32 %v1641, %v1643
      %v1645 = vrot.slane %v1631, %v1644
      %v1646 = vcombine.low %v1590, %v1606
      %v1647 = vcombine.high %v1590, %v1606
      %v1649 = vunpack.c.l.s4 1934713408
      %v1650 = vunpack.c.0.s8 %v1649
      %v1651 = vlaneseq
      %v1652 = vshrl.u32 %v1651, 7
      %v1653 = vsub.s32 %v1650, %v1652
      %v1654 = vrot.slane %v1646, %v1653
      %v1656 = vunpack.c.l.s4 1934713408
      %v1657 = vunpack.c.0.s8 %v1656
      %v1658 = vlaneseq
      %v1659 = vshrl.u32 %v1658, 7
      %v1660 = vsub.s32 %v1657, %v1659
      %v1661 = vrot.slane %v1647, %v1660
      %v1662 = vcombine.low %v1597, %v1613
      %v1664 = vunpack.c.l.s4 1934713408
      %v1665 = vunpack.c.0.s8 %v1664
      %v1666 = vlaneseq
      %v1667 = vshrl.u32 %v1666, 7
      %v1668 = vsub.s32 %v1665, %v1667
      %v1669 = vrot.slane %v1662, %v1668
      %v1670 = vcombine.low %v1622, %v1638
      %v1671 = vcombine.high %v1622, %v1638
      %v1673 = vunpack.c.l.s4 1934713408
      %v1674 = vunpack.c.0.s8 %v1673
      %v1675 = vlaneseq
      %v1676 = vshrl.u32 %v1675, 7
      %v1677 = vsub.s32 %v1674, %v1676
      %v1678 = vrot.slane %v1670, %v1677
      %v1680 = vunpack.c.l.s4 1934713408
      %v1681 = vunpack.c.0.s8 %v1680
      %v1682 = vlaneseq
      %v1683 = vshrl.u32 %v1682, 7
      %v1684 = vsub.s32 %v1681, %v1683
      %v1685 = vrot.slane %v1671, %v1684
      %v1686 = vcombine.low %v1629, %v1645
      %v1688 = vunpack.c.l.s4 1934713408
      %v1689 = vunpack.c.0.s8 %v1688
      %v1690 = vlaneseq
      %v1691 = vshrl.u32 %v1690, 7
      %v1692 = vsub.s32 %v1689, %v1691
      %v1693 = vrot.slane %v1686, %v1692
      %v1694 = vcombine.low %v1654, %v1678
      %v1695 = vcombine.high %v1654, %v1678
      %v1696 = vcombine.low %v1661, %v1685
      %v1697 = vcombine.high %v1661, %v1685
      %v1698 = vcombine.low %v1669, %v1693
      %v1699 = vcombine.high %v1669, %v1693
      %v1702 = vpack.i.b16 %v1458, %v1340
      %v1703 = vshrl.u32 %v1340, 16
      %v1704 = vshrl.u32 %v1458, 16
      %v1705 = vpack.i.b16 %v1704, %v1703
      %v1708 = vpack.i.b16 %v1459, %v1341
      %v1709 = vshrl.u32 %v1341, 16
      %v1710 = vshrl.u32 %v1459, 16
      %v1711 = vpack.i.b16 %v1710, %v1709
      %v1714 = vpack.i.b16 %v1460, %v1342
      %v1715 = vshrl.u32 %v1342, 16
      %v1716 = vshrl.u32 %v1460, 16
      %v1717 = vpack.i.b16 %v1716, %v1715
      %v1720 = vpack.i.b16 %v1461, %v1343
      %v1721 = vshrl.u32 %v1343, 16
      %v1722 = vshrl.u32 %v1461, 16
      %v1723 = vpack.i.b16 %v1722, %v1721
      %v1726 = vpack.i.b16 %v1462, %v1344
      %v1727 = vshrl.u32 %v1344, 16
      %v1728 = vshrl.u32 %v1462, 16
      %v1729 = vpack.i.b16 %v1728, %v1727
      %v1732 = vpack.i.b16 %v1463, %v1345
      %v1733 = vshrl.u32 %v1345, 16
      %v1734 = vshrl.u32 %v1463, 16
      %v1735 = vpack.i.b16 %v1734, %v1733
      %v1738 = vpack.i.b16 %v1694, %v1576
      %v1739 = vshrl.u32 %v1576, 16
      %v1740 = vshrl.u32 %v1694, 16
      %v1741 = vpack.i.b16 %v1740, %v1739
      %v1744 = vpack.i.b16 %v1695, %v1577
      %v1745 = vshrl.u32 %v1577, 16
      %v1746 = vshrl.u32 %v1695, 16
      %v1747 = vpack.i.b16 %v1746, %v1745
      %v1750 = vpack.i.b16 %v1696, %v1578
      %v1751 = vshrl.u32 %v1578, 16
      %v1752 = vshrl.u32 %v1696, 16
      %v1753 = vpack.i.b16 %v1752, %v1751
      %v1756 = vpack.i.b16 %v1697, %v1579
      %v1757 = vshrl.u32 %v1579, 16
      %v1758 = vshrl.u32 %v1697, 16
      %v1759 = vpack.i.b16 %v1758, %v1757
      %v1762 = vpack.i.b16 %v1698, %v1580
      %v1763 = vshrl.u32 %v1580, 16
      %v1764 = vshrl.u32 %v1698, 16
      %v1765 = vpack.i.b16 %v1764, %v1763
      %v1768 = vpack.i.b16 %v1699, %v1581
      %v1769 = vshrl.u32 %v1581, 16
      %v1770 = vshrl.u32 %v1699, 16
      %v1771 = vpack.i.b16 %v1770, %v1769
      %v1772 = vunpack.c.l.b16 %v1702
      %v1773 = vunpack.c.h.b16 %v1702
      %v1774 = vunpack.c.l.b16 %v1738
      %v1775 = vunpack.c.h.b16 %v1738
      %v1776 = vunpack.c.l.b16 %v1705
      %v1777 = vunpack.c.h.b16 %v1705
      %v1778 = vunpack.c.l.b16 %v1741
      %v1779 = vunpack.c.h.b16 %v1741
      %v1780 = vunpack.c.l.b16 %v1708
      %v1781 = vunpack.c.h.b16 %v1708
      %v1782 = vunpack.c.l.b16 %v1744
      %v1783 = vunpack.c.h.b16 %v1744
      %v1784 = vunpack.c.l.b16 %v1711
      %v1785 = vunpack.c.h.b16 %v1711
      %v1786 = vunpack.c.l.b16 %v1747
      %v1787 = vunpack.c.h.b16 %v1747
      %v1788 = vpack.c.b16 %v1772, %v1772
      %v1789 = vpack.c.b16 %v1773, %v1773
      %v1790 = vpack.c.b16 %v1774, %v1774
      %v1791 = vpack.c.b16 %v1775, %v1775
      %v1792 = vpack.c.b16 %v1776, %v1776
      %v1793 = vpack.c.b16 %v1777, %v1777
      %v1794 = vpack.c.b16 %v1778, %v1778
      %v1795 = vpack.c.b16 %v1779, %v1779
      %v1796 = vpack.c.b16 %v1780, %v1780
      %v1797 = vpack.c.b16 %v1781, %v1781
      %v1798 = vpack.c.b16 %v1782, %v1782
      %v1799 = vpack.c.b16 %v1783, %v1783
      %v1800 = vpack.c.b16 %v1784, %v1784
      %v1801 = vpack.c.b16 %v1785, %v1785
      %v1802 = vpack.c.b16 %v1786, %v1786
      %v1803 = vpack.c.b16 %v1787, %v1787
      %v1804 = vunpack.c.l.b16 %v1714
      %v1805 = vunpack.c.h.b16 %v1714
      %v1806 = vunpack.c.l.b16 %v1750
      %v1807 = vunpack.c.h.b16 %v1750
      %v1808 = vunpack.c.l.b16 %v1717
      %v1809 = vunpack.c.h.b16 %v1717
      %v1810 = vunpack.c.l.b16 %v1753
      %v1811 = vunpack.c.h.b16 %v1753
      %v1812 = vunpack.c.l.b16 %v1720
      %v1813 = vunpack.c.h.b16 %v1720
      %v1814 = vunpack.c.l.b16 %v1756
      %v1815 = vunpack.c.h.b16 %v1756
      %v1816 = vunpack.c.l.b16 %v1723
      %v1817 = vunpack.c.h.b16 %v1723
      %v1818 = vunpack.c.l.b16 %v1759
      %v1819 = vunpack.c.h.b16 %v1759
      %v1820 = vpack.c.b16 %v1804, %v1804
      %v1821 = vpack.c.b16 %v1805, %v1805
      %v1822 = vpack.c.b16 %v1806, %v1806
      %v1823 = vpack.c.b16 %v1807, %v1807
      %v1824 = vpack.c.b16 %v1808, %v1808
      %v1825 = vpack.c.b16 %v1809, %v1809
      %v1826 = vpack.c.b16 %v1810, %v1810
      %v1827 = vpack.c.b16 %v1811, %v1811
      %v1828 = vpack.c.b16 %v1812, %v1812
      %v1829 = vpack.c.b16 %v1813, %v1813
      %v1830 = vpack.c.b16 %v1814, %v1814
      %v1831 = vpack.c.b16 %v1815, %v1815
      %v1832 = vpack.c.b16 %v1816, %v1816
      %v1833 = vpack.c.b16 %v1817, %v1817
      %v1834 = vpack.c.b16 %v1818, %v1818
      %v1835 = vpack.c.b16 %v1819, %v1819
      %v1836 = vunpack.c.l.b16 %v1726
      %v1837 = vunpack.c.h.b16 %v1726
      %v1838 = vunpack.c.l.b16 %v1762
      %v1839 = vunpack.c.h.b16 %v1762
      %v1840 = vunpack.c.l.b16 %v1729
      %v1841 = vunpack.c.h.b16 %v1729
      %v1842 = vunpack.c.l.b16 %v1765
      %v1843 = vunpack.c.h.b16 %v1765
      %v1844 = vunpack.c.l.b16 %v1732
      %v1845 = vunpack.c.h.b16 %v1732
      %v1846 = vunpack.c.l.b16 %v1768
      %v1847 = vunpack.c.h.b16 %v1768
      %v1848 = vunpack.c.l.b16 %v1735
      %v1849 = vunpack.c.h.b16 %v1735
      %v1850 = vunpack.c.l.b16 %v1771
      %v1851 = vunpack.c.h.b16 %v1771
      %v1852 = vpack.c.b16 %v1836, %v1836
      %v1853 = vpack.c.b16 %v1837, %v1837
      %v1854 = vpack.c.b16 %v1838, %v1838
      %v1855 = vpack.c.b16 %v1839, %v1839
      %v1856 = vpack.c.b16 %v1840, %v1840
      %v1857 = vpack.c.b16 %v1841, %v1841
      %v1858 = vpack.c.b16 %v1842, %v1842
      %v1859 = vpack.c.b16 %v1843, %v1843
      %v1860 = vpack.c.b16 %v1844, %v1844
      %v1861 = vpack.c.b16 %v1845, %v1845
      %v1862 = vpack.c.b16 %v1846, %v1846
      %v1863 = vpack.c.b16 %v1847, %v1847
      %v1864 = vpack.c.b16 %v1848, %v1848
      %v1865 = vpack.c.b16 %v1849, %v1849
      %v1866 = vpack.c.b16 %v1850, %v1850
      %v1867 = vpack.c.b16 %v1851, %v1851
      %v1869 = vsel %vm401, %v1788, 0
      %v1872 = vsel %vm401, %v1820, 0
      %1874 = vmatprep.subr.bf16.mxu0 0
      %1875 = vmatpush1.bf16.xpose.msra.mxu0 %v1872
      %1876 = vmatprep.subr.bf16.mxu0 0
      %1877 = vmatpush1.bf16.xpose.msra.mxu0 0
      %1878 = vmatprep.subr.bf16.mxu0 0
      %1879 = vmatpush1.bf16.xpose.msra.mxu0 0
      %1880 = vmatprep.subr.bf16.mxu0 0
      %1881 = vmatpush1.bf16.xpose.msra.mxu0 0
      %1882 = vmatprep.subr.bf16.mxu0 0
      %1883 = vmatpush1.bf16.xpose.msra.mxu0 0
      %1884 = vmatprep.subr.bf16.mxu0 0
      %1885 = vmatpush1.bf16.xpose.msra.mxu0 0
      %1886 = vmatprep.subr.bf16.mxu0 0
      %1887 = vmatpush1.bf16.xpose.msra.mxu0 0
      %1888 = vmatprep.subr.bf16.mxu0 0
      %1889 = vmatpush1.bf16.xpose.msra.mxu0 0
      %1890 = vmatprep.subr.bf16.mxu0 0
      %1891 = vmatpush1.bf16.xpose.msra.mxu0 0
      %1892 = vmatprep.subr.bf16.mxu0 0
      %1893 = vmatpush1.bf16.xpose.msra.mxu0 0
      %1894 = vmatprep.subr.bf16.mxu0 0
      %1895 = vmatpush1.bf16.xpose.msra.mxu0 0
      %1896 = vmatprep.subr.bf16.mxu0 0
      %1897 = vmatpush1.bf16.xpose.msra.mxu0 0
      %1898 = vmatprep.subr.bf16.mxu0 0
      %1899 = vmatpush1.bf16.xpose.msra.mxu0 0
      %1900 = vmatprep.subr.bf16.mxu0 0
      %1901 = vmatpush1.bf16.xpose.msra.mxu0 0
      %1902 = vmatprep.subr.bf16.mxu0 0
      %1903 = vmatpush1.bf16.xpose.msra.mxu0 0
      %1904 = vmatprep.subr.bf16.mxu0 0
      %1905 = vmatpush1.bf16.xpose.msra.mxu0 0
      %1906 = vmatprep.mubr.bf16.mxu0 0
      %1907 = vmatmul.mubr.bf16.gmra.mrb[0].mxu0 %v1869
      %v1908 = vpop.f32.mrb[0].mxu0
      %v1909 = vadd.f32 0.0, %v1908
      %v1910 = vpop.f32.mrb[0].mxu0
      %v1911 = vpop.f32.mrb[0].mxu0
      %v1912 = vpop.f32.mrb[0].mxu0
      %1913 = vdwg.mxu0
      %v1915 = vsel %vm401, %v1789, 0
      %v1918 = vsel %vm401, %v1821, 0
      %1920 = vmatprep.subr.bf16.mxu0 0
      %1921 = vmatpush1.bf16.xpose.msra.mxu0 %v1918
      %1922 = vmatprep.subr.bf16.mxu0 0
      %1923 = vmatpush1.bf16.xpose.msra.mxu0 0
      %1924 = vmatprep.subr.bf16.mxu0 0
      %1925 = vmatpush1.bf16.xpose.msra.mxu0 0
      %1926 = vmatprep.subr.bf16.mxu0 0
      %1927 = vmatpush1.bf16.xpose.msra.mxu0 0
      %1928 = vmatprep.subr.bf16.mxu0 0
      %1929 = vmatpush1.bf16.xpose.msra.mxu0 0
      %1930 = vmatprep.subr.bf16.mxu0 0
      %1931 = vmatpush1.bf16.xpose.msra.mxu0 0
      %1932 = vmatprep.subr.bf16.mxu0 0
      %1933 = vmatpush1.bf16.xpose.msra.mxu0 0
      %1934 = vmatprep.subr.bf16.mxu0 0
      %1935 = vmatpush1.bf16.xpose.msra.mxu0 0
      %1936 = vmatprep.subr.bf16.mxu0 0
      %1937 = vmatpush1.bf16.xpose.msra.mxu0 0
      %1938 = vmatprep.subr.bf16.mxu0 0
      %1939 = vmatpush1.bf16.xpose.msra.mxu0 0
      %1940 = vmatprep.subr.bf16.mxu0 0
      %1941 = vmatpush1.bf16.xpose.msra.mxu0 0
      %1942 = vmatprep.subr.bf16.mxu0 0
      %1943 = vmatpush1.bf16.xpose.msra.mxu0 0
      %1944 = vmatprep.subr.bf16.mxu0 0
      %1945 = vmatpush1.bf16.xpose.msra.mxu0 0
      %1946 = vmatprep.subr.bf16.mxu0 0
      %1947 = vmatpush1.bf16.xpose.msra.mxu0 0
      %1948 = vmatprep.subr.bf16.mxu0 0
      %1949 = vmatpush1.bf16.xpose.msra.mxu0 0
      %1950 = vmatprep.subr.bf16.mxu0 0
      %1951 = vmatpush1.bf16.xpose.msra.mxu0 0
      %1952 = vmatprep.mubr.bf16.mxu0 0
      %1953 = vmatmul.mubr.bf16.gmra.mrb[0].mxu0 %v1915
      %v1954 = vpop.f32.mrb[0].mxu0
      %v1955 = vadd.f32 0.0, %v1954
      %v1956 = vpop.f32.mrb[0].mxu0
      %v1957 = vpop.f32.mrb[0].mxu0
      %v1958 = vpop.f32.mrb[0].mxu0
      %1959 = vdwg.mxu0
      %v1961 = vsel %vm401, %v1790, 0
      %v1964 = vsel %vm401, %v1822, 0
      %1966 = vmatprep.subr.bf16.mxu0 0
      %1967 = vmatpush1.bf16.xpose.msra.mxu0 %v1964
      %1968 = vmatprep.subr.bf16.mxu0 0
      %1969 = vmatpush1.bf16.xpose.msra.mxu0 0
      %1970 = vmatprep.subr.bf16.mxu0 0
      %1971 = vmatpush1.bf16.xpose.msra.mxu0 0
      %1972 = vmatprep.subr.bf16.mxu0 0
      %1973 = vmatpush1.bf16.xpose.msra.mxu0 0
      %1974 = vmatprep.subr.bf16.mxu0 0
      %1975 = vmatpush1.bf16.xpose.msra.mxu0 0
      %1976 = vmatprep.subr.bf16.mxu0 0
      %1977 = vmatpush1.bf16.xpose.msra.mxu0 0
      %1978 = vmatprep.subr.bf16.mxu0 0
      %1979 = vmatpush1.bf16.xpose.msra.mxu0 0
      %1980 = vmatprep.subr.bf16.mxu0 0
      %1981 = vmatpush1.bf16.xpose.msra.mxu0 0
      %1982 = vmatprep.subr.bf16.mxu0 0
      %1983 = vmatpush1.bf16.xpose.msra.mxu0 0
      %1984 = vmatprep.subr.bf16.mxu0 0
      %1985 = vmatpush1.bf16.xpose.msra.mxu0 0
      %1986 = vmatprep.subr.bf16.mxu0 0
      %1987 = vmatpush1.bf16.xpose.msra.mxu0 0
      %1988 = vmatprep.subr.bf16.mxu0 0
      %1989 = vmatpush1.bf16.xpose.msra.mxu0 0
      %1990 = vmatprep.subr.bf16.mxu0 0
      %1991 = vmatpush1.bf16.xpose.msra.mxu0 0
      %1992 = vmatprep.subr.bf16.mxu0 0
      %1993 = vmatpush1.bf16.xpose.msra.mxu0 0
      %1994 = vmatprep.subr.bf16.mxu0 0
      %1995 = vmatpush1.bf16.xpose.msra.mxu0 0
      %1996 = vmatprep.subr.bf16.mxu0 0
      %1997 = vmatpush1.bf16.xpose.msra.mxu0 0
      %1998 = vmatprep.mubr.bf16.mxu0 0
      %1999 = vmatmul.mubr.bf16.gmra.mrb[0].mxu0 %v1961
      %v2000 = vpop.f32.mrb[0].mxu0
      %v2001 = vadd.f32 0.0, %v2000
      %v2002 = vpop.f32.mrb[0].mxu0
      %v2003 = vpop.f32.mrb[0].mxu0
      %v2004 = vpop.f32.mrb[0].mxu0
      %2005 = vdwg.mxu0
      %v2007 = vsel %vm401, %v1791, 0
      %v2010 = vsel %vm401, %v1823, 0
      %2012 = vmatprep.subr.bf16.mxu0 0
      %2013 = vmatpush1.bf16.xpose.msra.mxu0 %v2010
      %2014 = vmatprep.subr.bf16.mxu0 0
      %2015 = vmatpush1.bf16.xpose.msra.mxu0 0
      %2016 = vmatprep.subr.bf16.mxu0 0
      %2017 = vmatpush1.bf16.xpose.msra.mxu0 0
      %2018 = vmatprep.subr.bf16.mxu0 0
      %2019 = vmatpush1.bf16.xpose.msra.mxu0 0
      %2020 = vmatprep.subr.bf16.mxu0 0
      %2021 = vmatpush1.bf16.xpose.msra.mxu0 0
      %2022 = vmatprep.subr.bf16.mxu0 0
      %2023 = vmatpush1.bf16.xpose.msra.mxu0 0
      %2024 = vmatprep.subr.bf16.mxu0 0
      %2025 = vmatpush1.bf16.xpose.msra.mxu0 0
      %2026 = vmatprep.subr.bf16.mxu0 0
      %2027 = vmatpush1.bf16.xpose.msra.mxu0 0
      %2028 = vmatprep.subr.bf16.mxu0 0
      %2029 = vmatpush1.bf16.xpose.msra.mxu0 0
      %2030 = vmatprep.subr.bf16.mxu0 0
      %2031 = vmatpush1.bf16.xpose.msra.mxu0 0
      %2032 = vmatprep.subr.bf16.mxu0 0
      %2033 = vmatpush1.bf16.xpose.msra.mxu0 0
      %2034 = vmatprep.subr.bf16.mxu0 0
      %2035 = vmatpush1.bf16.xpose.msra.mxu0 0
      %2036 = vmatprep.subr.bf16.mxu0 0
      %2037 = vmatpush1.bf16.xpose.msra.mxu0 0
      %2038 = vmatprep.subr.bf16.mxu0 0
      %2039 = vmatpush1.bf16.xpose.msra.mxu0 0
      %2040 = vmatprep.subr.bf16.mxu0 0
      %2041 = vmatpush1.bf16.xpose.msra.mxu0 0
      %2042 = vmatprep.subr.bf16.mxu0 0
      %2043 = vmatpush1.bf16.xpose.msra.mxu0 0
      %2044 = vmatprep.mubr.bf16.mxu0 0
      %2045 = vmatmul.mubr.bf16.gmra.mrb[0].mxu0 %v2007
      %v2046 = vpop.f32.mrb[0].mxu0
      %v2047 = vadd.f32 0.0, %v2046
      %v2048 = vpop.f32.mrb[0].mxu0
      %v2049 = vpop.f32.mrb[0].mxu0
      %v2050 = vpop.f32.mrb[0].mxu0
      %2051 = vdwg.mxu0
      %v2053 = vsel %vm401, %v1792, 0
      %v2056 = vsel %vm401, %v1824, 0
      %2058 = vmatprep.subr.bf16.mxu0 0
      %2059 = vmatpush1.bf16.xpose.msra.mxu0 %v2056
      %2060 = vmatprep.subr.bf16.mxu0 0
      %2061 = vmatpush1.bf16.xpose.msra.mxu0 0
      %2062 = vmatprep.subr.bf16.mxu0 0
      %2063 = vmatpush1.bf16.xpose.msra.mxu0 0
      %2064 = vmatprep.subr.bf16.mxu0 0
      %2065 = vmatpush1.bf16.xpose.msra.mxu0 0
      %2066 = vmatprep.subr.bf16.mxu0 0
      %2067 = vmatpush1.bf16.xpose.msra.mxu0 0
      %2068 = vmatprep.subr.bf16.mxu0 0
      %2069 = vmatpush1.bf16.xpose.msra.mxu0 0
      %2070 = vmatprep.subr.bf16.mxu0 0
      %2071 = vmatpush1.bf16.xpose.msra.mxu0 0
      %2072 = vmatprep.subr.bf16.mxu0 0
      %2073 = vmatpush1.bf16.xpose.msra.mxu0 0
      %2074 = vmatprep.subr.bf16.mxu0 0
      %2075 = vmatpush1.bf16.xpose.msra.mxu0 0
      %2076 = vmatprep.subr.bf16.mxu0 0
      %2077 = vmatpush1.bf16.xpose.msra.mxu0 0
      %2078 = vmatprep.subr.bf16.mxu0 0
      %2079 = vmatpush1.bf16.xpose.msra.mxu0 0
      %2080 = vmatprep.subr.bf16.mxu0 0
      %2081 = vmatpush1.bf16.xpose.msra.mxu0 0
      %2082 = vmatprep.subr.bf16.mxu0 0
      %2083 = vmatpush1.bf16.xpose.msra.mxu0 0
      %2084 = vmatprep.subr.bf16.mxu0 0
      %2085 = vmatpush1.bf16.xpose.msra.mxu0 0
      %2086 = vmatprep.subr.bf16.mxu0 0
      %2087 = vmatpush1.bf16.xpose.msra.mxu0 0
      %2088 = vmatprep.subr.bf16.mxu0 0
      %2089 = vmatpush1.bf16.xpose.msra.mxu0 0
      %2090 = vmatprep.mubr.bf16.mxu0 0
      %2091 = vmatmul.mubr.bf16.gmra.mrb[0].mxu0 %v2053
      %v2092 = vpop.f32.mrb[0].mxu0
      %v2093 = vadd.f32 0.0, %v2092
      %v2094 = vpop.f32.mrb[0].mxu0
      %v2095 = vpop.f32.mrb[0].mxu0
      %v2096 = vpop.f32.mrb[0].mxu0
      %2097 = vdwg.mxu0
      %v2099 = vsel %vm401, %v1793, 0
      %v2102 = vsel %vm401, %v1825, 0
      %2104 = vmatprep.subr.bf16.mxu0 0
      %2105 = vmatpush1.bf16.xpose.msra.mxu0 %v2102
      %2106 = vmatprep.subr.bf16.mxu0 0
      %2107 = vmatpush1.bf16.xpose.msra.mxu0 0
      %2108 = vmatprep.subr.bf16.mxu0 0
      %2109 = vmatpush1.bf16.xpose.msra.mxu0 0
      %2110 = vmatprep.subr.bf16.mxu0 0
      %2111 = vmatpush1.bf16.xpose.msra.mxu0 0
      %2112 = vmatprep.subr.bf16.mxu0 0
      %2113 = vmatpush1.bf16.xpose.msra.mxu0 0
      %2114 = vmatprep.subr.bf16.mxu0 0
      %2115 = vmatpush1.bf16.xpose.msra.mxu0 0
      %2116 = vmatprep.subr.bf16.mxu0 0
      %2117 = vmatpush1.bf16.xpose.msra.mxu0 0
      %2118 = vmatprep.subr.bf16.mxu0 0
      %2119 = vmatpush1.bf16.xpose.msra.mxu0 0
      %2120 = vmatprep.subr.bf16.mxu0 0
      %2121 = vmatpush1.bf16.xpose.msra.mxu0 0
      %2122 = vmatprep.subr.bf16.mxu0 0
      %2123 = vmatpush1.bf16.xpose.msra.mxu0 0
      %2124 = vmatprep.subr.bf16.mxu0 0
      %2125 = vmatpush1.bf16.xpose.msra.mxu0 0
      %2126 = vmatprep.subr.bf16.mxu0 0
      %2127 = vmatpush1.bf16.xpose.msra.mxu0 0
      %2128 = vmatprep.subr.bf16.mxu0 0
      %2129 = vmatpush1.bf16.xpose.msra.mxu0 0
      %2130 = vmatprep.subr.bf16.mxu0 0
      %2131 = vmatpush1.bf16.xpose.msra.mxu0 0
      %2132 = vmatprep.subr.bf16.mxu0 0
      %2133 = vmatpush1.bf16.xpose.msra.mxu0 0
      %2134 = vmatprep.subr.bf16.mxu0 0
      %2135 = vmatpush1.bf16.xpose.msra.mxu0 0
      %2136 = vmatprep.mubr.bf16.mxu0 0
      %2137 = vmatmul.mubr.bf16.gmra.mrb[0].mxu0 %v2099
      %v2138 = vpop.f32.mrb[0].mxu0
      %v2139 = vadd.f32 0.0, %v2138
      %v2140 = vpop.f32.mrb[0].mxu0
      %v2141 = vpop.f32.mrb[0].mxu0
      %v2142 = vpop.f32.mrb[0].mxu0
      %2143 = vdwg.mxu0
      %v2145 = vsel %vm401, %v1794, 0
      %v2148 = vsel %vm401, %v1826, 0
      %2150 = vmatprep.subr.bf16.mxu0 0
      %2151 = vmatpush1.bf16.xpose.msra.mxu0 %v2148
      %2152 = vmatprep.subr.bf16.mxu0 0
      %2153 = vmatpush1.bf16.xpose.msra.mxu0 0
      %2154 = vmatprep.subr.bf16.mxu0 0
      %2155 = vmatpush1.bf16.xpose.msra.mxu0 0
      %2156 = vmatprep.subr.bf16.mxu0 0
      %2157 = vmatpush1.bf16.xpose.msra.mxu0 0
      %2158 = vmatprep.subr.bf16.mxu0 0
      %2159 = vmatpush1.bf16.xpose.msra.mxu0 0
      %2160 = vmatprep.subr.bf16.mxu0 0
      %2161 = vmatpush1.bf16.xpose.msra.mxu0 0
      %2162 = vmatprep.subr.bf16.mxu0 0
      %2163 = vmatpush1.bf16.xpose.msra.mxu0 0
      %2164 = vmatprep.subr.bf16.mxu0 0
      %2165 = vmatpush1.bf16.xpose.msra.mxu0 0
      %2166 = vmatprep.subr.bf16.mxu0 0
      %2167 = vmatpush1.bf16.xpose.msra.mxu0 0
      %2168 = vmatprep.subr.bf16.mxu0 0
      %2169 = vmatpush1.bf16.xpose.msra.mxu0 0
      %2170 = vmatprep.subr.bf16.mxu0 0
      %2171 = vmatpush1.bf16.xpose.msra.mxu0 0
      %2172 = vmatprep.subr.bf16.mxu0 0
      %2173 = vmatpush1.bf16.xpose.msra.mxu0 0
      %2174 = vmatprep.subr.bf16.mxu0 0
      %2175 = vmatpush1.bf16.xpose.msra.mxu0 0
      %2176 = vmatprep.subr.bf16.mxu0 0
      %2177 = vmatpush1.bf16.xpose.msra.mxu0 0
      %2178 = vmatprep.subr.bf16.mxu0 0
      %2179 = vmatpush1.bf16.xpose.msra.mxu0 0
      %2180 = vmatprep.subr.bf16.mxu0 0
      %2181 = vmatpush1.bf16.xpose.msra.mxu0 0
      %2182 = vmatprep.mubr.bf16.mxu0 0
      %2183 = vmatmul.mubr.bf16.gmra.mrb[0].mxu0 %v2145
      %v2184 = vpop.f32.mrb[0].mxu0
      %v2185 = vadd.f32 0.0, %v2184
      %v2186 = vpop.f32.mrb[0].mxu0
      %v2187 = vpop.f32.mrb[0].mxu0
      %v2188 = vpop.f32.mrb[0].mxu0
      %2189 = vdwg.mxu0
      %v2191 = vsel %vm401, %v1795, 0
      %v2194 = vsel %vm401, %v1827, 0
      %2196 = vmatprep.subr.bf16.mxu0 0
      %2197 = vmatpush1.bf16.xpose.msra.mxu0 %v2194
      %2198 = vmatprep.subr.bf16.mxu0 0
      %2199 = vmatpush1.bf16.xpose.msra.mxu0 0
      %2200 = vmatprep.subr.bf16.mxu0 0
      %2201 = vmatpush1.bf16.xpose.msra.mxu0 0
      %2202 = vmatprep.subr.bf16.mxu0 0
      %2203 = vmatpush1.bf16.xpose.msra.mxu0 0
      %2204 = vmatprep.subr.bf16.mxu0 0
      %2205 = vmatpush1.bf16.xpose.msra.mxu0 0
      %2206 = vmatprep.subr.bf16.mxu0 0
      %2207 = vmatpush1.bf16.xpose.msra.mxu0 0
      %2208 = vmatprep.subr.bf16.mxu0 0
      %2209 = vmatpush1.bf16.xpose.msra.mxu0 0
      %2210 = vmatprep.subr.bf16.mxu0 0
      %2211 = vmatpush1.bf16.xpose.msra.mxu0 0
      %2212 = vmatprep.subr.bf16.mxu0 0
      %2213 = vmatpush1.bf16.xpose.msra.mxu0 0
      %2214 = vmatprep.subr.bf16.mxu0 0
      %2215 = vmatpush1.bf16.xpose.msra.mxu0 0
      %2216 = vmatprep.subr.bf16.mxu0 0
      %2217 = vmatpush1.bf16.xpose.msra.mxu0 0
      %2218 = vmatprep.subr.bf16.mxu0 0
      %2219 = vmatpush1.bf16.xpose.msra.mxu0 0
      %2220 = vmatprep.subr.bf16.mxu0 0
      %2221 = vmatpush1.bf16.xpose.msra.mxu0 0
      %2222 = vmatprep.subr.bf16.mxu0 0
      %2223 = vmatpush1.bf16.xpose.msra.mxu0 0
      %2224 = vmatprep.subr.bf16.mxu0 0
      %2225 = vmatpush1.bf16.xpose.msra.mxu0 0
      %2226 = vmatprep.subr.bf16.mxu0 0
      %2227 = vmatpush1.bf16.xpose.msra.mxu0 0
      %2228 = vmatprep.mubr.bf16.mxu0 0
      %2229 = vmatmul.mubr.bf16.gmra.mrb[0].mxu0 %v2191
      %v2230 = vpop.f32.mrb[0].mxu0
      %v2231 = vadd.f32 0.0, %v2230
      %v2232 = vpop.f32.mrb[0].mxu0
      %v2233 = vpop.f32.mrb[0].mxu0
      %v2234 = vpop.f32.mrb[0].mxu0
      %2235 = vdwg.mxu0
      %v2237 = vsel %vm401, %v1796, 0
      %v2240 = vsel %vm401, %v1828, 0
      %2242 = vmatprep.subr.bf16.mxu0 0
      %2243 = vmatpush1.bf16.xpose.msra.mxu0 %v2240
      %2244 = vmatprep.subr.bf16.mxu0 0
      %2245 = vmatpush1.bf16.xpose.msra.mxu0 0
      %2246 = vmatprep.subr.bf16.mxu0 0
      %2247 = vmatpush1.bf16.xpose.msra.mxu0 0
      %2248 = vmatprep.subr.bf16.mxu0 0
      %2249 = vmatpush1.bf16.xpose.msra.mxu0 0
      %2250 = vmatprep.subr.bf16.mxu0 0
      %2251 = vmatpush1.bf16.xpose.msra.mxu0 0
      %2252 = vmatprep.subr.bf16.mxu0 0
      %2253 = vmatpush1.bf16.xpose.msra.mxu0 0
      %2254 = vmatprep.subr.bf16.mxu0 0
      %2255 = vmatpush1.bf16.xpose.msra.mxu0 0
      %2256 = vmatprep.subr.bf16.mxu0 0
      %2257 = vmatpush1.bf16.xpose.msra.mxu0 0
      %2258 = vmatprep.subr.bf16.mxu0 0
      %2259 = vmatpush1.bf16.xpose.msra.mxu0 0
      %2260 = vmatprep.subr.bf16.mxu0 0
      %2261 = vmatpush1.bf16.xpose.msra.mxu0 0
      %2262 = vmatprep.subr.bf16.mxu0 0
      %2263 = vmatpush1.bf16.xpose.msra.mxu0 0
      %2264 = vmatprep.subr.bf16.mxu0 0
      %2265 = vmatpush1.bf16.xpose.msra.mxu0 0
      %2266 = vmatprep.subr.bf16.mxu0 0
      %2267 = vmatpush1.bf16.xpose.msra.mxu0 0
      %2268 = vmatprep.subr.bf16.mxu0 0
      %2269 = vmatpush1.bf16.xpose.msra.mxu0 0
      %2270 = vmatprep.subr.bf16.mxu0 0
      %2271 = vmatpush1.bf16.xpose.msra.mxu0 0
      %2272 = vmatprep.subr.bf16.mxu0 0
      %2273 = vmatpush1.bf16.xpose.msra.mxu0 0
      %2274 = vmatprep.mubr.bf16.mxu0 0
      %2275 = vmatmul.mubr.bf16.gmra.mrb[0].mxu0 %v2237
      %v2276 = vpop.f32.mrb[0].mxu0
      %v2277 = vadd.f32 0.0, %v2276
      %v2278 = vpop.f32.mrb[0].mxu0
      %v2279 = vpop.f32.mrb[0].mxu0
      %v2280 = vpop.f32.mrb[0].mxu0
      %2281 = vdwg.mxu0
      %v2283 = vsel %vm401, %v1797, 0
      %v2286 = vsel %vm401, %v1829, 0
      %2288 = vmatprep.subr.bf16.mxu0 0
      %2289 = vmatpush1.bf16.xpose.msra.mxu0 %v2286
      %2290 = vmatprep.subr.bf16.mxu0 0
      %2291 = vmatpush1.bf16.xpose.msra.mxu0 0
      %2292 = vmatprep.subr.bf16.mxu0 0
      %2293 = vmatpush1.bf16.xpose.msra.mxu0 0
      %2294 = vmatprep.subr.bf16.mxu0 0
      %2295 = vmatpush1.bf16.xpose.msra.mxu0 0
      %2296 = vmatprep.subr.bf16.mxu0 0
      %2297 = vmatpush1.bf16.xpose.msra.mxu0 0
      %2298 = vmatprep.subr.bf16.mxu0 0
      %2299 = vmatpush1.bf16.xpose.msra.mxu0 0
      %2300 = vmatprep.subr.bf16.mxu0 0
      %2301 = vmatpush1.bf16.xpose.msra.mxu0 0
      %2302 = vmatprep.subr.bf16.mxu0 0
      %2303 = vmatpush1.bf16.xpose.msra.mxu0 0
      %2304 = vmatprep.subr.bf16.mxu0 0
      %2305 = vmatpush1.bf16.xpose.msra.mxu0 0
      %2306 = vmatprep.subr.bf16.mxu0 0
      %2307 = vmatpush1.bf16.xpose.msra.mxu0 0
      %2308 = vmatprep.subr.bf16.mxu0 0
      %2309 = vmatpush1.bf16.xpose.msra.mxu0 0
      %2310 = vmatprep.subr.bf16.mxu0 0
      %2311 = vmatpush1.bf16.xpose.msra.mxu0 0
      %2312 = vmatprep.subr.bf16.mxu0 0
      %2313 = vmatpush1.bf16.xpose.msra.mxu0 0
      %2314 = vmatprep.subr.bf16.mxu0 0
      %2315 = vmatpush1.bf16.xpose.msra.mxu0 0
      %2316 = vmatprep.subr.bf16.mxu0 0
      %2317 = vmatpush1.bf16.xpose.msra.mxu0 0
      %2318 = vmatprep.subr.bf16.mxu0 0
      %2319 = vmatpush1.bf16.xpose.msra.mxu0 0
      %2320 = vmatprep.mubr.bf16.mxu0 0
      %2321 = vmatmul.mubr.bf16.gmra.mrb[0].mxu0 %v2283
      %v2322 = vpop.f32.mrb[0].mxu0
      %v2323 = vadd.f32 0.0, %v2322
      %v2324 = vpop.f32.mrb[0].mxu0
      %v2325 = vpop.f32.mrb[0].mxu0
      %v2326 = vpop.f32.mrb[0].mxu0
      %2327 = vdwg.mxu0
      %v2329 = vsel %vm401, %v1798, 0
      %v2332 = vsel %vm401, %v1830, 0
      %2334 = vmatprep.subr.bf16.mxu0 0
      %2335 = vmatpush1.bf16.xpose.msra.mxu0 %v2332
      %2336 = vmatprep.subr.bf16.mxu0 0
      %2337 = vmatpush1.bf16.xpose.msra.mxu0 0
      %2338 = vmatprep.subr.bf16.mxu0 0
      %2339 = vmatpush1.bf16.xpose.msra.mxu0 0
      %2340 = vmatprep.subr.bf16.mxu0 0
      %2341 = vmatpush1.bf16.xpose.msra.mxu0 0
      %2342 = vmatprep.subr.bf16.mxu0 0
      %2343 = vmatpush1.bf16.xpose.msra.mxu0 0
      %2344 = vmatprep.subr.bf16.mxu0 0
      %2345 = vmatpush1.bf16.xpose.msra.mxu0 0
      %2346 = vmatprep.subr.bf16.mxu0 0
      %2347 = vmatpush1.bf16.xpose.msra.mxu0 0
      %2348 = vmatprep.subr.bf16.mxu0 0
      %2349 = vmatpush1.bf16.xpose.msra.mxu0 0
      %2350 = vmatprep.subr.bf16.mxu0 0
      %2351 = vmatpush1.bf16.xpose.msra.mxu0 0
      %2352 = vmatprep.subr.bf16.mxu0 0
      %2353 = vmatpush1.bf16.xpose.msra.mxu0 0
      %2354 = vmatprep.subr.bf16.mxu0 0
      %2355 = vmatpush1.bf16.xpose.msra.mxu0 0
      %2356 = vmatprep.subr.bf16.mxu0 0
      %2357 = vmatpush1.bf16.xpose.msra.mxu0 0
      %2358 = vmatprep.subr.bf16.mxu0 0
      %2359 = vmatpush1.bf16.xpose.msra.mxu0 0
      %2360 = vmatprep.subr.bf16.mxu0 0
      %2361 = vmatpush1.bf16.xpose.msra.mxu0 0
      %2362 = vmatprep.subr.bf16.mxu0 0
      %2363 = vmatpush1.bf16.xpose.msra.mxu0 0
      %2364 = vmatprep.subr.bf16.mxu0 0
      %2365 = vmatpush1.bf16.xpose.msra.mxu0 0
      %2366 = vmatprep.mubr.bf16.mxu0 0
      %2367 = vmatmul.mubr.bf16.gmra.mrb[0].mxu0 %v2329
      %v2368 = vpop.f32.mrb[0].mxu0
      %v2369 = vadd.f32 0.0, %v2368
      %v2370 = vpop.f32.mrb[0].mxu0
      %v2371 = vpop.f32.mrb[0].mxu0
      %v2372 = vpop.f32.mrb[0].mxu0
      %2373 = vdwg.mxu0
      %v2375 = vsel %vm401, %v1799, 0
      %v2378 = vsel %vm401, %v1831, 0
      %2380 = vmatprep.subr.bf16.mxu0 0
      %2381 = vmatpush1.bf16.xpose.msra.mxu0 %v2378
      %2382 = vmatprep.subr.bf16.mxu0 0
      %2383 = vmatpush1.bf16.xpose.msra.mxu0 0
      %2384 = vmatprep.subr.bf16.mxu0 0
      %2385 = vmatpush1.bf16.xpose.msra.mxu0 0
      %2386 = vmatprep.subr.bf16.mxu0 0
      %2387 = vmatpush1.bf16.xpose.msra.mxu0 0
      %2388 = vmatprep.subr.bf16.mxu0 0
      %2389 = vmatpush1.bf16.xpose.msra.mxu0 0
      %2390 = vmatprep.subr.bf16.mxu0 0
      %2391 = vmatpush1.bf16.xpose.msra.mxu0 0
      %2392 = vmatprep.subr.bf16.mxu0 0
      %2393 = vmatpush1.bf16.xpose.msra.mxu0 0
      %2394 = vmatprep.subr.bf16.mxu0 0
      %2395 = vmatpush1.bf16.xpose.msra.mxu0 0
      %2396 = vmatprep.subr.bf16.mxu0 0
      %2397 = vmatpush1.bf16.xpose.msra.mxu0 0
      %2398 = vmatprep.subr.bf16.mxu0 0
      %2399 = vmatpush1.bf16.xpose.msra.mxu0 0
      %2400 = vmatprep.subr.bf16.mxu0 0
      %2401 = vmatpush1.bf16.xpose.msra.mxu0 0
      %2402 = vmatprep.subr.bf16.mxu0 0
      %2403 = vmatpush1.bf16.xpose.msra.mxu0 0
      %2404 = vmatprep.subr.bf16.mxu0 0
      %2405 = vmatpush1.bf16.xpose.msra.mxu0 0
      %2406 = vmatprep.subr.bf16.mxu0 0
      %2407 = vmatpush1.bf16.xpose.msra.mxu0 0
      %2408 = vmatprep.subr.bf16.mxu0 0
      %2409 = vmatpush1.bf16.xpose.msra.mxu0 0
      %2410 = vmatprep.subr.bf16.mxu0 0
      %2411 = vmatpush1.bf16.xpose.msra.mxu0 0
      %2412 = vmatprep.mubr.bf16.mxu0 0
      %2413 = vmatmul.mubr.bf16.gmra.mrb[0].mxu0 %v2375
      %v2414 = vpop.f32.mrb[0].mxu0
      %v2415 = vadd.f32 0.0, %v2414
      %v2416 = vpop.f32.mrb[0].mxu0
      %v2417 = vpop.f32.mrb[0].mxu0
      %v2418 = vpop.f32.mrb[0].mxu0
      %2419 = vdwg.mxu0
      %v2421 = vsel %vm401, %v1800, 0
      %v2424 = vsel %vm401, %v1832, 0
      %2426 = vmatprep.subr.bf16.mxu0 0
      %2427 = vmatpush1.bf16.xpose.msra.mxu0 %v2424
      %2428 = vmatprep.subr.bf16.mxu0 0
      %2429 = vmatpush1.bf16.xpose.msra.mxu0 0
      %2430 = vmatprep.subr.bf16.mxu0 0
      %2431 = vmatpush1.bf16.xpose.msra.mxu0 0
      %2432 = vmatprep.subr.bf16.mxu0 0
      %2433 = vmatpush1.bf16.xpose.msra.mxu0 0
      %2434 = vmatprep.subr.bf16.mxu0 0
      %2435 = vmatpush1.bf16.xpose.msra.mxu0 0
      %2436 = vmatprep.subr.bf16.mxu0 0
      %2437 = vmatpush1.bf16.xpose.msra.mxu0 0
      %2438 = vmatprep.subr.bf16.mxu0 0
      %2439 = vmatpush1.bf16.xpose.msra.mxu0 0
      %2440 = vmatprep.subr.bf16.mxu0 0
      %2441 = vmatpush1.bf16.xpose.msra.mxu0 0
      %2442 = vmatprep.subr.bf16.mxu0 0
      %2443 = vmatpush1.bf16.xpose.msra.mxu0 0
      %2444 = vmatprep.subr.bf16.mxu0 0
      %2445 = vmatpush1.bf16.xpose.msra.mxu0 0
      %2446 = vmatprep.subr.bf16.mxu0 0
      %2447 = vmatpush1.bf16.xpose.msra.mxu0 0
      %2448 = vmatprep.subr.bf16.mxu0 0
      %2449 = vmatpush1.bf16.xpose.msra.mxu0 0
      %2450 = vmatprep.subr.bf16.mxu0 0
      %2451 = vmatpush1.bf16.xpose.msra.mxu0 0
      %2452 = vmatprep.subr.bf16.mxu0 0
      %2453 = vmatpush1.bf16.xpose.msra.mxu0 0
      %2454 = vmatprep.subr.bf16.mxu0 0
      %2455 = vmatpush1.bf16.xpose.msra.mxu0 0
      %2456 = vmatprep.subr.bf16.mxu0 0
      %2457 = vmatpush1.bf16.xpose.msra.mxu0 0
      %2458 = vmatprep.mubr.bf16.mxu0 0
      %2459 = vmatmul.mubr.bf16.gmra.mrb[0].mxu0 %v2421
      %v2460 = vpop.f32.mrb[0].mxu0
      %v2461 = vadd.f32 0.0, %v2460
      %v2462 = vpop.f32.mrb[0].mxu0
      %v2463 = vpop.f32.mrb[0].mxu0
      %v2464 = vpop.f32.mrb[0].mxu0
      %2465 = vdwg.mxu0
      %v2467 = vsel %vm401, %v1801, 0
      %v2470 = vsel %vm401, %v1833, 0
      %2472 = vmatprep.subr.bf16.mxu0 0
      %2473 = vmatpush1.bf16.xpose.msra.mxu0 %v2470
      %2474 = vmatprep.subr.bf16.mxu0 0
      %2475 = vmatpush1.bf16.xpose.msra.mxu0 0
      %2476 = vmatprep.subr.bf16.mxu0 0
      %2477 = vmatpush1.bf16.xpose.msra.mxu0 0
      %2478 = vmatprep.subr.bf16.mxu0 0
      %2479 = vmatpush1.bf16.xpose.msra.mxu0 0
      %2480 = vmatprep.subr.bf16.mxu0 0
      %2481 = vmatpush1.bf16.xpose.msra.mxu0 0
      %2482 = vmatprep.subr.bf16.mxu0 0
      %2483 = vmatpush1.bf16.xpose.msra.mxu0 0
      %2484 = vmatprep.subr.bf16.mxu0 0
      %2485 = vmatpush1.bf16.xpose.msra.mxu0 0
      %2486 = vmatprep.subr.bf16.mxu0 0
      %2487 = vmatpush1.bf16.xpose.msra.mxu0 0
      %2488 = vmatprep.subr.bf16.mxu0 0
      %2489 = vmatpush1.bf16.xpose.msra.mxu0 0
      %2490 = vmatprep.subr.bf16.mxu0 0
      %2491 = vmatpush1.bf16.xpose.msra.mxu0 0
      %2492 = vmatprep.subr.bf16.mxu0 0
      %2493 = vmatpush1.bf16.xpose.msra.mxu0 0
      %2494 = vmatprep.subr.bf16.mxu0 0
      %2495 = vmatpush1.bf16.xpose.msra.mxu0 0
      %2496 = vmatprep.subr.bf16.mxu0 0
      %2497 = vmatpush1.bf16.xpose.msra.mxu0 0
      %2498 = vmatprep.subr.bf16.mxu0 0
      %2499 = vmatpush1.bf16.xpose.msra.mxu0 0
      %2500 = vmatprep.subr.bf16.mxu0 0
      %2501 = vmatpush1.bf16.xpose.msra.mxu0 0
      %2502 = vmatprep.subr.bf16.mxu0 0
      %2503 = vmatpush1.bf16.xpose.msra.mxu0 0
      %2504 = vmatprep.mubr.bf16.mxu0 0
      %2505 = vmatmul.mubr.bf16.gmra.mrb[0].mxu0 %v2467
      %v2506 = vpop.f32.mrb[0].mxu0
      %v2507 = vadd.f32 0.0, %v2506
      %v2508 = vpop.f32.mrb[0].mxu0
      %v2509 = vpop.f32.mrb[0].mxu0
      %v2510 = vpop.f32.mrb[0].mxu0
      %2511 = vdwg.mxu0
      %v2513 = vsel %vm401, %v1802, 0
      %v2516 = vsel %vm401, %v1834, 0
      %2518 = vmatprep.subr.bf16.mxu0 0
      %2519 = vmatpush1.bf16.xpose.msra.mxu0 %v2516
      %2520 = vmatprep.subr.bf16.mxu0 0
      %2521 = vmatpush1.bf16.xpose.msra.mxu0 0
      %2522 = vmatprep.subr.bf16.mxu0 0
      %2523 = vmatpush1.bf16.xpose.msra.mxu0 0
      %2524 = vmatprep.subr.bf16.mxu0 0
      %2525 = vmatpush1.bf16.xpose.msra.mxu0 0
      %2526 = vmatprep.subr.bf16.mxu0 0
      %2527 = vmatpush1.bf16.xpose.msra.mxu0 0
      %2528 = vmatprep.subr.bf16.mxu0 0
      %2529 = vmatpush1.bf16.xpose.msra.mxu0 0
      %2530 = vmatprep.subr.bf16.mxu0 0
      %2531 = vmatpush1.bf16.xpose.msra.mxu0 0
      %2532 = vmatprep.subr.bf16.mxu0 0
      %2533 = vmatpush1.bf16.xpose.msra.mxu0 0
      %2534 = vmatprep.subr.bf16.mxu0 0
      %2535 = vmatpush1.bf16.xpose.msra.mxu0 0
      %2536 = vmatprep.subr.bf16.mxu0 0
      %2537 = vmatpush1.bf16.xpose.msra.mxu0 0
      %2538 = vmatprep.subr.bf16.mxu0 0
      %2539 = vmatpush1.bf16.xpose.msra.mxu0 0
      %2540 = vmatprep.subr.bf16.mxu0 0
      %2541 = vmatpush1.bf16.xpose.msra.mxu0 0
      %2542 = vmatprep.subr.bf16.mxu0 0
      %2543 = vmatpush1.bf16.xpose.msra.mxu0 0
      %2544 = vmatprep.subr.bf16.mxu0 0
      %2545 = vmatpush1.bf16.xpose.msra.mxu0 0
      %2546 = vmatprep.subr.bf16.mxu0 0
      %2547 = vmatpush1.bf16.xpose.msra.mxu0 0
      %2548 = vmatprep.subr.bf16.mxu0 0
      %2549 = vmatpush1.bf16.xpose.msra.mxu0 0
      %2550 = vmatprep.mubr.bf16.mxu0 0
      %2551 = vmatmul.mubr.bf16.gmra.mrb[0].mxu0 %v2513
      %v2552 = vpop.f32.mrb[0].mxu0
      %v2553 = vadd.f32 0.0, %v2552
      %v2554 = vpop.f32.mrb[0].mxu0
      %v2555 = vpop.f32.mrb[0].mxu0
      %v2556 = vpop.f32.mrb[0].mxu0
      %2557 = vdwg.mxu0
      %v2559 = vsel %vm401, %v1803, 0
      %v2562 = vsel %vm401, %v1835, 0
      %2564 = vmatprep.subr.bf16.mxu0 0
      %2565 = vmatpush1.bf16.xpose.msra.mxu0 %v2562
      %2566 = vmatprep.subr.bf16.mxu0 0
      %2567 = vmatpush1.bf16.xpose.msra.mxu0 0
      %2568 = vmatprep.subr.bf16.mxu0 0
      %2569 = vmatpush1.bf16.xpose.msra.mxu0 0
      %2570 = vmatprep.subr.bf16.mxu0 0
      %2571 = vmatpush1.bf16.xpose.msra.mxu0 0
      %2572 = vmatprep.subr.bf16.mxu0 0
      %2573 = vmatpush1.bf16.xpose.msra.mxu0 0
      %2574 = vmatprep.subr.bf16.mxu0 0
      %2575 = vmatpush1.bf16.xpose.msra.mxu0 0
      %2576 = vmatprep.subr.bf16.mxu0 0
      %2577 = vmatpush1.bf16.xpose.msra.mxu0 0
      %2578 = vmatprep.subr.bf16.mxu0 0
      %2579 = vmatpush1.bf16.xpose.msra.mxu0 0
      %2580 = vmatprep.subr.bf16.mxu0 0
      %2581 = vmatpush1.bf16.xpose.msra.mxu0 0
      %2582 = vmatprep.subr.bf16.mxu0 0
      %2583 = vmatpush1.bf16.xpose.msra.mxu0 0
      %2584 = vmatprep.subr.bf16.mxu0 0
      %2585 = vmatpush1.bf16.xpose.msra.mxu0 0
      %2586 = vmatprep.subr.bf16.mxu0 0
      %2587 = vmatpush1.bf16.xpose.msra.mxu0 0
      %2588 = vmatprep.subr.bf16.mxu0 0
      %2589 = vmatpush1.bf16.xpose.msra.mxu0 0
      %2590 = vmatprep.subr.bf16.mxu0 0
      %2591 = vmatpush1.bf16.xpose.msra.mxu0 0
      %2592 = vmatprep.subr.bf16.mxu0 0
      %2593 = vmatpush1.bf16.xpose.msra.mxu0 0
      %2594 = vmatprep.subr.bf16.mxu0 0
      %2595 = vmatpush1.bf16.xpose.msra.mxu0 0
      %2596 = vmatprep.mubr.bf16.mxu0 0
      %2597 = vmatmul.mubr.bf16.gmra.mrb[0].mxu0 %v2559
      %v2598 = vpop.f32.mrb[0].mxu0
      %v2599 = vadd.f32 0.0, %v2598
      %v2600 = vpop.f32.mrb[0].mxu0
      %v2601 = vpop.f32.mrb[0].mxu0
      %v2602 = vpop.f32.mrb[0].mxu0
      %2603 = vdwg.mxu0
      %v2604 = vsel %vm401, %v1909, -inf
      %2605 = vmax.xlane.f32.xlu0 %v2604
      %v2606 = vpop.xlane.xlu0 %2605
      %v2607 = vsel %vm401, %v1955, -inf
      %2608 = vmax.xlane.f32.xlu0 %v2607
      %v2609 = vpop.xlane.xlu0 %2608
      %v2610 = vsel %vm401, %v2001, -inf
      %2611 = vmax.xlane.f32.xlu0 %v2610
      %v2612 = vpop.xlane.xlu0 %2611
      %v2613 = vsel %vm401, %v2047, -inf
      %2614 = vmax.xlane.f32.xlu0 %v2613
      %v2615 = vpop.xlane.xlu0 %2614
      %v2616 = vsel %vm401, %v2093, -inf
      %2617 = vmax.xlane.f32.xlu0 %v2616
      %v2618 = vpop.xlane.xlu0 %2617
      %v2619 = vsel %vm401, %v2139, -inf
      %2620 = vmax.xlane.f32.xlu0 %v2619
      %v2621 = vpop.xlane.xlu0 %2620
      %v2622 = vsel %vm401, %v2185, -inf
      %2623 = vmax.xlane.f32.xlu0 %v2622
      %v2624 = vpop.xlane.xlu0 %2623
      %v2625 = vsel %vm401, %v2231, -inf
      %2626 = vmax.xlane.f32.xlu0 %v2625
      %v2627 = vpop.xlane.xlu0 %2626
      %v2628 = vsel %vm401, %v2277, -inf
      %2629 = vmax.xlane.f32.xlu0 %v2628
      %v2630 = vpop.xlane.xlu0 %2629
      %v2631 = vsel %vm401, %v2323, -inf
      %2632 = vmax.xlane.f32.xlu0 %v2631
      %v2633 = vpop.xlane.xlu0 %2632
      %v2634 = vsel %vm401, %v2369, -inf
      %2635 = vmax.xlane.f32.xlu0 %v2634
      %v2636 = vpop.xlane.xlu0 %2635
      %v2637 = vsel %vm401, %v2415, -inf
      %2638 = vmax.xlane.f32.xlu0 %v2637
      %v2639 = vpop.xlane.xlu0 %2638
      %v2640 = vsel %vm401, %v2461, -inf
      %2641 = vmax.xlane.f32.xlu0 %v2640
      %v2642 = vpop.xlane.xlu0 %2641
      %v2643 = vsel %vm401, %v2507, -inf
      %2644 = vmax.xlane.f32.xlu0 %v2643
      %v2645 = vpop.xlane.xlu0 %2644
      %v2646 = vsel %vm401, %v2553, -inf
      %2647 = vmax.xlane.f32.xlu0 %v2646
      %v2648 = vpop.xlane.xlu0 %2647
      %v2649 = vsel %vm401, %v2599, -inf
      %2650 = vmax.xlane.f32.xlu0 %v2649
      %v2651 = vpop.xlane.xlu0 %2650
      %v2652 = vsub.f32 %v1909, %v2606
      %v2653 = vsub.f32 %v1955, %v2609
      %v2654 = vsub.f32 %v2001, %v2612
      %v2655 = vsub.f32 %v2047, %v2615
      %v2656 = vsub.f32 %v2093, %v2618
      %v2657 = vsub.f32 %v2139, %v2621
      %v2658 = vsub.f32 %v2185, %v2624
      %v2659 = vsub.f32 %v2231, %v2627
      %v2660 = vsub.f32 %v2277, %v2630
      %v2661 = vsub.f32 %v2323, %v2633
      %v2662 = vsub.f32 %v2369, %v2636
      %v2663 = vsub.f32 %v2415, %v2639
      %v2664 = vsub.f32 %v2461, %v2642
      %v2665 = vsub.f32 %v2507, %v2645
      %v2666 = vsub.f32 %v2553, %v2648
      %v2667 = vsub.f32 %v2599, %v2651
      %v2668 = vmul.f32 %v2652, 1.442695
      %v2669 = vpow.pop %v2668
      %v2670 = vmul.f32 %v2653, 1.442695
      %v2671 = vpow.pop %v2670
      %v2672 = vmul.f32 %v2654, 1.442695
      %v2673 = vpow.pop %v2672
      %v2674 = vmul.f32 %v2655, 1.442695
      %v2675 = vpow.pop %v2674
      %v2676 = vmul.f32 %v2656, 1.442695
      %v2677 = vpow.pop %v2676
      %v2678 = vmul.f32 %v2657, 1.442695
      %v2679 = vpow.pop %v2678
      %v2680 = vmul.f32 %v2658, 1.442695
      %v2681 = vpow.pop %v2680
      %v2682 = vmul.f32 %v2659, 1.442695
      %v2683 = vpow.pop %v2682
      %v2684 = vmul.f32 %v2660, 1.442695
      %v2685 = vpow.pop %v2684
      %v2686 = vmul.f32 %v2661, 1.442695
      %v2687 = vpow.pop %v2686
      %v2688 = vmul.f32 %v2662, 1.442695
      %v2689 = vpow.pop %v2688
      %v2690 = vmul.f32 %v2663, 1.442695
      %v2691 = vpow.pop %v2690
      %v2692 = vmul.f32 %v2664, 1.442695
      %v2693 = vpow.pop %v2692
      %v2694 = vmul.f32 %v2665, 1.442695
      %v2695 = vpow.pop %v2694
      %v2696 = vmul.f32 %v2666, 1.442695
      %v2697 = vpow.pop %v2696
      %v2698 = vmul.f32 %v2667, 1.442695
      %v2699 = vpow.pop %v2698
      %v2700 = vsel %vm401, %v2669, 0.0
      %2701 = vadd.xlane.f32.xlu0 %v2700
      %v2702 = vpop.xlane.xlu0 %2701
      %v2703 = vsel %vm401, %v2671, 0.0
      %2704 = vadd.xlane.f32.xlu0 %v2703
      %v2705 = vpop.xlane.xlu0 %2704
      %v2706 = vsel %vm401, %v2673, 0.0
      %2707 = vadd.xlane.f32.xlu0 %v2706
      %v2708 = vpop.xlane.xlu0 %2707
      %v2709 = vsel %vm401, %v2675, 0.0
      %2710 = vadd.xlane.f32.xlu0 %v2709
      %v2711 = vpop.xlane.xlu0 %2710
      %v2712 = vsel %vm401, %v2677, 0.0
      %2713 = vadd.xlane.f32.xlu0 %v2712
      %v2714 = vpop.xlane.xlu0 %2713
      %v2715 = vsel %vm401, %v2679, 0.0
      %2716 = vadd.xlane.f32.xlu0 %v2715
      %v2717 = vpop.xlane.xlu0 %2716
      %v2718 = vsel %vm401, %v2681, 0.0
      %2719 = vadd.xlane.f32.xlu0 %v2718
      %v2720 = vpop.xlane.xlu0 %2719
      %v2721 = vsel %vm401, %v2683, 0.0
      %2722 = vadd.xlane.f32.xlu0 %v2721
      %v2723 = vpop.xlane.xlu0 %2722
      %v2724 = vsel %vm401, %v2685, 0.0
      %2725 = vadd.xlane.f32.xlu0 %v2724
      %v2726 = vpop.xlane.xlu0 %2725
      %v2727 = vsel %vm401, %v2687, 0.0
      %2728 = vadd.xlane.f32.xlu0 %v2727
      %v2729 = vpop.xlane.xlu0 %2728
      %v2730 = vsel %vm401, %v2689, 0.0
      %2731 = vadd.xlane.f32.xlu0 %v2730
      %v2732 = vpop.xlane.xlu0 %2731
      %v2733 = vsel %vm401, %v2691, 0.0
      %2734 = vadd.xlane.f32.xlu0 %v2733
      %v2735 = vpop.xlane.xlu0 %2734
      %v2736 = vsel %vm401, %v2693, 0.0
      %2737 = vadd.xlane.f32.xlu0 %v2736
      %v2738 = vpop.xlane.xlu0 %2737
      %v2739 = vsel %vm401, %v2695, 0.0
      %2740 = vadd.xlane.f32.xlu0 %v2739
      %v2741 = vpop.xlane.xlu0 %2740
      %v2742 = vsel %vm401, %v2697, 0.0
      %2743 = vadd.xlane.f32.xlu0 %v2742
      %v2744 = vpop.xlane.xlu0 %2743
      %v2745 = vsel %vm401, %v2699, 0.0
      %2746 = vadd.xlane.f32.xlu0 %v2745
      %v2747 = vpop.xlane.xlu0 %2746
      %v2748 = vrcp.pop %v2702
      %v2749 = vrcp.pop %v2705
      %v2750 = vrcp.pop %v2708
      %v2751 = vrcp.pop %v2711
      %v2752 = vrcp.pop %v2714
      %v2753 = vrcp.pop %v2717
      %v2754 = vrcp.pop %v2720
      %v2755 = vrcp.pop %v2723
      %v2756 = vrcp.pop %v2726
      %v2757 = vrcp.pop %v2729
      %v2758 = vrcp.pop %v2732
      %v2759 = vrcp.pop %v2735
      %v2760 = vrcp.pop %v2738
      %v2761 = vrcp.pop %v2741
      %v2762 = vrcp.pop %v2744
      %v2763 = vrcp.pop %v2747
      %v2764 = vmul.f32 %v2669, %v2748
      %v2765 = vmul.f32 %v2671, %v2749
      %v2766 = vmul.f32 %v2673, %v2750
      %v2767 = vmul.f32 %v2675, %v2751
      %v2768 = vmul.f32 %v2677, %v2752
      %v2769 = vmul.f32 %v2679, %v2753
      %v2770 = vmul.f32 %v2681, %v2754
      %v2771 = vmul.f32 %v2683, %v2755
      %v2772 = vmul.f32 %v2685, %v2756
      %v2773 = vmul.f32 %v2687, %v2757
      %v2774 = vmul.f32 %v2689, %v2758
      %v2775 = vmul.f32 %v2691, %v2759
      %v2776 = vmul.f32 %v2693, %v2760
      %v2777 = vmul.f32 %v2695, %v2761
      %v2778 = vmul.f32 %v2697, %v2762
      %v2779 = vmul.f32 %v2699, %v2763
      %v2780 = vpack.c.bf16 %v2764, %v2764
      %v2781 = vpack.c.bf16 %v2765, %v2765
      %v2782 = vpack.c.bf16 %v2766, %v2766
      %v2783 = vpack.c.bf16 %v2767, %v2767
      %v2784 = vpack.c.bf16 %v2768, %v2768
      %v2785 = vpack.c.bf16 %v2769, %v2769
      %v2786 = vpack.c.bf16 %v2770, %v2770
      %v2787 = vpack.c.bf16 %v2771, %v2771
      %v2788 = vpack.c.bf16 %v2772, %v2772
      %v2789 = vpack.c.bf16 %v2773, %v2773
      %v2790 = vpack.c.bf16 %v2774, %v2774
      %v2791 = vpack.c.bf16 %v2775, %v2775
      %v2792 = vpack.c.bf16 %v2776, %v2776
      %v2793 = vpack.c.bf16 %v2777, %v2777
      %v2794 = vpack.c.bf16 %v2778, %v2778
      %v2795 = vpack.c.bf16 %v2779, %v2779
      %v2797 = vsel %vm401, %v2780, 0
      %v2800 = vsel %vm408, %v1852, 0
      %2802 = vmatprep.subr.bf16.mxu0 0
      %2803 = vmatpush1.bf16.msra.mxu0 %v2800
      %2804 = vmatprep.subr.bf16.mxu0 0
      %2805 = vmatpush1.bf16.msra.mxu0 0
      %2806 = vmatprep.subr.bf16.mxu0 0
      %2807 = vmatpush1.bf16.msra.mxu0 0
      %2808 = vmatprep.subr.bf16.mxu0 0
      %2809 = vmatpush1.bf16.msra.mxu0 0
      %2810 = vmatprep.subr.bf16.mxu0 0
      %2811 = vmatpush1.bf16.msra.mxu0 0
      %2812 = vmatprep.subr.bf16.mxu0 0
      %2813 = vmatpush1.bf16.msra.mxu0 0
      %2814 = vmatprep.subr.bf16.mxu0 0
      %2815 = vmatpush1.bf16.msra.mxu0 0
      %2816 = vmatprep.subr.bf16.mxu0 0
      %2817 = vmatpush1.bf16.msra.mxu0 0
      %2818 = vmatprep.subr.bf16.mxu0 0
      %2819 = vmatpush1.bf16.msra.mxu0 0
      %2820 = vmatprep.subr.bf16.mxu0 0
      %2821 = vmatpush1.bf16.msra.mxu0 0
      %2822 = vmatprep.subr.bf16.mxu0 0
      %2823 = vmatpush1.bf16.msra.mxu0 0
      %2824 = vmatprep.subr.bf16.mxu0 0
      %2825 = vmatpush1.bf16.msra.mxu0 0
      %2826 = vmatprep.subr.bf16.mxu0 0
      %2827 = vmatpush1.bf16.msra.mxu0 0
      %2828 = vmatprep.subr.bf16.mxu0 0
      %2829 = vmatpush1.bf16.msra.mxu0 0
      %2830 = vmatprep.subr.bf16.mxu0 0
      %2831 = vmatpush1.bf16.msra.mxu0 0
      %2832 = vmatprep.subr.bf16.mxu0 0
      %2833 = vmatpush1.bf16.msra.mxu0 0
      %2834 = vmatprep.mubr.bf16.mxu0 0
      %2835 = vmatmul.mubr.bf16.gmra.mrb[0].mxu0 %v2797
      %v2836 = vpop.f32.mrb[0].mxu0
      %v2837 = vadd.f32 0.0, %v2836
      %v2838 = vpop.f32.mrb[0].mxu0
      %v2839 = vpop.f32.mrb[0].mxu0
      %v2840 = vpop.f32.mrb[0].mxu0
      %2841 = vdwg.mxu0
      %v2843 = vsel %vm401, %v2781, 0
      %v2846 = vsel %vm408, %v1853, 0
      %2848 = vmatprep.subr.bf16.mxu0 0
      %2849 = vmatpush1.bf16.msra.mxu0 %v2846
      %2850 = vmatprep.subr.bf16.mxu0 0
      %2851 = vmatpush1.bf16.msra.mxu0 0
      %2852 = vmatprep.subr.bf16.mxu0 0
      %2853 = vmatpush1.bf16.msra.mxu0 0
      %2854 = vmatprep.subr.bf16.mxu0 0
      %2855 = vmatpush1.bf16.msra.mxu0 0
      %2856 = vmatprep.subr.bf16.mxu0 0
      %2857 = vmatpush1.bf16.msra.mxu0 0
      %2858 = vmatprep.subr.bf16.mxu0 0
      %2859 = vmatpush1.bf16.msra.mxu0 0
      %2860 = vmatprep.subr.bf16.mxu0 0
      %2861 = vmatpush1.bf16.msra.mxu0 0
      %2862 = vmatprep.subr.bf16.mxu0 0
      %2863 = vmatpush1.bf16.msra.mxu0 0
      %2864 = vmatprep.subr.bf16.mxu0 0
      %2865 = vmatpush1.bf16.msra.mxu0 0
      %2866 = vmatprep.subr.bf16.mxu0 0
      %2867 = vmatpush1.bf16.msra.mxu0 0
      %2868 = vmatprep.subr.bf16.mxu0 0
      %2869 = vmatpush1.bf16.msra.mxu0 0
      %2870 = vmatprep.subr.bf16.mxu0 0
      %2871 = vmatpush1.bf16.msra.mxu0 0
      %2872 = vmatprep.subr.bf16.mxu0 0
      %2873 = vmatpush1.bf16.msra.mxu0 0
      %2874 = vmatprep.subr.bf16.mxu0 0
      %2875 = vmatpush1.bf16.msra.mxu0 0
      %2876 = vmatprep.subr.bf16.mxu0 0
      %2877 = vmatpush1.bf16.msra.mxu0 0
      %2878 = vmatprep.subr.bf16.mxu0 0
      %2879 = vmatpush1.bf16.msra.mxu0 0
      %2880 = vmatprep.mubr.bf16.mxu0 0
      %2881 = vmatmul.mubr.bf16.gmra.mrb[0].mxu0 %v2843
      %v2882 = vpop.f32.mrb[0].mxu0
      %v2883 = vadd.f32 0.0, %v2882
      %v2884 = vpop.f32.mrb[0].mxu0
      %v2885 = vpop.f32.mrb[0].mxu0
      %v2886 = vpop.f32.mrb[0].mxu0
      %2887 = vdwg.mxu0
      %v2889 = vsel %vm401, %v2782, 0
      %v2892 = vsel %vm408, %v1854, 0
      %2894 = vmatprep.subr.bf16.mxu0 0
      %2895 = vmatpush1.bf16.msra.mxu0 %v2892
      %2896 = vmatprep.subr.bf16.mxu0 0
      %2897 = vmatpush1.bf16.msra.mxu0 0
      %2898 = vmatprep.subr.bf16.mxu0 0
      %2899 = vmatpush1.bf16.msra.mxu0 0
      %2900 = vmatprep.subr.bf16.mxu0 0
      %2901 = vmatpush1.bf16.msra.mxu0 0
      %2902 = vmatprep.subr.bf16.mxu0 0
      %2903 = vmatpush1.bf16.msra.mxu0 0
      %2904 = vmatprep.subr.bf16.mxu0 0
      %2905 = vmatpush1.bf16.msra.mxu0 0
      %2906 = vmatprep.subr.bf16.mxu0 0
      %2907 = vmatpush1.bf16.msra.mxu0 0
      %2908 = vmatprep.subr.bf16.mxu0 0
      %2909 = vmatpush1.bf16.msra.mxu0 0
      %2910 = vmatprep.subr.bf16.mxu0 0
      %2911 = vmatpush1.bf16.msra.mxu0 0
      %2912 = vmatprep.subr.bf16.mxu0 0
      %2913 = vmatpush1.bf16.msra.mxu0 0
      %2914 = vmatprep.subr.bf16.mxu0 0
      %2915 = vmatpush1.bf16.msra.mxu0 0
      %2916 = vmatprep.subr.bf16.mxu0 0
      %2917 = vmatpush1.bf16.msra.mxu0 0
      %2918 = vmatprep.subr.bf16.mxu0 0
      %2919 = vmatpush1.bf16.msra.mxu0 0
      %2920 = vmatprep.subr.bf16.mxu0 0
      %2921 = vmatpush1.bf16.msra.mxu0 0
      %2922 = vmatprep.subr.bf16.mxu0 0
      %2923 = vmatpush1.bf16.msra.mxu0 0
      %2924 = vmatprep.subr.bf16.mxu0 0
      %2925 = vmatpush1.bf16.msra.mxu0 0
      %2926 = vmatprep.mubr.bf16.mxu0 0
      %2927 = vmatmul.mubr.bf16.gmra.mrb[0].mxu0 %v2889
      %v2928 = vpop.f32.mrb[0].mxu0
      %v2929 = vadd.f32 0.0, %v2928
      %v2930 = vpop.f32.mrb[0].mxu0
      %v2931 = vpop.f32.mrb[0].mxu0
      %v2932 = vpop.f32.mrb[0].mxu0
      %2933 = vdwg.mxu0
      %v2935 = vsel %vm401, %v2783, 0
      %v2938 = vsel %vm408, %v1855, 0
      %2940 = vmatprep.subr.bf16.mxu0 0
      %2941 = vmatpush1.bf16.msra.mxu0 %v2938
      %2942 = vmatprep.subr.bf16.mxu0 0
      %2943 = vmatpush1.bf16.msra.mxu0 0
      %2944 = vmatprep.subr.bf16.mxu0 0
      %2945 = vmatpush1.bf16.msra.mxu0 0
      %2946 = vmatprep.subr.bf16.mxu0 0
      %2947 = vmatpush1.bf16.msra.mxu0 0
      %2948 = vmatprep.subr.bf16.mxu0 0
      %2949 = vmatpush1.bf16.msra.mxu0 0
      %2950 = vmatprep.subr.bf16.mxu0 0
      %2951 = vmatpush1.bf16.msra.mxu0 0
      %2952 = vmatprep.subr.bf16.mxu0 0
      %2953 = vmatpush1.bf16.msra.mxu0 0
      %2954 = vmatprep.subr.bf16.mxu0 0
      %2955 = vmatpush1.bf16.msra.mxu0 0
      %2956 = vmatprep.subr.bf16.mxu0 0
      %2957 = vmatpush1.bf16.msra.mxu0 0
      %2958 = vmatprep.subr.bf16.mxu0 0
      %2959 = vmatpush1.bf16.msra.mxu0 0
      %2960 = vmatprep.subr.bf16.mxu0 0
      %2961 = vmatpush1.bf16.msra.mxu0 0
      %2962 = vmatprep.subr.bf16.mxu0 0
      %2963 = vmatpush1.bf16.msra.mxu0 0
      %2964 = vmatprep.subr.bf16.mxu0 0
      %2965 = vmatpush1.bf16.msra.mxu0 0
      %2966 = vmatprep.subr.bf16.mxu0 0
      %2967 = vmatpush1.bf16.msra.mxu0 0
      %2968 = vmatprep.subr.bf16.mxu0 0
      %2969 = vmatpush1.bf16.msra.mxu0 0
      %2970 = vmatprep.subr.bf16.mxu0 0
      %2971 = vmatpush1.bf16.msra.mxu0 0
      %2972 = vmatprep.mubr.bf16.mxu0 0
      %2973 = vmatmul.mubr.bf16.gmra.mrb[0].mxu0 %v2935
      %v2974 = vpop.f32.mrb[0].mxu0
      %v2975 = vadd.f32 0.0, %v2974
      %v2976 = vpop.f32.mrb[0].mxu0
      %v2977 = vpop.f32.mrb[0].mxu0
      %v2978 = vpop.f32.mrb[0].mxu0
      %2979 = vdwg.mxu0
      %v2981 = vsel %vm401, %v2784, 0
      %v2984 = vsel %vm408, %v1856, 0
      %2986 = vmatprep.subr.bf16.mxu0 0
      %2987 = vmatpush1.bf16.msra.mxu0 %v2984
      %2988 = vmatprep.subr.bf16.mxu0 0
      %2989 = vmatpush1.bf16.msra.mxu0 0
      %2990 = vmatprep.subr.bf16.mxu0 0
      %2991 = vmatpush1.bf16.msra.mxu0 0
      %2992 = vmatprep.subr.bf16.mxu0 0
      %2993 = vmatpush1.bf16.msra.mxu0 0
      %2994 = vmatprep.subr.bf16.mxu0 0
      %2995 = vmatpush1.bf16.msra.mxu0 0
      %2996 = vmatprep.subr.bf16.mxu0 0
      %2997 = vmatpush1.bf16.msra.mxu0 0
      %2998 = vmatprep.subr.bf16.mxu0 0
      %2999 = vmatpush1.bf16.msra.mxu0 0
      %3000 = vmatprep.subr.bf16.mxu0 0
      %3001 = vmatpush1.bf16.msra.mxu0 0
      %3002 = vmatprep.subr.bf16.mxu0 0
      %3003 = vmatpush1.bf16.msra.mxu0 0
      %3004 = vmatprep.subr.bf16.mxu0 0
      %3005 = vmatpush1.bf16.msra.mxu0 0
      %3006 = vmatprep.subr.bf16.mxu0 0
      %3007 = vmatpush1.bf16.msra.mxu0 0
      %3008 = vmatprep.subr.bf16.mxu0 0
      %3009 = vmatpush1.bf16.msra.mxu0 0
      %3010 = vmatprep.subr.bf16.mxu0 0
      %3011 = vmatpush1.bf16.msra.mxu0 0
      %3012 = vmatprep.subr.bf16.mxu0 0
      %3013 = vmatpush1.bf16.msra.mxu0 0
      %3014 = vmatprep.subr.bf16.mxu0 0
      %3015 = vmatpush1.bf16.msra.mxu0 0
      %3016 = vmatprep.subr.bf16.mxu0 0
      %3017 = vmatpush1.bf16.msra.mxu0 0
      %3018 = vmatprep.mubr.bf16.mxu0 0
      %3019 = vmatmul.mubr.bf16.gmra.mrb[0].mxu0 %v2981
      %v3020 = vpop.f32.mrb[0].mxu0
      %v3021 = vadd.f32 0.0, %v3020
      %v3022 = vpop.f32.mrb[0].mxu0
      %v3023 = vpop.f32.mrb[0].mxu0
      %v3024 = vpop.f32.mrb[0].mxu0
      %3025 = vdwg.mxu0
      %v3027 = vsel %vm401, %v2785, 0
      %v3030 = vsel %vm408, %v1857, 0
      %3032 = vmatprep.subr.bf16.mxu0 0
      %3033 = vmatpush1.bf16.msra.mxu0 %v3030
      %3034 = vmatprep.subr.bf16.mxu0 0
      %3035 = vmatpush1.bf16.msra.mxu0 0
      %3036 = vmatprep.subr.bf16.mxu0 0
      %3037 = vmatpush1.bf16.msra.mxu0 0
      %3038 = vmatprep.subr.bf16.mxu0 0
      %3039 = vmatpush1.bf16.msra.mxu0 0
      %3040 = vmatprep.subr.bf16.mxu0 0
      %3041 = vmatpush1.bf16.msra.mxu0 0
      %3042 = vmatprep.subr.bf16.mxu0 0
      %3043 = vmatpush1.bf16.msra.mxu0 0
      %3044 = vmatprep.subr.bf16.mxu0 0
      %3045 = vmatpush1.bf16.msra.mxu0 0
      %3046 = vmatprep.subr.bf16.mxu0 0
      %3047 = vmatpush1.bf16.msra.mxu0 0
      %3048 = vmatprep.subr.bf16.mxu0 0
      %3049 = vmatpush1.bf16.msra.mxu0 0
      %3050 = vmatprep.subr.bf16.mxu0 0
      %3051 = vmatpush1.bf16.msra.mxu0 0
      %3052 = vmatprep.subr.bf16.mxu0 0
      %3053 = vmatpush1.bf16.msra.mxu0 0
      %3054 = vmatprep.subr.bf16.mxu0 0
      %3055 = vmatpush1.bf16.msra.mxu0 0
      %3056 = vmatprep.subr.bf16.mxu0 0
      %3057 = vmatpush1.bf16.msra.mxu0 0
      %3058 = vmatprep.subr.bf16.mxu0 0
      %3059 = vmatpush1.bf16.msra.mxu0 0
      %3060 = vmatprep.subr.bf16.mxu0 0
      %3061 = vmatpush1.bf16.msra.mxu0 0
      %3062 = vmatprep.subr.bf16.mxu0 0
      %3063 = vmatpush1.bf16.msra.mxu0 0
      %3064 = vmatprep.mubr.bf16.mxu0 0
      %3065 = vmatmul.mubr.bf16.gmra.mrb[0].mxu0 %v3027
      %v3066 = vpop.f32.mrb[0].mxu0
      %v3067 = vadd.f32 0.0, %v3066
      %v3068 = vpop.f32.mrb[0].mxu0
      %v3069 = vpop.f32.mrb[0].mxu0
      %v3070 = vpop.f32.mrb[0].mxu0
      %3071 = vdwg.mxu0
      %v3073 = vsel %vm401, %v2786, 0
      %v3076 = vsel %vm408, %v1858, 0
      %3078 = vmatprep.subr.bf16.mxu0 0
      %3079 = vmatpush1.bf16.msra.mxu0 %v3076
      %3080 = vmatprep.subr.bf16.mxu0 0
      %3081 = vmatpush1.bf16.msra.mxu0 0
      %3082 = vmatprep.subr.bf16.mxu0 0
      %3083 = vmatpush1.bf16.msra.mxu0 0
      %3084 = vmatprep.subr.bf16.mxu0 0
      %3085 = vmatpush1.bf16.msra.mxu0 0
      %3086 = vmatprep.subr.bf16.mxu0 0
      %3087 = vmatpush1.bf16.msra.mxu0 0
      %3088 = vmatprep.subr.bf16.mxu0 0
      %3089 = vmatpush1.bf16.msra.mxu0 0
      %3090 = vmatprep.subr.bf16.mxu0 0
      %3091 = vmatpush1.bf16.msra.mxu0 0
      %3092 = vmatprep.subr.bf16.mxu0 0
      %3093 = vmatpush1.bf16.msra.mxu0 0
      %3094 = vmatprep.subr.bf16.mxu0 0
      %3095 = vmatpush1.bf16.msra.mxu0 0
      %3096 = vmatprep.subr.bf16.mxu0 0
      %3097 = vmatpush1.bf16.msra.mxu0 0
      %3098 = vmatprep.subr.bf16.mxu0 0
      %3099 = vmatpush1.bf16.msra.mxu0 0
      %3100 = vmatprep.subr.bf16.mxu0 0
      %3101 = vmatpush1.bf16.msra.mxu0 0
      %3102 = vmatprep.subr.bf16.mxu0 0
      %3103 = vmatpush1.bf16.msra.mxu0 0
      %3104 = vmatprep.subr.bf16.mxu0 0
      %3105 = vmatpush1.bf16.msra.mxu0 0
      %3106 = vmatprep.subr.bf16.mxu0 0
      %3107 = vmatpush1.bf16.msra.mxu0 0
      %3108 = vmatprep.subr.bf16.mxu0 0
      %3109 = vmatpush1.bf16.msra.mxu0 0
      %3110 = vmatprep.mubr.bf16.mxu0 0
      %3111 = vmatmul.mubr.bf16.gmra.mrb[0].mxu0 %v3073
      %v3112 = vpop.f32.mrb[0].mxu0
      %v3113 = vadd.f32 0.0, %v3112
      %v3114 = vpop.f32.mrb[0].mxu0
      %v3115 = vpop.f32.mrb[0].mxu0
      %v3116 = vpop.f32.mrb[0].mxu0
      %3117 = vdwg.mxu0
      %v3119 = vsel %vm401, %v2787, 0
      %v3122 = vsel %vm408, %v1859, 0
      %3124 = vmatprep.subr.bf16.mxu0 0
      %3125 = vmatpush1.bf16.msra.mxu0 %v3122
      %3126 = vmatprep.subr.bf16.mxu0 0
      %3127 = vmatpush1.bf16.msra.mxu0 0
      %3128 = vmatprep.subr.bf16.mxu0 0
      %3129 = vmatpush1.bf16.msra.mxu0 0
      %3130 = vmatprep.subr.bf16.mxu0 0
      %3131 = vmatpush1.bf16.msra.mxu0 0
      %3132 = vmatprep.subr.bf16.mxu0 0
      %3133 = vmatpush1.bf16.msra.mxu0 0
      %3134 = vmatprep.subr.bf16.mxu0 0
      %3135 = vmatpush1.bf16.msra.mxu0 0
      %3136 = vmatprep.subr.bf16.mxu0 0
      %3137 = vmatpush1.bf16.msra.mxu0 0
      %3138 = vmatprep.subr.bf16.mxu0 0
      %3139 = vmatpush1.bf16.msra.mxu0 0
      %3140 = vmatprep.subr.bf16.mxu0 0
      %3141 = vmatpush1.bf16.msra.mxu0 0
      %3142 = vmatprep.subr.bf16.mxu0 0
      %3143 = vmatpush1.bf16.msra.mxu0 0
      %3144 = vmatprep.subr.bf16.mxu0 0
      %3145 = vmatpush1.bf16.msra.mxu0 0
      %3146 = vmatprep.subr.bf16.mxu0 0
      %3147 = vmatpush1.bf16.msra.mxu0 0
      %3148 = vmatprep.subr.bf16.mxu0 0
      %3149 = vmatpush1.bf16.msra.mxu0 0
      %3150 = vmatprep.subr.bf16.mxu0 0
      %3151 = vmatpush1.bf16.msra.mxu0 0
      %3152 = vmatprep.subr.bf16.mxu0 0
      %3153 = vmatpush1.bf16.msra.mxu0 0
      %3154 = vmatprep.subr.bf16.mxu0 0
      %3155 = vmatpush1.bf16.msra.mxu0 0
      %3156 = vmatprep.mubr.bf16.mxu0 0
      %3157 = vmatmul.mubr.bf16.gmra.mrb[0].mxu0 %v3119
      %v3158 = vpop.f32.mrb[0].mxu0
      %v3159 = vadd.f32 0.0, %v3158
      %v3160 = vpop.f32.mrb[0].mxu0
      %v3161 = vpop.f32.mrb[0].mxu0
      %v3162 = vpop.f32.mrb[0].mxu0
      %3163 = vdwg.mxu0
      %v3165 = vsel %vm401, %v2788, 0
      %v3168 = vsel %vm408, %v1860, 0
      %3170 = vmatprep.subr.bf16.mxu0 0
      %3171 = vmatpush1.bf16.msra.mxu0 %v3168
      %3172 = vmatprep.subr.bf16.mxu0 0
      %3173 = vmatpush1.bf16.msra.mxu0 0
      %3174 = vmatprep.subr.bf16.mxu0 0
      %3175 = vmatpush1.bf16.msra.mxu0 0
      %3176 = vmatprep.subr.bf16.mxu0 0
      %3177 = vmatpush1.bf16.msra.mxu0 0
      %3178 = vmatprep.subr.bf16.mxu0 0
      %3179 = vmatpush1.bf16.msra.mxu0 0
      %3180 = vmatprep.subr.bf16.mxu0 0
      %3181 = vmatpush1.bf16.msra.mxu0 0
      %3182 = vmatprep.subr.bf16.mxu0 0
      %3183 = vmatpush1.bf16.msra.mxu0 0
      %3184 = vmatprep.subr.bf16.mxu0 0
      %3185 = vmatpush1.bf16.msra.mxu0 0
      %3186 = vmatprep.subr.bf16.mxu0 0
      %3187 = vmatpush1.bf16.msra.mxu0 0
      %3188 = vmatprep.subr.bf16.mxu0 0
      %3189 = vmatpush1.bf16.msra.mxu0 0
      %3190 = vmatprep.subr.bf16.mxu0 0
      %3191 = vmatpush1.bf16.msra.mxu0 0
      %3192 = vmatprep.subr.bf16.mxu0 0
      %3193 = vmatpush1.bf16.msra.mxu0 0
      %3194 = vmatprep.subr.bf16.mxu0 0
      %3195 = vmatpush1.bf16.msra.mxu0 0
      %3196 = vmatprep.subr.bf16.mxu0 0
      %3197 = vmatpush1.bf16.msra.mxu0 0
      %3198 = vmatprep.subr.bf16.mxu0 0
      %3199 = vmatpush1.bf16.msra.mxu0 0
      %3200 = vmatprep.subr.bf16.mxu0 0
      %3201 = vmatpush1.bf16.msra.mxu0 0
      %3202 = vmatprep.mubr.bf16.mxu0 0
      %3203 = vmatmul.mubr.bf16.gmra.mrb[0].mxu0 %v3165
      %v3204 = vpop.f32.mrb[0].mxu0
      %v3205 = vadd.f32 0.0, %v3204
      %v3206 = vpop.f32.mrb[0].mxu0
      %v3207 = vpop.f32.mrb[0].mxu0
      %v3208 = vpop.f32.mrb[0].mxu0
      %3209 = vdwg.mxu0
      %v3211 = vsel %vm401, %v2789, 0
      %v3214 = vsel %vm408, %v1861, 0
      %3216 = vmatprep.subr.bf16.mxu0 0
      %3217 = vmatpush1.bf16.msra.mxu0 %v3214
      %3218 = vmatprep.subr.bf16.mxu0 0
      %3219 = vmatpush1.bf16.msra.mxu0 0
      %3220 = vmatprep.subr.bf16.mxu0 0
      %3221 = vmatpush1.bf16.msra.mxu0 0
      %3222 = vmatprep.subr.bf16.mxu0 0
      %3223 = vmatpush1.bf16.msra.mxu0 0
      %3224 = vmatprep.subr.bf16.mxu0 0
      %3225 = vmatpush1.bf16.msra.mxu0 0
      %3226 = vmatprep.subr.bf16.mxu0 0
      %3227 = vmatpush1.bf16.msra.mxu0 0
      %3228 = vmatprep.subr.bf16.mxu0 0
      %3229 = vmatpush1.bf16.msra.mxu0 0
      %3230 = vmatprep.subr.bf16.mxu0 0
      %3231 = vmatpush1.bf16.msra.mxu0 0
      %3232 = vmatprep.subr.bf16.mxu0 0
      %3233 = vmatpush1.bf16.msra.mxu0 0
      %3234 = vmatprep.subr.bf16.mxu0 0
      %3235 = vmatpush1.bf16.msra.mxu0 0
      %3236 = vmatprep.subr.bf16.mxu0 0
      %3237 = vmatpush1.bf16.msra.mxu0 0
      %3238 = vmatprep.subr.bf16.mxu0 0
      %3239 = vmatpush1.bf16.msra.mxu0 0
      %3240 = vmatprep.subr.bf16.mxu0 0
      %3241 = vmatpush1.bf16.msra.mxu0 0
      %3242 = vmatprep.subr.bf16.mxu0 0
      %3243 = vmatpush1.bf16.msra.mxu0 0
      %3244 = vmatprep.subr.bf16.mxu0 0
      %3245 = vmatpush1.bf16.msra.mxu0 0
      %3246 = vmatprep.subr.bf16.mxu0 0
      %3247 = vmatpush1.bf16.msra.mxu0 0
      %3248 = vmatprep.mubr.bf16.mxu0 0
      %3249 = vmatmul.mubr.bf16.gmra.mrb[0].mxu0 %v3211
      %v3250 = vpop.f32.mrb[0].mxu0
      %v3251 = vadd.f32 0.0, %v3250
      %v3252 = vpop.f32.mrb[0].mxu0
      %v3253 = vpop.f32.mrb[0].mxu0
      %v3254 = vpop.f32.mrb[0].mxu0
      %3255 = vdwg.mxu0
      %v3257 = vsel %vm401, %v2790, 0
      %v3260 = vsel %vm408, %v1862, 0
      %3262 = vmatprep.subr.bf16.mxu0 0
      %3263 = vmatpush1.bf16.msra.mxu0 %v3260
      %3264 = vmatprep.subr.bf16.mxu0 0
      %3265 = vmatpush1.bf16.msra.mxu0 0
      %3266 = vmatprep.subr.bf16.mxu0 0
      %3267 = vmatpush1.bf16.msra.mxu0 0
      %3268 = vmatprep.subr.bf16.mxu0 0
      %3269 = vmatpush1.bf16.msra.mxu0 0
      %3270 = vmatprep.subr.bf16.mxu0 0
      %3271 = vmatpush1.bf16.msra.mxu0 0
      %3272 = vmatprep.subr.bf16.mxu0 0
      %3273 = vmatpush1.bf16.msra.mxu0 0
      %3274 = vmatprep.subr.bf16.mxu0 0
      %3275 = vmatpush1.bf16.msra.mxu0 0
      %3276 = vmatprep.subr.bf16.mxu0 0
      %3277 = vmatpush1.bf16.msra.mxu0 0
      %3278 = vmatprep.subr.bf16.mxu0 0
      %3279 = vmatpush1.bf16.msra.mxu0 0
      %3280 = vmatprep.subr.bf16.mxu0 0
      %3281 = vmatpush1.bf16.msra.mxu0 0
      %3282 = vmatprep.subr.bf16.mxu0 0
      %3283 = vmatpush1.bf16.msra.mxu0 0
      %3284 = vmatprep.subr.bf16.mxu0 0
      %3285 = vmatpush1.bf16.msra.mxu0 0
      %3286 = vmatprep.subr.bf16.mxu0 0
      %3287 = vmatpush1.bf16.msra.mxu0 0
      %3288 = vmatprep.subr.bf16.mxu0 0
      %3289 = vmatpush1.bf16.msra.mxu0 0
      %3290 = vmatprep.subr.bf16.mxu0 0
      %3291 = vmatpush1.bf16.msra.mxu0 0
      %3292 = vmatprep.subr.bf16.mxu0 0
      %3293 = vmatpush1.bf16.msra.mxu0 0
      %3294 = vmatprep.mubr.bf16.mxu0 0
      %3295 = vmatmul.mubr.bf16.gmra.mrb[0].mxu0 %v3257
      %v3296 = vpop.f32.mrb[0].mxu0
      %v3297 = vadd.f32 0.0, %v3296
      %v3298 = vpop.f32.mrb[0].mxu0
      %v3299 = vpop.f32.mrb[0].mxu0
      %v3300 = vpop.f32.mrb[0].mxu0
      %3301 = vdwg.mxu0
      %v3303 = vsel %vm401, %v2791, 0
      %v3306 = vsel %vm408, %v1863, 0
      %3308 = vmatprep.subr.bf16.mxu0 0
      %3309 = vmatpush1.bf16.msra.mxu0 %v3306
      %3310 = vmatprep.subr.bf16.mxu0 0
      %3311 = vmatpush1.bf16.msra.mxu0 0
      %3312 = vmatprep.subr.bf16.mxu0 0
      %3313 = vmatpush1.bf16.msra.mxu0 0
      %3314 = vmatprep.subr.bf16.mxu0 0
      %3315 = vmatpush1.bf16.msra.mxu0 0
      %3316 = vmatprep.subr.bf16.mxu0 0
      %3317 = vmatpush1.bf16.msra.mxu0 0
      %3318 = vmatprep.subr.bf16.mxu0 0
      %3319 = vmatpush1.bf16.msra.mxu0 0
      %3320 = vmatprep.subr.bf16.mxu0 0
      %3321 = vmatpush1.bf16.msra.mxu0 0
      %3322 = vmatprep.subr.bf16.mxu0 0
      %3323 = vmatpush1.bf16.msra.mxu0 0
      %3324 = vmatprep.subr.bf16.mxu0 0
      %3325 = vmatpush1.bf16.msra.mxu0 0
      %3326 = vmatprep.subr.bf16.mxu0 0
      %3327 = vmatpush1.bf16.msra.mxu0 0
      %3328 = vmatprep.subr.bf16.mxu0 0
      %3329 = vmatpush1.bf16.msra.mxu0 0
      %3330 = vmatprep.subr.bf16.mxu0 0
      %3331 = vmatpush1.bf16.msra.mxu0 0
      %3332 = vmatprep.subr.bf16.mxu0 0
      %3333 = vmatpush1.bf16.msra.mxu0 0
      %3334 = vmatprep.subr.bf16.mxu0 0
      %3335 = vmatpush1.bf16.msra.mxu0 0
      %3336 = vmatprep.subr.bf16.mxu0 0
      %3337 = vmatpush1.bf16.msra.mxu0 0
      %3338 = vmatprep.subr.bf16.mxu0 0
      %3339 = vmatpush1.bf16.msra.mxu0 0
      %3340 = vmatprep.mubr.bf16.mxu0 0
      %3341 = vmatmul.mubr.bf16.gmra.mrb[0].mxu0 %v3303
      %v3342 = vpop.f32.mrb[0].mxu0
      %v3343 = vadd.f32 0.0, %v3342
      %v3344 = vpop.f32.mrb[0].mxu0
      %v3345 = vpop.f32.mrb[0].mxu0
      %v3346 = vpop.f32.mrb[0].mxu0
      %3347 = vdwg.mxu0
      %v3349 = vsel %vm401, %v2792, 0
      %v3352 = vsel %vm408, %v1864, 0
      %3354 = vmatprep.subr.bf16.mxu0 0
      %3355 = vmatpush1.bf16.msra.mxu0 %v3352
      %3356 = vmatprep.subr.bf16.mxu0 0
      %3357 = vmatpush1.bf16.msra.mxu0 0
      %3358 = vmatprep.subr.bf16.mxu0 0
      %3359 = vmatpush1.bf16.msra.mxu0 0
      %3360 = vmatprep.subr.bf16.mxu0 0
      %3361 = vmatpush1.bf16.msra.mxu0 0
      %3362 = vmatprep.subr.bf16.mxu0 0
      %3363 = vmatpush1.bf16.msra.mxu0 0
      %3364 = vmatprep.subr.bf16.mxu0 0
      %3365 = vmatpush1.bf16.msra.mxu0 0
      %3366 = vmatprep.subr.bf16.mxu0 0
      %3367 = vmatpush1.bf16.msra.mxu0 0
      %3368 = vmatprep.subr.bf16.mxu0 0
      %3369 = vmatpush1.bf16.msra.mxu0 0
      %3370 = vmatprep.subr.bf16.mxu0 0
      %3371 = vmatpush1.bf16.msra.mxu0 0
      %3372 = vmatprep.subr.bf16.mxu0 0
      %3373 = vmatpush1.bf16.msra.mxu0 0
      %3374 = vmatprep.subr.bf16.mxu0 0
      %3375 = vmatpush1.bf16.msra.mxu0 0
      %3376 = vmatprep.subr.bf16.mxu0 0
      %3377 = vmatpush1.bf16.msra.mxu0 0
      %3378 = vmatprep.subr.bf16.mxu0 0
      %3379 = vmatpush1.bf16.msra.mxu0 0
      %3380 = vmatprep.subr.bf16.mxu0 0
      %3381 = vmatpush1.bf16.msra.mxu0 0
      %3382 = vmatprep.subr.bf16.mxu0 0
      %3383 = vmatpush1.bf16.msra.mxu0 0
      %3384 = vmatprep.subr.bf16.mxu0 0
      %3385 = vmatpush1.bf16.msra.mxu0 0
      %3386 = vmatprep.mubr.bf16.mxu0 0
      %3387 = vmatmul.mubr.bf16.gmra.mrb[0].mxu0 %v3349
      %v3388 = vpop.f32.mrb[0].mxu0
      %v3389 = vadd.f32 0.0, %v3388
      %v3390 = vpop.f32.mrb[0].mxu0
      %v3391 = vpop.f32.mrb[0].mxu0
      %v3392 = vpop.f32.mrb[0].mxu0
      %3393 = vdwg.mxu0
      %v3395 = vsel %vm401, %v2793, 0
      %v3398 = vsel %vm408, %v1865, 0
      %3400 = vmatprep.subr.bf16.mxu0 0
      %3401 = vmatpush1.bf16.msra.mxu0 %v3398
      %3402 = vmatprep.subr.bf16.mxu0 0
      %3403 = vmatpush1.bf16.msra.mxu0 0
      %3404 = vmatprep.subr.bf16.mxu0 0
      %3405 = vmatpush1.bf16.msra.mxu0 0
      %3406 = vmatprep.subr.bf16.mxu0 0
      %3407 = vmatpush1.bf16.msra.mxu0 0
      %3408 = vmatprep.subr.bf16.mxu0 0
      %3409 = vmatpush1.bf16.msra.mxu0 0
      %3410 = vmatprep.subr.bf16.mxu0 0
      %3411 = vmatpush1.bf16.msra.mxu0 0
      %3412 = vmatprep.subr.bf16.mxu0 0
      %3413 = vmatpush1.bf16.msra.mxu0 0
      %3414 = vmatprep.subr.bf16.mxu0 0
      %3415 = vmatpush1.bf16.msra.mxu0 0
      %3416 = vmatprep.subr.bf16.mxu0 0
      %3417 = vmatpush1.bf16.msra.mxu0 0
      %3418 = vmatprep.subr.bf16.mxu0 0
      %3419 = vmatpush1.bf16.msra.mxu0 0
      %3420 = vmatprep.subr.bf16.mxu0 0
      %3421 = vmatpush1.bf16.msra.mxu0 0
      %3422 = vmatprep.subr.bf16.mxu0 0
      %3423 = vmatpush1.bf16.msra.mxu0 0
      %3424 = vmatprep.subr.bf16.mxu0 0
      %3425 = vmatpush1.bf16.msra.mxu0 0
      %3426 = vmatprep.subr.bf16.mxu0 0
      %3427 = vmatpush1.bf16.msra.mxu0 0
      %3428 = vmatprep.subr.bf16.mxu0 0
      %3429 = vmatpush1.bf16.msra.mxu0 0
      %3430 = vmatprep.subr.bf16.mxu0 0
      %3431 = vmatpush1.bf16.msra.mxu0 0
      %3432 = vmatprep.mubr.bf16.mxu0 0
      %3433 = vmatmul.mubr.bf16.gmra.mrb[0].mxu0 %v3395
      %v3434 = vpop.f32.mrb[0].mxu0
      %v3435 = vadd.f32 0.0, %v3434
      %v3436 = vpop.f32.mrb[0].mxu0
      %v3437 = vpop.f32.mrb[0].mxu0
      %v3438 = vpop.f32.mrb[0].mxu0
      %3439 = vdwg.mxu0
      %v3441 = vsel %vm401, %v2794, 0
      %v3444 = vsel %vm408, %v1866, 0
      %3446 = vmatprep.subr.bf16.mxu0 0
      %3447 = vmatpush1.bf16.msra.mxu0 %v3444
      %3448 = vmatprep.subr.bf16.mxu0 0
      %3449 = vmatpush1.bf16.msra.mxu0 0
      %3450 = vmatprep.subr.bf16.mxu0 0
      %3451 = vmatpush1.bf16.msra.mxu0 0
      %3452 = vmatprep.subr.bf16.mxu0 0
      %3453 = vmatpush1.bf16.msra.mxu0 0
      %3454 = vmatprep.subr.bf16.mxu0 0
      %3455 = vmatpush1.bf16.msra.mxu0 0
      %3456 = vmatprep.subr.bf16.mxu0 0
      %3457 = vmatpush1.bf16.msra.mxu0 0
      %3458 = vmatprep.subr.bf16.mxu0 0
      %3459 = vmatpush1.bf16.msra.mxu0 0
      %3460 = vmatprep.subr.bf16.mxu0 0
      %3461 = vmatpush1.bf16.msra.mxu0 0
      %3462 = vmatprep.subr.bf16.mxu0 0
      %3463 = vmatpush1.bf16.msra.mxu0 0
      %3464 = vmatprep.subr.bf16.mxu0 0
      %3465 = vmatpush1.bf16.msra.mxu0 0
      %3466 = vmatprep.subr.bf16.mxu0 0
      %3467 = vmatpush1.bf16.msra.mxu0 0
      %3468 = vmatprep.subr.bf16.mxu0 0
      %3469 = vmatpush1.bf16.msra.mxu0 0
      %3470 = vmatprep.subr.bf16.mxu0 0
      %3471 = vmatpush1.bf16.msra.mxu0 0
      %3472 = vmatprep.subr.bf16.mxu0 0
      %3473 = vmatpush1.bf16.msra.mxu0 0
      %3474 = vmatprep.subr.bf16.mxu0 0
      %3475 = vmatpush1.bf16.msra.mxu0 0
      %3476 = vmatprep.subr.bf16.mxu0 0
      %3477 = vmatpush1.bf16.msra.mxu0 0
      %3478 = vmatprep.mubr.bf16.mxu0 0
      %3479 = vmatmul.mubr.bf16.gmra.mrb[0].mxu0 %v3441
      %v3480 = vpop.f32.mrb[0].mxu0
      %v3481 = vadd.f32 0.0, %v3480
      %v3482 = vpop.f32.mrb[0].mxu0
      %v3483 = vpop.f32.mrb[0].mxu0
      %v3484 = vpop.f32.mrb[0].mxu0
      %3485 = vdwg.mxu0
      %v3487 = vsel %vm401, %v2795, 0
      %v3490 = vsel %vm408, %v1867, 0
      %3492 = vmatprep.subr.bf16.mxu0 0
      %3493 = vmatpush1.bf16.msra.mxu0 %v3490
      %3494 = vmatprep.subr.bf16.mxu0 0
      %3495 = vmatpush1.bf16.msra.mxu0 0
      %3496 = vmatprep.subr.bf16.mxu0 0
      %3497 = vmatpush1.bf16.msra.mxu0 0
      %3498 = vmatprep.subr.bf16.mxu0 0
      %3499 = vmatpush1.bf16.msra.mxu0 0
      %3500 = vmatprep.subr.bf16.mxu0 0
      %3501 = vmatpush1.bf16.msra.mxu0 0
      %3502 = vmatprep.subr.bf16.mxu0 0
      %3503 = vmatpush1.bf16.msra.mxu0 0
      %3504 = vmatprep.subr.bf16.mxu0 0
      %3505 = vmatpush1.bf16.msra.mxu0 0
      %3506 = vmatprep.subr.bf16.mxu0 0
      %3507 = vmatpush1.bf16.msra.mxu0 0
      %3508 = vmatprep.subr.bf16.mxu0 0
      %3509 = vmatpush1.bf16.msra.mxu0 0
      %3510 = vmatprep.subr.bf16.mxu0 0
      %3511 = vmatpush1.bf16.msra.mxu0 0
      %3512 = vmatprep.subr.bf16.mxu0 0
      %3513 = vmatpush1.bf16.msra.mxu0 0
      %3514 = vmatprep.subr.bf16.mxu0 0
      %3515 = vmatpush1.bf16.msra.mxu0 0
      %3516 = vmatprep.subr.bf16.mxu0 0
      %3517 = vmatpush1.bf16.msra.mxu0 0
      %3518 = vmatprep.subr.bf16.mxu0 0
      %3519 = vmatpush1.bf16.msra.mxu0 0
      %3520 = vmatprep.subr.bf16.mxu0 0
      %3521 = vmatpush1.bf16.msra.mxu0 0
      %3522 = vmatprep.subr.bf16.mxu0 0
      %3523 = vmatpush1.bf16.msra.mxu0 0
      %3524 = vmatprep.mubr.bf16.mxu0 0
      %3525 = vmatmul.mubr.bf16.gmra.mrb[0].mxu0 %v3487
      %v3526 = vpop.f32.mrb[0].mxu0
      %v3527 = vadd.f32 0.0, %v3526
      %v3528 = vpop.f32.mrb[0].mxu0
      %v3529 = vpop.f32.mrb[0].mxu0
      %v3530 = vpop.f32.mrb[0].mxu0
      %3531 = vdwg.mxu0
      %v3532 = vpack.c.bf16 %v2883, %v2837
      %v3533 = vpack.c.bf16 %v2975, %v2929
      %v3534 = vpack.c.bf16 %v3067, %v3021
      %v3535 = vpack.c.bf16 %v3159, %v3113
      %v3536 = vpack.c.bf16 %v3251, %v3205
      %v3537 = vpack.c.bf16 %v3343, %v3297
      %v3538 = vpack.c.bf16 %v3435, %v3389
      %v3539 = vpack.c.bf16 %v3527, %v3481
      %v3540 = vld [vmem:[%s4] sm:$0xf]
      %v3541 = vld [vmem:[%s4 + $0x4] sm:$0xf]
      %v3542 = vld [vmem:[%s4 + $0x8] sm:$0xf]
      %v3543 = vld [vmem:[%s4 + $0xc] sm:$0xf]
      %v3545 = vsel %vm401, %v3532, 0
      %v3548 = vsel %vm401, %v3533, 0
      %v3551 = vsel %vm408, %v3540, 0
      %3553 = vmatprep.subr.bf16.mxu0 0
      %3554 = vmatpush1.bf16.msra.mxu0 %v3551
      %3555 = vmatprep.subr.bf16.mxu0 0
      %3556 = vmatpush1.bf16.msra.mxu0 0
      %3557 = vmatprep.subr.bf16.mxu0 0
      %3558 = vmatpush1.bf16.msra.mxu0 0
      %3559 = vmatprep.subr.bf16.mxu0 0
      %3560 = vmatpush1.bf16.msra.mxu0 0
      %3561 = vmatprep.subr.bf16.mxu0 0
      %3562 = vmatpush1.bf16.msra.mxu0 0
      %3563 = vmatprep.subr.bf16.mxu0 0
      %3564 = vmatpush1.bf16.msra.mxu0 0
      %3565 = vmatprep.subr.bf16.mxu0 0
      %3566 = vmatpush1.bf16.msra.mxu0 0
      %3567 = vmatprep.subr.bf16.mxu0 0
      %3568 = vmatpush1.bf16.msra.mxu0 0
      %3569 = vmatprep.subr.bf16.mxu0 0
      %3570 = vmatpush1.bf16.msra.mxu0 0
      %3571 = vmatprep.subr.bf16.mxu0 0
      %3572 = vmatpush1.bf16.msra.mxu0 0
      %3573 = vmatprep.subr.bf16.mxu0 0
      %3574 = vmatpush1.bf16.msra.mxu0 0
      %3575 = vmatprep.subr.bf16.mxu0 0
      %3576 = vmatpush1.bf16.msra.mxu0 0
      %3577 = vmatprep.subr.bf16.mxu0 0
      %3578 = vmatpush1.bf16.msra.mxu0 0
      %3579 = vmatprep.subr.bf16.mxu0 0
      %3580 = vmatpush1.bf16.msra.mxu0 0
      %3581 = vmatprep.subr.bf16.mxu0 0
      %3582 = vmatpush1.bf16.msra.mxu0 0
      %3583 = vmatprep.subr.bf16.mxu0 0
      %3584 = vmatpush1.bf16.msra.mxu0 0
      %3585 = vmatprep.mubr.bf16.mxu0 0
      %3586 = vmatmul.mubr.bf16.gmra.mrb[0].mxu0 %v3545
      %v3587 = vpop.f32.mrb[0].mxu0
      %v3588 = vadd.f32 0.0, %v3587
      %v3589 = vpop.f32.mrb[0].mxu0
      %v3590 = vpop.f32.mrb[0].mxu0
      %v3591 = vadd.f32 0.0, %v3590
      %v3592 = vpop.f32.mrb[0].mxu0
      %3593 = vmatprep.mubr.bf16.mxu0 0
      %3594 = vmatmul.mubr.bf16.gmra.mrb[0].mxu0 %v3548
      %v3595 = vpop.f32.mrb[0].mxu0
      %v3596 = vadd.f32 0.0, %v3595
      %v3597 = vpop.f32.mrb[0].mxu0
      %v3598 = vpop.f32.mrb[0].mxu0
      %v3599 = vadd.f32 0.0, %v3598
      %v3600 = vpop.f32.mrb[0].mxu0
      %3601 = vdwg.mxu0
      %v3603 = vsel %vm401, %v3534, 0
      %v3606 = vsel %vm401, %v3535, 0
      %v3609 = vsel %vm408, %v3541, 0
      %3611 = vmatprep.subr.bf16.mxu0 0
      %3612 = vmatpush1.bf16.msra.mxu0 %v3609
      %3613 = vmatprep.subr.bf16.mxu0 0
      %3614 = vmatpush1.bf16.msra.mxu0 0
      %3615 = vmatprep.subr.bf16.mxu0 0
      %3616 = vmatpush1.bf16.msra.mxu0 0
      %3617 = vmatprep.subr.bf16.mxu0 0
      %3618 = vmatpush1.bf16.msra.mxu0 0
      %3619 = vmatprep.subr.bf16.mxu0 0
      %3620 = vmatpush1.bf16.msra.mxu0 0
      %3621 = vmatprep.subr.bf16.mxu0 0
      %3622 = vmatpush1.bf16.msra.mxu0 0
      %3623 = vmatprep.subr.bf16.mxu0 0
      %3624 = vmatpush1.bf16.msra.mxu0 0
      %3625 = vmatprep.subr.bf16.mxu0 0
      %3626 = vmatpush1.bf16.msra.mxu0 0
      %3627 = vmatprep.subr.bf16.mxu0 0
      %3628 = vmatpush1.bf16.msra.mxu0 0
      %3629 = vmatprep.subr.bf16.mxu0 0
      %3630 = vmatpush1.bf16.msra.mxu0 0
      %3631 = vmatprep.subr.bf16.mxu0 0
      %3632 = vmatpush1.bf16.msra.mxu0 0
      %3633 = vmatprep.subr.bf16.mxu0 0
      %3634 = vmatpush1.bf16.msra.mxu0 0
      %3635 = vmatprep.subr.bf16.mxu0 0
      %3636 = vmatpush1.bf16.msra.mxu0 0
      %3637 = vmatprep.subr.bf16.mxu0 0
      %3638 = vmatpush1.bf16.msra.mxu0 0
      %3639 = vmatprep.subr.bf16.mxu0 0
      %3640 = vmatpush1.bf16.msra.mxu0 0
      %3641 = vmatprep.subr.bf16.mxu0 0
      %3642 = vmatpush1.bf16.msra.mxu0 0
      %3643 = vmatprep.mubr.bf16.mxu0 0
      %3644 = vmatmul.mubr.bf16.gmra.mrb[0].mxu0 %v3603
      %v3645 = vpop.f32.mrb[0].mxu0
      %v3646 = vadd.f32 0.0, %v3645
      %v3647 = vpop.f32.mrb[0].mxu0
      %v3648 = vpop.f32.mrb[0].mxu0
      %v3649 = vadd.f32 0.0, %v3648
      %v3650 = vpop.f32.mrb[0].mxu0
      %3651 = vmatprep.mubr.bf16.mxu0 0
      %3652 = vmatmul.mubr.bf16.gmra.mrb[0].mxu0 %v3606
      %v3653 = vpop.f32.mrb[0].mxu0
      %v3654 = vadd.f32 0.0, %v3653
      %v3655 = vpop.f32.mrb[0].mxu0
      %v3656 = vpop.f32.mrb[0].mxu0
      %v3657 = vadd.f32 0.0, %v3656
      %v3658 = vpop.f32.mrb[0].mxu0
      %3659 = vdwg.mxu0
      %v3661 = vsel %vm401, %v3536, 0
      %v3664 = vsel %vm401, %v3537, 0
      %v3667 = vsel %vm408, %v3542, 0
      %3669 = vmatprep.subr.bf16.mxu0 0
      %3670 = vmatpush1.bf16.msra.mxu0 %v3667
      %3671 = vmatprep.subr.bf16.mxu0 0
      %3672 = vmatpush1.bf16.msra.mxu0 0
      %3673 = vmatprep.subr.bf16.mxu0 0
      %3674 = vmatpush1.bf16.msra.mxu0 0
      %3675 = vmatprep.subr.bf16.mxu0 0
      %3676 = vmatpush1.bf16.msra.mxu0 0
      %3677 = vmatprep.subr.bf16.mxu0 0
      %3678 = vmatpush1.bf16.msra.mxu0 0
      %3679 = vmatprep.subr.bf16.mxu0 0
      %3680 = vmatpush1.bf16.msra.mxu0 0
      %3681 = vmatprep.subr.bf16.mxu0 0
      %3682 = vmatpush1.bf16.msra.mxu0 0
      %3683 = vmatprep.subr.bf16.mxu0 0
      %3684 = vmatpush1.bf16.msra.mxu0 0
      %3685 = vmatprep.subr.bf16.mxu0 0
      %3686 = vmatpush1.bf16.msra.mxu0 0
      %3687 = vmatprep.subr.bf16.mxu0 0
      %3688 = vmatpush1.bf16.msra.mxu0 0
      %3689 = vmatprep.subr.bf16.mxu0 0
      %3690 = vmatpush1.bf16.msra.mxu0 0
      %3691 = vmatprep.subr.bf16.mxu0 0
      %3692 = vmatpush1.bf16.msra.mxu0 0
      %3693 = vmatprep.subr.bf16.mxu0 0
      %3694 = vmatpush1.bf16.msra.mxu0 0
      %3695 = vmatprep.subr.bf16.mxu0 0
      %3696 = vmatpush1.bf16.msra.mxu0 0
      %3697 = vmatprep.subr.bf16.mxu0 0
      %3698 = vmatpush1.bf16.msra.mxu0 0
      %3699 = vmatprep.subr.bf16.mxu0 0
      %3700 = vmatpush1.bf16.msra.mxu0 0
      %3701 = vmatprep.mubr.bf16.mxu0 0
      %3702 = vmatmul.mubr.bf16.gmra.mrb[0].mxu0 %v3661
      %v3703 = vpop.f32.mrb[0].mxu0
      %v3704 = vadd.f32 0.0, %v3703
      %v3705 = vpop.f32.mrb[0].mxu0
      %v3706 = vpop.f32.mrb[0].mxu0
      %v3707 = vadd.f32 0.0, %v3706
      %v3708 = vpop.f32.mrb[0].mxu0
      %3709 = vmatprep.mubr.bf16.mxu0 0
      %3710 = vmatmul.mubr.bf16.gmra.mrb[0].mxu0 %v3664
      %v3711 = vpop.f32.mrb[0].mxu0
      %v3712 = vadd.f32 0.0, %v3711
      %v3713 = vpop.f32.mrb[0].mxu0
      %v3714 = vpop.f32.mrb[0].mxu0
      %v3715 = vadd.f32 0.0, %v3714
      %v3716 = vpop.f32.mrb[0].mxu0
      %3717 = vdwg.mxu0
      %v3719 = vsel %vm401, %v3538, 0
      %v3722 = vsel %vm401, %v3539, 0
      %v3725 = vsel %vm408, %v3543, 0
      %3727 = vmatprep.subr.bf16.mxu0 0
      %3728 = vmatpush1.bf16.msra.mxu0 %v3725
      %3729 = vmatprep.subr.bf16.mxu0 0
      %3730 = vmatpush1.bf16.msra.mxu0 0
      %3731 = vmatprep.subr.bf16.mxu0 0
      %3732 = vmatpush1.bf16.msra.mxu0 0
      %3733 = vmatprep.subr.bf16.mxu0 0
      %3734 = vmatpush1.bf16.msra.mxu0 0
      %3735 = vmatprep.subr.bf16.mxu0 0
      %3736 = vmatpush1.bf16.msra.mxu0 0
      %3737 = vmatprep.subr.bf16.mxu0 0
      %3738 = vmatpush1.bf16.msra.mxu0 0
      %3739 = vmatprep.subr.bf16.mxu0 0
      %3740 = vmatpush1.bf16.msra.mxu0 0
      %3741 = vmatprep.subr.bf16.mxu0 0
      %3742 = vmatpush1.bf16.msra.mxu0 0
      %3743 = vmatprep.subr.bf16.mxu0 0
      %3744 = vmatpush1.bf16.msra.mxu0 0
      %3745 = vmatprep.subr.bf16.mxu0 0
      %3746 = vmatpush1.bf16.msra.mxu0 0
      %3747 = vmatprep.subr.bf16.mxu0 0
      %3748 = vmatpush1.bf16.msra.mxu0 0
      %3749 = vmatprep.subr.bf16.mxu0 0
      %3750 = vmatpush1.bf16.msra.mxu0 0
      %3751 = vmatprep.subr.bf16.mxu0 0
      %3752 = vmatpush1.bf16.msra.mxu0 0
      %3753 = vmatprep.subr.bf16.mxu0 0
      %3754 = vmatpush1.bf16.msra.mxu0 0
      %3755 = vmatprep.subr.bf16.mxu0 0
      %3756 = vmatpush1.bf16.msra.mxu0 0
      %3757 = vmatprep.subr.bf16.mxu0 0
      %3758 = vmatpush1.bf16.msra.mxu0 0
      %3759 = vmatprep.mubr.bf16.mxu0 0
      %3760 = vmatmul.mubr.bf16.gmra.mrb[0].mxu0 %v3719
      %v3761 = vpop.f32.mrb[0].mxu0
      %v3762 = vadd.f32 0.0, %v3761
      %v3763 = vpop.f32.mrb[0].mxu0
      %v3764 = vpop.f32.mrb[0].mxu0
      %v3765 = vadd.f32 0.0, %v3764
      %v3766 = vpop.f32.mrb[0].mxu0
      %3767 = vmatprep.mubr.bf16.mxu0 0
      %3768 = vmatmul.mubr.bf16.gmra.mrb[0].mxu0 %v3722
      %v3769 = vpop.f32.mrb[0].mxu0
      %v3770 = vadd.f32 0.0, %v3769
      %v3771 = vpop.f32.mrb[0].mxu0
      %v3772 = vpop.f32.mrb[0].mxu0
      %v3773 = vadd.f32 0.0, %v3772
      %v3774 = vpop.f32.mrb[0].mxu0
      %3775 = vdwg.mxu0
      %v3776 = vsel %vm486, %v3588, 0.0
      %v3777 = vsel %vm486, %v3646, 0.0
      %v3778 = vadd.f32 %v3776, %v3777
      %v3779 = vsel %vm486, %v3704, 0.0
      %v3780 = vadd.f32 %v3778, %v3779
      %v3781 = vsel %vm486, %v3762, 0.0
      %v3782 = vadd.f32 %v3780, %v3781
      %v3783 = vsel %vm486, %v3591, 0.0
      %v3784 = vsel %vm486, %v3649, 0.0
      %v3785 = vadd.f32 %v3783, %v3784
      %v3786 = vsel %vm486, %v3707, 0.0
      %v3787 = vadd.f32 %v3785, %v3786
      %v3788 = vsel %vm486, %v3765, 0.0
      %v3789 = vadd.f32 %v3787, %v3788
      %v3790 = vsel %vm486, %v3596, 0.0
      %v3791 = vsel %vm486, %v3654, 0.0
      %v3792 = vadd.f32 %v3790, %v3791
      %v3793 = vsel %vm486, %v3712, 0.0
      %v3794 = vadd.f32 %v3792, %v3793
      %v3795 = vsel %vm486, %v3770, 0.0
      %v3796 = vadd.f32 %v3794, %v3795
      %v3797 = vsel %vm486, %v3599, 0.0
      %v3798 = vsel %vm486, %v3657, 0.0
      %v3799 = vadd.f32 %v3797, %v3798
      %v3800 = vsel %vm486, %v3715, 0.0
      %v3801 = vadd.f32 %v3799, %v3800
      %v3802 = vsel %vm486, %v3773, 0.0
      %v3803 = vadd.f32 %v3801, %v3802
      %v3804 = vlaneseq
      %v3805 = vshrl.u32 %v3804, 7
      %v3806 = vsub.s32 1, %v3805
      %v3807 = vrot.slane %v392, %v3806
      %v3808 = vadd.f32 %v3782, %v3807
      %v3809 = vadd.f32 %v3789, %v3807
      %v3810 = vadd.f32 %v3796, %v3807
      %v3811 = vadd.f32 %v3803, %v3807
      %v3812 = vadd.f32 %v447, %v3808
      %v3813 = vadd.f32 %v450, %v3809
      %v3814 = vadd.f32 %v455, %v3810
      %v3815 = vadd.f32 %v458, %v3811
      %v3816 = vsel %vm486, %v3812, 0.0
      %3817 = vadd.xlane.f32.xlu0 %v3816
      %v3818 = vpop.xlane.xlu0 %3817
      %v3819 = vsel %vm486, %v3813, 0.0
      %3820 = vadd.xlane.f32.xlu0 %v3819
      %v3821 = vpop.xlane.xlu0 %3820
      %v3822 = vsel %vm486, %v3814, 0.0
      %3823 = vadd.xlane.f32.xlu0 %v3822
      %v3824 = vpop.xlane.xlu0 %3823
      %v3825 = vsel %vm486, %v3815, 0.0
      %3826 = vadd.xlane.f32.xlu0 %v3825
      %v3827 = vpop.xlane.xlu0 %3826
      %v3828 = vrcp.pop 32.0
      %v3829 = vmul.f32 %v3818, %v3828
      %v3830 = vmul.f32 %v3821, %v3828
      %v3831 = vmul.f32 %v3824, %v3828
      %v3832 = vmul.f32 %v3827, %v3828
      %v3833 = vmul.f32 %v3812, %v3812
      %v3834 = vmul.f32 %v3813, %v3813
      %v3835 = vmul.f32 %v3814, %v3814
      %v3836 = vmul.f32 %v3815, %v3815
      %v3837 = vsel %vm486, %v3833, 0.0
      %3838 = vadd.xlane.f32.xlu0 %v3837
      %v3839 = vpop.xlane.xlu0 %3838
      %v3840 = vsel %vm486, %v3834, 0.0
      %3841 = vadd.xlane.f32.xlu0 %v3840
      %v3842 = vpop.xlane.xlu0 %3841
      %v3843 = vsel %vm486, %v3835, 0.0
      %3844 = vadd.xlane.f32.xlu0 %v3843
      %v3845 = vpop.xlane.xlu0 %3844
      %v3846 = vsel %vm486, %v3836, 0.0
      %3847 = vadd.xlane.f32.xlu0 %v3846
      %v3848 = vpop.xlane.xlu0 %3847
      %v3849 = vmul.f32 %v3839, %v3828
      %v3850 = vmul.f32 %v3842, %v3828
      %v3851 = vmul.f32 %v3845, %v3828
      %v3852 = vmul.f32 %v3848, %v3828
      %v3853 = vmul.f32 %v3829, %v3829
      %v3854 = vmul.f32 %v3830, %v3830
      %v3855 = vmul.f32 %v3831, %v3831
      %v3856 = vmul.f32 %v3832, %v3832
      %v3857 = vsub.f32 %v3849, %v3853
      %v3858 = vsub.f32 %v3850, %v3854
      %v3859 = vsub.f32 %v3851, %v3855
      %v3860 = vsub.f32 %v3852, %v3856
      %v3861 = vsub.f32 %v3812, %v3829
      %v3862 = vsub.f32 %v3813, %v3830
      %v3863 = vsub.f32 %v3814, %v3831
      %v3864 = vsub.f32 %v3815, %v3832
      %v3865 = vadd.f32 %v3857, 1e-05
      %v3866 = vadd.f32 %v3858, 1e-05
      %v3867 = vadd.f32 %v3859, 1e-05
      %v3868 = vadd.f32 %v3860, 1e-05
      %v3869 = vrsqrt.pop %v3865
      %v3870 = vrsqrt.pop %v3866
      %v3871 = vrsqrt.pop %v3867
      %v3872 = vrsqrt.pop %v3868
      %v3873 = vmul.f32 %v3861, %v3869
      %v3874 = vmul.f32 %v3862, %v3870
      %v3875 = vmul.f32 %v3863, %v3871
      %v3876 = vmul.f32 %v3864, %v3872
      %v3877 = vlaneseq
      %v3878 = vshrl.u32 %v3877, 7
      %v3879 = vsub.s32 3, %v3878
      %v3880 = vrot.slane %v392, %v3879
      %v3881 = vmul.f32 %v3873, %v3880
      %v3882 = vmul.f32 %v3874, %v3880
      %v3883 = vmul.f32 %v3875, %v3880
      %v3884 = vmul.f32 %v3876, %v3880
      %v3885 = vlaneseq
      %v3886 = vshrl.u32 %v3885, 7
      %v3887 = vsub.s32 4, %v3886
      %v3888 = vrot.slane %v392, %v3887
      %v3889 = vadd.f32 %v3881, %v3888
      %v3890 = vadd.f32 %v3882, %v3888
      %v3891 = vadd.f32 %v3883, %v3888
      %v3892 = vadd.f32 %v3884, %v3888
      %v3893 = vpack.c.bf16 %v3890, %v3889
      %v3894 = vpack.c.bf16 %v3892, %v3891
      %v3895 = vld [vmem:[%s5] sm:$0xff]
      %v3896 = vld [vmem:[%s5 + $0x8] sm:$0xff]
      %v3897 = vld [vmem:[%s5 + $0x10] sm:$0xff]
      %v3898 = vld [vmem:[%s5 + $0x18] sm:$0xff]
      %v3899 = vld [vmem:[%s5 + $0x20] sm:$0xff]
      %v3900 = vld [vmem:[%s5 + $0x28] sm:$0xff]
      %v3901 = vld [vmem:[%s5 + $0x30] sm:$0xff]
      %v3902 = vld [vmem:[%s5 + $0x38] sm:$0xff]
      %v3903 = vld [vmem:[%s5 + $0x40] sm:$0xff]
      %v3904 = vld [vmem:[%s5 + $0x48] sm:$0xff]
      %v3905 = vld [vmem:[%s5 + $0x50] sm:$0xff]
      %v3906 = vld [vmem:[%s5 + $0x58] sm:$0xff]
      %v3907 = vld [vmem:[%s5 + $0x60] sm:$0xff]
      %v3908 = vld [vmem:[%s5 + $0x68] sm:$0xff]
      %v3909 = vld [vmem:[%s5 + $0x70] sm:$0xff]
      %v3910 = vld [vmem:[%s5 + $0x78] sm:$0xff]
      %v3911 = vld [vmem:[%s5 + $0x80] sm:$0xff]
      %v3912 = vld [vmem:[%s5 + $0x88] sm:$0xff]
      %v3913 = vld [vmem:[%s5 + $0x90] sm:$0xff]
      %v3914 = vld [vmem:[%s5 + $0x98] sm:$0xff]
      %v3915 = vld [vmem:[%s5 + $0xa0] sm:$0xff]
      %v3916 = vld [vmem:[%s5 + $0xa8] sm:$0xff]
      %v3917 = vld [vmem:[%s5 + $0xb0] sm:$0xff]
      %v3918 = vld [vmem:[%s5 + $0xb8] sm:$0xff]
      %v3919 = vld [vmem:[%s5 + $0xc0] sm:$0xff]
      %v3920 = vld [vmem:[%s5 + $0xc8] sm:$0xff]
      %v3921 = vld [vmem:[%s5 + $0xd0] sm:$0xff]
      %v3922 = vld [vmem:[%s5 + $0xd8] sm:$0xff]
      %v3923 = vld [vmem:[%s5 + $0xe0] sm:$0xff]
      %v3924 = vld [vmem:[%s5 + $0xe8] sm:$0xff]
      %v3925 = vld [vmem:[%s5 + $0xf0] sm:$0xff]
      %v3926 = vld [vmem:[%s5 + $0xf8] sm:$0xff]
      %v3927 = vld [vmem:[%s6] sm:$0xff]
      %v3928 = vld [vmem:[%s6 + $0x8] sm:$0xff]
      %v3931 = vlaneseq
      %v3932 = vshrl.u32 %v3931, 7
      %v3933 = vsub.s32 0, %v3932
      %v3934 = vrot.slane %v3927, %v3933
      %v3935 = vlaneseq
      %v3936 = vshrl.u32 %v3935, 7
      %v3937 = vsub.s32 1, %v3936
      %v3938 = vrot.slane %v3927, %v3937
      %v3939 = vlaneseq
      %v3940 = vshrl.u32 %v3939, 7
      %v3941 = vsub.s32 2, %v3940
      %v3942 = vrot.slane %v3927, %v3941
      %v3943 = vlaneseq
      %v3944 = vshrl.u32 %v3943, 7
      %v3945 = vsub.s32 3, %v3944
      %v3946 = vrot.slane %v3927, %v3945
      %v3947 = vlaneseq
      %v3948 = vshrl.u32 %v3947, 7
      %v3949 = vsub.s32 4, %v3948
      %v3950 = vrot.slane %v3927, %v3949
      %v3951 = vlaneseq
      %v3952 = vshrl.u32 %v3951, 7
      %v3953 = vsub.s32 5, %v3952
      %v3954 = vrot.slane %v3927, %v3953
      %v3955 = vlaneseq
      %v3956 = vshrl.u32 %v3955, 7
      %v3957 = vsub.s32 6, %v3956
      %v3958 = vrot.slane %v3927, %v3957
      %v3959 = vlaneseq
      %v3960 = vshrl.u32 %v3959, 7
      %v3961 = vsub.s32 7, %v3960
      %v3962 = vrot.slane %v3927, %v3961
      %v3963 = vlaneseq
      %v3964 = vshrl.u32 %v3963, 7
      %v3965 = vsub.s32 0, %v3964
      %v3966 = vrot.slane %v3928, %v3965
      %v3967 = vlaneseq
      %v3968 = vshrl.u32 %v3967, 7
      %v3969 = vsub.s32 1, %v3968
      %v3970 = vrot.slane %v3928, %v3969
      %v3971 = vlaneseq
      %v3972 = vshrl.u32 %v3971, 7
      %v3973 = vsub.s32 2, %v3972
      %v3974 = vrot.slane %v3928, %v3973
      %v3975 = vlaneseq
      %v3976 = vshrl.u32 %v3975, 7
      %v3977 = vsub.s32 3, %v3976
      %v3978 = vrot.slane %v3928, %v3977
      %v3979 = vlaneseq
      %v3980 = vshrl.u32 %v3979, 7
      %v3981 = vsub.s32 4, %v3980
      %v3982 = vrot.slane %v3928, %v3981
      %v3983 = vlaneseq
      %v3984 = vshrl.u32 %v3983, 7
      %v3985 = vsub.s32 5, %v3984
      %v3986 = vrot.slane %v3928, %v3985
      %v3987 = vlaneseq
      %v3988 = vshrl.u32 %v3987, 7
      %v3989 = vsub.s32 6, %v3988
      %v3990 = vrot.slane %v3928, %v3989
      %v3991 = vlaneseq
      %v3992 = vshrl.u32 %v3991, 7
      %v3993 = vsub.s32 7, %v3992
      %v3994 = vrot.slane %v3928, %v3993
      %v4043 = vunpack.c.l.b16 %v3895
      %v4044 = vunpack.c.h.b16 %v3895
      %v4045 = vunpack.c.l.b16 %v3896
      %v4046 = vunpack.c.h.b16 %v3896
      %v4047 = vunpack.c.l.b16 %v3897
      %v4048 = vunpack.c.h.b16 %v3897
      %v4049 = vunpack.c.l.b16 %v3898
      %v4050 = vunpack.c.h.b16 %v3898
      %v4051 = vunpack.c.l.b16 %v3899
      %v4052 = vunpack.c.h.b16 %v3899
      %v4053 = vunpack.c.l.b16 %v3900
      %v4054 = vunpack.c.h.b16 %v3900
      %v4055 = vunpack.c.l.b16 %v3901
      %v4056 = vunpack.c.h.b16 %v3901
      %v4057 = vunpack.c.l.b16 %v3902
      %v4058 = vunpack.c.h.b16 %v3902
      %v4059 = vunpack.c.l.b16 %v3903
      %v4060 = vunpack.c.h.b16 %v3903
      %v4061 = vunpack.c.l.b16 %v3904
      %v4062 = vunpack.c.h.b16 %v3904
      %v4063 = vunpack.c.l.b16 %v3905
      %v4064 = vunpack.c.h.b16 %v3905
      %v4065 = vunpack.c.l.b16 %v3906
      %v4066 = vunpack.c.h.b16 %v3906
      %v4067 = vunpack.c.l.b16 %v3907
      %v4068 = vunpack.c.h.b16 %v3907
      %v4069 = vunpack.c.l.b16 %v3908
      %v4070 = vunpack.c.h.b16 %v3908
      %v4071 = vunpack.c.l.b16 %v3909
      %v4072 = vunpack.c.h.b16 %v3909
      %v4073 = vunpack.c.l.b16 %v3910
      %v4074 = vunpack.c.h.b16 %v3910
      %v4075 = vunpack.c.l.b16 %v3911
      %v4076 = vunpack.c.h.b16 %v3911
      %v4077 = vunpack.c.l.b16 %v3912
      %v4078 = vunpack.c.h.b16 %v3912
      %v4079 = vunpack.c.l.b16 %v3913
      %v4080 = vunpack.c.h.b16 %v3913
      %v4081 = vunpack.c.l.b16 %v3914
      %v4082 = vunpack.c.h.b16 %v3914
      %v4083 = vunpack.c.l.b16 %v3915
      %v4084 = vunpack.c.h.b16 %v3915
      %v4085 = vunpack.c.l.b16 %v3916
      %v4086 = vunpack.c.h.b16 %v3916
      %v4087 = vunpack.c.l.b16 %v3917
      %v4088 = vunpack.c.h.b16 %v3917
      %v4089 = vunpack.c.l.b16 %v3918
      %v4090 = vunpack.c.h.b16 %v3918
      %v4091 = vunpack.c.l.b16 %v3919
      %v4092 = vunpack.c.h.b16 %v3919
      %v4093 = vunpack.c.l.b16 %v3920
      %v4094 = vunpack.c.h.b16 %v3920
      %v4095 = vunpack.c.l.b16 %v3921
      %v4096 = vunpack.c.h.b16 %v3921
      %v4097 = vunpack.c.l.b16 %v3922
      %v4098 = vunpack.c.h.b16 %v3922
      %v4099 = vunpack.c.l.b16 %v3923
      %v4100 = vunpack.c.h.b16 %v3923
      %v4101 = vunpack.c.l.b16 %v3924
      %v4102 = vunpack.c.h.b16 %v3924
      %v4103 = vunpack.c.l.b16 %v3925
      %v4104 = vunpack.c.h.b16 %v3925
      %v4105 = vunpack.c.l.b16 %v3926
      %v4106 = vunpack.c.h.b16 %v3926
      %v4107 = vpack.c.b16 %v4059, %v4043
      %v4108 = vpack.c.b16 %v4060, %v4044
      %v4109 = vpack.c.b16 %v4061, %v4045
      %v4110 = vpack.c.b16 %v4062, %v4046
      %v4111 = vpack.c.b16 %v4063, %v4047
      %v4112 = vpack.c.b16 %v4064, %v4048
      %v4113 = vpack.c.b16 %v4065, %v4049
      %v4114 = vpack.c.b16 %v4066, %v4050
      %v4115 = vpack.c.b16 %v4067, %v4051
      %v4116 = vpack.c.b16 %v4068, %v4052
      %v4117 = vpack.c.b16 %v4069, %v4053
      %v4118 = vpack.c.b16 %v4070, %v4054
      %v4119 = vpack.c.b16 %v4071, %v4055
      %v4120 = vpack.c.b16 %v4072, %v4056
      %v4121 = vpack.c.b16 %v4073, %v4057
      %v4122 = vpack.c.b16 %v4074, %v4058
      %v4123 = vpack.c.b16 %v4091, %v4075
      %v4124 = vpack.c.b16 %v4092, %v4076
      %v4125 = vpack.c.b16 %v4093, %v4077
      %v4126 = vpack.c.b16 %v4094, %v4078
      %v4127 = vpack.c.b16 %v4095, %v4079
      %v4128 = vpack.c.b16 %v4096, %v4080
      %v4129 = vpack.c.b16 %v4097, %v4081
      %v4130 = vpack.c.b16 %v4098, %v4082
      %v4131 = vpack.c.b16 %v4099, %v4083
      %v4132 = vpack.c.b16 %v4100, %v4084
      %v4133 = vpack.c.b16 %v4101, %v4085
      %v4134 = vpack.c.b16 %v4102, %v4086
      %v4135 = vpack.c.b16 %v4103, %v4087
      %v4136 = vpack.c.b16 %v4104, %v4088
      %v4137 = vpack.c.b16 %v4105, %v4089
      %v4138 = vpack.c.b16 %v4106, %v4090
      %v4172 = vsel %vm486, %v3893, 0
      %v4175 = vsel %vm486, %v3894, 0
      %4177 = vmatprep.subr.bf16.mxu0 %v4108
      %4178 = vmatpush1.bf16.msra.mxu0 %v4107
      %4179 = vmatprep.subr.bf16.mxu0 %v4124
      %4180 = vmatpush1.bf16.msra.mxu0 %v4123
      %4181 = vmatprep.subr.bf16.mxu0 0
      %4182 = vmatpush1.bf16.msra.mxu0 0
      %4183 = vmatprep.subr.bf16.mxu0 0
      %4184 = vmatpush1.bf16.msra.mxu0 0
      %4185 = vmatprep.subr.bf16.mxu0 0
      %4186 = vmatpush1.bf16.msra.mxu0 0
      %4187 = vmatprep.subr.bf16.mxu0 0
      %4188 = vmatpush1.bf16.msra.mxu0 0
      %4189 = vmatprep.subr.bf16.mxu0 0
      %4190 = vmatpush1.bf16.msra.mxu0 0
      %4191 = vmatprep.subr.bf16.mxu0 0
      %4192 = vmatpush1.bf16.msra.mxu0 0
      %4193 = vmatprep.subr.bf16.mxu0 0
      %4194 = vmatpush1.bf16.msra.mxu0 0
      %4195 = vmatprep.subr.bf16.mxu0 0
      %4196 = vmatpush1.bf16.msra.mxu0 0
      %4197 = vmatprep.subr.bf16.mxu0 0
      %4198 = vmatpush1.bf16.msra.mxu0 0
      %4199 = vmatprep.subr.bf16.mxu0 0
      %4200 = vmatpush1.bf16.msra.mxu0 0
      %4201 = vmatprep.subr.bf16.mxu0 0
      %4202 = vmatpush1.bf16.msra.mxu0 0
      %4203 = vmatprep.subr.bf16.mxu0 0
      %4204 = vmatpush1.bf16.msra.mxu0 0
      %4205 = vmatprep.subr.bf16.mxu0 0
      %4206 = vmatpush1.bf16.msra.mxu0 0
      %4207 = vmatprep.subr.bf16.mxu0 0
      %4208 = vmatpush1.bf16.msra.mxu0 0
      %4209 = vmatprep.mubr.bf16.mxu0 0
      %4210 = vmatmul.mubr.bf16.gmra.mrb[0].mxu0 %v4172
      %v4211 = vpop.f32.mrb[0].mxu0
      %v4212 = vadd.f32 %v3934, %v4211
      %v4213 = vpop.f32.mrb[0].mxu0
      %v4214 = vadd.f32 %v3938, %v4213
      %v4215 = vpop.f32.mrb[0].mxu0
      %v4216 = vadd.f32 %v3934, %v4215
      %v4217 = vpop.f32.mrb[0].mxu0
      %v4218 = vadd.f32 %v3938, %v4217
      %4219 = vmatprep.mubr.bf16.mxu0 0
      %4220 = vmatmul.mubr.bf16.gmra.mrb[0].mxu0 %v4175
      %v4221 = vpop.f32.mrb[0].mxu0
      %v4222 = vadd.f32 %v3934, %v4221
      %v4223 = vpop.f32.mrb[0].mxu0
      %v4224 = vadd.f32 %v3938, %v4223
      %v4225 = vpop.f32.mrb[0].mxu0
      %v4226 = vadd.f32 %v3934, %v4225
      %v4227 = vpop.f32.mrb[0].mxu0
      %v4228 = vadd.f32 %v3938, %v4227
      %4229 = vdwg.mxu0
      %4230 = vmatprep.subr.bf16.mxu0 %v4110
      %4231 = vmatpush1.bf16.msra.mxu0 %v4109
      %4232 = vmatprep.subr.bf16.mxu0 %v4126
      %4233 = vmatpush1.bf16.msra.mxu0 %v4125
      %4234 = vmatprep.subr.bf16.mxu0 0
      %4235 = vmatpush1.bf16.msra.mxu0 0
      %4236 = vmatprep.subr.bf16.mxu0 0
      %4237 = vmatpush1.bf16.msra.mxu0 0
      %4238 = vmatprep.subr.bf16.mxu0 0
      %4239 = vmatpush1.bf16.msra.mxu0 0
      %4240 = vmatprep.subr.bf16.mxu0 0
      %4241 = vmatpush1.bf16.msra.mxu0 0
      %4242 = vmatprep.subr.bf16.mxu0 0
      %4243 = vmatpush1.bf16.msra.mxu0 0
      %4244 = vmatprep.subr.bf16.mxu0 0
      %4245 = vmatpush1.bf16.msra.mxu0 0
      %4246 = vmatprep.subr.bf16.mxu0 0
      %4247 = vmatpush1.bf16.msra.mxu0 0
      %4248 = vmatprep.subr.bf16.mxu0 0
      %4249 = vmatpush1.bf16.msra.mxu0 0
      %4250 = vmatprep.subr.bf16.mxu0 0
      %4251 = vmatpush1.bf16.msra.mxu0 0
      %4252 = vmatprep.subr.bf16.mxu0 0
      %4253 = vmatpush1.bf16.msra.mxu0 0
      %4254 = vmatprep.subr.bf16.mxu0 0
      %4255 = vmatpush1.bf16.msra.mxu0 0
      %4256 = vmatprep.subr.bf16.mxu0 0
      %4257 = vmatpush1.bf16.msra.mxu0 0
      %4258 = vmatprep.subr.bf16.mxu0 0
      %4259 = vmatpush1.bf16.msra.mxu0 0
      %4260 = vmatprep.subr.bf16.mxu0 0
      %4261 = vmatpush1.bf16.msra.mxu0 0
      %4262 = vmatprep.mubr.bf16.mxu0 0
      %4263 = vmatmul.mubr.bf16.gmra.mrb[0].mxu0 %v4172
      %v4264 = vpop.f32.mrb[0].mxu0
      %v4265 = vadd.f32 %v3942, %v4264
      %v4266 = vpop.f32.mrb[0].mxu0
      %v4267 = vadd.f32 %v3946, %v4266
      %v4268 = vpop.f32.mrb[0].mxu0
      %v4269 = vadd.f32 %v3942, %v4268
      %v4270 = vpop.f32.mrb[0].mxu0
      %v4271 = vadd.f32 %v3946, %v4270
      %4272 = vmatprep.mubr.bf16.mxu0 0
      %4273 = vmatmul.mubr.bf16.gmra.mrb[0].mxu0 %v4175
      %v4274 = vpop.f32.mrb[0].mxu0
      %v4275 = vadd.f32 %v3942, %v4274
      %v4276 = vpop.f32.mrb[0].mxu0
      %v4277 = vadd.f32 %v3946, %v4276
      %v4278 = vpop.f32.mrb[0].mxu0
      %v4279 = vadd.f32 %v3942, %v4278
      %v4280 = vpop.f32.mrb[0].mxu0
      %v4281 = vadd.f32 %v3946, %v4280
      %4282 = vdwg.mxu0
      %4283 = vmatprep.subr.bf16.mxu0 %v4112
      %4284 = vmatpush1.bf16.msra.mxu0 %v4111
      %4285 = vmatprep.subr.bf16.mxu0 %v4128
      %4286 = vmatpush1.bf16.msra.mxu0 %v4127
      %4287 = vmatprep.subr.bf16.mxu0 0
      %4288 = vmatpush1.bf16.msra.mxu0 0
      %4289 = vmatprep.subr.bf16.mxu0 0
      %4290 = vmatpush1.bf16.msra.mxu0 0
      %4291 = vmatprep.subr.bf16.mxu0 0
      %4292 = vmatpush1.bf16.msra.mxu0 0
      %4293 = vmatprep.subr.bf16.mxu0 0
      %4294 = vmatpush1.bf16.msra.mxu0 0
      %4295 = vmatprep.subr.bf16.mxu0 0
      %4296 = vmatpush1.bf16.msra.mxu0 0
      %4297 = vmatprep.subr.bf16.mxu0 0
      %4298 = vmatpush1.bf16.msra.mxu0 0
      %4299 = vmatprep.subr.bf16.mxu0 0
      %4300 = vmatpush1.bf16.msra.mxu0 0
      %4301 = vmatprep.subr.bf16.mxu0 0
      %4302 = vmatpush1.bf16.msra.mxu0 0
      %4303 = vmatprep.subr.bf16.mxu0 0
      %4304 = vmatpush1.bf16.msra.mxu0 0
      %4305 = vmatprep.subr.bf16.mxu0 0
      %4306 = vmatpush1.bf16.msra.mxu0 0
      %4307 = vmatprep.subr.bf16.mxu0 0
      %4308 = vmatpush1.bf16.msra.mxu0 0
      %4309 = vmatprep.subr.bf16.mxu0 0
      %4310 = vmatpush1.bf16.msra.mxu0 0
      %4311 = vmatprep.subr.bf16.mxu0 0
      %4312 = vmatpush1.bf16.msra.mxu0 0
      %4313 = vmatprep.subr.bf16.mxu0 0
      %4314 = vmatpush1.bf16.msra.mxu0 0
      %4315 = vmatprep.mubr.bf16.mxu0 0
      %4316 = vmatmul.mubr.bf16.gmra.mrb[0].mxu0 %v4172
      %v4317 = vpop.f32.mrb[0].mxu0
      %v4318 = vadd.f32 %v3950, %v4317
      %v4319 = vpop.f32.mrb[0].mxu0
      %v4320 = vadd.f32 %v3954, %v4319
      %v4321 = vpop.f32.mrb[0].mxu0
      %v4322 = vadd.f32 %v3950, %v4321
      %v4323 = vpop.f32.mrb[0].mxu0
      %v4324 = vadd.f32 %v3954, %v4323
      %4325 = vmatprep.mubr.bf16.mxu0 0
      %4326 = vmatmul.mubr.bf16.gmra.mrb[0].mxu0 %v4175
      %v4327 = vpop.f32.mrb[0].mxu0
      %v4328 = vadd.f32 %v3950, %v4327
      %v4329 = vpop.f32.mrb[0].mxu0
      %v4330 = vadd.f32 %v3954, %v4329
      %v4331 = vpop.f32.mrb[0].mxu0
      %v4332 = vadd.f32 %v3950, %v4331
      %v4333 = vpop.f32.mrb[0].mxu0
      %v4334 = vadd.f32 %v3954, %v4333
      %4335 = vdwg.mxu0
      %4336 = vmatprep.subr.bf16.mxu0 %v4114
      %4337 = vmatpush1.bf16.msra.mxu0 %v4113
      %4338 = vmatprep.subr.bf16.mxu0 %v4130
      %4339 = vmatpush1.bf16.msra.mxu0 %v4129
      %4340 = vmatprep.subr.bf16.mxu0 0
      %4341 = vmatpush1.bf16.msra.mxu0 0
      %4342 = vmatprep.subr.bf16.mxu0 0
      %4343 = vmatpush1.bf16.msra.mxu0 0
      %4344 = vmatprep.subr.bf16.mxu0 0
      %4345 = vmatpush1.bf16.msra.mxu0 0
      %4346 = vmatprep.subr.bf16.mxu0 0
      %4347 = vmatpush1.bf16.msra.mxu0 0
      %4348 = vmatprep.subr.bf16.mxu0 0
      %4349 = vmatpush1.bf16.msra.mxu0 0
      %4350 = vmatprep.subr.bf16.mxu0 0
      %4351 = vmatpush1.bf16.msra.mxu0 0
      %4352 = vmatprep.subr.bf16.mxu0 0
      %4353 = vmatpush1.bf16.msra.mxu0 0
      %4354 = vmatprep.subr.bf16.mxu0 0
      %4355 = vmatpush1.bf16.msra.mxu0 0
      %4356 = vmatprep.subr.bf16.mxu0 0
      %4357 = vmatpush1.bf16.msra.mxu0 0
      %4358 = vmatprep.subr.bf16.mxu0 0
      %4359 = vmatpush1.bf16.msra.mxu0 0
      %4360 = vmatprep.subr.bf16.mxu0 0
      %4361 = vmatpush1.bf16.msra.mxu0 0
      %4362 = vmatprep.subr.bf16.mxu0 0
      %4363 = vmatpush1.bf16.msra.mxu0 0
      %4364 = vmatprep.subr.bf16.mxu0 0
      %4365 = vmatpush1.bf16.msra.mxu0 0
      %4366 = vmatprep.subr.bf16.mxu0 0
      %4367 = vmatpush1.bf16.msra.mxu0 0
      %4368 = vmatprep.mubr.bf16.mxu0 0
      %4369 = vmatmul.mubr.bf16.gmra.mrb[0].mxu0 %v4172
      %v4370 = vpop.f32.mrb[0].mxu0
      %v4371 = vadd.f32 %v3958, %v4370
      %v4372 = vpop.f32.mrb[0].mxu0
      %v4373 = vadd.f32 %v3962, %v4372
      %v4374 = vpop.f32.mrb[0].mxu0
      %v4375 = vadd.f32 %v3958, %v4374
      %v4376 = vpop.f32.mrb[0].mxu0
      %v4377 = vadd.f32 %v3962, %v4376
      %4378 = vmatprep.mubr.bf16.mxu0 0
      %4379 = vmatmul.mubr.bf16.gmra.mrb[0].mxu0 %v4175
      %v4380 = vpop.f32.mrb[0].mxu0
      %v4381 = vadd.f32 %v3958, %v4380
      %v4382 = vpop.f32.mrb[0].mxu0
      %v4383 = vadd.f32 %v3962, %v4382
      %v4384 = vpop.f32.mrb[0].mxu0
      %v4385 = vadd.f32 %v3958, %v4384
      %v4386 = vpop.f32.mrb[0].mxu0
      %v4387 = vadd.f32 %v3962, %v4386
      %4388 = vdwg.mxu0
      %4389 = vmatprep.subr.bf16.mxu0 %v4116
      %4390 = vmatpush1.bf16.msra.mxu0 %v4115
      %4391 = vmatprep.subr.bf16.mxu0 %v4132
      %4392 = vmatpush1.bf16.msra.mxu0 %v4131
      %4393 = vmatprep.subr.bf16.mxu0 0
      %4394 = vmatpush1.bf16.msra.mxu0 0
      %4395 = vmatprep.subr.bf16.mxu0 0
      %4396 = vmatpush1.bf16.msra.mxu0 0
      %4397 = vmatprep.subr.bf16.mxu0 0
      %4398 = vmatpush1.bf16.msra.mxu0 0
      %4399 = vmatprep.subr.bf16.mxu0 0
      %4400 = vmatpush1.bf16.msra.mxu0 0
      %4401 = vmatprep.subr.bf16.mxu0 0
      %4402 = vmatpush1.bf16.msra.mxu0 0
      %4403 = vmatprep.subr.bf16.mxu0 0
      %4404 = vmatpush1.bf16.msra.mxu0 0
      %4405 = vmatprep.subr.bf16.mxu0 0
      %4406 = vmatpush1.bf16.msra.mxu0 0
      %4407 = vmatprep.subr.bf16.mxu0 0
      %4408 = vmatpush1.bf16.msra.mxu0 0
      %4409 = vmatprep.subr.bf16.mxu0 0
      %4410 = vmatpush1.bf16.msra.mxu0 0
      %4411 = vmatprep.subr.bf16.mxu0 0
      %4412 = vmatpush1.bf16.msra.mxu0 0
      %4413 = vmatprep.subr.bf16.mxu0 0
      %4414 = vmatpush1.bf16.msra.mxu0 0
      %4415 = vmatprep.subr.bf16.mxu0 0
      %4416 = vmatpush1.bf16.msra.mxu0 0
      %4417 = vmatprep.subr.bf16.mxu0 0
      %4418 = vmatpush1.bf16.msra.mxu0 0
      %4419 = vmatprep.subr.bf16.mxu0 0
      %4420 = vmatpush1.bf16.msra.mxu0 0
      %4421 = vmatprep.mubr.bf16.mxu0 0
      %4422 = vmatmul.mubr.bf16.gmra.mrb[0].mxu0 %v4172
      %v4423 = vpop.f32.mrb[0].mxu0
      %v4424 = vadd.f32 %v3966, %v4423
      %v4425 = vpop.f32.mrb[0].mxu0
      %v4426 = vadd.f32 %v3970, %v4425
      %v4427 = vpop.f32.mrb[0].mxu0
      %v4428 = vadd.f32 %v3966, %v4427
      %v4429 = vpop.f32.mrb[0].mxu0
      %v4430 = vadd.f32 %v3970, %v4429
      %4431 = vmatprep.mubr.bf16.mxu0 0
      %4432 = vmatmul.mubr.bf16.gmra.mrb[0].mxu0 %v4175
      %v4433 = vpop.f32.mrb[0].mxu0
      %v4434 = vadd.f32 %v3966, %v4433
      %v4435 = vpop.f32.mrb[0].mxu0
      %v4436 = vadd.f32 %v3970, %v4435
      %v4437 = vpop.f32.mrb[0].mxu0
      %v4438 = vadd.f32 %v3966, %v4437
      %v4439 = vpop.f32.mrb[0].mxu0
      %v4440 = vadd.f32 %v3970, %v4439
      %4441 = vdwg.mxu0
      %4442 = vmatprep.subr.bf16.mxu0 %v4118
      %4443 = vmatpush1.bf16.msra.mxu0 %v4117
      %4444 = vmatprep.subr.bf16.mxu0 %v4134
      %4445 = vmatpush1.bf16.msra.mxu0 %v4133
      %4446 = vmatprep.subr.bf16.mxu0 0
      %4447 = vmatpush1.bf16.msra.mxu0 0
      %4448 = vmatprep.subr.bf16.mxu0 0
      %4449 = vmatpush1.bf16.msra.mxu0 0
      %4450 = vmatprep.subr.bf16.mxu0 0
      %4451 = vmatpush1.bf16.msra.mxu0 0
      %4452 = vmatprep.subr.bf16.mxu0 0
      %4453 = vmatpush1.bf16.msra.mxu0 0
      %4454 = vmatprep.subr.bf16.mxu0 0
      %4455 = vmatpush1.bf16.msra.mxu0 0
      %4456 = vmatprep.subr.bf16.mxu0 0
      %4457 = vmatpush1.bf16.msra.mxu0 0
      %4458 = vmatprep.subr.bf16.mxu0 0
      %4459 = vmatpush1.bf16.msra.mxu0 0
      %4460 = vmatprep.subr.bf16.mxu0 0
      %4461 = vmatpush1.bf16.msra.mxu0 0
      %4462 = vmatprep.subr.bf16.mxu0 0
      %4463 = vmatpush1.bf16.msra.mxu0 0
      %4464 = vmatprep.subr.bf16.mxu0 0
      %4465 = vmatpush1.bf16.msra.mxu0 0
      %4466 = vmatprep.subr.bf16.mxu0 0
      %4467 = vmatpush1.bf16.msra.mxu0 0
      %4468 = vmatprep.subr.bf16.mxu0 0
      %4469 = vmatpush1.bf16.msra.mxu0 0
      %4470 = vmatprep.subr.bf16.mxu0 0
      %4471 = vmatpush1.bf16.msra.mxu0 0
      %4472 = vmatprep.subr.bf16.mxu0 0
      %4473 = vmatpush1.bf16.msra.mxu0 0
      %4474 = vmatprep.mubr.bf16.mxu0 0
      %4475 = vmatmul.mubr.bf16.gmra.mrb[0].mxu0 %v4172
      %v4476 = vpop.f32.mrb[0].mxu0
      %v4477 = vadd.f32 %v3974, %v4476
      %v4478 = vpop.f32.mrb[0].mxu0
      %v4479 = vadd.f32 %v3978, %v4478
      %v4480 = vpop.f32.mrb[0].mxu0
      %v4481 = vadd.f32 %v3974, %v4480
      %v4482 = vpop.f32.mrb[0].mxu0
      %v4483 = vadd.f32 %v3978, %v4482
      %4484 = vmatprep.mubr.bf16.mxu0 0
      %4485 = vmatmul.mubr.bf16.gmra.mrb[0].mxu0 %v4175
      %v4486 = vpop.f32.mrb[0].mxu0
      %v4487 = vadd.f32 %v3974, %v4486
      %v4488 = vpop.f32.mrb[0].mxu0
      %v4489 = vadd.f32 %v3978, %v4488
      %v4490 = vpop.f32.mrb[0].mxu0
      %v4491 = vadd.f32 %v3974, %v4490
      %v4492 = vpop.f32.mrb[0].mxu0
      %v4493 = vadd.f32 %v3978, %v4492
      %4494 = vdwg.mxu0
      %4495 = vmatprep.subr.bf16.mxu0 %v4120
      %4496 = vmatpush1.bf16.msra.mxu0 %v4119
      %4497 = vmatprep.subr.bf16.mxu0 %v4136
      %4498 = vmatpush1.bf16.msra.mxu0 %v4135
      %4499 = vmatprep.subr.bf16.mxu0 0
      %4500 = vmatpush1.bf16.msra.mxu0 0
      %4501 = vmatprep.subr.bf16.mxu0 0
      %4502 = vmatpush1.bf16.msra.mxu0 0
      %4503 = vmatprep.subr.bf16.mxu0 0
      %4504 = vmatpush1.bf16.msra.mxu0 0
      %4505 = vmatprep.subr.bf16.mxu0 0
      %4506 = vmatpush1.bf16.msra.mxu0 0
      %4507 = vmatprep.subr.bf16.mxu0 0
      %4508 = vmatpush1.bf16.msra.mxu0 0
      %4509 = vmatprep.subr.bf16.mxu0 0
      %4510 = vmatpush1.bf16.msra.mxu0 0
      %4511 = vmatprep.subr.bf16.mxu0 0
      %4512 = vmatpush1.bf16.msra.mxu0 0
      %4513 = vmatprep.subr.bf16.mxu0 0
      %4514 = vmatpush1.bf16.msra.mxu0 0
      %4515 = vmatprep.subr.bf16.mxu0 0
      %4516 = vmatpush1.bf16.msra.mxu0 0
      %4517 = vmatprep.subr.bf16.mxu0 0
      %4518 = vmatpush1.bf16.msra.mxu0 0
      %4519 = vmatprep.subr.bf16.mxu0 0
      %4520 = vmatpush1.bf16.msra.mxu0 0
      %4521 = vmatprep.subr.bf16.mxu0 0
      %4522 = vmatpush1.bf16.msra.mxu0 0
      %4523 = vmatprep.subr.bf16.mxu0 0
      %4524 = vmatpush1.bf16.msra.mxu0 0
      %4525 = vmatprep.subr.bf16.mxu0 0
      %4526 = vmatpush1.bf16.msra.mxu0 0
      %4527 = vmatprep.mubr.bf16.mxu0 0
      %4528 = vmatmul.mubr.bf16.gmra.mrb[0].mxu0 %v4172
      %v4529 = vpop.f32.mrb[0].mxu0
      %v4530 = vadd.f32 %v3982, %v4529
      %v4531 = vpop.f32.mrb[0].mxu0
      %v4532 = vadd.f32 %v3986, %v4531
      %v4533 = vpop.f32.mrb[0].mxu0
      %v4534 = vadd.f32 %v3982, %v4533
      %v4535 = vpop.f32.mrb[0].mxu0
      %v4536 = vadd.f32 %v3986, %v4535
      %4537 = vmatprep.mubr.bf16.mxu0 0
      %4538 = vmatmul.mubr.bf16.gmra.mrb[0].mxu0 %v4175
      %v4539 = vpop.f32.mrb[0].mxu0
      %v4540 = vadd.f32 %v3982, %v4539
      %v4541 = vpop.f32.mrb[0].mxu0
      %v4542 = vadd.f32 %v3986, %v4541
      %v4543 = vpop.f32.mrb[0].mxu0
      %v4544 = vadd.f32 %v3982, %v4543
      %v4545 = vpop.f32.mrb[0].mxu0
      %v4546 = vadd.f32 %v3986, %v4545
      %4547 = vdwg.mxu0
      %4548 = vmatprep.subr.bf16.mxu0 %v4122
      %4549 = vmatpush1.bf16.msra.mxu0 %v4121
      %4550 = vmatprep.subr.bf16.mxu0 %v4138
      %4551 = vmatpush1.bf16.msra.mxu0 %v4137
      %4552 = vmatprep.subr.bf16.mxu0 0
      %4553 = vmatpush1.bf16.msra.mxu0 0
      %4554 = vmatprep.subr.bf16.mxu0 0
      %4555 = vmatpush1.bf16.msra.mxu0 0
      %4556 = vmatprep.subr.bf16.mxu0 0
      %4557 = vmatpush1.bf16.msra.mxu0 0
      %4558 = vmatprep.subr.bf16.mxu0 0
      %4559 = vmatpush1.bf16.msra.mxu0 0
      %4560 = vmatprep.subr.bf16.mxu0 0
      %4561 = vmatpush1.bf16.msra.mxu0 0
      %4562 = vmatprep.subr.bf16.mxu0 0
      %4563 = vmatpush1.bf16.msra.mxu0 0
      %4564 = vmatprep.subr.bf16.mxu0 0
      %4565 = vmatpush1.bf16.msra.mxu0 0
      %4566 = vmatprep.subr.bf16.mxu0 0
      %4567 = vmatpush1.bf16.msra.mxu0 0
      %4568 = vmatprep.subr.bf16.mxu0 0
      %4569 = vmatpush1.bf16.msra.mxu0 0
      %4570 = vmatprep.subr.bf16.mxu0 0
      %4571 = vmatpush1.bf16.msra.mxu0 0
      %4572 = vmatprep.subr.bf16.mxu0 0
      %4573 = vmatpush1.bf16.msra.mxu0 0
      %4574 = vmatprep.subr.bf16.mxu0 0
      %4575 = vmatpush1.bf16.msra.mxu0 0
      %4576 = vmatprep.subr.bf16.mxu0 0
      %4577 = vmatpush1.bf16.msra.mxu0 0
      %4578 = vmatprep.subr.bf16.mxu0 0
      %4579 = vmatpush1.bf16.msra.mxu0 0
      %4580 = vmatprep.mubr.bf16.mxu0 0
      %4581 = vmatmul.mubr.bf16.gmra.mrb[0].mxu0 %v4172
      %v4582 = vpop.f32.mrb[0].mxu0
      %v4583 = vadd.f32 %v3990, %v4582
      %v4584 = vpop.f32.mrb[0].mxu0
      %v4585 = vadd.f32 %v3994, %v4584
      %v4586 = vpop.f32.mrb[0].mxu0
      %v4587 = vadd.f32 %v3990, %v4586
      %v4588 = vpop.f32.mrb[0].mxu0
      %v4589 = vadd.f32 %v3994, %v4588
      %4590 = vmatprep.mubr.bf16.mxu0 0
      %4591 = vmatmul.mubr.bf16.gmra.mrb[0].mxu0 %v4175
      %v4592 = vpop.f32.mrb[0].mxu0
      %v4593 = vadd.f32 %v3990, %v4592
      %v4594 = vpop.f32.mrb[0].mxu0
      %v4595 = vadd.f32 %v3994, %v4594
      %v4596 = vpop.f32.mrb[0].mxu0
      %v4597 = vadd.f32 %v3990, %v4596
      %v4598 = vpop.f32.mrb[0].mxu0
      %v4599 = vadd.f32 %v3994, %v4598
      %4600 = vdwg.mxu0
      %v4601 = vmax.f32 %v4212, 0.0
      %v4602 = vmax.f32 %v4214, 0.0
      %v4603 = vmax.f32 %v4265, 0.0
      %v4604 = vmax.f32 %v4267, 0.0
      %v4605 = vmax.f32 %v4318, 0.0
      %v4606 = vmax.f32 %v4320, 0.0
      %v4607 = vmax.f32 %v4371, 0.0
      %v4608 = vmax.f32 %v4373, 0.0
      %v4609 = vmax.f32 %v4424, 0.0
      %v4610 = vmax.f32 %v4426, 0.0
      %v4611 = vmax.f32 %v4477, 0.0
      %v4612 = vmax.f32 %v4479, 0.0
      %v4613 = vmax.f32 %v4530, 0.0
      %v4614 = vmax.f32 %v4532, 0.0
      %v4615 = vmax.f32 %v4583, 0.0
      %v4616 = vmax.f32 %v4585, 0.0
      %v4617 = vmax.f32 %v4216, 0.0
      %v4618 = vmax.f32 %v4218, 0.0
      %v4619 = vmax.f32 %v4269, 0.0
      %v4620 = vmax.f32 %v4271, 0.0
      %v4621 = vmax.f32 %v4322, 0.0
      %v4622 = vmax.f32 %v4324, 0.0
      %v4623 = vmax.f32 %v4375, 0.0
      %v4624 = vmax.f32 %v4377, 0.0
      %v4625 = vmax.f32 %v4428, 0.0
      %v4626 = vmax.f32 %v4430, 0.0
      %v4627 = vmax.f32 %v4481, 0.0
      %v4628 = vmax.f32 %v4483, 0.0
      %v4629 = vmax.f32 %v4534, 0.0
      %v4630 = vmax.f32 %v4536, 0.0
      %v4631 = vmax.f32 %v4587, 0.0
      %v4632 = vmax.f32 %v4589, 0.0
      %v4633 = vmax.f32 %v4222, 0.0
      %v4634 = vmax.f32 %v4224, 0.0
      %v4635 = vmax.f32 %v4275, 0.0
      %v4636 = vmax.f32 %v4277, 0.0
      %v4637 = vmax.f32 %v4328, 0.0
      %v4638 = vmax.f32 %v4330, 0.0
      %v4639 = vmax.f32 %v4381, 0.0
      %v4640 = vmax.f32 %v4383, 0.0
      %v4641 = vmax.f32 %v4434, 0.0
      %v4642 = vmax.f32 %v4436, 0.0
      %v4643 = vmax.f32 %v4487, 0.0
      %v4644 = vmax.f32 %v4489, 0.0
      %v4645 = vmax.f32 %v4540, 0.0
      %v4646 = vmax.f32 %v4542, 0.0
      %v4647 = vmax.f32 %v4593, 0.0
      %v4648 = vmax.f32 %v4595, 0.0
      %v4649 = vmax.f32 %v4226, 0.0
      %v4650 = vmax.f32 %v4228, 0.0
      %v4651 = vmax.f32 %v4279, 0.0
      %v4652 = vmax.f32 %v4281, 0.0
      %v4653 = vmax.f32 %v4332, 0.0
      %v4654 = vmax.f32 %v4334, 0.0
      %v4655 = vmax.f32 %v4385, 0.0
      %v4656 = vmax.f32 %v4387, 0.0
      %v4657 = vmax.f32 %v4438, 0.0
      %v4658 = vmax.f32 %v4440, 0.0
      %v4659 = vmax.f32 %v4491, 0.0
      %v4660 = vmax.f32 %v4493, 0.0
      %v4661 = vmax.f32 %v4544, 0.0
      %v4662 = vmax.f32 %v4546, 0.0
      %v4663 = vmax.f32 %v4597, 0.0
      %v4664 = vmax.f32 %v4599, 0.0
      %v4665 = vpack.c.bf16 %v4617, %v4601
      %v4666 = vpack.c.bf16 %v4618, %v4602
      %v4667 = vpack.c.bf16 %v4619, %v4603
      %v4668 = vpack.c.bf16 %v4620, %v4604
      %v4669 = vpack.c.bf16 %v4621, %v4605
      %v4670 = vpack.c.bf16 %v4622, %v4606
      %v4671 = vpack.c.bf16 %v4623, %v4607
      %v4672 = vpack.c.bf16 %v4624, %v4608
      %v4673 = vpack.c.bf16 %v4625, %v4609
      %v4674 = vpack.c.bf16 %v4626, %v4610
      %v4675 = vpack.c.bf16 %v4627, %v4611
      %v4676 = vpack.c.bf16 %v4628, %v4612
      %v4677 = vpack.c.bf16 %v4629, %v4613
      %v4678 = vpack.c.bf16 %v4630, %v4614
      %v4679 = vpack.c.bf16 %v4631, %v4615
      %v4680 = vpack.c.bf16 %v4632, %v4616
      %v4681 = vpack.c.bf16 %v4649, %v4633
      %v4682 = vpack.c.bf16 %v4650, %v4634
      %v4683 = vpack.c.bf16 %v4651, %v4635
      %v4684 = vpack.c.bf16 %v4652, %v4636
      %v4685 = vpack.c.bf16 %v4653, %v4637
      %v4686 = vpack.c.bf16 %v4654, %v4638
      %v4687 = vpack.c.bf16 %v4655, %v4639
      %v4688 = vpack.c.bf16 %v4656, %v4640
      %v4689 = vpack.c.bf16 %v4657, %v4641
      %v4690 = vpack.c.bf16 %v4658, %v4642
      %v4691 = vpack.c.bf16 %v4659, %v4643
      %v4692 = vpack.c.bf16 %v4660, %v4644
      %v4693 = vpack.c.bf16 %v4661, %v4645
      %v4694 = vpack.c.bf16 %v4662, %v4646
      %v4695 = vpack.c.bf16 %v4663, %v4647
      %v4696 = vpack.c.bf16 %v4664, %v4648
      %v4697 = vld [vmem:[%s7] sm:$0xf]
      %v4698 = vld [vmem:[%s7 + $0x4] sm:$0xf]
      %v4699 = vld [vmem:[%s7 + $0x8] sm:$0xf]
      %v4700 = vld [vmem:[%s7 + $0xc] sm:$0xf]
      %v4701 = vld [vmem:[%s7 + $0x10] sm:$0xf]
      %v4702 = vld [vmem:[%s7 + $0x14] sm:$0xf]
      %v4703 = vld [vmem:[%s7 + $0x18] sm:$0xf]
      %v4704 = vld [vmem:[%s7 + $0x1c] sm:$0xf]
      %v4705 = vld [vmem:[%s7 + $0x20] sm:$0xf]
      %v4706 = vld [vmem:[%s7 + $0x24] sm:$0xf]
      %v4707 = vld [vmem:[%s7 + $0x28] sm:$0xf]
      %v4708 = vld [vmem:[%s7 + $0x2c] sm:$0xf]
      %v4709 = vld [vmem:[%s7 + $0x30] sm:$0xf]
      %v4710 = vld [vmem:[%s7 + $0x34] sm:$0xf]
      %v4711 = vld [vmem:[%s7 + $0x38] sm:$0xf]
      %v4712 = vld [vmem:[%s7 + $0x3c] sm:$0xf]
      %v4713 = vld [vmem:[%s7 + $0x40] sm:$0xf]
      %v4714 = vld [vmem:[%s7 + $0x44] sm:$0xf]
      %v4715 = vld [vmem:[%s7 + $0x48] sm:$0xf]
      %v4716 = vld [vmem:[%s7 + $0x4c] sm:$0xf]
      %v4717 = vld [vmem:[%s7 + $0x50] sm:$0xf]
      %v4718 = vld [vmem:[%s7 + $0x54] sm:$0xf]
      %v4719 = vld [vmem:[%s7 + $0x58] sm:$0xf]
      %v4720 = vld [vmem:[%s7 + $0x5c] sm:$0xf]
      %v4721 = vld [vmem:[%s7 + $0x60] sm:$0xf]
      %v4722 = vld [vmem:[%s7 + $0x64] sm:$0xf]
      %v4723 = vld [vmem:[%s7 + $0x68] sm:$0xf]
      %v4724 = vld [vmem:[%s7 + $0x6c] sm:$0xf]
      %v4725 = vld [vmem:[%s7 + $0x70] sm:$0xf]
      %v4726 = vld [vmem:[%s7 + $0x74] sm:$0xf]
      %v4727 = vld [vmem:[%s7 + $0x78] sm:$0xf]
      %v4728 = vld [vmem:[%s7 + $0x7c] sm:$0xf]
      %v4729 = vld [vmem:[%s7 + $0x80] sm:$0xf]
      %v4730 = vld [vmem:[%s7 + $0x84] sm:$0xf]
      %v4731 = vld [vmem:[%s7 + $0x88] sm:$0xf]
      %v4732 = vld [vmem:[%s7 + $0x8c] sm:$0xf]
      %v4733 = vld [vmem:[%s7 + $0x90] sm:$0xf]
      %v4734 = vld [vmem:[%s7 + $0x94] sm:$0xf]
      %v4735 = vld [vmem:[%s7 + $0x98] sm:$0xf]
      %v4736 = vld [vmem:[%s7 + $0x9c] sm:$0xf]
      %v4737 = vld [vmem:[%s7 + $0xa0] sm:$0xf]
      %v4738 = vld [vmem:[%s7 + $0xa4] sm:$0xf]
      %v4739 = vld [vmem:[%s7 + $0xa8] sm:$0xf]
      %v4740 = vld [vmem:[%s7 + $0xac] sm:$0xf]
      %v4741 = vld [vmem:[%s7 + $0xb0] sm:$0xf]
      %v4742 = vld [vmem:[%s7 + $0xb4] sm:$0xf]
      %v4743 = vld [vmem:[%s7 + $0xb8] sm:$0xf]
      %v4744 = vld [vmem:[%s7 + $0xbc] sm:$0xf]
      %v4745 = vld [vmem:[%s7 + $0xc0] sm:$0xf]
      %v4746 = vld [vmem:[%s7 + $0xc4] sm:$0xf]
      %v4747 = vld [vmem:[%s7 + $0xc8] sm:$0xf]
      %v4748 = vld [vmem:[%s7 + $0xcc] sm:$0xf]
      %v4749 = vld [vmem:[%s7 + $0xd0] sm:$0xf]
      %v4750 = vld [vmem:[%s7 + $0xd4] sm:$0xf]
      %v4751 = vld [vmem:[%s7 + $0xd8] sm:$0xf]
      %v4752 = vld [vmem:[%s7 + $0xdc] sm:$0xf]
      %v4753 = vld [vmem:[%s7 + $0xe0] sm:$0xf]
      %v4754 = vld [vmem:[%s7 + $0xe4] sm:$0xf]
      %v4755 = vld [vmem:[%s7 + $0xe8] sm:$0xf]
      %v4756 = vld [vmem:[%s7 + $0xec] sm:$0xf]
      %v4757 = vld [vmem:[%s7 + $0xf0] sm:$0xf]
      %v4758 = vld [vmem:[%s7 + $0xf4] sm:$0xf]
      %v4759 = vld [vmem:[%s7 + $0xf8] sm:$0xf]
      %v4760 = vld [vmem:[%s7 + $0xfc] sm:$0xf]
      %v4761 = vld [vmem:[%s7 + $0x100] sm:$0xf]
      %v4762 = vld [vmem:[%s7 + $0x104] sm:$0xf]
      %v4763 = vld [vmem:[%s7 + $0x108] sm:$0xf]
      %v4764 = vld [vmem:[%s7 + $0x10c] sm:$0xf]
      %v4765 = vld [vmem:[%s7 + $0x110] sm:$0xf]
      %v4766 = vld [vmem:[%s7 + $0x114] sm:$0xf]
      %v4767 = vld [vmem:[%s7 + $0x118] sm:$0xf]
      %v4768 = vld [vmem:[%s7 + $0x11c] sm:$0xf]
      %v4769 = vld [vmem:[%s7 + $0x120] sm:$0xf]
      %v4770 = vld [vmem:[%s7 + $0x124] sm:$0xf]
      %v4771 = vld [vmem:[%s7 + $0x128] sm:$0xf]
      %v4772 = vld [vmem:[%s7 + $0x12c] sm:$0xf]
      %v4773 = vld [vmem:[%s7 + $0x130] sm:$0xf]
      %v4774 = vld [vmem:[%s7 + $0x134] sm:$0xf]
      %v4775 = vld [vmem:[%s7 + $0x138] sm:$0xf]
      %v4776 = vld [vmem:[%s7 + $0x13c] sm:$0xf]
      %v4777 = vld [vmem:[%s7 + $0x140] sm:$0xf]
      %v4778 = vld [vmem:[%s7 + $0x144] sm:$0xf]
      %v4779 = vld [vmem:[%s7 + $0x148] sm:$0xf]
      %v4780 = vld [vmem:[%s7 + $0x14c] sm:$0xf]
      %v4781 = vld [vmem:[%s7 + $0x150] sm:$0xf]
      %v4782 = vld [vmem:[%s7 + $0x154] sm:$0xf]
      %v4783 = vld [vmem:[%s7 + $0x158] sm:$0xf]
      %v4784 = vld [vmem:[%s7 + $0x15c] sm:$0xf]
      %v4785 = vld [vmem:[%s7 + $0x160] sm:$0xf]
      %v4786 = vld [vmem:[%s7 + $0x164] sm:$0xf]
      %v4787 = vld [vmem:[%s7 + $0x168] sm:$0xf]
      %v4788 = vld [vmem:[%s7 + $0x16c] sm:$0xf]
      %v4789 = vld [vmem:[%s7 + $0x170] sm:$0xf]
      %v4790 = vld [vmem:[%s7 + $0x174] sm:$0xf]
      %v4791 = vld [vmem:[%s7 + $0x178] sm:$0xf]
      %v4792 = vld [vmem:[%s7 + $0x17c] sm:$0xf]
      %v4793 = vld [vmem:[%s7 + $0x180] sm:$0xf]
      %v4794 = vld [vmem:[%s7 + $0x184] sm:$0xf]
      %v4795 = vld [vmem:[%s7 + $0x188] sm:$0xf]
      %v4796 = vld [vmem:[%s7 + $0x18c] sm:$0xf]
      %v4797 = vld [vmem:[%s7 + $0x190] sm:$0xf]
      %v4798 = vld [vmem:[%s7 + $0x194] sm:$0xf]
      %v4799 = vld [vmem:[%s7 + $0x198] sm:$0xf]
      %v4800 = vld [vmem:[%s7 + $0x19c] sm:$0xf]
      %v4801 = vld [vmem:[%s7 + $0x1a0] sm:$0xf]
      %v4802 = vld [vmem:[%s7 + $0x1a4] sm:$0xf]
      %v4803 = vld [vmem:[%s7 + $0x1a8] sm:$0xf]
      %v4804 = vld [vmem:[%s7 + $0x1ac] sm:$0xf]
      %v4805 = vld [vmem:[%s7 + $0x1b0] sm:$0xf]
      %v4806 = vld [vmem:[%s7 + $0x1b4] sm:$0xf]
      %v4807 = vld [vmem:[%s7 + $0x1b8] sm:$0xf]
      %v4808 = vld [vmem:[%s7 + $0x1bc] sm:$0xf]
      %v4809 = vld [vmem:[%s7 + $0x1c0] sm:$0xf]
      %v4810 = vld [vmem:[%s7 + $0x1c4] sm:$0xf]
      %v4811 = vld [vmem:[%s7 + $0x1c8] sm:$0xf]
      %v4812 = vld [vmem:[%s7 + $0x1cc] sm:$0xf]
      %v4813 = vld [vmem:[%s7 + $0x1d0] sm:$0xf]
      %v4814 = vld [vmem:[%s7 + $0x1d4] sm:$0xf]
      %v4815 = vld [vmem:[%s7 + $0x1d8] sm:$0xf]
      %v4816 = vld [vmem:[%s7 + $0x1dc] sm:$0xf]
      %v4817 = vld [vmem:[%s7 + $0x1e0] sm:$0xf]
      %v4818 = vld [vmem:[%s7 + $0x1e4] sm:$0xf]
      %v4819 = vld [vmem:[%s7 + $0x1e8] sm:$0xf]
      %v4820 = vld [vmem:[%s7 + $0x1ec] sm:$0xf]
      %v4821 = vld [vmem:[%s7 + $0x1f0] sm:$0xf]
      %v4822 = vld [vmem:[%s7 + $0x1f4] sm:$0xf]
      %v4823 = vld [vmem:[%s7 + $0x1f8] sm:$0xf]
      %v4824 = vld [vmem:[%s7 + $0x1fc] sm:$0xf]
      %v4825 = vld [vmem:[%s7 + $0x200] sm:$0xf]
      %v4826 = vld [vmem:[%s7 + $0x204] sm:$0xf]
      %v4827 = vld [vmem:[%s7 + $0x208] sm:$0xf]
      %v4828 = vld [vmem:[%s7 + $0x20c] sm:$0xf]
      %v4829 = vld [vmem:[%s7 + $0x210] sm:$0xf]
      %v4830 = vld [vmem:[%s7 + $0x214] sm:$0xf]
      %v4831 = vld [vmem:[%s7 + $0x218] sm:$0xf]
      %v4832 = vld [vmem:[%s7 + $0x21c] sm:$0xf]
      %v4833 = vld [vmem:[%s7 + $0x220] sm:$0xf]
      %v4834 = vld [vmem:[%s7 + $0x224] sm:$0xf]
      %v4835 = vld [vmem:[%s7 + $0x228] sm:$0xf]
      %v4836 = vld [vmem:[%s7 + $0x22c] sm:$0xf]
      %v4837 = vld [vmem:[%s7 + $0x230] sm:$0xf]
      %v4838 = vld [vmem:[%s7 + $0x234] sm:$0xf]
      %v4839 = vld [vmem:[%s7 + $0x238] sm:$0xf]
      %v4840 = vld [vmem:[%s7 + $0x23c] sm:$0xf]
      %v4841 = vld [vmem:[%s7 + $0x240] sm:$0xf]
      %v4842 = vld [vmem:[%s7 + $0x244] sm:$0xf]
      %v4843 = vld [vmem:[%s7 + $0x248] sm:$0xf]
      %v4844 = vld [vmem:[%s7 + $0x24c] sm:$0xf]
      %v4845 = vld [vmem:[%s7 + $0x250] sm:$0xf]
      %v4846 = vld [vmem:[%s7 + $0x254] sm:$0xf]
      %v4847 = vld [vmem:[%s7 + $0x258] sm:$0xf]
      %v4848 = vld [vmem:[%s7 + $0x25c] sm:$0xf]
      %v4849 = vld [vmem:[%s7 + $0x260] sm:$0xf]
      %v4850 = vld [vmem:[%s7 + $0x264] sm:$0xf]
      %v4851 = vld [vmem:[%s7 + $0x268] sm:$0xf]
      %v4852 = vld [vmem:[%s7 + $0x26c] sm:$0xf]
      %v4853 = vld [vmem:[%s7 + $0x270] sm:$0xf]
      %v4854 = vld [vmem:[%s7 + $0x274] sm:$0xf]
      %v4855 = vld [vmem:[%s7 + $0x278] sm:$0xf]
      %v4856 = vld [vmem:[%s7 + $0x27c] sm:$0xf]
      %v4857 = vld [vmem:[%s7 + $0x280] sm:$0xf]
      %v4858 = vld [vmem:[%s7 + $0x284] sm:$0xf]
      %v4859 = vld [vmem:[%s7 + $0x288] sm:$0xf]
      %v4860 = vld [vmem:[%s7 + $0x28c] sm:$0xf]
      %v4861 = vld [vmem:[%s7 + $0x290] sm:$0xf]
      %v4862 = vld [vmem:[%s7 + $0x294] sm:$0xf]
      %v4863 = vld [vmem:[%s7 + $0x298] sm:$0xf]
      %v4864 = vld [vmem:[%s7 + $0x29c] sm:$0xf]
      %v4865 = vld [vmem:[%s7 + $0x2a0] sm:$0xf]
      %v4866 = vld [vmem:[%s7 + $0x2a4] sm:$0xf]
      %v4867 = vld [vmem:[%s7 + $0x2a8] sm:$0xf]
      %v4868 = vld [vmem:[%s7 + $0x2ac] sm:$0xf]
      %v4869 = vld [vmem:[%s7 + $0x2b0] sm:$0xf]
      %v4870 = vld [vmem:[%s7 + $0x2b4] sm:$0xf]
      %v4871 = vld [vmem:[%s7 + $0x2b8] sm:$0xf]
      %v4872 = vld [vmem:[%s7 + $0x2bc] sm:$0xf]
      %v4873 = vld [vmem:[%s7 + $0x2c0] sm:$0xf]
      %v4874 = vld [vmem:[%s7 + $0x2c4] sm:$0xf]
      %v4875 = vld [vmem:[%s7 + $0x2c8] sm:$0xf]
      %v4876 = vld [vmem:[%s7 + $0x2cc] sm:$0xf]
      %v4877 = vld [vmem:[%s7 + $0x2d0] sm:$0xf]
      %v4878 = vld [vmem:[%s7 + $0x2d4] sm:$0xf]
      %v4879 = vld [vmem:[%s7 + $0x2d8] sm:$0xf]
      %v4880 = vld [vmem:[%s7 + $0x2dc] sm:$0xf]
      %v4881 = vld [vmem:[%s7 + $0x2e0] sm:$0xf]
      %v4882 = vld [vmem:[%s7 + $0x2e4] sm:$0xf]
      %v4883 = vld [vmem:[%s7 + $0x2e8] sm:$0xf]
      %v4884 = vld [vmem:[%s7 + $0x2ec] sm:$0xf]
      %v4885 = vld [vmem:[%s7 + $0x2f0] sm:$0xf]
      %v4886 = vld [vmem:[%s7 + $0x2f4] sm:$0xf]
      %v4887 = vld [vmem:[%s7 + $0x2f8] sm:$0xf]
      %v4888 = vld [vmem:[%s7 + $0x2fc] sm:$0xf]
      %v4889 = vld [vmem:[%s7 + $0x300] sm:$0xf]
      %v4890 = vld [vmem:[%s7 + $0x304] sm:$0xf]
      %v4891 = vld [vmem:[%s7 + $0x308] sm:$0xf]
      %v4892 = vld [vmem:[%s7 + $0x30c] sm:$0xf]
      %v4893 = vld [vmem:[%s7 + $0x310] sm:$0xf]
      %v4894 = vld [vmem:[%s7 + $0x314] sm:$0xf]
      %v4895 = vld [vmem:[%s7 + $0x318] sm:$0xf]
      %v4896 = vld [vmem:[%s7 + $0x31c] sm:$0xf]
      %v4897 = vld [vmem:[%s7 + $0x320] sm:$0xf]
      %v4898 = vld [vmem:[%s7 + $0x324] sm:$0xf]
      %v4899 = vld [vmem:[%s7 + $0x328] sm:$0xf]
      %v4900 = vld [vmem:[%s7 + $0x32c] sm:$0xf]
      %v4901 = vld [vmem:[%s7 + $0x330] sm:$0xf]
      %v4902 = vld [vmem:[%s7 + $0x334] sm:$0xf]
      %v4903 = vld [vmem:[%s7 + $0x338] sm:$0xf]
      %v4904 = vld [vmem:[%s7 + $0x33c] sm:$0xf]
      %v4905 = vld [vmem:[%s7 + $0x340] sm:$0xf]
      %v4906 = vld [vmem:[%s7 + $0x344] sm:$0xf]
      %v4907 = vld [vmem:[%s7 + $0x348] sm:$0xf]
      %v4908 = vld [vmem:[%s7 + $0x34c] sm:$0xf]
      %v4909 = vld [vmem:[%s7 + $0x350] sm:$0xf]
      %v4910 = vld [vmem:[%s7 + $0x354] sm:$0xf]
      %v4911 = vld [vmem:[%s7 + $0x358] sm:$0xf]
      %v4912 = vld [vmem:[%s7 + $0x35c] sm:$0xf]
      %v4913 = vld [vmem:[%s7 + $0x360] sm:$0xf]
      %v4914 = vld [vmem:[%s7 + $0x364] sm:$0xf]
      %v4915 = vld [vmem:[%s7 + $0x368] sm:$0xf]
      %v4916 = vld [vmem:[%s7 + $0x36c] sm:$0xf]
      %v4917 = vld [vmem:[%s7 + $0x370] sm:$0xf]
      %v4918 = vld [vmem:[%s7 + $0x374] sm:$0xf]
      %v4919 = vld [vmem:[%s7 + $0x378] sm:$0xf]
      %v4920 = vld [vmem:[%s7 + $0x37c] sm:$0xf]
      %v4921 = vld [vmem:[%s7 + $0x380] sm:$0xf]
      %v4922 = vld [vmem:[%s7 + $0x384] sm:$0xf]
      %v4923 = vld [vmem:[%s7 + $0x388] sm:$0xf]
      %v4924 = vld [vmem:[%s7 + $0x38c] sm:$0xf]
      %v4925 = vld [vmem:[%s7 + $0x390] sm:$0xf]
      %v4926 = vld [vmem:[%s7 + $0x394] sm:$0xf]
      %v4927 = vld [vmem:[%s7 + $0x398] sm:$0xf]
      %v4928 = vld [vmem:[%s7 + $0x39c] sm:$0xf]
      %v4929 = vld [vmem:[%s7 + $0x3a0] sm:$0xf]
      %v4930 = vld [vmem:[%s7 + $0x3a4] sm:$0xf]
      %v4931 = vld [vmem:[%s7 + $0x3a8] sm:$0xf]
      %v4932 = vld [vmem:[%s7 + $0x3ac] sm:$0xf]
      %v4933 = vld [vmem:[%s7 + $0x3b0] sm:$0xf]
      %v4934 = vld [vmem:[%s7 + $0x3b4] sm:$0xf]
      %v4935 = vld [vmem:[%s7 + $0x3b8] sm:$0xf]
      %v4936 = vld [vmem:[%s7 + $0x3bc] sm:$0xf]
      %v4937 = vld [vmem:[%s7 + $0x3c0] sm:$0xf]
      %v4938 = vld [vmem:[%s7 + $0x3c4] sm:$0xf]
      %v4939 = vld [vmem:[%s7 + $0x3c8] sm:$0xf]
      %v4940 = vld [vmem:[%s7 + $0x3cc] sm:$0xf]
      %v4941 = vld [vmem:[%s7 + $0x3d0] sm:$0xf]
      %v4942 = vld [vmem:[%s7 + $0x3d4] sm:$0xf]
      %v4943 = vld [vmem:[%s7 + $0x3d8] sm:$0xf]
      %v4944 = vld [vmem:[%s7 + $0x3dc] sm:$0xf]
      %v4945 = vld [vmem:[%s7 + $0x3e0] sm:$0xf]
      %v4946 = vld [vmem:[%s7 + $0x3e4] sm:$0xf]
      %v4947 = vld [vmem:[%s7 + $0x3e8] sm:$0xf]
      %v4948 = vld [vmem:[%s7 + $0x3ec] sm:$0xf]
      %v4949 = vld [vmem:[%s7 + $0x3f0] sm:$0xf]
      %v4950 = vld [vmem:[%s7 + $0x3f4] sm:$0xf]
      %v4951 = vld [vmem:[%s7 + $0x3f8] sm:$0xf]
      %v4952 = vld [vmem:[%s7 + $0x3fc] sm:$0xf]
      %v4953 = vlaneseq
      %v4954 = vshrl.u32 %v4953, 7
      %v4955 = vsub.s32 2, %v4954
      %v4956 = vrot.slane %v392, %v4955
      %v5213 = vunpack.c.l.b16 %v4697
      %v5214 = vunpack.c.l.b16 %v4698
      %v5215 = vunpack.c.l.b16 %v4699
      %v5216 = vunpack.c.l.b16 %v4700
      %v5217 = vunpack.c.l.b16 %v4701
      %v5218 = vunpack.c.l.b16 %v4702
      %v5219 = vunpack.c.l.b16 %v4703
      %v5220 = vunpack.c.l.b16 %v4704
      %v5221 = vunpack.c.l.b16 %v4705
      %v5222 = vunpack.c.l.b16 %v4706
      %v5223 = vunpack.c.l.b16 %v4707
      %v5224 = vunpack.c.l.b16 %v4708
      %v5225 = vunpack.c.l.b16 %v4709
      %v5226 = vunpack.c.l.b16 %v4710
      %v5227 = vunpack.c.l.b16 %v4711
      %v5228 = vunpack.c.l.b16 %v4712
      %v5229 = vunpack.c.l.b16 %v4713
      %v5230 = vunpack.c.l.b16 %v4714
      %v5231 = vunpack.c.l.b16 %v4715
      %v5232 = vunpack.c.l.b16 %v4716
      %v5233 = vunpack.c.l.b16 %v4717
      %v5234 = vunpack.c.l.b16 %v4718
      %v5235 = vunpack.c.l.b16 %v4719
      %v5236 = vunpack.c.l.b16 %v4720
      %v5237 = vunpack.c.l.b16 %v4721
      %v5238 = vunpack.c.l.b16 %v4722
      %v5239 = vunpack.c.l.b16 %v4723
      %v5240 = vunpack.c.l.b16 %v4724
      %v5241 = vunpack.c.l.b16 %v4725
      %v5242 = vunpack.c.l.b16 %v4726
      %v5243 = vunpack.c.l.b16 %v4727
      %v5244 = vunpack.c.l.b16 %v4728
      %v5245 = vunpack.c.l.b16 %v4729
      %v5246 = vunpack.c.l.b16 %v4730
      %v5247 = vunpack.c.l.b16 %v4731
      %v5248 = vunpack.c.l.b16 %v4732
      %v5249 = vunpack.c.l.b16 %v4733
      %v5250 = vunpack.c.l.b16 %v4734
      %v5251 = vunpack.c.l.b16 %v4735
      %v5252 = vunpack.c.l.b16 %v4736
      %v5253 = vunpack.c.l.b16 %v4737
      %v5254 = vunpack.c.l.b16 %v4738
      %v5255 = vunpack.c.l.b16 %v4739
      %v5256 = vunpack.c.l.b16 %v4740
      %v5257 = vunpack.c.l.b16 %v4741
      %v5258 = vunpack.c.l.b16 %v4742
      %v5259 = vunpack.c.l.b16 %v4743
      %v5260 = vunpack.c.l.b16 %v4744
      %v5261 = vunpack.c.l.b16 %v4745
      %v5262 = vunpack.c.l.b16 %v4746
      %v5263 = vunpack.c.l.b16 %v4747
      %v5264 = vunpack.c.l.b16 %v4748
      %v5265 = vunpack.c.l.b16 %v4749
      %v5266 = vunpack.c.l.b16 %v4750
      %v5267 = vunpack.c.l.b16 %v4751
      %v5268 = vunpack.c.l.b16 %v4752
      %v5269 = vunpack.c.l.b16 %v4753
      %v5270 = vunpack.c.l.b16 %v4754
      %v5271 = vunpack.c.l.b16 %v4755
      %v5272 = vunpack.c.l.b16 %v4756
      %v5273 = vunpack.c.l.b16 %v4757
      %v5274 = vunpack.c.l.b16 %v4758
      %v5275 = vunpack.c.l.b16 %v4759
      %v5276 = vunpack.c.l.b16 %v4760
      %v5277 = vunpack.c.l.b16 %v4761
      %v5278 = vunpack.c.l.b16 %v4762
      %v5279 = vunpack.c.l.b16 %v4763
      %v5280 = vunpack.c.l.b16 %v4764
      %v5281 = vunpack.c.l.b16 %v4765
      %v5282 = vunpack.c.l.b16 %v4766
      %v5283 = vunpack.c.l.b16 %v4767
      %v5284 = vunpack.c.l.b16 %v4768
      %v5285 = vunpack.c.l.b16 %v4769
      %v5286 = vunpack.c.l.b16 %v4770
      %v5287 = vunpack.c.l.b16 %v4771
      %v5288 = vunpack.c.l.b16 %v4772
      %v5289 = vunpack.c.l.b16 %v4773
      %v5290 = vunpack.c.l.b16 %v4774
      %v5291 = vunpack.c.l.b16 %v4775
      %v5292 = vunpack.c.l.b16 %v4776
      %v5293 = vunpack.c.l.b16 %v4777
      %v5294 = vunpack.c.l.b16 %v4778
      %v5295 = vunpack.c.l.b16 %v4779
      %v5296 = vunpack.c.l.b16 %v4780
      %v5297 = vunpack.c.l.b16 %v4781
      %v5298 = vunpack.c.l.b16 %v4782
      %v5299 = vunpack.c.l.b16 %v4783
      %v5300 = vunpack.c.l.b16 %v4784
      %v5301 = vunpack.c.l.b16 %v4785
      %v5302 = vunpack.c.l.b16 %v4786
      %v5303 = vunpack.c.l.b16 %v4787
      %v5304 = vunpack.c.l.b16 %v4788
      %v5305 = vunpack.c.l.b16 %v4789
      %v5306 = vunpack.c.l.b16 %v4790
      %v5307 = vunpack.c.l.b16 %v4791
      %v5308 = vunpack.c.l.b16 %v4792
      %v5309 = vunpack.c.l.b16 %v4793
      %v5310 = vunpack.c.l.b16 %v4794
      %v5311 = vunpack.c.l.b16 %v4795
      %v5312 = vunpack.c.l.b16 %v4796
      %v5313 = vunpack.c.l.b16 %v4797
      %v5314 = vunpack.c.l.b16 %v4798
      %v5315 = vunpack.c.l.b16 %v4799
      %v5316 = vunpack.c.l.b16 %v4800
      %v5317 = vunpack.c.l.b16 %v4801
      %v5318 = vunpack.c.l.b16 %v4802
      %v5319 = vunpack.c.l.b16 %v4803
      %v5320 = vunpack.c.l.b16 %v4804
      %v5321 = vunpack.c.l.b16 %v4805
      %v5322 = vunpack.c.l.b16 %v4806
      %v5323 = vunpack.c.l.b16 %v4807
      %v5324 = vunpack.c.l.b16 %v4808
      %v5325 = vunpack.c.l.b16 %v4809
      %v5326 = vunpack.c.l.b16 %v4810
      %v5327 = vunpack.c.l.b16 %v4811
      %v5328 = vunpack.c.l.b16 %v4812
      %v5329 = vunpack.c.l.b16 %v4813
      %v5330 = vunpack.c.l.b16 %v4814
      %v5331 = vunpack.c.l.b16 %v4815
      %v5332 = vunpack.c.l.b16 %v4816
      %v5333 = vunpack.c.l.b16 %v4817
      %v5334 = vunpack.c.l.b16 %v4818
      %v5335 = vunpack.c.l.b16 %v4819
      %v5336 = vunpack.c.l.b16 %v4820
      %v5337 = vunpack.c.l.b16 %v4821
      %v5338 = vunpack.c.l.b16 %v4822
      %v5339 = vunpack.c.l.b16 %v4823
      %v5340 = vunpack.c.l.b16 %v4824
      %v5341 = vunpack.c.l.b16 %v4825
      %v5342 = vunpack.c.l.b16 %v4826
      %v5343 = vunpack.c.l.b16 %v4827
      %v5344 = vunpack.c.l.b16 %v4828
      %v5345 = vunpack.c.l.b16 %v4829
      %v5346 = vunpack.c.l.b16 %v4830
      %v5347 = vunpack.c.l.b16 %v4831
      %v5348 = vunpack.c.l.b16 %v4832
      %v5349 = vunpack.c.l.b16 %v4833
      %v5350 = vunpack.c.l.b16 %v4834
      %v5351 = vunpack.c.l.b16 %v4835
      %v5352 = vunpack.c.l.b16 %v4836
      %v5353 = vunpack.c.l.b16 %v4837
      %v5354 = vunpack.c.l.b16 %v4838
      %v5355 = vunpack.c.l.b16 %v4839
      %v5356 = vunpack.c.l.b16 %v4840
      %v5357 = vunpack.c.l.b16 %v4841
      %v5358 = vunpack.c.l.b16 %v4842
      %v5359 = vunpack.c.l.b16 %v4843
      %v5360 = vunpack.c.l.b16 %v4844
      %v5361 = vunpack.c.l.b16 %v4845
      %v5362 = vunpack.c.l.b16 %v4846
      %v5363 = vunpack.c.l.b16 %v4847
      %v5364 = vunpack.c.l.b16 %v4848
      %v5365 = vunpack.c.l.b16 %v4849
      %v5366 = vunpack.c.l.b16 %v4850
      %v5367 = vunpack.c.l.b16 %v4851
      %v5368 = vunpack.c.l.b16 %v4852
      %v5369 = vunpack.c.l.b16 %v4853
      %v5370 = vunpack.c.l.b16 %v4854
      %v5371 = vunpack.c.l.b16 %v4855
      %v5372 = vunpack.c.l.b16 %v4856
      %v5373 = vunpack.c.l.b16 %v4857
      %v5374 = vunpack.c.l.b16 %v4858
      %v5375 = vunpack.c.l.b16 %v4859
      %v5376 = vunpack.c.l.b16 %v4860
      %v5377 = vunpack.c.l.b16 %v4861
      %v5378 = vunpack.c.l.b16 %v4862
      %v5379 = vunpack.c.l.b16 %v4863
      %v5380 = vunpack.c.l.b16 %v4864
      %v5381 = vunpack.c.l.b16 %v4865
      %v5382 = vunpack.c.l.b16 %v4866
      %v5383 = vunpack.c.l.b16 %v4867
      %v5384 = vunpack.c.l.b16 %v4868
      %v5385 = vunpack.c.l.b16 %v4869
      %v5386 = vunpack.c.l.b16 %v4870
      %v5387 = vunpack.c.l.b16 %v4871
      %v5388 = vunpack.c.l.b16 %v4872
      %v5389 = vunpack.c.l.b16 %v4873
      %v5390 = vunpack.c.l.b16 %v4874
      %v5391 = vunpack.c.l.b16 %v4875
      %v5392 = vunpack.c.l.b16 %v4876
      %v5393 = vunpack.c.l.b16 %v4877
      %v5394 = vunpack.c.l.b16 %v4878
      %v5395 = vunpack.c.l.b16 %v4879
      %v5396 = vunpack.c.l.b16 %v4880
      %v5397 = vunpack.c.l.b16 %v4881
      %v5398 = vunpack.c.l.b16 %v4882
      %v5399 = vunpack.c.l.b16 %v4883
      %v5400 = vunpack.c.l.b16 %v4884
      %v5401 = vunpack.c.l.b16 %v4885
      %v5402 = vunpack.c.l.b16 %v4886
      %v5403 = vunpack.c.l.b16 %v4887
      %v5404 = vunpack.c.l.b16 %v4888
      %v5405 = vunpack.c.l.b16 %v4889
      %v5406 = vunpack.c.l.b16 %v4890
      %v5407 = vunpack.c.l.b16 %v4891
      %v5408 = vunpack.c.l.b16 %v4892
      %v5409 = vunpack.c.l.b16 %v4893
      %v5410 = vunpack.c.l.b16 %v4894
      %v5411 = vunpack.c.l.b16 %v4895
      %v5412 = vunpack.c.l.b16 %v4896
      %v5413 = vunpack.c.l.b16 %v4897
      %v5414 = vunpack.c.l.b16 %v4898
      %v5415 = vunpack.c.l.b16 %v4899
      %v5416 = vunpack.c.l.b16 %v4900
      %v5417 = vunpack.c.l.b16 %v4901
      %v5418 = vunpack.c.l.b16 %v4902
      %v5419 = vunpack.c.l.b16 %v4903
      %v5420 = vunpack.c.l.b16 %v4904
      %v5421 = vunpack.c.l.b16 %v4905
      %v5422 = vunpack.c.l.b16 %v4906
      %v5423 = vunpack.c.l.b16 %v4907
      %v5424 = vunpack.c.l.b16 %v4908
      %v5425 = vunpack.c.l.b16 %v4909
      %v5426 = vunpack.c.l.b16 %v4910
      %v5427 = vunpack.c.l.b16 %v4911
      %v5428 = vunpack.c.l.b16 %v4912
      %v5429 = vunpack.c.l.b16 %v4913
      %v5430 = vunpack.c.l.b16 %v4914
      %v5431 = vunpack.c.l.b16 %v4915
      %v5432 = vunpack.c.l.b16 %v4916
      %v5433 = vunpack.c.l.b16 %v4917
      %v5434 = vunpack.c.l.b16 %v4918
      %v5435 = vunpack.c.l.b16 %v4919
      %v5436 = vunpack.c.l.b16 %v4920
      %v5437 = vunpack.c.l.b16 %v4921
      %v5438 = vunpack.c.l.b16 %v4922
      %v5439 = vunpack.c.l.b16 %v4923
      %v5440 = vunpack.c.l.b16 %v4924
      %v5441 = vunpack.c.l.b16 %v4925
      %v5442 = vunpack.c.l.b16 %v4926
      %v5443 = vunpack.c.l.b16 %v4927
      %v5444 = vunpack.c.l.b16 %v4928
      %v5445 = vunpack.c.l.b16 %v4929
      %v5446 = vunpack.c.l.b16 %v4930
      %v5447 = vunpack.c.l.b16 %v4931
      %v5448 = vunpack.c.l.b16 %v4932
      %v5449 = vunpack.c.l.b16 %v4933
      %v5450 = vunpack.c.l.b16 %v4934
      %v5451 = vunpack.c.l.b16 %v4935
      %v5452 = vunpack.c.l.b16 %v4936
      %v5453 = vunpack.c.l.b16 %v4937
      %v5454 = vunpack.c.l.b16 %v4938
      %v5455 = vunpack.c.l.b16 %v4939
      %v5456 = vunpack.c.l.b16 %v4940
      %v5457 = vunpack.c.l.b16 %v4941
      %v5458 = vunpack.c.l.b16 %v4942
      %v5459 = vunpack.c.l.b16 %v4943
      %v5460 = vunpack.c.l.b16 %v4944
      %v5461 = vunpack.c.l.b16 %v4945
      %v5462 = vunpack.c.l.b16 %v4946
      %v5463 = vunpack.c.l.b16 %v4947
      %v5464 = vunpack.c.l.b16 %v4948
      %v5465 = vunpack.c.l.b16 %v4949
      %v5466 = vunpack.c.l.b16 %v4950
      %v5467 = vunpack.c.l.b16 %v4951
      %v5468 = vunpack.c.l.b16 %v4952
      %v5469 = vpack.c.b16 %v5214, %v5213
      %v5470 = vpack.c.b16 %v5216, %v5215
      %v5471 = vpack.c.b16 %v5218, %v5217
      %v5472 = vpack.c.b16 %v5220, %v5219
      %v5473 = vpack.c.b16 %v5222, %v5221
      %v5474 = vpack.c.b16 %v5224, %v5223
      %v5475 = vpack.c.b16 %v5226, %v5225
      %v5476 = vpack.c.b16 %v5228, %v5227
      %v5477 = vpack.c.b16 %v5230, %v5229
      %v5478 = vpack.c.b16 %v5232, %v5231
      %v5479 = vpack.c.b16 %v5234, %v5233
      %v5480 = vpack.c.b16 %v5236, %v5235
      %v5481 = vpack.c.b16 %v5238, %v5237
      %v5482 = vpack.c.b16 %v5240, %v5239
      %v5483 = vpack.c.b16 %v5242, %v5241
      %v5484 = vpack.c.b16 %v5244, %v5243
      %v5485 = vpack.c.b16 %v5246, %v5245
      %v5486 = vpack.c.b16 %v5248, %v5247
      %v5487 = vpack.c.b16 %v5250, %v5249
      %v5488 = vpack.c.b16 %v5252, %v5251
      %v5489 = vpack.c.b16 %v5254, %v5253
      %v5490 = vpack.c.b16 %v5256, %v5255
      %v5491 = vpack.c.b16 %v5258, %v5257
      %v5492 = vpack.c.b16 %v5260, %v5259
      %v5493 = vpack.c.b16 %v5262, %v5261
      %v5494 = vpack.c.b16 %v5264, %v5263
      %v5495 = vpack.c.b16 %v5266, %v5265
      %v5496 = vpack.c.b16 %v5268, %v5267
      %v5497 = vpack.c.b16 %v5270, %v5269
      %v5498 = vpack.c.b16 %v5272, %v5271
      %v5499 = vpack.c.b16 %v5274, %v5273
      %v5500 = vpack.c.b16 %v5276, %v5275
      %v5501 = vpack.c.b16 %v5278, %v5277
      %v5502 = vpack.c.b16 %v5280, %v5279
      %v5503 = vpack.c.b16 %v5282, %v5281
      %v5504 = vpack.c.b16 %v5284, %v5283
      %v5505 = vpack.c.b16 %v5286, %v5285
      %v5506 = vpack.c.b16 %v5288, %v5287
      %v5507 = vpack.c.b16 %v5290, %v5289
      %v5508 = vpack.c.b16 %v5292, %v5291
      %v5509 = vpack.c.b16 %v5294, %v5293
      %v5510 = vpack.c.b16 %v5296, %v5295
      %v5511 = vpack.c.b16 %v5298, %v5297
      %v5512 = vpack.c.b16 %v5300, %v5299
      %v5513 = vpack.c.b16 %v5302, %v5301
      %v5514 = vpack.c.b16 %v5304, %v5303
      %v5515 = vpack.c.b16 %v5306, %v5305
      %v5516 = vpack.c.b16 %v5308, %v5307
      %v5517 = vpack.c.b16 %v5310, %v5309
      %v5518 = vpack.c.b16 %v5312, %v5311
      %v5519 = vpack.c.b16 %v5314, %v5313
      %v5520 = vpack.c.b16 %v5316, %v5315
      %v5521 = vpack.c.b16 %v5318, %v5317
      %v5522 = vpack.c.b16 %v5320, %v5319
      %v5523 = vpack.c.b16 %v5322, %v5321
      %v5524 = vpack.c.b16 %v5324, %v5323
      %v5525 = vpack.c.b16 %v5326, %v5325
      %v5526 = vpack.c.b16 %v5328, %v5327
      %v5527 = vpack.c.b16 %v5330, %v5329
      %v5528 = vpack.c.b16 %v5332, %v5331
      %v5529 = vpack.c.b16 %v5334, %v5333
      %v5530 = vpack.c.b16 %v5336, %v5335
      %v5531 = vpack.c.b16 %v5338, %v5337
      %v5532 = vpack.c.b16 %v5340, %v5339
      %v5533 = vpack.c.b16 %v5342, %v5341
      %v5534 = vpack.c.b16 %v5344, %v5343
      %v5535 = vpack.c.b16 %v5346, %v5345
      %v5536 = vpack.c.b16 %v5348, %v5347
      %v5537 = vpack.c.b16 %v5350, %v5349
      %v5538 = vpack.c.b16 %v5352, %v5351
      %v5539 = vpack.c.b16 %v5354, %v5353
      %v5540 = vpack.c.b16 %v5356, %v5355
      %v5541 = vpack.c.b16 %v5358, %v5357
      %v5542 = vpack.c.b16 %v5360, %v5359
      %v5543 = vpack.c.b16 %v5362, %v5361
      %v5544 = vpack.c.b16 %v5364, %v5363
      %v5545 = vpack.c.b16 %v5366, %v5365
      %v5546 = vpack.c.b16 %v5368, %v5367
      %v5547 = vpack.c.b16 %v5370, %v5369
      %v5548 = vpack.c.b16 %v5372, %v5371
      %v5549 = vpack.c.b16 %v5374, %v5373
      %v5550 = vpack.c.b16 %v5376, %v5375
      %v5551 = vpack.c.b16 %v5378, %v5377
      %v5552 = vpack.c.b16 %v5380, %v5379
      %v5553 = vpack.c.b16 %v5382, %v5381
      %v5554 = vpack.c.b16 %v5384, %v5383
      %v5555 = vpack.c.b16 %v5386, %v5385
      %v5556 = vpack.c.b16 %v5388, %v5387
      %v5557 = vpack.c.b16 %v5390, %v5389
      %v5558 = vpack.c.b16 %v5392, %v5391
      %v5559 = vpack.c.b16 %v5394, %v5393
      %v5560 = vpack.c.b16 %v5396, %v5395
      %v5561 = vpack.c.b16 %v5398, %v5397
      %v5562 = vpack.c.b16 %v5400, %v5399
      %v5563 = vpack.c.b16 %v5402, %v5401
      %v5564 = vpack.c.b16 %v5404, %v5403
      %v5565 = vpack.c.b16 %v5406, %v5405
      %v5566 = vpack.c.b16 %v5408, %v5407
      %v5567 = vpack.c.b16 %v5410, %v5409
      %v5568 = vpack.c.b16 %v5412, %v5411
      %v5569 = vpack.c.b16 %v5414, %v5413
      %v5570 = vpack.c.b16 %v5416, %v5415
      %v5571 = vpack.c.b16 %v5418, %v5417
      %v5572 = vpack.c.b16 %v5420, %v5419
      %v5573 = vpack.c.b16 %v5422, %v5421
      %v5574 = vpack.c.b16 %v5424, %v5423
      %v5575 = vpack.c.b16 %v5426, %v5425
      %v5576 = vpack.c.b16 %v5428, %v5427
      %v5577 = vpack.c.b16 %v5430, %v5429
      %v5578 = vpack.c.b16 %v5432, %v5431
      %v5579 = vpack.c.b16 %v5434, %v5433
      %v5580 = vpack.c.b16 %v5436, %v5435
      %v5581 = vpack.c.b16 %v5438, %v5437
      %v5582 = vpack.c.b16 %v5440, %v5439
      %v5583 = vpack.c.b16 %v5442, %v5441
      %v5584 = vpack.c.b16 %v5444, %v5443
      %v5585 = vpack.c.b16 %v5446, %v5445
      %v5586 = vpack.c.b16 %v5448, %v5447
      %v5587 = vpack.c.b16 %v5450, %v5449
      %v5588 = vpack.c.b16 %v5452, %v5451
      %v5589 = vpack.c.b16 %v5454, %v5453
      %v5590 = vpack.c.b16 %v5456, %v5455
      %v5591 = vpack.c.b16 %v5458, %v5457
      %v5592 = vpack.c.b16 %v5460, %v5459
      %v5593 = vpack.c.b16 %v5462, %v5461
      %v5594 = vpack.c.b16 %v5464, %v5463
      %v5595 = vpack.c.b16 %v5466, %v5465
      %v5596 = vpack.c.b16 %v5468, %v5467
      %5725 = vmatprep.subr.bf16.mxu0 0
      %5726 = vmatpush1.bf16.msra.mxu0 %v5469
      %5727 = vmatprep.subr.bf16.mxu0 0
      %5728 = vmatpush1.bf16.msra.mxu0 %v5470
      %5729 = vmatprep.subr.bf16.mxu0 0
      %5730 = vmatpush1.bf16.msra.mxu0 %v5471
      %5731 = vmatprep.subr.bf16.mxu0 0
      %5732 = vmatpush1.bf16.msra.mxu0 %v5472
      %5733 = vmatprep.subr.bf16.mxu0 0
      %5734 = vmatpush1.bf16.msra.mxu0 %v5473
      %5735 = vmatprep.subr.bf16.mxu0 0
      %5736 = vmatpush1.bf16.msra.mxu0 %v5474
      %5737 = vmatprep.subr.bf16.mxu0 0
      %5738 = vmatpush1.bf16.msra.mxu0 %v5475
      %5739 = vmatprep.subr.bf16.mxu0 0
      %5740 = vmatpush1.bf16.msra.mxu0 %v5476
      %5741 = vmatprep.subr.bf16.mxu0 0
      %5742 = vmatpush1.bf16.msra.mxu0 %v5477
      %5743 = vmatprep.subr.bf16.mxu0 0
      %5744 = vmatpush1.bf16.msra.mxu0 %v5478
      %5745 = vmatprep.subr.bf16.mxu0 0
      %5746 = vmatpush1.bf16.msra.mxu0 %v5479
      %5747 = vmatprep.subr.bf16.mxu0 0
      %5748 = vmatpush1.bf16.msra.mxu0 %v5480
      %5749 = vmatprep.subr.bf16.mxu0 0
      %5750 = vmatpush1.bf16.msra.mxu0 %v5481
      %5751 = vmatprep.subr.bf16.mxu0 0
      %5752 = vmatpush1.bf16.msra.mxu0 %v5482
      %5753 = vmatprep.subr.bf16.mxu0 0
      %5754 = vmatpush1.bf16.msra.mxu0 %v5483
      %5755 = vmatprep.subr.bf16.mxu0 0
      %5756 = vmatpush1.bf16.msra.mxu0 %v5484
      %5757 = vmatprep.mubr.bf16.mxu0 %v4666
      %5758 = vmatmul.mubr.bf16.gmra.mrb[0].mxu0 %v4665
      %v5759 = vpop.f32.mrb[0].mxu0
      %v5760 = vadd.f32 %v4956, %v5759
      %v5761 = vpop.f32.mrb[0].mxu0
      %v5762 = vpop.f32.mrb[0].mxu0
      %v5763 = vadd.f32 %v4956, %v5762
      %v5764 = vpop.f32.mrb[0].mxu0
      %5765 = vmatprep.mubr.bf16.mxu0 %v4682
      %5766 = vmatmul.mubr.bf16.gmra.mrb[0].mxu0 %v4681
      %v5767 = vpop.f32.mrb[0].mxu0
      %v5768 = vadd.f32 %v4956, %v5767
      %v5769 = vpop.f32.mrb[0].mxu0
      %v5770 = vpop.f32.mrb[0].mxu0
      %v5771 = vadd.f32 %v4956, %v5770
      %v5772 = vpop.f32.mrb[0].mxu0
      %5773 = vdwg.mxu0
      %5774 = vmatprep.subr.bf16.mxu0 0
      %5775 = vmatpush1.bf16.msra.mxu0 %v5485
      %5776 = vmatprep.subr.bf16.mxu0 0
      %5777 = vmatpush1.bf16.msra.mxu0 %v5486
      %5778 = vmatprep.subr.bf16.mxu0 0
      %5779 = vmatpush1.bf16.msra.mxu0 %v5487
      %5780 = vmatprep.subr.bf16.mxu0 0
      %5781 = vmatpush1.bf16.msra.mxu0 %v5488
      %5782 = vmatprep.subr.bf16.mxu0 0
      %5783 = vmatpush1.bf16.msra.mxu0 %v5489
      %5784 = vmatprep.subr.bf16.mxu0 0
      %5785 = vmatpush1.bf16.msra.mxu0 %v5490
      %5786 = vmatprep.subr.bf16.mxu0 0
      %5787 = vmatpush1.bf16.msra.mxu0 %v5491
      %5788 = vmatprep.subr.bf16.mxu0 0
      %5789 = vmatpush1.bf16.msra.mxu0 %v5492
      %5790 = vmatprep.subr.bf16.mxu0 0
      %5791 = vmatpush1.bf16.msra.mxu0 %v5493
      %5792 = vmatprep.subr.bf16.mxu0 0
      %5793 = vmatpush1.bf16.msra.mxu0 %v5494
      %5794 = vmatprep.subr.bf16.mxu0 0
      %5795 = vmatpush1.bf16.msra.mxu0 %v5495
      %5796 = vmatprep.subr.bf16.mxu0 0
      %5797 = vmatpush1.bf16.msra.mxu0 %v5496
      %5798 = vmatprep.subr.bf16.mxu0 0
      %5799 = vmatpush1.bf16.msra.mxu0 %v5497
      %5800 = vmatprep.subr.bf16.mxu0 0
      %5801 = vmatpush1.bf16.msra.mxu0 %v5498
      %5802 = vmatprep.subr.bf16.mxu0 0
      %5803 = vmatpush1.bf16.msra.mxu0 %v5499
      %5804 = vmatprep.subr.bf16.mxu0 0
      %5805 = vmatpush1.bf16.msra.mxu0 %v5500
      %5806 = vmatprep.mubr.bf16.mxu0 %v4668
      %5807 = vmatmul.mubr.bf16.gmra.mrb[0].mxu0 %v4667
      %v5808 = vpop.f32.mrb[0].mxu0
      %v5809 = vadd.f32 %v5760, %v5808
      %v5810 = vpop.f32.mrb[0].mxu0
      %v5811 = vpop.f32.mrb[0].mxu0
      %v5812 = vadd.f32 %v5763, %v5811
      %v5813 = vpop.f32.mrb[0].mxu0
      %5814 = vmatprep.mubr.bf16.mxu0 %v4684
      %5815 = vmatmul.mubr.bf16.gmra.mrb[0].mxu0 %v4683
      %v5816 = vpop.f32.mrb[0].mxu0
      %v5817 = vadd.f32 %v5768, %v5816
      %v5818 = vpop.f32.mrb[0].mxu0
      %v5819 = vpop.f32.mrb[0].mxu0
      %v5820 = vadd.f32 %v5771, %v5819
      %v5821 = vpop.f32.mrb[0].mxu0
      %5822 = vdwg.mxu0
      %5823 = vmatprep.subr.bf16.mxu0 0
      %5824 = vmatpush1.bf16.msra.mxu0 %v5501
      %5825 = vmatprep.subr.bf16.mxu0 0
      %5826 = vmatpush1.bf16.msra.mxu0 %v5502
      %5827 = vmatprep.subr.bf16.mxu0 0
      %5828 = vmatpush1.bf16.msra.mxu0 %v5503
      %5829 = vmatprep.subr.bf16.mxu0 0
      %5830 = vmatpush1.bf16.msra.mxu0 %v5504
      %5831 = vmatprep.subr.bf16.mxu0 0
      %5832 = vmatpush1.bf16.msra.mxu0 %v5505
      %5833 = vmatprep.subr.bf16.mxu0 0
      %5834 = vmatpush1.bf16.msra.mxu0 %v5506
      %5835 = vmatprep.subr.bf16.mxu0 0
      %5836 = vmatpush1.bf16.msra.mxu0 %v5507
      %5837 = vmatprep.subr.bf16.mxu0 0
      %5838 = vmatpush1.bf16.msra.mxu0 %v5508
      %5839 = vmatprep.subr.bf16.mxu0 0
      %5840 = vmatpush1.bf16.msra.mxu0 %v5509
      %5841 = vmatprep.subr.bf16.mxu0 0
      %5842 = vmatpush1.bf16.msra.mxu0 %v5510
      %5843 = vmatprep.subr.bf16.mxu0 0
      %5844 = vmatpush1.bf16.msra.mxu0 %v5511
      %5845 = vmatprep.subr.bf16.mxu0 0
      %5846 = vmatpush1.bf16.msra.mxu0 %v5512
      %5847 = vmatprep.subr.bf16.mxu0 0
      %5848 = vmatpush1.bf16.msra.mxu0 %v5513
      %5849 = vmatprep.subr.bf16.mxu0 0
      %5850 = vmatpush1.bf16.msra.mxu0 %v5514
      %5851 = vmatprep.subr.bf16.mxu0 0
      %5852 = vmatpush1.bf16.msra.mxu0 %v5515
      %5853 = vmatprep.subr.bf16.mxu0 0
      %5854 = vmatpush1.bf16.msra.mxu0 %v5516
      %5855 = vmatprep.mubr.bf16.mxu0 %v4670
      %5856 = vmatmul.mubr.bf16.gmra.mrb[0].mxu0 %v4669
      %v5857 = vpop.f32.mrb[0].mxu0
      %v5858 = vadd.f32 %v5809, %v5857
      %v5859 = vpop.f32.mrb[0].mxu0
      %v5860 = vpop.f32.mrb[0].mxu0
      %v5861 = vadd.f32 %v5812, %v5860
      %v5862 = vpop.f32.mrb[0].mxu0
      %5863 = vmatprep.mubr.bf16.mxu0 %v4686
      %5864 = vmatmul.mubr.bf16.gmra.mrb[0].mxu0 %v4685
      %v5865 = vpop.f32.mrb[0].mxu0
      %v5866 = vadd.f32 %v5817, %v5865
      %v5867 = vpop.f32.mrb[0].mxu0
      %v5868 = vpop.f32.mrb[0].mxu0
      %v5869 = vadd.f32 %v5820, %v5868
      %v5870 = vpop.f32.mrb[0].mxu0
      %5871 = vdwg.mxu0
      %5872 = vmatprep.subr.bf16.mxu0 0
      %5873 = vmatpush1.bf16.msra.mxu0 %v5517
      %5874 = vmatprep.subr.bf16.mxu0 0
      %5875 = vmatpush1.bf16.msra.mxu0 %v5518
      %5876 = vmatprep.subr.bf16.mxu0 0
      %5877 = vmatpush1.bf16.msra.mxu0 %v5519
      %5878 = vmatprep.subr.bf16.mxu0 0
      %5879 = vmatpush1.bf16.msra.mxu0 %v5520
      %5880 = vmatprep.subr.bf16.mxu0 0
      %5881 = vmatpush1.bf16.msra.mxu0 %v5521
      %5882 = vmatprep.subr.bf16.mxu0 0
      %5883 = vmatpush1.bf16.msra.mxu0 %v5522
      %5884 = vmatprep.subr.bf16.mxu0 0
      %5885 = vmatpush1.bf16.msra.mxu0 %v5523
      %5886 = vmatprep.subr.bf16.mxu0 0
      %5887 = vmatpush1.bf16.msra.mxu0 %v5524
      %5888 = vmatprep.subr.bf16.mxu0 0
      %5889 = vmatpush1.bf16.msra.mxu0 %v5525
      %5890 = vmatprep.subr.bf16.mxu0 0
      %5891 = vmatpush1.bf16.msra.mxu0 %v5526
      %5892 = vmatprep.subr.bf16.mxu0 0
      %5893 = vmatpush1.bf16.msra.mxu0 %v5527
      %5894 = vmatprep.subr.bf16.mxu0 0
      %5895 = vmatpush1.bf16.msra.mxu0 %v5528
      %5896 = vmatprep.subr.bf16.mxu0 0
      %5897 = vmatpush1.bf16.msra.mxu0 %v5529
      %5898 = vmatprep.subr.bf16.mxu0 0
      %5899 = vmatpush1.bf16.msra.mxu0 %v5530
      %5900 = vmatprep.subr.bf16.mxu0 0
      %5901 = vmatpush1.bf16.msra.mxu0 %v5531
      %5902 = vmatprep.subr.bf16.mxu0 0
      %5903 = vmatpush1.bf16.msra.mxu0 %v5532
      %5904 = vmatprep.mubr.bf16.mxu0 %v4672
      %5905 = vmatmul.mubr.bf16.gmra.mrb[0].mxu0 %v4671
      %v5906 = vpop.f32.mrb[0].mxu0
      %v5907 = vadd.f32 %v5858, %v5906
      %v5908 = vpop.f32.mrb[0].mxu0
      %v5909 = vpop.f32.mrb[0].mxu0
      %v5910 = vadd.f32 %v5861, %v5909
      %v5911 = vpop.f32.mrb[0].mxu0
      %5912 = vmatprep.mubr.bf16.mxu0 %v4688
      %5913 = vmatmul.mubr.bf16.gmra.mrb[0].mxu0 %v4687
      %v5914 = vpop.f32.mrb[0].mxu0
      %v5915 = vadd.f32 %v5866, %v5914
      %v5916 = vpop.f32.mrb[0].mxu0
      %v5917 = vpop.f32.mrb[0].mxu0
      %v5918 = vadd.f32 %v5869, %v5917
      %v5919 = vpop.f32.mrb[0].mxu0
      %5920 = vdwg.mxu0
      %5921 = vmatprep.subr.bf16.mxu0 0
      %5922 = vmatpush1.bf16.msra.mxu0 %v5533
      %5923 = vmatprep.subr.bf16.mxu0 0
      %5924 = vmatpush1.bf16.msra.mxu0 %v5534
      %5925 = vmatprep.subr.bf16.mxu0 0
      %5926 = vmatpush1.bf16.msra.mxu0 %v5535
      %5927 = vmatprep.subr.bf16.mxu0 0
      %5928 = vmatpush1.bf16.msra.mxu0 %v5536
      %5929 = vmatprep.subr.bf16.mxu0 0
      %5930 = vmatpush1.bf16.msra.mxu0 %v5537
      %5931 = vmatprep.subr.bf16.mxu0 0
      %5932 = vmatpush1.bf16.msra.mxu0 %v5538
      %5933 = vmatprep.subr.bf16.mxu0 0
      %5934 = vmatpush1.bf16.msra.mxu0 %v5539
      %5935 = vmatprep.subr.bf16.mxu0 0
      %5936 = vmatpush1.bf16.msra.mxu0 %v5540
      %5937 = vmatprep.subr.bf16.mxu0 0
      %5938 = vmatpush1.bf16.msra.mxu0 %v5541
      %5939 = vmatprep.subr.bf16.mxu0 0
      %5940 = vmatpush1.bf16.msra.mxu0 %v5542
      %5941 = vmatprep.subr.bf16.mxu0 0
      %5942 = vmatpush1.bf16.msra.mxu0 %v5543
      %5943 = vmatprep.subr.bf16.mxu0 0
      %5944 = vmatpush1.bf16.msra.mxu0 %v5544
      %5945 = vmatprep.subr.bf16.mxu0 0
      %5946 = vmatpush1.bf16.msra.mxu0 %v5545
      %5947 = vmatprep.subr.bf16.mxu0 0
      %5948 = vmatpush1.bf16.msra.mxu0 %v5546
      %5949 = vmatprep.subr.bf16.mxu0 0
      %5950 = vmatpush1.bf16.msra.mxu0 %v5547
      %5951 = vmatprep.subr.bf16.mxu0 0
      %5952 = vmatpush1.bf16.msra.mxu0 %v5548
      %5953 = vmatprep.mubr.bf16.mxu0 %v4674
      %5954 = vmatmul.mubr.bf16.gmra.mrb[0].mxu0 %v4673
      %v5955 = vpop.f32.mrb[0].mxu0
      %v5956 = vadd.f32 %v5907, %v5955
      %v5957 = vpop.f32.mrb[0].mxu0
      %v5958 = vpop.f32.mrb[0].mxu0
      %v5959 = vadd.f32 %v5910, %v5958
      %v5960 = vpop.f32.mrb[0].mxu0
      %5961 = vmatprep.mubr.bf16.mxu0 %v4690
      %5962 = vmatmul.mubr.bf16.gmra.mrb[0].mxu0 %v4689
      %v5963 = vpop.f32.mrb[0].mxu0
      %v5964 = vadd.f32 %v5915, %v5963
      %v5965 = vpop.f32.mrb[0].mxu0
      %v5966 = vpop.f32.mrb[0].mxu0
      %v5967 = vadd.f32 %v5918, %v5966
      %v5968 = vpop.f32.mrb[0].mxu0
      %5969 = vdwg.mxu0
      %5970 = vmatprep.subr.bf16.mxu0 0
      %5971 = vmatpush1.bf16.msra.mxu0 %v5549
      %5972 = vmatprep.subr.bf16.mxu0 0
      %5973 = vmatpush1.bf16.msra.mxu0 %v5550
      %5974 = vmatprep.subr.bf16.mxu0 0
      %5975 = vmatpush1.bf16.msra.mxu0 %v5551
      %5976 = vmatprep.subr.bf16.mxu0 0
      %5977 = vmatpush1.bf16.msra.mxu0 %v5552
      %5978 = vmatprep.subr.bf16.mxu0 0
      %5979 = vmatpush1.bf16.msra.mxu0 %v5553
      %5980 = vmatprep.subr.bf16.mxu0 0
      %5981 = vmatpush1.bf16.msra.mxu0 %v5554
      %5982 = vmatprep.subr.bf16.mxu0 0
      %5983 = vmatpush1.bf16.msra.mxu0 %v5555
      %5984 = vmatprep.subr.bf16.mxu0 0
      %5985 = vmatpush1.bf16.msra.mxu0 %v5556
      %5986 = vmatprep.subr.bf16.mxu0 0
      %5987 = vmatpush1.bf16.msra.mxu0 %v5557
      %5988 = vmatprep.subr.bf16.mxu0 0
      %5989 = vmatpush1.bf16.msra.mxu0 %v5558
      %5990 = vmatprep.subr.bf16.mxu0 0
      %5991 = vmatpush1.bf16.msra.mxu0 %v5559
      %5992 = vmatprep.subr.bf16.mxu0 0
      %5993 = vmatpush1.bf16.msra.mxu0 %v5560
      %5994 = vmatprep.subr.bf16.mxu0 0
      %5995 = vmatpush1.bf16.msra.mxu0 %v5561
      %5996 = vmatprep.subr.bf16.mxu0 0
      %5997 = vmatpush1.bf16.msra.mxu0 %v5562
      %5998 = vmatprep.subr.bf16.mxu0 0
      %5999 = vmatpush1.bf16.msra.mxu0 %v5563
      %6000 = vmatprep.subr.bf16.mxu0 0
      %6001 = vmatpush1.bf16.msra.mxu0 %v5564
      %6002 = vmatprep.mubr.bf16.mxu0 %v4676
      %6003 = vmatmul.mubr.bf16.gmra.mrb[0].mxu0 %v4675
      %v6004 = vpop.f32.mrb[0].mxu0
      %v6005 = vadd.f32 %v5956, %v6004
      %v6006 = vpop.f32.mrb[0].mxu0
      %v6007 = vpop.f32.mrb[0].mxu0
      %v6008 = vadd.f32 %v5959, %v6007
      %v6009 = vpop.f32.mrb[0].mxu0
      %6010 = vmatprep.mubr.bf16.mxu0 %v4692
      %6011 = vmatmul.mubr.bf16.gmra.mrb[0].mxu0 %v4691
      %v6012 = vpop.f32.mrb[0].mxu0
      %v6013 = vadd.f32 %v5964, %v6012
      %v6014 = vpop.f32.mrb[0].mxu0
      %v6015 = vpop.f32.mrb[0].mxu0
      %v6016 = vadd.f32 %v5967, %v6015
      %v6017 = vpop.f32.mrb[0].mxu0
      %6018 = vdwg.mxu0
      %6019 = vmatprep.subr.bf16.mxu0 0
      %6020 = vmatpush1.bf16.msra.mxu0 %v5565
      %6021 = vmatprep.subr.bf16.mxu0 0
      %6022 = vmatpush1.bf16.msra.mxu0 %v5566
      %6023 = vmatprep.subr.bf16.mxu0 0
      %6024 = vmatpush1.bf16.msra.mxu0 %v5567
      %6025 = vmatprep.subr.bf16.mxu0 0
      %6026 = vmatpush1.bf16.msra.mxu0 %v5568
      %6027 = vmatprep.subr.bf16.mxu0 0
      %6028 = vmatpush1.bf16.msra.mxu0 %v5569
      %6029 = vmatprep.subr.bf16.mxu0 0
      %6030 = vmatpush1.bf16.msra.mxu0 %v5570
      %6031 = vmatprep.subr.bf16.mxu0 0
      %6032 = vmatpush1.bf16.msra.mxu0 %v5571
      %6033 = vmatprep.subr.bf16.mxu0 0
      %6034 = vmatpush1.bf16.msra.mxu0 %v5572
      %6035 = vmatprep.subr.bf16.mxu0 0
      %6036 = vmatpush1.bf16.msra.mxu0 %v5573
      %6037 = vmatprep.subr.bf16.mxu0 0
      %6038 = vmatpush1.bf16.msra.mxu0 %v5574
      %6039 = vmatprep.subr.bf16.mxu0 0
      %6040 = vmatpush1.bf16.msra.mxu0 %v5575
      %6041 = vmatprep.subr.bf16.mxu0 0
      %6042 = vmatpush1.bf16.msra.mxu0 %v5576
      %6043 = vmatprep.subr.bf16.mxu0 0
      %6044 = vmatpush1.bf16.msra.mxu0 %v5577
      %6045 = vmatprep.subr.bf16.mxu0 0
      %6046 = vmatpush1.bf16.msra.mxu0 %v5578
      %6047 = vmatprep.subr.bf16.mxu0 0
      %6048 = vmatpush1.bf16.msra.mxu0 %v5579
      %6049 = vmatprep.subr.bf16.mxu0 0
      %6050 = vmatpush1.bf16.msra.mxu0 %v5580
      %6051 = vmatprep.mubr.bf16.mxu0 %v4678
      %6052 = vmatmul.mubr.bf16.gmra.mrb[0].mxu0 %v4677
      %v6053 = vpop.f32.mrb[0].mxu0
      %v6054 = vadd.f32 %v6005, %v6053
      %v6055 = vpop.f32.mrb[0].mxu0
      %v6056 = vpop.f32.mrb[0].mxu0
      %v6057 = vadd.f32 %v6008, %v6056
      %v6058 = vpop.f32.mrb[0].mxu0
      %6059 = vmatprep.mubr.bf16.mxu0 %v4694
      %6060 = vmatmul.mubr.bf16.gmra.mrb[0].mxu0 %v4693
      %v6061 = vpop.f32.mrb[0].mxu0
      %v6062 = vadd.f32 %v6013, %v6061
      %v6063 = vpop.f32.mrb[0].mxu0
      %v6064 = vpop.f32.mrb[0].mxu0
      %v6065 = vadd.f32 %v6016, %v6064
      %v6066 = vpop.f32.mrb[0].mxu0
      %6067 = vdwg.mxu0
      %6068 = vmatprep.subr.bf16.mxu0 0
      %6069 = vmatpush1.bf16.msra.mxu0 %v5581
      %6070 = vmatprep.subr.bf16.mxu0 0
      %6071 = vmatpush1.bf16.msra.mxu0 %v5582
      %6072 = vmatprep.subr.bf16.mxu0 0
      %6073 = vmatpush1.bf16.msra.mxu0 %v5583
      %6074 = vmatprep.subr.bf16.mxu0 0
      %6075 = vmatpush1.bf16.msra.mxu0 %v5584
      %6076 = vmatprep.subr.bf16.mxu0 0
      %6077 = vmatpush1.bf16.msra.mxu0 %v5585
      %6078 = vmatprep.subr.bf16.mxu0 0
      %6079 = vmatpush1.bf16.msra.mxu0 %v5586
      %6080 = vmatprep.subr.bf16.mxu0 0
      %6081 = vmatpush1.bf16.msra.mxu0 %v5587
      %6082 = vmatprep.subr.bf16.mxu0 0
      %6083 = vmatpush1.bf16.msra.mxu0 %v5588
      %6084 = vmatprep.subr.bf16.mxu0 0
      %6085 = vmatpush1.bf16.msra.mxu0 %v5589
      %6086 = vmatprep.subr.bf16.mxu0 0
      %6087 = vmatpush1.bf16.msra.mxu0 %v5590
      %6088 = vmatprep.subr.bf16.mxu0 0
      %6089 = vmatpush1.bf16.msra.mxu0 %v5591
      %6090 = vmatprep.subr.bf16.mxu0 0
      %6091 = vmatpush1.bf16.msra.mxu0 %v5592
      %6092 = vmatprep.subr.bf16.mxu0 0
      %6093 = vmatpush1.bf16.msra.mxu0 %v5593
      %6094 = vmatprep.subr.bf16.mxu0 0
      %6095 = vmatpush1.bf16.msra.mxu0 %v5594
      %6096 = vmatprep.subr.bf16.mxu0 0
      %6097 = vmatpush1.bf16.msra.mxu0 %v5595
      %6098 = vmatprep.subr.bf16.mxu0 0
      %6099 = vmatpush1.bf16.msra.mxu0 %v5596
      %6100 = vmatprep.mubr.bf16.mxu0 %v4680
      %6101 = vmatmul.mubr.bf16.gmra.mrb[0].mxu0 %v4679
      %v6102 = vpop.f32.mrb[0].mxu0
      %v6103 = vadd.f32 %v6054, %v6102
      %v6104 = vpop.f32.mrb[0].mxu0
      %v6105 = vpop.f32.mrb[0].mxu0
      %v6106 = vadd.f32 %v6057, %v6105
      %v6107 = vpop.f32.mrb[0].mxu0
      %6108 = vmatprep.mubr.bf16.mxu0 %v4696
      %6109 = vmatmul.mubr.bf16.gmra.mrb[0].mxu0 %v4695
      %v6110 = vpop.f32.mrb[0].mxu0
      %v6111 = vadd.f32 %v6062, %v6110
      %v6112 = vpop.f32.mrb[0].mxu0
      %v6113 = vpop.f32.mrb[0].mxu0
      %v6114 = vadd.f32 %v6065, %v6113
      %v6115 = vpop.f32.mrb[0].mxu0
      %6116 = vdwg.mxu0
      %v6117 = vadd.f32 %v3889, %v6103
      %v6118 = vadd.f32 %v3890, %v6106
      %v6119 = vadd.f32 %v3891, %v6111
      %v6120 = vadd.f32 %v3892, %v6114
      %v6121 = vsel %vm486, %v6117, 0.0
      %6122 = vadd.xlane.f32.xlu0 %v6121
      %v6123 = vpop.xlane.xlu0 %6122
      %v6124 = vsel %vm486, %v6118, 0.0
      %6125 = vadd.xlane.f32.xlu0 %v6124
      %v6126 = vpop.xlane.xlu0 %6125
      %v6127 = vsel %vm486, %v6119, 0.0
      %6128 = vadd.xlane.f32.xlu0 %v6127
      %v6129 = vpop.xlane.xlu0 %6128
      %v6130 = vsel %vm486, %v6120, 0.0
      %6131 = vadd.xlane.f32.xlu0 %v6130
      %v6132 = vpop.xlane.xlu0 %6131
      %v6133 = vmul.f32 %v6123, %v3828
      %v6134 = vmul.f32 %v6126, %v3828
      %v6135 = vmul.f32 %v6129, %v3828
      %v6136 = vmul.f32 %v6132, %v3828
      %v6137 = vmul.f32 %v6117, %v6117
      %v6138 = vmul.f32 %v6118, %v6118
      %v6139 = vmul.f32 %v6119, %v6119
      %v6140 = vmul.f32 %v6120, %v6120
      %v6141 = vsel %vm486, %v6137, 0.0
      %6142 = vadd.xlane.f32.xlu0 %v6141
      %v6143 = vpop.xlane.xlu0 %6142
      %v6144 = vsel %vm486, %v6138, 0.0
      %6145 = vadd.xlane.f32.xlu0 %v6144
      %v6146 = vpop.xlane.xlu0 %6145
      %v6147 = vsel %vm486, %v6139, 0.0
      %6148 = vadd.xlane.f32.xlu0 %v6147
      %v6149 = vpop.xlane.xlu0 %6148
      %v6150 = vsel %vm486, %v6140, 0.0
      %6151 = vadd.xlane.f32.xlu0 %v6150
      %v6152 = vpop.xlane.xlu0 %6151
      %v6153 = vmul.f32 %v6143, %v3828
      %v6154 = vmul.f32 %v6146, %v3828
      %v6155 = vmul.f32 %v6149, %v3828
      %v6156 = vmul.f32 %v6152, %v3828
      %v6157 = vmul.f32 %v6133, %v6133
      %v6158 = vmul.f32 %v6134, %v6134
      %v6159 = vmul.f32 %v6135, %v6135
      %v6160 = vmul.f32 %v6136, %v6136
      %v6161 = vsub.f32 %v6153, %v6157
      %v6162 = vsub.f32 %v6154, %v6158
      %v6163 = vsub.f32 %v6155, %v6159
      %v6164 = vsub.f32 %v6156, %v6160
      %v6165 = vsub.f32 %v6117, %v6133
      %v6166 = vsub.f32 %v6118, %v6134
      %v6167 = vsub.f32 %v6119, %v6135
      %v6168 = vsub.f32 %v6120, %v6136
      %v6169 = vadd.f32 %v6161, 1e-05
      %v6170 = vadd.f32 %v6162, 1e-05
      %v6171 = vadd.f32 %v6163, 1e-05
      %v6172 = vadd.f32 %v6164, 1e-05
      %v6173 = vrsqrt.pop %v6169
      %v6174 = vrsqrt.pop %v6170
      %v6175 = vrsqrt.pop %v6171
      %v6176 = vrsqrt.pop %v6172
      %v6177 = vmul.f32 %v6165, %v6173
      %v6178 = vmul.f32 %v6166, %v6174
      %v6179 = vmul.f32 %v6167, %v6175
      %v6180 = vmul.f32 %v6168, %v6176
      %v6181 = vlaneseq
      %v6182 = vshrl.u32 %v6181, 7
      %v6183 = vsub.s32 5, %v6182
      %v6184 = vrot.slane %v392, %v6183
      %v6185 = vmul.f32 %v6177, %v6184
      %v6186 = vmul.f32 %v6178, %v6184
      %v6187 = vmul.f32 %v6179, %v6184
      %v6188 = vmul.f32 %v6180, %v6184
      %v6189 = vlaneseq
      %v6190 = vshrl.u32 %v6189, 7
      %v6191 = vsub.s32 6, %v6190
      %v6192 = vrot.slane %v392, %v6191
      %v6193 = vadd.f32 %v6185, %v6192
      %v6194 = vadd.f32 %v6186, %v6192
      %v6195 = vadd.f32 %v6187, %v6192
      %v6196 = vadd.f32 %v6188, %v6192
      %v6197 = vpack.c.bf16 %v6194, %v6193
      %v6198 = vpack.c.bf16 %v6196, %v6195
      %s6199 = scalar_lea.vmem %s2, 16
      %v6200 = vld [vmem:[%s6199] sm:$0xf]
      %v6201 = vld [vmem:[%s6199 + $0x4] sm:$0xf]
      %v6202 = vld [vmem:[%s6199 + $0x8] sm:$0xf]
      %v6203 = vld [vmem:[%s6199 + $0xc] sm:$0xf]
      %s6204 = scalar_lea.vmem %s3, 1
      %v6205 = vld [vmem:[%s6204] sm:$0x1]
      %v6207 = vlaneseq
      %v6208 = vshrl.u32 %v6207, 7
      %v6209 = vsub.s32 0, %v6208
      %v6210 = vrot.slane %v6205, %v6209
      %v6216 = vunpack.c.l.b16 %v6200
      %v6217 = vunpack.c.l.b16 %v6201
      %v6218 = vunpack.c.l.b16 %v6202
      %v6219 = vunpack.c.l.b16 %v6203
      %v6220 = vpack.c.b16 %v6217, %v6216
      %v6221 = vpack.c.b16 %v6219, %v6218
      %v6225 = vsel %vm486, %v6197, 0
      %v6228 = vsel %vm486, %v6198, 0
      %6230 = vmatprep.subr.bf16.mxu0 0
      %6231 = vmatpush1.bf16.msra.mxu0 %v6220
      %6232 = vmatprep.subr.bf16.mxu0 0
      %6233 = vmatpush1.bf16.msra.mxu0 %v6221
      %6234 = vmatprep.subr.bf16.mxu0 0
      %6235 = vmatpush1.bf16.msra.mxu0 0
      %6236 = vmatprep.subr.bf16.mxu0 0
      %6237 = vmatpush1.bf16.msra.mxu0 0
      %6238 = vmatprep.subr.bf16.mxu0 0
      %6239 = vmatpush1.bf16.msra.mxu0 0
      %6240 = vmatprep.subr.bf16.mxu0 0
      %6241 = vmatpush1.bf16.msra.mxu0 0
      %6242 = vmatprep.subr.bf16.mxu0 0
      %6243 = vmatpush1.bf16.msra.mxu0 0
      %6244 = vmatprep.subr.bf16.mxu0 0
      %6245 = vmatpush1.bf16.msra.mxu0 0
      %6246 = vmatprep.subr.bf16.mxu0 0
      %6247 = vmatpush1.bf16.msra.mxu0 0
      %6248 = vmatprep.subr.bf16.mxu0 0
      %6249 = vmatpush1.bf16.msra.mxu0 0
      %6250 = vmatprep.subr.bf16.mxu0 0
      %6251 = vmatpush1.bf16.msra.mxu0 0
      %6252 = vmatprep.subr.bf16.mxu0 0
      %6253 = vmatpush1.bf16.msra.mxu0 0
      %6254 = vmatprep.subr.bf16.mxu0 0
      %6255 = vmatpush1.bf16.msra.mxu0 0
      %6256 = vmatprep.subr.bf16.mxu0 0
      %6257 = vmatpush1.bf16.msra.mxu0 0
      %6258 = vmatprep.subr.bf16.mxu0 0
      %6259 = vmatpush1.bf16.msra.mxu0 0
      %6260 = vmatprep.subr.bf16.mxu0 0
      %6261 = vmatpush1.bf16.msra.mxu0 0
      %6262 = vmatprep.mubr.bf16.mxu0 0
      %6263 = vmatmul.mubr.bf16.gmra.mrb[0].mxu0 %v6225
      %v6264 = vpop.f32.mrb[0].mxu0
      %v6265 = vadd.f32 %v6210, %v6264
      %v6266 = vpop.f32.mrb[0].mxu0
      %v6267 = vpop.f32.mrb[0].mxu0
      %v6268 = vadd.f32 %v6210, %v6267
      %v6269 = vpop.f32.mrb[0].mxu0
      %6270 = vmatprep.mubr.bf16.mxu0 0
      %6271 = vmatmul.mubr.bf16.gmra.mrb[0].mxu0 %v6228
      %v6272 = vpop.f32.mrb[0].mxu0
      %v6273 = vadd.f32 %v6210, %v6272
      %v6274 = vpop.f32.mrb[0].mxu0
      %v6275 = vpop.f32.mrb[0].mxu0
      %v6276 = vadd.f32 %v6210, %v6275
      %v6277 = vpop.f32.mrb[0].mxu0
      %6278 = vdwg.mxu0
      %v6279 = vpack.c.bf16 %v6268, %v6265
      %v6280 = vpack.c.bf16 %v6276, %v6273
      %6283 = vrot.lane.b32.xlu0 %v6279, 120
      %v6284 = vpop.permute.xlu0 %6283
      %6285 = vrot.lane.b32.xlu0 %v6280, 120
      %v6286 = vpop.permute.xlu0 %6285
      %6287 = vrot.lane.b32.xlu0 %v6279, 112
      %v6288 = vpop.permute.xlu0 %6287
      %6289 = vrot.lane.b32.xlu0 %v6280, 112
      %v6290 = vpop.permute.xlu0 %6289
      %6291 = vrot.lane.b32.xlu0 %v6279, 104
      %v6292 = vpop.permute.xlu0 %6291
      %6293 = vrot.lane.b32.xlu0 %v6280, 104
      %v6294 = vpop.permute.xlu0 %6293
      %6295 = vrot.lane.b32.xlu0 %v6279, 96
      %v6296 = vpop.permute.xlu0 %6295
      %6297 = vrot.lane.b32.xlu0 %v6280, 96
      %v6298 = vpop.permute.xlu0 %6297
      %6299 = vrot.lane.b32.xlu0 %v6279, 88
      %v6300 = vpop.permute.xlu0 %6299
      %6301 = vrot.lane.b32.xlu0 %v6280, 88
      %v6302 = vpop.permute.xlu0 %6301
      %6303 = vrot.lane.b32.xlu0 %v6279, 80
      %v6304 = vpop.permute.xlu0 %6303
      %6305 = vrot.lane.b32.xlu0 %v6280, 80
      %v6306 = vpop.permute.xlu0 %6305
      %6307 = vrot.lane.b32.xlu0 %v6279, 72
      %v6308 = vpop.permute.xlu0 %6307
      %6309 = vrot.lane.b32.xlu0 %v6280, 72
      %v6310 = vpop.permute.xlu0 %6309
      %6311 = vrot.lane.b32.xlu0 %v6279, 64
      %v6312 = vpop.permute.xlu0 %6311
      %6313 = vrot.lane.b32.xlu0 %v6280, 64
      %v6314 = vpop.permute.xlu0 %6313
      %6315 = vrot.lane.b32.xlu0 %v6279, 56
      %v6316 = vpop.permute.xlu0 %6315
      %6317 = vrot.lane.b32.xlu0 %v6280, 56
      %v6318 = vpop.permute.xlu0 %6317
      %6319 = vrot.lane.b32.xlu0 %v6279, 48
      %v6320 = vpop.permute.xlu0 %6319
      %6321 = vrot.lane.b32.xlu0 %v6280, 48
      %v6322 = vpop.permute.xlu0 %6321
      %6323 = vrot.lane.b32.xlu0 %v6279, 40
      %v6324 = vpop.permute.xlu0 %6323
      %6325 = vrot.lane.b32.xlu0 %v6280, 40
      %v6326 = vpop.permute.xlu0 %6325
      %v6329 = vpack.i.b16 %v6284, %v6279
      %v6331 = vshrl.u32 %v6279, 16
      %v6332 = vshrl.u32 %v6284, 16
      %v6333 = vpack.i.b16 %v6332, %v6331
      %v6337 = vpack.i.b16 %v6292, %v6288
      %v6339 = vshrl.u32 %v6288, 16
      %v6340 = vshrl.u32 %v6292, 16
      %v6341 = vpack.i.b16 %v6340, %v6339
      %v6345 = vpack.i.b16 %v6300, %v6296
      %v6347 = vshrl.u32 %v6296, 16
      %v6348 = vshrl.u32 %v6300, 16
      %v6349 = vpack.i.b16 %v6348, %v6347
      %v6353 = vpack.i.b16 %v6308, %v6304
      %v6355 = vshrl.u32 %v6304, 16
      %v6356 = vshrl.u32 %v6308, 16
      %v6357 = vpack.i.b16 %v6356, %v6355
      %v6361 = vpack.i.b16 %v6316, %v6312
      %v6363 = vshrl.u32 %v6312, 16
      %v6364 = vshrl.u32 %v6316, 16
      %v6365 = vpack.i.b16 %v6364, %v6363
      %v6369 = vpack.i.b16 %v6324, %v6320
      %v6371 = vshrl.u32 %v6320, 16
      %v6372 = vshrl.u32 %v6324, 16
      %v6373 = vpack.i.b16 %v6372, %v6371
      %v6377 = vpack.i.b16 %v6286, %v6280
      %v6379 = vshrl.u32 %v6280, 16
      %v6380 = vshrl.u32 %v6286, 16
      %v6381 = vpack.i.b16 %v6380, %v6379
      %v6385 = vpack.i.b16 %v6294, %v6290
      %v6387 = vshrl.u32 %v6290, 16
      %v6388 = vshrl.u32 %v6294, 16
      %v6389 = vpack.i.b16 %v6388, %v6387
      %v6393 = vpack.i.b16 %v6302, %v6298
      %v6395 = vshrl.u32 %v6298, 16
      %v6396 = vshrl.u32 %v6302, 16
      %v6397 = vpack.i.b16 %v6396, %v6395
      %v6401 = vpack.i.b16 %v6310, %v6306
      %v6403 = vshrl.u32 %v6306, 16
      %v6404 = vshrl.u32 %v6310, 16
      %v6405 = vpack.i.b16 %v6404, %v6403
      %v6409 = vpack.i.b16 %v6318, %v6314
      %v6411 = vshrl.u32 %v6314, 16
      %v6412 = vshrl.u32 %v6318, 16
      %v6413 = vpack.i.b16 %v6412, %v6411
      %v6417 = vpack.i.b16 %v6326, %v6322
      %v6419 = vshrl.u32 %v6322, 16
      %v6420 = vshrl.u32 %v6326, 16
      %v6421 = vpack.i.b16 %v6420, %v6419
      %v6423 = vcombine.low %v6329, %v6345
      %v6424 = vcombine.high %v6329, %v6345
      %v6426 = vunpack.c.l.s4 1983009808
      %v6427 = vunpack.c.0.s8 %v6426
      %v6428 = vlaneseq
      %v6429 = vshrl.u32 %v6428, 7
      %v6430 = vsub.s32 %v6427, %v6429
      %v6431 = vrot.slane %v6423, %v6430
      %v6433 = vunpack.c.l.s4 1983009808
      %v6434 = vunpack.c.0.s8 %v6433
      %v6435 = vlaneseq
      %v6436 = vshrl.u32 %v6435, 7
      %v6437 = vsub.s32 %v6434, %v6436
      %v6438 = vrot.slane %v6424, %v6437
      %v6439 = vcombine.low %v6337, %v6353
      %v6440 = vcombine.high %v6337, %v6353
      %v6442 = vunpack.c.l.s4 1983009808
      %v6443 = vunpack.c.0.s8 %v6442
      %v6444 = vlaneseq
      %v6445 = vshrl.u32 %v6444, 7
      %v6446 = vsub.s32 %v6443, %v6445
      %v6447 = vrot.slane %v6439, %v6446
      %v6449 = vunpack.c.l.s4 1983009808
      %v6450 = vunpack.c.0.s8 %v6449
      %v6451 = vlaneseq
      %v6452 = vshrl.u32 %v6451, 7
      %v6453 = vsub.s32 %v6450, %v6452
      %v6454 = vrot.slane %v6440, %v6453
      %v6455 = vcombine.high %v6361, %v639
      %v6457 = vunpack.c.l.s4 1983009808
      %v6458 = vunpack.c.0.s8 %v6457
      %v6459 = vlaneseq
      %v6460 = vshrl.u32 %v6459, 7
      %v6461 = vsub.s32 %v6458, %v6460
      %v6462 = vrot.slane %v6361, %v6461
      %v6464 = vunpack.c.l.s4 1983009808
      %v6465 = vunpack.c.0.s8 %v6464
      %v6466 = vlaneseq
      %v6467 = vshrl.u32 %v6466, 7
      %v6468 = vsub.s32 %v6465, %v6467
      %v6469 = vrot.slane %v6455, %v6468
      %v6470 = vcombine.high %v6369, %v639
      %v6472 = vunpack.c.l.s4 1983009808
      %v6473 = vunpack.c.0.s8 %v6472
      %v6474 = vlaneseq
      %v6475 = vshrl.u32 %v6474, 7
      %v6476 = vsub.s32 %v6473, %v6475
      %v6477 = vrot.slane %v6369, %v6476
      %v6479 = vunpack.c.l.s4 1983009808
      %v6480 = vunpack.c.0.s8 %v6479
      %v6481 = vlaneseq
      %v6482 = vshrl.u32 %v6481, 7
      %v6483 = vsub.s32 %v6480, %v6482
      %v6484 = vrot.slane %v6470, %v6483
      %v6485 = vcombine.low %v6431, %v6447
      %v6486 = vcombine.high %v6431, %v6447
      %v6488 = vunpack.c.l.s4 1934713408
      %v6489 = vunpack.c.0.s8 %v6488
      %v6490 = vlaneseq
      %v6491 = vshrl.u32 %v6490, 7
      %v6492 = vsub.s32 %v6489, %v6491
      %v6493 = vrot.slane %v6485, %v6492
      %v6495 = vunpack.c.l.s4 1934713408
      %v6496 = vunpack.c.0.s8 %v6495
      %v6497 = vlaneseq
      %v6498 = vshrl.u32 %v6497, 7
      %v6499 = vsub.s32 %v6496, %v6498
      %v6500 = vrot.slane %v6486, %v6499
      %v6501 = vcombine.low %v6438, %v6454
      %v6502 = vcombine.high %v6438, %v6454
      %v6504 = vunpack.c.l.s4 1934713408
      %v6505 = vunpack.c.0.s8 %v6504
      %v6506 = vlaneseq
      %v6507 = vshrl.u32 %v6506, 7
      %v6508 = vsub.s32 %v6505, %v6507
      %v6509 = vrot.slane %v6501, %v6508
      %v6511 = vunpack.c.l.s4 1934713408
      %v6512 = vunpack.c.0.s8 %v6511
      %v6513 = vlaneseq
      %v6514 = vshrl.u32 %v6513, 7
      %v6515 = vsub.s32 %v6512, %v6514
      %v6516 = vrot.slane %v6502, %v6515
      %v6517 = vcombine.low %v6462, %v6477
      %v6518 = vcombine.high %v6462, %v6477
      %v6520 = vunpack.c.l.s4 1934713408
      %v6521 = vunpack.c.0.s8 %v6520
      %v6522 = vlaneseq
      %v6523 = vshrl.u32 %v6522, 7
      %v6524 = vsub.s32 %v6521, %v6523
      %v6525 = vrot.slane %v6517, %v6524
      %v6527 = vunpack.c.l.s4 1934713408
      %v6528 = vunpack.c.0.s8 %v6527
      %v6529 = vlaneseq
      %v6530 = vshrl.u32 %v6529, 7
      %v6531 = vsub.s32 %v6528, %v6530
      %v6532 = vrot.slane %v6518, %v6531
      %v6533 = vcombine.low %v6469, %v6484
      %v6534 = vcombine.high %v6469, %v6484
      %v6536 = vunpack.c.l.s4 1934713408
      %v6537 = vunpack.c.0.s8 %v6536
      %v6538 = vlaneseq
      %v6539 = vshrl.u32 %v6538, 7
      %v6540 = vsub.s32 %v6537, %v6539
      %v6541 = vrot.slane %v6533, %v6540
      %v6543 = vunpack.c.l.s4 1934713408
      %v6544 = vunpack.c.0.s8 %v6543
      %v6545 = vlaneseq
      %v6546 = vshrl.u32 %v6545, 7
      %v6547 = vsub.s32 %v6544, %v6546
      %v6548 = vrot.slane %v6534, %v6547
      %v6549 = vcombine.low %v6493, %v6525
      %v6550 = vcombine.high %v6493, %v6525
      %v6551 = vcombine.low %v6500, %v6532
      %v6552 = vcombine.high %v6500, %v6532
      %v6553 = vcombine.low %v6509, %v6541
      %v6554 = vcombine.high %v6509, %v6541
      %v6555 = vcombine.low %v6516, %v6548
      %v6556 = vcombine.high %v6516, %v6548
      %v6557 = vcombine.low %v6333, %v6349
      %v6558 = vcombine.high %v6333, %v6349
      %v6560 = vunpack.c.l.s4 1983009808
      %v6561 = vunpack.c.0.s8 %v6560
      %v6562 = vlaneseq
      %v6563 = vshrl.u32 %v6562, 7
      %v6564 = vsub.s32 %v6561, %v6563
      %v6565 = vrot.slane %v6557, %v6564
      %v6567 = vunpack.c.l.s4 1983009808
      %v6568 = vunpack.c.0.s8 %v6567
      %v6569 = vlaneseq
      %v6570 = vshrl.u32 %v6569, 7
      %v6571 = vsub.s32 %v6568, %v6570
      %v6572 = vrot.slane %v6558, %v6571
      %v6573 = vcombine.low %v6341, %v6357
      %v6574 = vcombine.high %v6341, %v6357
      %v6576 = vunpack.c.l.s4 1983009808
      %v6577 = vunpack.c.0.s8 %v6576
      %v6578 = vlaneseq
      %v6579 = vshrl.u32 %v6578, 7
      %v6580 = vsub.s32 %v6577, %v6579
      %v6581 = vrot.slane %v6573, %v6580
      %v6583 = vunpack.c.l.s4 1983009808
      %v6584 = vunpack.c.0.s8 %v6583
      %v6585 = vlaneseq
      %v6586 = vshrl.u32 %v6585, 7
      %v6587 = vsub.s32 %v6584, %v6586
      %v6588 = vrot.slane %v6574, %v6587
      %v6589 = vcombine.high %v6365, %v642
      %v6591 = vunpack.c.l.s4 1983009808
      %v6592 = vunpack.c.0.s8 %v6591
      %v6593 = vlaneseq
      %v6594 = vshrl.u32 %v6593, 7
      %v6595 = vsub.s32 %v6592, %v6594
      %v6596 = vrot.slane %v6365, %v6595
      %v6598 = vunpack.c.l.s4 1983009808
      %v6599 = vunpack.c.0.s8 %v6598
      %v6600 = vlaneseq
      %v6601 = vshrl.u32 %v6600, 7
      %v6602 = vsub.s32 %v6599, %v6601
      %v6603 = vrot.slane %v6589, %v6602
      %v6604 = vcombine.high %v6373, %v642
      %v6606 = vunpack.c.l.s4 1983009808
      %v6607 = vunpack.c.0.s8 %v6606
      %v6608 = vlaneseq
      %v6609 = vshrl.u32 %v6608, 7
      %v6610 = vsub.s32 %v6607, %v6609
      %v6611 = vrot.slane %v6373, %v6610
      %v6613 = vunpack.c.l.s4 1983009808
      %v6614 = vunpack.c.0.s8 %v6613
      %v6615 = vlaneseq
      %v6616 = vshrl.u32 %v6615, 7
      %v6617 = vsub.s32 %v6614, %v6616
      %v6618 = vrot.slane %v6604, %v6617
      %v6619 = vcombine.low %v6565, %v6581
      %v6620 = vcombine.high %v6565, %v6581
      %v6622 = vunpack.c.l.s4 1934713408
      %v6623 = vunpack.c.0.s8 %v6622
      %v6624 = vlaneseq
      %v6625 = vshrl.u32 %v6624, 7
      %v6626 = vsub.s32 %v6623, %v6625
      %v6627 = vrot.slane %v6619, %v6626
      %v6629 = vunpack.c.l.s4 1934713408
      %v6630 = vunpack.c.0.s8 %v6629
      %v6631 = vlaneseq
      %v6632 = vshrl.u32 %v6631, 7
      %v6633 = vsub.s32 %v6630, %v6632
      %v6634 = vrot.slane %v6620, %v6633
      %v6635 = vcombine.low %v6572, %v6588
      %v6636 = vcombine.high %v6572, %v6588
      %v6638 = vunpack.c.l.s4 1934713408
      %v6639 = vunpack.c.0.s8 %v6638
      %v6640 = vlaneseq
      %v6641 = vshrl.u32 %v6640, 7
      %v6642 = vsub.s32 %v6639, %v6641
      %v6643 = vrot.slane %v6635, %v6642
      %v6645 = vunpack.c.l.s4 1934713408
      %v6646 = vunpack.c.0.s8 %v6645
      %v6647 = vlaneseq
      %v6648 = vshrl.u32 %v6647, 7
      %v6649 = vsub.s32 %v6646, %v6648
      %v6650 = vrot.slane %v6636, %v6649
      %v6651 = vcombine.low %v6596, %v6611
      %v6652 = vcombine.high %v6596, %v6611
      %v6654 = vunpack.c.l.s4 1934713408
      %v6655 = vunpack.c.0.s8 %v6654
      %v6656 = vlaneseq
      %v6657 = vshrl.u32 %v6656, 7
      %v6658 = vsub.s32 %v6655, %v6657
      %v6659 = vrot.slane %v6651, %v6658
      %v6661 = vunpack.c.l.s4 1934713408
      %v6662 = vunpack.c.0.s8 %v6661
      %v6663 = vlaneseq
      %v6664 = vshrl.u32 %v6663, 7
      %v6665 = vsub.s32 %v6662, %v6664
      %v6666 = vrot.slane %v6652, %v6665
      %v6667 = vcombine.low %v6603, %v6618
      %v6668 = vcombine.high %v6603, %v6618
      %v6670 = vunpack.c.l.s4 1934713408
      %v6671 = vunpack.c.0.s8 %v6670
      %v6672 = vlaneseq
      %v6673 = vshrl.u32 %v6672, 7
      %v6674 = vsub.s32 %v6671, %v6673
      %v6675 = vrot.slane %v6667, %v6674
      %v6677 = vunpack.c.l.s4 1934713408
      %v6678 = vunpack.c.0.s8 %v6677
      %v6679 = vlaneseq
      %v6680 = vshrl.u32 %v6679, 7
      %v6681 = vsub.s32 %v6678, %v6680
      %v6682 = vrot.slane %v6668, %v6681
      %v6683 = vcombine.low %v6627, %v6659
      %v6684 = vcombine.high %v6627, %v6659
      %v6685 = vcombine.low %v6634, %v6666
      %v6686 = vcombine.high %v6634, %v6666
      %v6687 = vcombine.low %v6643, %v6675
      %v6688 = vcombine.high %v6643, %v6675
      %v6689 = vcombine.low %v6650, %v6682
      %v6690 = vcombine.high %v6650, %v6682
      %v6691 = vcombine.low %v6377, %v6393
      %v6692 = vcombine.high %v6377, %v6393
      %v6694 = vunpack.c.l.s4 1983009808
      %v6695 = vunpack.c.0.s8 %v6694
      %v6696 = vlaneseq
      %v6697 = vshrl.u32 %v6696, 7
      %v6698 = vsub.s32 %v6695, %v6697
      %v6699 = vrot.slane %v6691, %v6698
      %v6701 = vunpack.c.l.s4 1983009808
      %v6702 = vunpack.c.0.s8 %v6701
      %v6703 = vlaneseq
      %v6704 = vshrl.u32 %v6703, 7
      %v6705 = vsub.s32 %v6702, %v6704
      %v6706 = vrot.slane %v6692, %v6705
      %v6707 = vcombine.low %v6385, %v6401
      %v6708 = vcombine.high %v6385, %v6401
      %v6710 = vunpack.c.l.s4 1983009808
      %v6711 = vunpack.c.0.s8 %v6710
      %v6712 = vlaneseq
      %v6713 = vshrl.u32 %v6712, 7
      %v6714 = vsub.s32 %v6711, %v6713
      %v6715 = vrot.slane %v6707, %v6714
      %v6717 = vunpack.c.l.s4 1983009808
      %v6718 = vunpack.c.0.s8 %v6717
      %v6719 = vlaneseq
      %v6720 = vshrl.u32 %v6719, 7
      %v6721 = vsub.s32 %v6718, %v6720
      %v6722 = vrot.slane %v6708, %v6721
      %v6723 = vcombine.high %v6409, %v639
      %v6725 = vunpack.c.l.s4 1983009808
      %v6726 = vunpack.c.0.s8 %v6725
      %v6727 = vlaneseq
      %v6728 = vshrl.u32 %v6727, 7
      %v6729 = vsub.s32 %v6726, %v6728
      %v6730 = vrot.slane %v6409, %v6729
      %v6732 = vunpack.c.l.s4 1983009808
      %v6733 = vunpack.c.0.s8 %v6732
      %v6734 = vlaneseq
      %v6735 = vshrl.u32 %v6734, 7
      %v6736 = vsub.s32 %v6733, %v6735
      %v6737 = vrot.slane %v6723, %v6736
      %v6738 = vcombine.high %v6417, %v639
      %v6740 = vunpack.c.l.s4 1983009808
      %v6741 = vunpack.c.0.s8 %v6740
      %v6742 = vlaneseq
      %v6743 = vshrl.u32 %v6742, 7
      %v6744 = vsub.s32 %v6741, %v6743
      %v6745 = vrot.slane %v6417, %v6744
      %v6747 = vunpack.c.l.s4 1983009808
      %v6748 = vunpack.c.0.s8 %v6747
      %v6749 = vlaneseq
      %v6750 = vshrl.u32 %v6749, 7
      %v6751 = vsub.s32 %v6748, %v6750
      %v6752 = vrot.slane %v6738, %v6751
      %v6753 = vcombine.low %v6699, %v6715
      %v6754 = vcombine.high %v6699, %v6715
      %v6756 = vunpack.c.l.s4 1934713408
      %v6757 = vunpack.c.0.s8 %v6756
      %v6758 = vlaneseq
      %v6759 = vshrl.u32 %v6758, 7
      %v6760 = vsub.s32 %v6757, %v6759
      %v6761 = vrot.slane %v6753, %v6760
      %v6763 = vunpack.c.l.s4 1934713408
      %v6764 = vunpack.c.0.s8 %v6763
      %v6765 = vlaneseq
      %v6766 = vshrl.u32 %v6765, 7
      %v6767 = vsub.s32 %v6764, %v6766
      %v6768 = vrot.slane %v6754, %v6767
      %v6769 = vcombine.low %v6706, %v6722
      %v6770 = vcombine.high %v6706, %v6722
      %v6772 = vunpack.c.l.s4 1934713408
      %v6773 = vunpack.c.0.s8 %v6772
      %v6774 = vlaneseq
      %v6775 = vshrl.u32 %v6774, 7
      %v6776 = vsub.s32 %v6773, %v6775
      %v6777 = vrot.slane %v6769, %v6776
      %v6779 = vunpack.c.l.s4 1934713408
      %v6780 = vunpack.c.0.s8 %v6779
      %v6781 = vlaneseq
      %v6782 = vshrl.u32 %v6781, 7
      %v6783 = vsub.s32 %v6780, %v6782
      %v6784 = vrot.slane %v6770, %v6783
      %v6785 = vcombine.low %v6730, %v6745
      %v6786 = vcombine.high %v6730, %v6745
      %v6788 = vunpack.c.l.s4 1934713408
      %v6789 = vunpack.c.0.s8 %v6788
      %v6790 = vlaneseq
      %v6791 = vshrl.u32 %v6790, 7
      %v6792 = vsub.s32 %v6789, %v6791
      %v6793 = vrot.slane %v6785, %v6792
      %v6795 = vunpack.c.l.s4 1934713408
      %v6796 = vunpack.c.0.s8 %v6795
      %v6797 = vlaneseq
      %v6798 = vshrl.u32 %v6797, 7
      %v6799 = vsub.s32 %v6796, %v6798
      %v6800 = vrot.slane %v6786, %v6799
      %v6801 = vcombine.low %v6737, %v6752
      %v6802 = vcombine.high %v6737, %v6752
      %v6804 = vunpack.c.l.s4 1934713408
      %v6805 = vunpack.c.0.s8 %v6804
      %v6806 = vlaneseq
      %v6807 = vshrl.u32 %v6806, 7
      %v6808 = vsub.s32 %v6805, %v6807
      %v6809 = vrot.slane %v6801, %v6808
      %v6811 = vunpack.c.l.s4 1934713408
      %v6812 = vunpack.c.0.s8 %v6811
      %v6813 = vlaneseq
      %v6814 = vshrl.u32 %v6813, 7
      %v6815 = vsub.s32 %v6812, %v6814
      %v6816 = vrot.slane %v6802, %v6815
      %v6817 = vcombine.low %v6761, %v6793
      %v6818 = vcombine.high %v6761, %v6793
      %v6819 = vcombine.low %v6768, %v6800
      %v6820 = vcombine.high %v6768, %v6800
      %v6821 = vcombine.low %v6777, %v6809
      %v6822 = vcombine.high %v6777, %v6809
      %v6823 = vcombine.low %v6784, %v6816
      %v6824 = vcombine.high %v6784, %v6816
      %v6825 = vcombine.low %v6381, %v6397
      %v6826 = vcombine.high %v6381, %v6397
      %v6828 = vunpack.c.l.s4 1983009808
      %v6829 = vunpack.c.0.s8 %v6828
      %v6830 = vlaneseq
      %v6831 = vshrl.u32 %v6830, 7
      %v6832 = vsub.s32 %v6829, %v6831
      %v6833 = vrot.slane %v6825, %v6832
      %v6835 = vunpack.c.l.s4 1983009808
      %v6836 = vunpack.c.0.s8 %v6835
      %v6837 = vlaneseq
      %v6838 = vshrl.u32 %v6837, 7
      %v6839 = vsub.s32 %v6836, %v6838
      %v6840 = vrot.slane %v6826, %v6839
      %v6841 = vcombine.low %v6389, %v6405
      %v6842 = vcombine.high %v6389, %v6405
      %v6844 = vunpack.c.l.s4 1983009808
      %v6845 = vunpack.c.0.s8 %v6844
      %v6846 = vlaneseq
      %v6847 = vshrl.u32 %v6846, 7
      %v6848 = vsub.s32 %v6845, %v6847
      %v6849 = vrot.slane %v6841, %v6848
      %v6851 = vunpack.c.l.s4 1983009808
      %v6852 = vunpack.c.0.s8 %v6851
      %v6853 = vlaneseq
      %v6854 = vshrl.u32 %v6853, 7
      %v6855 = vsub.s32 %v6852, %v6854
      %v6856 = vrot.slane %v6842, %v6855
      %v6857 = vcombine.high %v6413, %v642
      %v6859 = vunpack.c.l.s4 1983009808
      %v6860 = vunpack.c.0.s8 %v6859
      %v6861 = vlaneseq
      %v6862 = vshrl.u32 %v6861, 7
      %v6863 = vsub.s32 %v6860, %v6862
      %v6864 = vrot.slane %v6413, %v6863
      %v6866 = vunpack.c.l.s4 1983009808
      %v6867 = vunpack.c.0.s8 %v6866
      %v6868 = vlaneseq
      %v6869 = vshrl.u32 %v6868, 7
      %v6870 = vsub.s32 %v6867, %v6869
      %v6871 = vrot.slane %v6857, %v6870
      %v6872 = vcombine.high %v6421, %v642
      %v6874 = vunpack.c.l.s4 1983009808
      %v6875 = vunpack.c.0.s8 %v6874
      %v6876 = vlaneseq
      %v6877 = vshrl.u32 %v6876, 7
      %v6878 = vsub.s32 %v6875, %v6877
      %v6879 = vrot.slane %v6421, %v6878
      %v6881 = vunpack.c.l.s4 1983009808
      %v6882 = vunpack.c.0.s8 %v6881
      %v6883 = vlaneseq
      %v6884 = vshrl.u32 %v6883, 7
      %v6885 = vsub.s32 %v6882, %v6884
      %v6886 = vrot.slane %v6872, %v6885
      %v6887 = vcombine.low %v6833, %v6849
      %v6888 = vcombine.high %v6833, %v6849
      %v6890 = vunpack.c.l.s4 1934713408
      %v6891 = vunpack.c.0.s8 %v6890
      %v6892 = vlaneseq
      %v6893 = vshrl.u32 %v6892, 7
      %v6894 = vsub.s32 %v6891, %v6893
      %v6895 = vrot.slane %v6887, %v6894
      %v6897 = vunpack.c.l.s4 1934713408
      %v6898 = vunpack.c.0.s8 %v6897
      %v6899 = vlaneseq
      %v6900 = vshrl.u32 %v6899, 7
      %v6901 = vsub.s32 %v6898, %v6900
      %v6902 = vrot.slane %v6888, %v6901
      %v6903 = vcombine.low %v6840, %v6856
      %v6904 = vcombine.high %v6840, %v6856
      %v6906 = vunpack.c.l.s4 1934713408
      %v6907 = vunpack.c.0.s8 %v6906
      %v6908 = vlaneseq
      %v6909 = vshrl.u32 %v6908, 7
      %v6910 = vsub.s32 %v6907, %v6909
      %v6911 = vrot.slane %v6903, %v6910
      %v6913 = vunpack.c.l.s4 1934713408
      %v6914 = vunpack.c.0.s8 %v6913
      %v6915 = vlaneseq
      %v6916 = vshrl.u32 %v6915, 7
      %v6917 = vsub.s32 %v6914, %v6916
      %v6918 = vrot.slane %v6904, %v6917
      %v6919 = vcombine.low %v6864, %v6879
      %v6920 = vcombine.high %v6864, %v6879
      %v6922 = vunpack.c.l.s4 1934713408
      %v6923 = vunpack.c.0.s8 %v6922
      %v6924 = vlaneseq
      %v6925 = vshrl.u32 %v6924, 7
      %v6926 = vsub.s32 %v6923, %v6925
      %v6927 = vrot.slane %v6919, %v6926
      %v6929 = vunpack.c.l.s4 1934713408
      %v6930 = vunpack.c.0.s8 %v6929
      %v6931 = vlaneseq
      %v6932 = vshrl.u32 %v6931, 7
      %v6933 = vsub.s32 %v6930, %v6932
      %v6934 = vrot.slane %v6920, %v6933
      %v6935 = vcombine.low %v6871, %v6886
      %v6936 = vcombine.high %v6871, %v6886
      %v6938 = vunpack.c.l.s4 1934713408
      %v6939 = vunpack.c.0.s8 %v6938
      %v6940 = vlaneseq
      %v6941 = vshrl.u32 %v6940, 7
      %v6942 = vsub.s32 %v6939, %v6941
      %v6943 = vrot.slane %v6935, %v6942
      %v6945 = vunpack.c.l.s4 1934713408
      %v6946 = vunpack.c.0.s8 %v6945
      %v6947 = vlaneseq
      %v6948 = vshrl.u32 %v6947, 7
      %v6949 = vsub.s32 %v6946, %v6948
      %v6950 = vrot.slane %v6936, %v6949
      %v6951 = vcombine.low %v6895, %v6927
      %v6952 = vcombine.high %v6895, %v6927
      %v6953 = vcombine.low %v6902, %v6934
      %v6954 = vcombine.high %v6902, %v6934
      %v6955 = vcombine.low %v6911, %v6943
      %v6956 = vcombine.high %v6911, %v6943
      %v6957 = vcombine.low %v6918, %v6950
      %v6958 = vcombine.high %v6918, %v6950
      %v6959 = vcombine.low %v6549, %v6551
      %v6960 = vcombine.high %v6549, %v6551
      %v6962 = vunpack.c.l.s4 1983009808
      %v6963 = vunpack.c.0.s8 %v6962
      %v6964 = vlaneseq
      %v6965 = vshrl.u32 %v6964, 7
      %v6966 = vsub.s32 %v6963, %v6965
      %v6967 = vrot.slane %v6959, %v6966
      %v6969 = vunpack.c.l.s4 1983009808
      %v6970 = vunpack.c.0.s8 %v6969
      %v6971 = vlaneseq
      %v6972 = vshrl.u32 %v6971, 7
      %v6973 = vsub.s32 %v6970, %v6972
      %v6974 = vrot.slane %v6960, %v6973
      %v6975 = vcombine.low %v6550, %v6552
      %v6976 = vcombine.high %v6550, %v6552
      %v6978 = vunpack.c.l.s4 1983009808
      %v6979 = vunpack.c.0.s8 %v6978
      %v6980 = vlaneseq
      %v6981 = vshrl.u32 %v6980, 7
      %v6982 = vsub.s32 %v6979, %v6981
      %v6983 = vrot.slane %v6975, %v6982
      %v6985 = vunpack.c.l.s4 1983009808
      %v6986 = vunpack.c.0.s8 %v6985
      %v6987 = vlaneseq
      %v6988 = vshrl.u32 %v6987, 7
      %v6989 = vsub.s32 %v6986, %v6988
      %v6990 = vrot.slane %v6976, %v6989
      %v6991 = vcombine.low %v6553, %v6555
      %v6992 = vcombine.high %v6553, %v6555
      %v6994 = vunpack.c.l.s4 1983009808
      %v6995 = vunpack.c.0.s8 %v6994
      %v6996 = vlaneseq
      %v6997 = vshrl.u32 %v6996, 7
      %v6998 = vsub.s32 %v6995, %v6997
      %v6999 = vrot.slane %v6991, %v6998
      %v7001 = vunpack.c.l.s4 1983009808
      %v7002 = vunpack.c.0.s8 %v7001
      %v7003 = vlaneseq
      %v7004 = vshrl.u32 %v7003, 7
      %v7005 = vsub.s32 %v7002, %v7004
      %v7006 = vrot.slane %v6992, %v7005
      %v7007 = vcombine.low %v6554, %v6556
      %v7008 = vcombine.high %v6554, %v6556
      %v7010 = vunpack.c.l.s4 1983009808
      %v7011 = vunpack.c.0.s8 %v7010
      %v7012 = vlaneseq
      %v7013 = vshrl.u32 %v7012, 7
      %v7014 = vsub.s32 %v7011, %v7013
      %v7015 = vrot.slane %v7007, %v7014
      %v7017 = vunpack.c.l.s4 1983009808
      %v7018 = vunpack.c.0.s8 %v7017
      %v7019 = vlaneseq
      %v7020 = vshrl.u32 %v7019, 7
      %v7021 = vsub.s32 %v7018, %v7020
      %v7022 = vrot.slane %v7008, %v7021
      %v7023 = vcombine.low %v6967, %v6983
      %v7024 = vcombine.high %v6967, %v6983
      %v7026 = vunpack.c.l.s4 1934713408
      %v7027 = vunpack.c.0.s8 %v7026
      %v7028 = vlaneseq
      %v7029 = vshrl.u32 %v7028, 7
      %v7030 = vsub.s32 %v7027, %v7029
      %v7031 = vrot.slane %v7023, %v7030
      %v7033 = vunpack.c.l.s4 1934713408
      %v7034 = vunpack.c.0.s8 %v7033
      %v7035 = vlaneseq
      %v7036 = vshrl.u32 %v7035, 7
      %v7037 = vsub.s32 %v7034, %v7036
      %v7038 = vrot.slane %v7024, %v7037
      %v7039 = vcombine.low %v6974, %v6990
      %v7041 = vunpack.c.l.s4 1934713408
      %v7042 = vunpack.c.0.s8 %v7041
      %v7043 = vlaneseq
      %v7044 = vshrl.u32 %v7043, 7
      %v7045 = vsub.s32 %v7042, %v7044
      %v7046 = vrot.slane %v7039, %v7045
      %v7047 = vcombine.low %v6999, %v7015
      %v7048 = vcombine.high %v6999, %v7015
      %v7050 = vunpack.c.l.s4 1934713408
      %v7051 = vunpack.c.0.s8 %v7050
      %v7052 = vlaneseq
      %v7053 = vshrl.u32 %v7052, 7
      %v7054 = vsub.s32 %v7051, %v7053
      %v7055 = vrot.slane %v7047, %v7054
      %v7057 = vunpack.c.l.s4 1934713408
      %v7058 = vunpack.c.0.s8 %v7057
      %v7059 = vlaneseq
      %v7060 = vshrl.u32 %v7059, 7
      %v7061 = vsub.s32 %v7058, %v7060
      %v7062 = vrot.slane %v7048, %v7061
      %v7063 = vcombine.low %v7006, %v7022
      %v7065 = vunpack.c.l.s4 1934713408
      %v7066 = vunpack.c.0.s8 %v7065
      %v7067 = vlaneseq
      %v7068 = vshrl.u32 %v7067, 7
      %v7069 = vsub.s32 %v7066, %v7068
      %v7070 = vrot.slane %v7063, %v7069
      %v7071 = vcombine.low %v7031, %v7055
      %v7072 = vcombine.high %v7031, %v7055
      %v7073 = vcombine.low %v7038, %v7062
      %v7074 = vcombine.high %v7038, %v7062
      %v7075 = vcombine.low %v7046, %v7070
      %v7076 = vcombine.high %v7046, %v7070
      %v7077 = vcombine.low %v6683, %v6685
      %v7078 = vcombine.high %v6683, %v6685
      %v7080 = vunpack.c.l.s4 1983009808
      %v7081 = vunpack.c.0.s8 %v7080
      %v7082 = vlaneseq
      %v7083 = vshrl.u32 %v7082, 7
      %v7084 = vsub.s32 %v7081, %v7083
      %v7085 = vrot.slane %v7077, %v7084
      %v7087 = vunpack.c.l.s4 1983009808
      %v7088 = vunpack.c.0.s8 %v7087
      %v7089 = vlaneseq
      %v7090 = vshrl.u32 %v7089, 7
      %v7091 = vsub.s32 %v7088, %v7090
      %v7092 = vrot.slane %v7078, %v7091
      %v7093 = vcombine.low %v6684, %v6686
      %v7094 = vcombine.high %v6684, %v6686
      %v7096 = vunpack.c.l.s4 1983009808
      %v7097 = vunpack.c.0.s8 %v7096
      %v7098 = vlaneseq
      %v7099 = vshrl.u32 %v7098, 7
      %v7100 = vsub.s32 %v7097, %v7099
      %v7101 = vrot.slane %v7093, %v7100
      %v7103 = vunpack.c.l.s4 1983009808
      %v7104 = vunpack.c.0.s8 %v7103
      %v7105 = vlaneseq
      %v7106 = vshrl.u32 %v7105, 7
      %v7107 = vsub.s32 %v7104, %v7106
      %v7108 = vrot.slane %v7094, %v7107
      %v7109 = vcombine.low %v6687, %v6689
      %v7110 = vcombine.high %v6687, %v6689
      %v7112 = vunpack.c.l.s4 1983009808
      %v7113 = vunpack.c.0.s8 %v7112
      %v7114 = vlaneseq
      %v7115 = vshrl.u32 %v7114, 7
      %v7116 = vsub.s32 %v7113, %v7115
      %v7117 = vrot.slane %v7109, %v7116
      %v7119 = vunpack.c.l.s4 1983009808
      %v7120 = vunpack.c.0.s8 %v7119
      %v7121 = vlaneseq
      %v7122 = vshrl.u32 %v7121, 7
      %v7123 = vsub.s32 %v7120, %v7122
      %v7124 = vrot.slane %v7110, %v7123
      %v7125 = vcombine.low %v6688, %v6690
      %v7126 = vcombine.high %v6688, %v6690
      %v7128 = vunpack.c.l.s4 1983009808
      %v7129 = vunpack.c.0.s8 %v7128
      %v7130 = vlaneseq
      %v7131 = vshrl.u32 %v7130, 7
      %v7132 = vsub.s32 %v7129, %v7131
      %v7133 = vrot.slane %v7125, %v7132
      %v7135 = vunpack.c.l.s4 1983009808
      %v7136 = vunpack.c.0.s8 %v7135
      %v7137 = vlaneseq
      %v7138 = vshrl.u32 %v7137, 7
      %v7139 = vsub.s32 %v7136, %v7138
      %v7140 = vrot.slane %v7126, %v7139
      %v7141 = vcombine.low %v7085, %v7101
      %v7142 = vcombine.high %v7085, %v7101
      %v7144 = vunpack.c.l.s4 1934713408
      %v7145 = vunpack.c.0.s8 %v7144
      %v7146 = vlaneseq
      %v7147 = vshrl.u32 %v7146, 7
      %v7148 = vsub.s32 %v7145, %v7147
      %v7149 = vrot.slane %v7141, %v7148
      %v7151 = vunpack.c.l.s4 1934713408
      %v7152 = vunpack.c.0.s8 %v7151
      %v7153 = vlaneseq
      %v7154 = vshrl.u32 %v7153, 7
      %v7155 = vsub.s32 %v7152, %v7154
      %v7156 = vrot.slane %v7142, %v7155
      %v7157 = vcombine.low %v7092, %v7108
      %v7159 = vunpack.c.l.s4 1934713408
      %v7160 = vunpack.c.0.s8 %v7159
      %v7161 = vlaneseq
      %v7162 = vshrl.u32 %v7161, 7
      %v7163 = vsub.s32 %v7160, %v7162
      %v7164 = vrot.slane %v7157, %v7163
      %v7165 = vcombine.low %v7117, %v7133
      %v7166 = vcombine.high %v7117, %v7133
      %v7168 = vunpack.c.l.s4 1934713408
      %v7169 = vunpack.c.0.s8 %v7168
      %v7170 = vlaneseq
      %v7171 = vshrl.u32 %v7170, 7
      %v7172 = vsub.s32 %v7169, %v7171
      %v7173 = vrot.slane %v7165, %v7172
      %v7175 = vunpack.c.l.s4 1934713408
      %v7176 = vunpack.c.0.s8 %v7175
      %v7177 = vlaneseq
      %v7178 = vshrl.u32 %v7177, 7
      %v7179 = vsub.s32 %v7176, %v7178
      %v7180 = vrot.slane %v7166, %v7179
      %v7181 = vcombine.low %v7124, %v7140
      %v7183 = vunpack.c.l.s4 1934713408
      %v7184 = vunpack.c.0.s8 %v7183
      %v7185 = vlaneseq
      %v7186 = vshrl.u32 %v7185, 7
      %v7187 = vsub.s32 %v7184, %v7186
      %v7188 = vrot.slane %v7181, %v7187
      %v7189 = vcombine.low %v7149, %v7173
      %v7190 = vcombine.high %v7149, %v7173
      %v7191 = vcombine.low %v7156, %v7180
      %v7192 = vcombine.high %v7156, %v7180
      %v7193 = vcombine.low %v7164, %v7188
      %v7194 = vcombine.high %v7164, %v7188
      %v7195 = vcombine.low %v6817, %v6819
      %v7196 = vcombine.high %v6817, %v6819
      %v7198 = vunpack.c.l.s4 1983009808
      %v7199 = vunpack.c.0.s8 %v7198
      %v7200 = vlaneseq
      %v7201 = vshrl.u32 %v7200, 7
      %v7202 = vsub.s32 %v7199, %v7201
      %v7203 = vrot.slane %v7195, %v7202
      %v7205 = vunpack.c.l.s4 1983009808
      %v7206 = vunpack.c.0.s8 %v7205
      %v7207 = vlaneseq
      %v7208 = vshrl.u32 %v7207, 7
      %v7209 = vsub.s32 %v7206, %v7208
      %v7210 = vrot.slane %v7196, %v7209
      %v7211 = vcombine.low %v6818, %v6820
      %v7212 = vcombine.high %v6818, %v6820
      %v7214 = vunpack.c.l.s4 1983009808
      %v7215 = vunpack.c.0.s8 %v7214
      %v7216 = vlaneseq
      %v7217 = vshrl.u32 %v7216, 7
      %v7218 = vsub.s32 %v7215, %v7217
      %v7219 = vrot.slane %v7211, %v7218
      %v7221 = vunpack.c.l.s4 1983009808
      %v7222 = vunpack.c.0.s8 %v7221
      %v7223 = vlaneseq
      %v7224 = vshrl.u32 %v7223, 7
      %v7225 = vsub.s32 %v7222, %v7224
      %v7226 = vrot.slane %v7212, %v7225
      %v7227 = vcombine.low %v6821, %v6823
      %v7228 = vcombine.high %v6821, %v6823
      %v7230 = vunpack.c.l.s4 1983009808
      %v7231 = vunpack.c.0.s8 %v7230
      %v7232 = vlaneseq
      %v7233 = vshrl.u32 %v7232, 7
      %v7234 = vsub.s32 %v7231, %v7233
      %v7235 = vrot.slane %v7227, %v7234
      %v7237 = vunpack.c.l.s4 1983009808
      %v7238 = vunpack.c.0.s8 %v7237
      %v7239 = vlaneseq
      %v7240 = vshrl.u32 %v7239, 7
      %v7241 = vsub.s32 %v7238, %v7240
      %v7242 = vrot.slane %v7228, %v7241
      %v7243 = vcombine.low %v6822, %v6824
      %v7244 = vcombine.high %v6822, %v6824
      %v7246 = vunpack.c.l.s4 1983009808
      %v7247 = vunpack.c.0.s8 %v7246
      %v7248 = vlaneseq
      %v7249 = vshrl.u32 %v7248, 7
      %v7250 = vsub.s32 %v7247, %v7249
      %v7251 = vrot.slane %v7243, %v7250
      %v7253 = vunpack.c.l.s4 1983009808
      %v7254 = vunpack.c.0.s8 %v7253
      %v7255 = vlaneseq
      %v7256 = vshrl.u32 %v7255, 7
      %v7257 = vsub.s32 %v7254, %v7256
      %v7258 = vrot.slane %v7244, %v7257
      %v7259 = vcombine.low %v7203, %v7219
      %v7260 = vcombine.high %v7203, %v7219
      %v7262 = vunpack.c.l.s4 1934713408
      %v7263 = vunpack.c.0.s8 %v7262
      %v7264 = vlaneseq
      %v7265 = vshrl.u32 %v7264, 7
      %v7266 = vsub.s32 %v7263, %v7265
      %v7267 = vrot.slane %v7259, %v7266
      %v7269 = vunpack.c.l.s4 1934713408
      %v7270 = vunpack.c.0.s8 %v7269
      %v7271 = vlaneseq
      %v7272 = vshrl.u32 %v7271, 7
      %v7273 = vsub.s32 %v7270, %v7272
      %v7274 = vrot.slane %v7260, %v7273
      %v7275 = vcombine.low %v7210, %v7226
      %v7277 = vunpack.c.l.s4 1934713408
      %v7278 = vunpack.c.0.s8 %v7277
      %v7279 = vlaneseq
      %v7280 = vshrl.u32 %v7279, 7
      %v7281 = vsub.s32 %v7278, %v7280
      %v7282 = vrot.slane %v7275, %v7281
      %v7283 = vcombine.low %v7235, %v7251
      %v7284 = vcombine.high %v7235, %v7251
      %v7286 = vunpack.c.l.s4 1934713408
      %v7287 = vunpack.c.0.s8 %v7286
      %v7288 = vlaneseq
      %v7289 = vshrl.u32 %v7288, 7
      %v7290 = vsub.s32 %v7287, %v7289
      %v7291 = vrot.slane %v7283, %v7290
      %v7293 = vunpack.c.l.s4 1934713408
      %v7294 = vunpack.c.0.s8 %v7293
      %v7295 = vlaneseq
      %v7296 = vshrl.u32 %v7295, 7
      %v7297 = vsub.s32 %v7294, %v7296
      %v7298 = vrot.slane %v7284, %v7297
      %v7299 = vcombine.low %v7242, %v7258
      %v7301 = vunpack.c.l.s4 1934713408
      %v7302 = vunpack.c.0.s8 %v7301
      %v7303 = vlaneseq
      %v7304 = vshrl.u32 %v7303, 7
      %v7305 = vsub.s32 %v7302, %v7304
      %v7306 = vrot.slane %v7299, %v7305
      %v7307 = vcombine.low %v7267, %v7291
      %v7308 = vcombine.high %v7267, %v7291
      %v7309 = vcombine.low %v7274, %v7298
      %v7310 = vcombine.high %v7274, %v7298
      %v7311 = vcombine.low %v7282, %v7306
      %v7312 = vcombine.high %v7282, %v7306
      %v7313 = vcombine.low %v6951, %v6953
      %v7314 = vcombine.high %v6951, %v6953
      %v7316 = vunpack.c.l.s4 1983009808
      %v7317 = vunpack.c.0.s8 %v7316
      %v7318 = vlaneseq
      %v7319 = vshrl.u32 %v7318, 7
      %v7320 = vsub.s32 %v7317, %v7319
      %v7321 = vrot.slane %v7313, %v7320
      %v7323 = vunpack.c.l.s4 1983009808
      %v7324 = vunpack.c.0.s8 %v7323
      %v7325 = vlaneseq
      %v7326 = vshrl.u32 %v7325, 7
      %v7327 = vsub.s32 %v7324, %v7326
      %v7328 = vrot.slane %v7314, %v7327
      %v7329 = vcombine.low %v6952, %v6954
      %v7330 = vcombine.high %v6952, %v6954
      %v7332 = vunpack.c.l.s4 1983009808
      %v7333 = vunpack.c.0.s8 %v7332
      %v7334 = vlaneseq
      %v7335 = vshrl.u32 %v7334, 7
      %v7336 = vsub.s32 %v7333, %v7335
      %v7337 = vrot.slane %v7329, %v7336
      %v7339 = vunpack.c.l.s4 1983009808
      %v7340 = vunpack.c.0.s8 %v7339
      %v7341 = vlaneseq
      %v7342 = vshrl.u32 %v7341, 7
      %v7343 = vsub.s32 %v7340, %v7342
      %v7344 = vrot.slane %v7330, %v7343
      %v7345 = vcombine.low %v6955, %v6957
      %v7346 = vcombine.high %v6955, %v6957
      %v7348 = vunpack.c.l.s4 1983009808
      %v7349 = vunpack.c.0.s8 %v7348
      %v7350 = vlaneseq
      %v7351 = vshrl.u32 %v7350, 7
      %v7352 = vsub.s32 %v7349, %v7351
      %v7353 = vrot.slane %v7345, %v7352
      %v7355 = vunpack.c.l.s4 1983009808
      %v7356 = vunpack.c.0.s8 %v7355
      %v7357 = vlaneseq
      %v7358 = vshrl.u32 %v7357, 7
      %v7359 = vsub.s32 %v7356, %v7358
      %v7360 = vrot.slane %v7346, %v7359
      %v7361 = vcombine.low %v6956, %v6958
      %v7362 = vcombine.high %v6956, %v6958
      %v7364 = vunpack.c.l.s4 1983009808
      %v7365 = vunpack.c.0.s8 %v7364
      %v7366 = vlaneseq
      %v7367 = vshrl.u32 %v7366, 7
      %v7368 = vsub.s32 %v7365, %v7367
      %v7369 = vrot.slane %v7361, %v7368
      %v7371 = vunpack.c.l.s4 1983009808
      %v7372 = vunpack.c.0.s8 %v7371
      %v7373 = vlaneseq
      %v7374 = vshrl.u32 %v7373, 7
      %v7375 = vsub.s32 %v7372, %v7374
      %v7376 = vrot.slane %v7362, %v7375
      %v7377 = vcombine.low %v7321, %v7337
      %v7378 = vcombine.high %v7321, %v7337
      %v7380 = vunpack.c.l.s4 1934713408
      %v7381 = vunpack.c.0.s8 %v7380
      %v7382 = vlaneseq
      %v7383 = vshrl.u32 %v7382, 7
      %v7384 = vsub.s32 %v7381, %v7383
      %v7385 = vrot.slane %v7377, %v7384
      %v7387 = vunpack.c.l.s4 1934713408
      %v7388 = vunpack.c.0.s8 %v7387
      %v7389 = vlaneseq
      %v7390 = vshrl.u32 %v7389, 7
      %v7391 = vsub.s32 %v7388, %v7390
      %v7392 = vrot.slane %v7378, %v7391
      %v7393 = vcombine.low %v7328, %v7344
      %v7395 = vunpack.c.l.s4 1934713408
      %v7396 = vunpack.c.0.s8 %v7395
      %v7397 = vlaneseq
      %v7398 = vshrl.u32 %v7397, 7
      %v7399 = vsub.s32 %v7396, %v7398
      %v7400 = vrot.slane %v7393, %v7399
      %v7401 = vcombine.low %v7353, %v7369
      %v7402 = vcombine.high %v7353, %v7369
      %v7404 = vunpack.c.l.s4 1934713408
      %v7405 = vunpack.c.0.s8 %v7404
      %v7406 = vlaneseq
      %v7407 = vshrl.u32 %v7406, 7
      %v7408 = vsub.s32 %v7405, %v7407
      %v7409 = vrot.slane %v7401, %v7408
      %v7411 = vunpack.c.l.s4 1934713408
      %v7412 = vunpack.c.0.s8 %v7411
      %v7413 = vlaneseq
      %v7414 = vshrl.u32 %v7413, 7
      %v7415 = vsub.s32 %v7412, %v7414
      %v7416 = vrot.slane %v7402, %v7415
      %v7417 = vcombine.low %v7360, %v7376
      %v7419 = vunpack.c.l.s4 1934713408
      %v7420 = vunpack.c.0.s8 %v7419
      %v7421 = vlaneseq
      %v7422 = vshrl.u32 %v7421, 7
      %v7423 = vsub.s32 %v7420, %v7422
      %v7424 = vrot.slane %v7417, %v7423
      %v7425 = vcombine.low %v7385, %v7409
      %v7426 = vcombine.high %v7385, %v7409
      %v7427 = vcombine.low %v7392, %v7416
      %v7428 = vcombine.high %v7392, %v7416
      %v7429 = vcombine.low %v7400, %v7424
      %v7430 = vcombine.high %v7400, %v7424
      %v7433 = vpack.i.b16 %v7189, %v7071
      %v7434 = vshrl.u32 %v7071, 16
      %v7435 = vshrl.u32 %v7189, 16
      %v7436 = vpack.i.b16 %v7435, %v7434
      %v7439 = vpack.i.b16 %v7190, %v7072
      %v7440 = vshrl.u32 %v7072, 16
      %v7441 = vshrl.u32 %v7190, 16
      %v7442 = vpack.i.b16 %v7441, %v7440
      %v7445 = vpack.i.b16 %v7191, %v7073
      %v7446 = vshrl.u32 %v7073, 16
      %v7447 = vshrl.u32 %v7191, 16
      %v7448 = vpack.i.b16 %v7447, %v7446
      %v7451 = vpack.i.b16 %v7192, %v7074
      %v7452 = vshrl.u32 %v7074, 16
      %v7453 = vshrl.u32 %v7192, 16
      %v7454 = vpack.i.b16 %v7453, %v7452
      %v7457 = vpack.i.b16 %v7193, %v7075
      %v7458 = vshrl.u32 %v7075, 16
      %v7459 = vshrl.u32 %v7193, 16
      %v7460 = vpack.i.b16 %v7459, %v7458
      %v7463 = vpack.i.b16 %v7194, %v7076
      %v7464 = vshrl.u32 %v7076, 16
      %v7465 = vshrl.u32 %v7194, 16
      %v7466 = vpack.i.b16 %v7465, %v7464
      %v7469 = vpack.i.b16 %v7425, %v7307
      %v7470 = vshrl.u32 %v7307, 16
      %v7471 = vshrl.u32 %v7425, 16
      %v7472 = vpack.i.b16 %v7471, %v7470
      %v7475 = vpack.i.b16 %v7426, %v7308
      %v7476 = vshrl.u32 %v7308, 16
      %v7477 = vshrl.u32 %v7426, 16
      %v7478 = vpack.i.b16 %v7477, %v7476
      %v7481 = vpack.i.b16 %v7427, %v7309
      %v7482 = vshrl.u32 %v7309, 16
      %v7483 = vshrl.u32 %v7427, 16
      %v7484 = vpack.i.b16 %v7483, %v7482
      %v7487 = vpack.i.b16 %v7428, %v7310
      %v7488 = vshrl.u32 %v7310, 16
      %v7489 = vshrl.u32 %v7428, 16
      %v7490 = vpack.i.b16 %v7489, %v7488
      %v7493 = vpack.i.b16 %v7429, %v7311
      %v7494 = vshrl.u32 %v7311, 16
      %v7495 = vshrl.u32 %v7429, 16
      %v7496 = vpack.i.b16 %v7495, %v7494
      %v7499 = vpack.i.b16 %v7430, %v7312
      %v7500 = vshrl.u32 %v7312, 16
      %v7501 = vshrl.u32 %v7430, 16
      %v7502 = vpack.i.b16 %v7501, %v7500
      %v7503 = vunpack.c.l.b16 %v7433
      %v7504 = vunpack.c.h.b16 %v7433
      %v7505 = vunpack.c.l.b16 %v7469
      %v7506 = vunpack.c.h.b16 %v7469
      %v7507 = vunpack.c.l.b16 %v7436
      %v7508 = vunpack.c.h.b16 %v7436
      %v7509 = vunpack.c.l.b16 %v7472
      %v7510 = vunpack.c.h.b16 %v7472
      %v7511 = vunpack.c.l.b16 %v7439
      %v7512 = vunpack.c.h.b16 %v7439
      %v7513 = vunpack.c.l.b16 %v7475
      %v7514 = vunpack.c.h.b16 %v7475
      %v7515 = vunpack.c.l.b16 %v7442
      %v7516 = vunpack.c.h.b16 %v7442
      %v7517 = vunpack.c.l.b16 %v7478
      %v7518 = vunpack.c.h.b16 %v7478
      %v7519 = vpack.c.b16 %v7503, %v7503
      %v7520 = vpack.c.b16 %v7504, %v7504
      %v7521 = vpack.c.b16 %v7505, %v7505
      %v7522 = vpack.c.b16 %v7506, %v7506
      %v7523 = vpack.c.b16 %v7507, %v7507
      %v7524 = vpack.c.b16 %v7508, %v7508
      %v7525 = vpack.c.b16 %v7509, %v7509
      %v7526 = vpack.c.b16 %v7510, %v7510
      %v7527 = vpack.c.b16 %v7511, %v7511
      %v7528 = vpack.c.b16 %v7512, %v7512
      %v7529 = vpack.c.b16 %v7513, %v7513
      %v7530 = vpack.c.b16 %v7514, %v7514
      %v7531 = vpack.c.b16 %v7515, %v7515
      %v7532 = vpack.c.b16 %v7516, %v7516
      %v7533 = vpack.c.b16 %v7517, %v7517
      %v7534 = vpack.c.b16 %v7518, %v7518
      %v7535 = vunpack.c.l.b16 %v7445
      %v7536 = vunpack.c.h.b16 %v7445
      %v7537 = vunpack.c.l.b16 %v7481
      %v7538 = vunpack.c.h.b16 %v7481
      %v7539 = vunpack.c.l.b16 %v7448
      %v7540 = vunpack.c.h.b16 %v7448
      %v7541 = vunpack.c.l.b16 %v7484
      %v7542 = vunpack.c.h.b16 %v7484
      %v7543 = vunpack.c.l.b16 %v7451
      %v7544 = vunpack.c.h.b16 %v7451
      %v7545 = vunpack.c.l.b16 %v7487
      %v7546 = vunpack.c.h.b16 %v7487
      %v7547 = vunpack.c.l.b16 %v7454
      %v7548 = vunpack.c.h.b16 %v7454
      %v7549 = vunpack.c.l.b16 %v7490
      %v7550 = vunpack.c.h.b16 %v7490
      %v7551 = vpack.c.b16 %v7535, %v7535
      %v7552 = vpack.c.b16 %v7536, %v7536
      %v7553 = vpack.c.b16 %v7537, %v7537
      %v7554 = vpack.c.b16 %v7538, %v7538
      %v7555 = vpack.c.b16 %v7539, %v7539
      %v7556 = vpack.c.b16 %v7540, %v7540
      %v7557 = vpack.c.b16 %v7541, %v7541
      %v7558 = vpack.c.b16 %v7542, %v7542
      %v7559 = vpack.c.b16 %v7543, %v7543
      %v7560 = vpack.c.b16 %v7544, %v7544
      %v7561 = vpack.c.b16 %v7545, %v7545
      %v7562 = vpack.c.b16 %v7546, %v7546
      %v7563 = vpack.c.b16 %v7547, %v7547
      %v7564 = vpack.c.b16 %v7548, %v7548
      %v7565 = vpack.c.b16 %v7549, %v7549
      %v7566 = vpack.c.b16 %v7550, %v7550
      %v7567 = vunpack.c.l.b16 %v7457
      %v7568 = vunpack.c.h.b16 %v7457
      %v7569 = vunpack.c.l.b16 %v7493
      %v7570 = vunpack.c.h.b16 %v7493
      %v7571 = vunpack.c.l.b16 %v7460
      %v7572 = vunpack.c.h.b16 %v7460
      %v7573 = vunpack.c.l.b16 %v7496
      %v7574 = vunpack.c.h.b16 %v7496
      %v7575 = vunpack.c.l.b16 %v7463
      %v7576 = vunpack.c.h.b16 %v7463
      %v7577 = vunpack.c.l.b16 %v7499
      %v7578 = vunpack.c.h.b16 %v7499
      %v7579 = vunpack.c.l.b16 %v7466
      %v7580 = vunpack.c.h.b16 %v7466
      %v7581 = vunpack.c.l.b16 %v7502
      %v7582 = vunpack.c.h.b16 %v7502
      %v7583 = vpack.c.b16 %v7567, %v7567
      %v7584 = vpack.c.b16 %v7568, %v7568
      %v7585 = vpack.c.b16 %v7569, %v7569
      %v7586 = vpack.c.b16 %v7570, %v7570
      %v7587 = vpack.c.b16 %v7571, %v7571
      %v7588 = vpack.c.b16 %v7572, %v7572
      %v7589 = vpack.c.b16 %v7573, %v7573
      %v7590 = vpack.c.b16 %v7574, %v7574
      %v7591 = vpack.c.b16 %v7575, %v7575
      %v7592 = vpack.c.b16 %v7576, %v7576
      %v7593 = vpack.c.b16 %v7577, %v7577
      %v7594 = vpack.c.b16 %v7578, %v7578
      %v7595 = vpack.c.b16 %v7579, %v7579
      %v7596 = vpack.c.b16 %v7580, %v7580
      %v7597 = vpack.c.b16 %v7581, %v7581
      %v7598 = vpack.c.b16 %v7582, %v7582
      %v7600 = vsel %vm401, %v7519, 0
      %v7603 = vsel %vm401, %v7551, 0
      %7605 = vmatprep.subr.bf16.mxu0 0
      %7606 = vmatpush1.bf16.xpose.msra.mxu0 %v7603
      %7607 = vmatprep.subr.bf16.mxu0 0
      %7608 = vmatpush1.bf16.xpose.msra.mxu0 0
      %7609 = vmatprep.subr.bf16.mxu0 0
      %7610 = vmatpush1.bf16.xpose.msra.mxu0 0
      %7611 = vmatprep.subr.bf16.mxu0 0
      %7612 = vmatpush1.bf16.xpose.msra.mxu0 0
      %7613 = vmatprep.subr.bf16.mxu0 0
      %7614 = vmatpush1.bf16.xpose.msra.mxu0 0
      %7615 = vmatprep.subr.bf16.mxu0 0
      %7616 = vmatpush1.bf16.xpose.msra.mxu0 0
      %7617 = vmatprep.subr.bf16.mxu0 0
      %7618 = vmatpush1.bf16.xpose.msra.mxu0 0
      %7619 = vmatprep.subr.bf16.mxu0 0
      %7620 = vmatpush1.bf16.xpose.msra.mxu0 0
      %7621 = vmatprep.subr.bf16.mxu0 0
      %7622 = vmatpush1.bf16.xpose.msra.mxu0 0
      %7623 = vmatprep.subr.bf16.mxu0 0
      %7624 = vmatpush1.bf16.xpose.msra.mxu0 0
      %7625 = vmatprep.subr.bf16.mxu0 0
      %7626 = vmatpush1.bf16.xpose.msra.mxu0 0
      %7627 = vmatprep.subr.bf16.mxu0 0
      %7628 = vmatpush1.bf16.xpose.msra.mxu0 0
      %7629 = vmatprep.subr.bf16.mxu0 0
      %7630 = vmatpush1.bf16.xpose.msra.mxu0 0
      %7631 = vmatprep.subr.bf16.mxu0 0
      %7632 = vmatpush1.bf16.xpose.msra.mxu0 0
      %7633 = vmatprep.subr.bf16.mxu0 0
      %7634 = vmatpush1.bf16.xpose.msra.mxu0 0
      %7635 = vmatprep.subr.bf16.mxu0 0
      %7636 = vmatpush1.bf16.xpose.msra.mxu0 0
      %7637 = vmatprep.mubr.bf16.mxu0 0
      %7638 = vmatmul.mubr.bf16.gmra.mrb[0].mxu0 %v7600
      %v7639 = vpop.f32.mrb[0].mxu0
      %v7640 = vadd.f32 0.0, %v7639
      %v7641 = vpop.f32.mrb[0].mxu0
      %v7642 = vpop.f32.mrb[0].mxu0
      %v7643 = vpop.f32.mrb[0].mxu0
      %7644 = vdwg.mxu0
      %v7646 = vsel %vm401, %v7520, 0
      %v7649 = vsel %vm401, %v7552, 0
      %7651 = vmatprep.subr.bf16.mxu0 0
      %7652 = vmatpush1.bf16.xpose.msra.mxu0 %v7649
      %7653 = vmatprep.subr.bf16.mxu0 0
      %7654 = vmatpush1.bf16.xpose.msra.mxu0 0
      %7655 = vmatprep.subr.bf16.mxu0 0
      %7656 = vmatpush1.bf16.xpose.msra.mxu0 0
      %7657 = vmatprep.subr.bf16.mxu0 0
      %7658 = vmatpush1.bf16.xpose.msra.mxu0 0
      %7659 = vmatprep.subr.bf16.mxu0 0
      %7660 = vmatpush1.bf16.xpose.msra.mxu0 0
      %7661 = vmatprep.subr.bf16.mxu0 0
      %7662 = vmatpush1.bf16.xpose.msra.mxu0 0
      %7663 = vmatprep.subr.bf16.mxu0 0
      %7664 = vmatpush1.bf16.xpose.msra.mxu0 0
      %7665 = vmatprep.subr.bf16.mxu0 0
      %7666 = vmatpush1.bf16.xpose.msra.mxu0 0
      %7667 = vmatprep.subr.bf16.mxu0 0
      %7668 = vmatpush1.bf16.xpose.msra.mxu0 0
      %7669 = vmatprep.subr.bf16.mxu0 0
      %7670 = vmatpush1.bf16.xpose.msra.mxu0 0
      %7671 = vmatprep.subr.bf16.mxu0 0
      %7672 = vmatpush1.bf16.xpose.msra.mxu0 0
      %7673 = vmatprep.subr.bf16.mxu0 0
      %7674 = vmatpush1.bf16.xpose.msra.mxu0 0
      %7675 = vmatprep.subr.bf16.mxu0 0
      %7676 = vmatpush1.bf16.xpose.msra.mxu0 0
      %7677 = vmatprep.subr.bf16.mxu0 0
      %7678 = vmatpush1.bf16.xpose.msra.mxu0 0
      %7679 = vmatprep.subr.bf16.mxu0 0
      %7680 = vmatpush1.bf16.xpose.msra.mxu0 0
      %7681 = vmatprep.subr.bf16.mxu0 0
      %7682 = vmatpush1.bf16.xpose.msra.mxu0 0
      %7683 = vmatprep.mubr.bf16.mxu0 0
      %7684 = vmatmul.mubr.bf16.gmra.mrb[0].mxu0 %v7646
      %v7685 = vpop.f32.mrb[0].mxu0
      %v7686 = vadd.f32 0.0, %v7685
      %v7687 = vpop.f32.mrb[0].mxu0
      %v7688 = vpop.f32.mrb[0].mxu0
      %v7689 = vpop.f32.mrb[0].mxu0
      %7690 = vdwg.mxu0
      %v7692 = vsel %vm401, %v7521, 0
      %v7695 = vsel %vm401, %v7553, 0
      %7697 = vmatprep.subr.bf16.mxu0 0
      %7698 = vmatpush1.bf16.xpose.msra.mxu0 %v7695
      %7699 = vmatprep.subr.bf16.mxu0 0
      %7700 = vmatpush1.bf16.xpose.msra.mxu0 0
      %7701 = vmatprep.subr.bf16.mxu0 0
      %7702 = vmatpush1.bf16.xpose.msra.mxu0 0
      %7703 = vmatprep.subr.bf16.mxu0 0
      %7704 = vmatpush1.bf16.xpose.msra.mxu0 0
      %7705 = vmatprep.subr.bf16.mxu0 0
      %7706 = vmatpush1.bf16.xpose.msra.mxu0 0
      %7707 = vmatprep.subr.bf16.mxu0 0
      %7708 = vmatpush1.bf16.xpose.msra.mxu0 0
      %7709 = vmatprep.subr.bf16.mxu0 0
      %7710 = vmatpush1.bf16.xpose.msra.mxu0 0
      %7711 = vmatprep.subr.bf16.mxu0 0
      %7712 = vmatpush1.bf16.xpose.msra.mxu0 0
      %7713 = vmatprep.subr.bf16.mxu0 0
      %7714 = vmatpush1.bf16.xpose.msra.mxu0 0
      %7715 = vmatprep.subr.bf16.mxu0 0
      %7716 = vmatpush1.bf16.xpose.msra.mxu0 0
      %7717 = vmatprep.subr.bf16.mxu0 0
      %7718 = vmatpush1.bf16.xpose.msra.mxu0 0
      %7719 = vmatprep.subr.bf16.mxu0 0
      %7720 = vmatpush1.bf16.xpose.msra.mxu0 0
      %7721 = vmatprep.subr.bf16.mxu0 0
      %7722 = vmatpush1.bf16.xpose.msra.mxu0 0
      %7723 = vmatprep.subr.bf16.mxu0 0
      %7724 = vmatpush1.bf16.xpose.msra.mxu0 0
      %7725 = vmatprep.subr.bf16.mxu0 0
      %7726 = vmatpush1.bf16.xpose.msra.mxu0 0
      %7727 = vmatprep.subr.bf16.mxu0 0
      %7728 = vmatpush1.bf16.xpose.msra.mxu0 0
      %7729 = vmatprep.mubr.bf16.mxu0 0
      %7730 = vmatmul.mubr.bf16.gmra.mrb[0].mxu0 %v7692
      %v7731 = vpop.f32.mrb[0].mxu0
      %v7732 = vadd.f32 0.0, %v7731
      %v7733 = vpop.f32.mrb[0].mxu0
      %v7734 = vpop.f32.mrb[0].mxu0
      %v7735 = vpop.f32.mrb[0].mxu0
      %7736 = vdwg.mxu0
      %v7738 = vsel %vm401, %v7522, 0
      %v7741 = vsel %vm401, %v7554, 0
      %7743 = vmatprep.subr.bf16.mxu0 0
      %7744 = vmatpush1.bf16.xpose.msra.mxu0 %v7741
      %7745 = vmatprep.subr.bf16.mxu0 0
      %7746 = vmatpush1.bf16.xpose.msra.mxu0 0
      %7747 = vmatprep.subr.bf16.mxu0 0
      %7748 = vmatpush1.bf16.xpose.msra.mxu0 0
      %7749 = vmatprep.subr.bf16.mxu0 0
      %7750 = vmatpush1.bf16.xpose.msra.mxu0 0
      %7751 = vmatprep.subr.bf16.mxu0 0
      %7752 = vmatpush1.bf16.xpose.msra.mxu0 0
      %7753 = vmatprep.subr.bf16.mxu0 0
      %7754 = vmatpush1.bf16.xpose.msra.mxu0 0
      %7755 = vmatprep.subr.bf16.mxu0 0
      %7756 = vmatpush1.bf16.xpose.msra.mxu0 0
      %7757 = vmatprep.subr.bf16.mxu0 0
      %7758 = vmatpush1.bf16.xpose.msra.mxu0 0
      %7759 = vmatprep.subr.bf16.mxu0 0
      %7760 = vmatpush1.bf16.xpose.msra.mxu0 0
      %7761 = vmatprep.subr.bf16.mxu0 0
      %7762 = vmatpush1.bf16.xpose.msra.mxu0 0
      %7763 = vmatprep.subr.bf16.mxu0 0
      %7764 = vmatpush1.bf16.xpose.msra.mxu0 0
      %7765 = vmatprep.subr.bf16.mxu0 0
      %7766 = vmatpush1.bf16.xpose.msra.mxu0 0
      %7767 = vmatprep.subr.bf16.mxu0 0
      %7768 = vmatpush1.bf16.xpose.msra.mxu0 0
      %7769 = vmatprep.subr.bf16.mxu0 0
      %7770 = vmatpush1.bf16.xpose.msra.mxu0 0
      %7771 = vmatprep.subr.bf16.mxu0 0
      %7772 = vmatpush1.bf16.xpose.msra.mxu0 0
      %7773 = vmatprep.subr.bf16.mxu0 0
      %7774 = vmatpush1.bf16.xpose.msra.mxu0 0
      %7775 = vmatprep.mubr.bf16.mxu0 0
      %7776 = vmatmul.mubr.bf16.gmra.mrb[0].mxu0 %v7738
      %v7777 = vpop.f32.mrb[0].mxu0
      %v7778 = vadd.f32 0.0, %v7777
      %v7779 = vpop.f32.mrb[0].mxu0
      %v7780 = vpop.f32.mrb[0].mxu0
      %v7781 = vpop.f32.mrb[0].mxu0
      %7782 = vdwg.mxu0
      %v7784 = vsel %vm401, %v7523, 0
      %v7787 = vsel %vm401, %v7555, 0
      %7789 = vmatprep.subr.bf16.mxu0 0
      %7790 = vmatpush1.bf16.xpose.msra.mxu0 %v7787
      %7791 = vmatprep.subr.bf16.mxu0 0
      %7792 = vmatpush1.bf16.xpose.msra.mxu0 0
      %7793 = vmatprep.subr.bf16.mxu0 0
      %7794 = vmatpush1.bf16.xpose.msra.mxu0 0
      %7795 = vmatprep.subr.bf16.mxu0 0
      %7796 = vmatpush1.bf16.xpose.msra.mxu0 0
      %7797 = vmatprep.subr.bf16.mxu0 0
      %7798 = vmatpush1.bf16.xpose.msra.mxu0 0
      %7799 = vmatprep.subr.bf16.mxu0 0
      %7800 = vmatpush1.bf16.xpose.msra.mxu0 0
      %7801 = vmatprep.subr.bf16.mxu0 0
      %7802 = vmatpush1.bf16.xpose.msra.mxu0 0
      %7803 = vmatprep.subr.bf16.mxu0 0
      %7804 = vmatpush1.bf16.xpose.msra.mxu0 0
      %7805 = vmatprep.subr.bf16.mxu0 0
      %7806 = vmatpush1.bf16.xpose.msra.mxu0 0
      %7807 = vmatprep.subr.bf16.mxu0 0
      %7808 = vmatpush1.bf16.xpose.msra.mxu0 0
      %7809 = vmatprep.subr.bf16.mxu0 0
      %7810 = vmatpush1.bf16.xpose.msra.mxu0 0
      %7811 = vmatprep.subr.bf16.mxu0 0
      %7812 = vmatpush1.bf16.xpose.msra.mxu0 0
      %7813 = vmatprep.subr.bf16.mxu0 0
      %7814 = vmatpush1.bf16.xpose.msra.mxu0 0
      %7815 = vmatprep.subr.bf16.mxu0 0
      %7816 = vmatpush1.bf16.xpose.msra.mxu0 0
      %7817 = vmatprep.subr.bf16.mxu0 0
      %7818 = vmatpush1.bf16.xpose.msra.mxu0 0
      %7819 = vmatprep.subr.bf16.mxu0 0
      %7820 = vmatpush1.bf16.xpose.msra.mxu0 0
      %7821 = vmatprep.mubr.bf16.mxu0 0
      %7822 = vmatmul.mubr.bf16.gmra.mrb[0].mxu0 %v7784
      %v7823 = vpop.f32.mrb[0].mxu0
      %v7824 = vadd.f32 0.0, %v7823
      %v7825 = vpop.f32.mrb[0].mxu0
      %v7826 = vpop.f32.mrb[0].mxu0
      %v7827 = vpop.f32.mrb[0].mxu0
      %7828 = vdwg.mxu0
      %v7830 = vsel %vm401, %v7524, 0
      %v7833 = vsel %vm401, %v7556, 0
      %7835 = vmatprep.subr.bf16.mxu0 0
      %7836 = vmatpush1.bf16.xpose.msra.mxu0 %v7833
      %7837 = vmatprep.subr.bf16.mxu0 0
      %7838 = vmatpush1.bf16.xpose.msra.mxu0 0
      %7839 = vmatprep.subr.bf16.mxu0 0
      %7840 = vmatpush1.bf16.xpose.msra.mxu0 0
      %7841 = vmatprep.subr.bf16.mxu0 0
      %7842 = vmatpush1.bf16.xpose.msra.mxu0 0
      %7843 = vmatprep.subr.bf16.mxu0 0
      %7844 = vmatpush1.bf16.xpose.msra.mxu0 0
      %7845 = vmatprep.subr.bf16.mxu0 0
      %7846 = vmatpush1.bf16.xpose.msra.mxu0 0
      %7847 = vmatprep.subr.bf16.mxu0 0
      %7848 = vmatpush1.bf16.xpose.msra.mxu0 0
      %7849 = vmatprep.subr.bf16.mxu0 0
      %7850 = vmatpush1.bf16.xpose.msra.mxu0 0
      %7851 = vmatprep.subr.bf16.mxu0 0
      %7852 = vmatpush1.bf16.xpose.msra.mxu0 0
      %7853 = vmatprep.subr.bf16.mxu0 0
      %7854 = vmatpush1.bf16.xpose.msra.mxu0 0
      %7855 = vmatprep.subr.bf16.mxu0 0
      %7856 = vmatpush1.bf16.xpose.msra.mxu0 0
      %7857 = vmatprep.subr.bf16.mxu0 0
      %7858 = vmatpush1.bf16.xpose.msra.mxu0 0
      %7859 = vmatprep.subr.bf16.mxu0 0
      %7860 = vmatpush1.bf16.xpose.msra.mxu0 0
      %7861 = vmatprep.subr.bf16.mxu0 0
      %7862 = vmatpush1.bf16.xpose.msra.mxu0 0
      %7863 = vmatprep.subr.bf16.mxu0 0
      %7864 = vmatpush1.bf16.xpose.msra.mxu0 0
      %7865 = vmatprep.subr.bf16.mxu0 0
      %7866 = vmatpush1.bf16.xpose.msra.mxu0 0
      %7867 = vmatprep.mubr.bf16.mxu0 0
      %7868 = vmatmul.mubr.bf16.gmra.mrb[0].mxu0 %v7830
      %v7869 = vpop.f32.mrb[0].mxu0
      %v7870 = vadd.f32 0.0, %v7869
      %v7871 = vpop.f32.mrb[0].mxu0
      %v7872 = vpop.f32.mrb[0].mxu0
      %v7873 = vpop.f32.mrb[0].mxu0
      %7874 = vdwg.mxu0
      %v7876 = vsel %vm401, %v7525, 0
      %v7879 = vsel %vm401, %v7557, 0
      %7881 = vmatprep.subr.bf16.mxu0 0
      %7882 = vmatpush1.bf16.xpose.msra.mxu0 %v7879
      %7883 = vmatprep.subr.bf16.mxu0 0
      %7884 = vmatpush1.bf16.xpose.msra.mxu0 0
      %7885 = vmatprep.subr.bf16.mxu0 0
      %7886 = vmatpush1.bf16.xpose.msra.mxu0 0
      %7887 = vmatprep.subr.bf16.mxu0 0
      %7888 = vmatpush1.bf16.xpose.msra.mxu0 0
      %7889 = vmatprep.subr.bf16.mxu0 0
      %7890 = vmatpush1.bf16.xpose.msra.mxu0 0
      %7891 = vmatprep.subr.bf16.mxu0 0
      %7892 = vmatpush1.bf16.xpose.msra.mxu0 0
      %7893 = vmatprep.subr.bf16.mxu0 0
      %7894 = vmatpush1.bf16.xpose.msra.mxu0 0
      %7895 = vmatprep.subr.bf16.mxu0 0
      %7896 = vmatpush1.bf16.xpose.msra.mxu0 0
      %7897 = vmatprep.subr.bf16.mxu0 0
      %7898 = vmatpush1.bf16.xpose.msra.mxu0 0
      %7899 = vmatprep.subr.bf16.mxu0 0
      %7900 = vmatpush1.bf16.xpose.msra.mxu0 0
      %7901 = vmatprep.subr.bf16.mxu0 0
      %7902 = vmatpush1.bf16.xpose.msra.mxu0 0
      %7903 = vmatprep.subr.bf16.mxu0 0
      %7904 = vmatpush1.bf16.xpose.msra.mxu0 0
      %7905 = vmatprep.subr.bf16.mxu0 0
      %7906 = vmatpush1.bf16.xpose.msra.mxu0 0
      %7907 = vmatprep.subr.bf16.mxu0 0
      %7908 = vmatpush1.bf16.xpose.msra.mxu0 0
      %7909 = vmatprep.subr.bf16.mxu0 0
      %7910 = vmatpush1.bf16.xpose.msra.mxu0 0
      %7911 = vmatprep.subr.bf16.mxu0 0
      %7912 = vmatpush1.bf16.xpose.msra.mxu0 0
      %7913 = vmatprep.mubr.bf16.mxu0 0
      %7914 = vmatmul.mubr.bf16.gmra.mrb[0].mxu0 %v7876
      %v7915 = vpop.f32.mrb[0].mxu0
      %v7916 = vadd.f32 0.0, %v7915
      %v7917 = vpop.f32.mrb[0].mxu0
      %v7918 = vpop.f32.mrb[0].mxu0
      %v7919 = vpop.f32.mrb[0].mxu0
      %7920 = vdwg.mxu0
      %v7922 = vsel %vm401, %v7526, 0
      %v7925 = vsel %vm401, %v7558, 0
      %7927 = vmatprep.subr.bf16.mxu0 0
      %7928 = vmatpush1.bf16.xpose.msra.mxu0 %v7925
      %7929 = vmatprep.subr.bf16.mxu0 0
      %7930 = vmatpush1.bf16.xpose.msra.mxu0 0
      %7931 = vmatprep.subr.bf16.mxu0 0
      %7932 = vmatpush1.bf16.xpose.msra.mxu0 0
      %7933 = vmatprep.subr.bf16.mxu0 0
      %7934 = vmatpush1.bf16.xpose.msra.mxu0 0
      %7935 = vmatprep.subr.bf16.mxu0 0
      %7936 = vmatpush1.bf16.xpose.msra.mxu0 0
      %7937 = vmatprep.subr.bf16.mxu0 0
      %7938 = vmatpush1.bf16.xpose.msra.mxu0 0
      %7939 = vmatprep.subr.bf16.mxu0 0
      %7940 = vmatpush1.bf16.xpose.msra.mxu0 0
      %7941 = vmatprep.subr.bf16.mxu0 0
      %7942 = vmatpush1.bf16.xpose.msra.mxu0 0
      %7943 = vmatprep.subr.bf16.mxu0 0
      %7944 = vmatpush1.bf16.xpose.msra.mxu0 0
      %7945 = vmatprep.subr.bf16.mxu0 0
      %7946 = vmatpush1.bf16.xpose.msra.mxu0 0
      %7947 = vmatprep.subr.bf16.mxu0 0
      %7948 = vmatpush1.bf16.xpose.msra.mxu0 0
      %7949 = vmatprep.subr.bf16.mxu0 0
      %7950 = vmatpush1.bf16.xpose.msra.mxu0 0
      %7951 = vmatprep.subr.bf16.mxu0 0
      %7952 = vmatpush1.bf16.xpose.msra.mxu0 0
      %7953 = vmatprep.subr.bf16.mxu0 0
      %7954 = vmatpush1.bf16.xpose.msra.mxu0 0
      %7955 = vmatprep.subr.bf16.mxu0 0
      %7956 = vmatpush1.bf16.xpose.msra.mxu0 0
      %7957 = vmatprep.subr.bf16.mxu0 0
      %7958 = vmatpush1.bf16.xpose.msra.mxu0 0
      %7959 = vmatprep.mubr.bf16.mxu0 0
      %7960 = vmatmul.mubr.bf16.gmra.mrb[0].mxu0 %v7922
      %v7961 = vpop.f32.mrb[0].mxu0
      %v7962 = vadd.f32 0.0, %v7961
      %v7963 = vpop.f32.mrb[0].mxu0
      %v7964 = vpop.f32.mrb[0].mxu0
      %v7965 = vpop.f32.mrb[0].mxu0
      %7966 = vdwg.mxu0
      %v7968 = vsel %vm401, %v7527, 0
      %v7971 = vsel %vm401, %v7559, 0
      %7973 = vmatprep.subr.bf16.mxu0 0
      %7974 = vmatpush1.bf16.xpose.msra.mxu0 %v7971
      %7975 = vmatprep.subr.bf16.mxu0 0
      %7976 = vmatpush1.bf16.xpose.msra.mxu0 0
      %7977 = vmatprep.subr.bf16.mxu0 0
      %7978 = vmatpush1.bf16.xpose.msra.mxu0 0
      %7979 = vmatprep.subr.bf16.mxu0 0
      %7980 = vmatpush1.bf16.xpose.msra.mxu0 0
      %7981 = vmatprep.subr.bf16.mxu0 0
      %7982 = vmatpush1.bf16.xpose.msra.mxu0 0
      %7983 = vmatprep.subr.bf16.mxu0 0
      %7984 = vmatpush1.bf16.xpose.msra.mxu0 0
      %7985 = vmatprep.subr.bf16.mxu0 0
      %7986 = vmatpush1.bf16.xpose.msra.mxu0 0
      %7987 = vmatprep.subr.bf16.mxu0 0
      %7988 = vmatpush1.bf16.xpose.msra.mxu0 0
      %7989 = vmatprep.subr.bf16.mxu0 0
      %7990 = vmatpush1.bf16.xpose.msra.mxu0 0
      %7991 = vmatprep.subr.bf16.mxu0 0
      %7992 = vmatpush1.bf16.xpose.msra.mxu0 0
      %7993 = vmatprep.subr.bf16.mxu0 0
      %7994 = vmatpush1.bf16.xpose.msra.mxu0 0
      %7995 = vmatprep.subr.bf16.mxu0 0
      %7996 = vmatpush1.bf16.xpose.msra.mxu0 0
      %7997 = vmatprep.subr.bf16.mxu0 0
      %7998 = vmatpush1.bf16.xpose.msra.mxu0 0
      %7999 = vmatprep.subr.bf16.mxu0 0
      %8000 = vmatpush1.bf16.xpose.msra.mxu0 0
      %8001 = vmatprep.subr.bf16.mxu0 0
      %8002 = vmatpush1.bf16.xpose.msra.mxu0 0
      %8003 = vmatprep.subr.bf16.mxu0 0
      %8004 = vmatpush1.bf16.xpose.msra.mxu0 0
      %8005 = vmatprep.mubr.bf16.mxu0 0
      %8006 = vmatmul.mubr.bf16.gmra.mrb[0].mxu0 %v7968
      %v8007 = vpop.f32.mrb[0].mxu0
      %v8008 = vadd.f32 0.0, %v8007
      %v8009 = vpop.f32.mrb[0].mxu0
      %v8010 = vpop.f32.mrb[0].mxu0
      %v8011 = vpop.f32.mrb[0].mxu0
      %8012 = vdwg.mxu0
      %v8014 = vsel %vm401, %v7528, 0
      %v8017 = vsel %vm401, %v7560, 0
      %8019 = vmatprep.subr.bf16.mxu0 0
      %8020 = vmatpush1.bf16.xpose.msra.mxu0 %v8017
      %8021 = vmatprep.subr.bf16.mxu0 0
      %8022 = vmatpush1.bf16.xpose.msra.mxu0 0
      %8023 = vmatprep.subr.bf16.mxu0 0
      %8024 = vmatpush1.bf16.xpose.msra.mxu0 0
      %8025 = vmatprep.subr.bf16.mxu0 0
      %8026 = vmatpush1.bf16.xpose.msra.mxu0 0
      %8027 = vmatprep.subr.bf16.mxu0 0
      %8028 = vmatpush1.bf16.xpose.msra.mxu0 0
      %8029 = vmatprep.subr.bf16.mxu0 0
      %8030 = vmatpush1.bf16.xpose.msra.mxu0 0
      %8031 = vmatprep.subr.bf16.mxu0 0
      %8032 = vmatpush1.bf16.xpose.msra.mxu0 0
      %8033 = vmatprep.subr.bf16.mxu0 0
      %8034 = vmatpush1.bf16.xpose.msra.mxu0 0
      %8035 = vmatprep.subr.bf16.mxu0 0
      %8036 = vmatpush1.bf16.xpose.msra.mxu0 0
      %8037 = vmatprep.subr.bf16.mxu0 0
      %8038 = vmatpush1.bf16.xpose.msra.mxu0 0
      %8039 = vmatprep.subr.bf16.mxu0 0
      %8040 = vmatpush1.bf16.xpose.msra.mxu0 0
      %8041 = vmatprep.subr.bf16.mxu0 0
      %8042 = vmatpush1.bf16.xpose.msra.mxu0 0
      %8043 = vmatprep.subr.bf16.mxu0 0
      %8044 = vmatpush1.bf16.xpose.msra.mxu0 0
      %8045 = vmatprep.subr.bf16.mxu0 0
      %8046 = vmatpush1.bf16.xpose.msra.mxu0 0
      %8047 = vmatprep.subr.bf16.mxu0 0
      %8048 = vmatpush1.bf16.xpose.msra.mxu0 0
      %8049 = vmatprep.subr.bf16.mxu0 0
      %8050 = vmatpush1.bf16.xpose.msra.mxu0 0
      %8051 = vmatprep.mubr.bf16.mxu0 0
      %8052 = vmatmul.mubr.bf16.gmra.mrb[0].mxu0 %v8014
      %v8053 = vpop.f32.mrb[0].mxu0
      %v8054 = vadd.f32 0.0, %v8053
      %v8055 = vpop.f32.mrb[0].mxu0
      %v8056 = vpop.f32.mrb[0].mxu0
      %v8057 = vpop.f32.mrb[0].mxu0
      %8058 = vdwg.mxu0
      %v8060 = vsel %vm401, %v7529, 0
      %v8063 = vsel %vm401, %v7561, 0
      %8065 = vmatprep.subr.bf16.mxu0 0
      %8066 = vmatpush1.bf16.xpose.msra.mxu0 %v8063
      %8067 = vmatprep.subr.bf16.mxu0 0
      %8068 = vmatpush1.bf16.xpose.msra.mxu0 0
      %8069 = vmatprep.subr.bf16.mxu0 0
      %8070 = vmatpush1.bf16.xpose.msra.mxu0 0
      %8071 = vmatprep.subr.bf16.mxu0 0
      %8072 = vmatpush1.bf16.xpose.msra.mxu0 0
      %8073 = vmatprep.subr.bf16.mxu0 0
      %8074 = vmatpush1.bf16.xpose.msra.mxu0 0
      %8075 = vmatprep.subr.bf16.mxu0 0
      %8076 = vmatpush1.bf16.xpose.msra.mxu0 0
      %8077 = vmatprep.subr.bf16.mxu0 0
      %8078 = vmatpush1.bf16.xpose.msra.mxu0 0
      %8079 = vmatprep.subr.bf16.mxu0 0
      %8080 = vmatpush1.bf16.xpose.msra.mxu0 0
      %8081 = vmatprep.subr.bf16.mxu0 0
      %8082 = vmatpush1.bf16.xpose.msra.mxu0 0
      %8083 = vmatprep.subr.bf16.mxu0 0
      %8084 = vmatpush1.bf16.xpose.msra.mxu0 0
      %8085 = vmatprep.subr.bf16.mxu0 0
      %8086 = vmatpush1.bf16.xpose.msra.mxu0 0
      %8087 = vmatprep.subr.bf16.mxu0 0
      %8088 = vmatpush1.bf16.xpose.msra.mxu0 0
      %8089 = vmatprep.subr.bf16.mxu0 0
      %8090 = vmatpush1.bf16.xpose.msra.mxu0 0
      %8091 = vmatprep.subr.bf16.mxu0 0
      %8092 = vmatpush1.bf16.xpose.msra.mxu0 0
      %8093 = vmatprep.subr.bf16.mxu0 0
      %8094 = vmatpush1.bf16.xpose.msra.mxu0 0
      %8095 = vmatprep.subr.bf16.mxu0 0
      %8096 = vmatpush1.bf16.xpose.msra.mxu0 0
      %8097 = vmatprep.mubr.bf16.mxu0 0
      %8098 = vmatmul.mubr.bf16.gmra.mrb[0].mxu0 %v8060
      %v8099 = vpop.f32.mrb[0].mxu0
      %v8100 = vadd.f32 0.0, %v8099
      %v8101 = vpop.f32.mrb[0].mxu0
      %v8102 = vpop.f32.mrb[0].mxu0
      %v8103 = vpop.f32.mrb[0].mxu0
      %8104 = vdwg.mxu0
      %v8106 = vsel %vm401, %v7530, 0
      %v8109 = vsel %vm401, %v7562, 0
      %8111 = vmatprep.subr.bf16.mxu0 0
      %8112 = vmatpush1.bf16.xpose.msra.mxu0 %v8109
      %8113 = vmatprep.subr.bf16.mxu0 0
      %8114 = vmatpush1.bf16.xpose.msra.mxu0 0
      %8115 = vmatprep.subr.bf16.mxu0 0
      %8116 = vmatpush1.bf16.xpose.msra.mxu0 0
      %8117 = vmatprep.subr.bf16.mxu0 0
      %8118 = vmatpush1.bf16.xpose.msra.mxu0 0
      %8119 = vmatprep.subr.bf16.mxu0 0
      %8120 = vmatpush1.bf16.xpose.msra.mxu0 0
      %8121 = vmatprep.subr.bf16.mxu0 0
      %8122 = vmatpush1.bf16.xpose.msra.mxu0 0
      %8123 = vmatprep.subr.bf16.mxu0 0
      %8124 = vmatpush1.bf16.xpose.msra.mxu0 0
      %8125 = vmatprep.subr.bf16.mxu0 0
      %8126 = vmatpush1.bf16.xpose.msra.mxu0 0
      %8127 = vmatprep.subr.bf16.mxu0 0
      %8128 = vmatpush1.bf16.xpose.msra.mxu0 0
      %8129 = vmatprep.subr.bf16.mxu0 0
      %8130 = vmatpush1.bf16.xpose.msra.mxu0 0
      %8131 = vmatprep.subr.bf16.mxu0 0
      %8132 = vmatpush1.bf16.xpose.msra.mxu0 0
      %8133 = vmatprep.subr.bf16.mxu0 0
      %8134 = vmatpush1.bf16.xpose.msra.mxu0 0
      %8135 = vmatprep.subr.bf16.mxu0 0
      %8136 = vmatpush1.bf16.xpose.msra.mxu0 0
      %8137 = vmatprep.subr.bf16.mxu0 0
      %8138 = vmatpush1.bf16.xpose.msra.mxu0 0
      %8139 = vmatprep.subr.bf16.mxu0 0
      %8140 = vmatpush1.bf16.xpose.msra.mxu0 0
      %8141 = vmatprep.subr.bf16.mxu0 0
      %8142 = vmatpush1.bf16.xpose.msra.mxu0 0
      %8143 = vmatprep.mubr.bf16.mxu0 0
      %8144 = vmatmul.mubr.bf16.gmra.mrb[0].mxu0 %v8106
      %v8145 = vpop.f32.mrb[0].mxu0
      %v8146 = vadd.f32 0.0, %v8145
      %v8147 = vpop.f32.mrb[0].mxu0
      %v8148 = vpop.f32.mrb[0].mxu0
      %v8149 = vpop.f32.mrb[0].mxu0
      %8150 = vdwg.mxu0
      %v8152 = vsel %vm401, %v7531, 0
      %v8155 = vsel %vm401, %v7563, 0
      %8157 = vmatprep.subr.bf16.mxu0 0
      %8158 = vmatpush1.bf16.xpose.msra.mxu0 %v8155
      %8159 = vmatprep.subr.bf16.mxu0 0
      %8160 = vmatpush1.bf16.xpose.msra.mxu0 0
      %8161 = vmatprep.subr.bf16.mxu0 0
      %8162 = vmatpush1.bf16.xpose.msra.mxu0 0
      %8163 = vmatprep.subr.bf16.mxu0 0
      %8164 = vmatpush1.bf16.xpose.msra.mxu0 0
      %8165 = vmatprep.subr.bf16.mxu0 0
      %8166 = vmatpush1.bf16.xpose.msra.mxu0 0
      %8167 = vmatprep.subr.bf16.mxu0 0
      %8168 = vmatpush1.bf16.xpose.msra.mxu0 0
      %8169 = vmatprep.subr.bf16.mxu0 0
      %8170 = vmatpush1.bf16.xpose.msra.mxu0 0
      %8171 = vmatprep.subr.bf16.mxu0 0
      %8172 = vmatpush1.bf16.xpose.msra.mxu0 0
      %8173 = vmatprep.subr.bf16.mxu0 0
      %8174 = vmatpush1.bf16.xpose.msra.mxu0 0
      %8175 = vmatprep.subr.bf16.mxu0 0
      %8176 = vmatpush1.bf16.xpose.msra.mxu0 0
      %8177 = vmatprep.subr.bf16.mxu0 0
      %8178 = vmatpush1.bf16.xpose.msra.mxu0 0
      %8179 = vmatprep.subr.bf16.mxu0 0
      %8180 = vmatpush1.bf16.xpose.msra.mxu0 0
      %8181 = vmatprep.subr.bf16.mxu0 0
      %8182 = vmatpush1.bf16.xpose.msra.mxu0 0
      %8183 = vmatprep.subr.bf16.mxu0 0
      %8184 = vmatpush1.bf16.xpose.msra.mxu0 0
      %8185 = vmatprep.subr.bf16.mxu0 0
      %8186 = vmatpush1.bf16.xpose.msra.mxu0 0
      %8187 = vmatprep.subr.bf16.mxu0 0
      %8188 = vmatpush1.bf16.xpose.msra.mxu0 0
      %8189 = vmatprep.mubr.bf16.mxu0 0
      %8190 = vmatmul.mubr.bf16.gmra.mrb[0].mxu0 %v8152
      %v8191 = vpop.f32.mrb[0].mxu0
      %v8192 = vadd.f32 0.0, %v8191
      %v8193 = vpop.f32.mrb[0].mxu0
      %v8194 = vpop.f32.mrb[0].mxu0
      %v8195 = vpop.f32.mrb[0].mxu0
      %8196 = vdwg.mxu0
      %v8198 = vsel %vm401, %v7532, 0
      %v8201 = vsel %vm401, %v7564, 0
      %8203 = vmatprep.subr.bf16.mxu0 0
      %8204 = vmatpush1.bf16.xpose.msra.mxu0 %v8201
      %8205 = vmatprep.subr.bf16.mxu0 0
      %8206 = vmatpush1.bf16.xpose.msra.mxu0 0
      %8207 = vmatprep.subr.bf16.mxu0 0
      %8208 = vmatpush1.bf16.xpose.msra.mxu0 0
      %8209 = vmatprep.subr.bf16.mxu0 0
      %8210 = vmatpush1.bf16.xpose.msra.mxu0 0
      %8211 = vmatprep.subr.bf16.mxu0 0
      %8212 = vmatpush1.bf16.xpose.msra.mxu0 0
      %8213 = vmatprep.subr.bf16.mxu0 0
      %8214 = vmatpush1.bf16.xpose.msra.mxu0 0
      %8215 = vmatprep.subr.bf16.mxu0 0
      %8216 = vmatpush1.bf16.xpose.msra.mxu0 0
      %8217 = vmatprep.subr.bf16.mxu0 0
      %8218 = vmatpush1.bf16.xpose.msra.mxu0 0
      %8219 = vmatprep.subr.bf16.mxu0 0
      %8220 = vmatpush1.bf16.xpose.msra.mxu0 0
      %8221 = vmatprep.subr.bf16.mxu0 0
      %8222 = vmatpush1.bf16.xpose.msra.mxu0 0
      %8223 = vmatprep.subr.bf16.mxu0 0
      %8224 = vmatpush1.bf16.xpose.msra.mxu0 0
      %8225 = vmatprep.subr.bf16.mxu0 0
      %8226 = vmatpush1.bf16.xpose.msra.mxu0 0
      %8227 = vmatprep.subr.bf16.mxu0 0
      %8228 = vmatpush1.bf16.xpose.msra.mxu0 0
      %8229 = vmatprep.subr.bf16.mxu0 0
      %8230 = vmatpush1.bf16.xpose.msra.mxu0 0
      %8231 = vmatprep.subr.bf16.mxu0 0
      %8232 = vmatpush1.bf16.xpose.msra.mxu0 0
      %8233 = vmatprep.subr.bf16.mxu0 0
      %8234 = vmatpush1.bf16.xpose.msra.mxu0 0
      %8235 = vmatprep.mubr.bf16.mxu0 0
      %8236 = vmatmul.mubr.bf16.gmra.mrb[0].mxu0 %v8198
      %v8237 = vpop.f32.mrb[0].mxu0
      %v8238 = vadd.f32 0.0, %v8237
      %v8239 = vpop.f32.mrb[0].mxu0
      %v8240 = vpop.f32.mrb[0].mxu0
      %v8241 = vpop.f32.mrb[0].mxu0
      %8242 = vdwg.mxu0
      %v8244 = vsel %vm401, %v7533, 0
      %v8247 = vsel %vm401, %v7565, 0
      %8249 = vmatprep.subr.bf16.mxu0 0
      %8250 = vmatpush1.bf16.xpose.msra.mxu0 %v8247
      %8251 = vmatprep.subr.bf16.mxu0 0
      %8252 = vmatpush1.bf16.xpose.msra.mxu0 0
      %8253 = vmatprep.subr.bf16.mxu0 0
      %8254 = vmatpush1.bf16.xpose.msra.mxu0 0
      %8255 = vmatprep.subr.bf16.mxu0 0
      %8256 = vmatpush1.bf16.xpose.msra.mxu0 0
      %8257 = vmatprep.subr.bf16.mxu0 0
      %8258 = vmatpush1.bf16.xpose.msra.mxu0 0
      %8259 = vmatprep.subr.bf16.mxu0 0
      %8260 = vmatpush1.bf16.xpose.msra.mxu0 0
      %8261 = vmatprep.subr.bf16.mxu0 0
      %8262 = vmatpush1.bf16.xpose.msra.mxu0 0
      %8263 = vmatprep.subr.bf16.mxu0 0
      %8264 = vmatpush1.bf16.xpose.msra.mxu0 0
      %8265 = vmatprep.subr.bf16.mxu0 0
      %8266 = vmatpush1.bf16.xpose.msra.mxu0 0
      %8267 = vmatprep.subr.bf16.mxu0 0
      %8268 = vmatpush1.bf16.xpose.msra.mxu0 0
      %8269 = vmatprep.subr.bf16.mxu0 0
      %8270 = vmatpush1.bf16.xpose.msra.mxu0 0
      %8271 = vmatprep.subr.bf16.mxu0 0
      %8272 = vmatpush1.bf16.xpose.msra.mxu0 0
      %8273 = vmatprep.subr.bf16.mxu0 0
      %8274 = vmatpush1.bf16.xpose.msra.mxu0 0
      %8275 = vmatprep.subr.bf16.mxu0 0
      %8276 = vmatpush1.bf16.xpose.msra.mxu0 0
      %8277 = vmatprep.subr.bf16.mxu0 0
      %8278 = vmatpush1.bf16.xpose.msra.mxu0 0
      %8279 = vmatprep.subr.bf16.mxu0 0
      %8280 = vmatpush1.bf16.xpose.msra.mxu0 0
      %8281 = vmatprep.mubr.bf16.mxu0 0
      %8282 = vmatmul.mubr.bf16.gmra.mrb[0].mxu0 %v8244
      %v8283 = vpop.f32.mrb[0].mxu0
      %v8284 = vadd.f32 0.0, %v8283
      %v8285 = vpop.f32.mrb[0].mxu0
      %v8286 = vpop.f32.mrb[0].mxu0
      %v8287 = vpop.f32.mrb[0].mxu0
      %8288 = vdwg.mxu0
      %v8290 = vsel %vm401, %v7534, 0
      %v8293 = vsel %vm401, %v7566, 0
      %8295 = vmatprep.subr.bf16.mxu0 0
      %8296 = vmatpush1.bf16.xpose.msra.mxu0 %v8293
      %8297 = vmatprep.subr.bf16.mxu0 0
      %8298 = vmatpush1.bf16.xpose.msra.mxu0 0
      %8299 = vmatprep.subr.bf16.mxu0 0
      %8300 = vmatpush1.bf16.xpose.msra.mxu0 0
      %8301 = vmatprep.subr.bf16.mxu0 0
      %8302 = vmatpush1.bf16.xpose.msra.mxu0 0
      %8303 = vmatprep.subr.bf16.mxu0 0
      %8304 = vmatpush1.bf16.xpose.msra.mxu0 0
      %8305 = vmatprep.subr.bf16.mxu0 0
      %8306 = vmatpush1.bf16.xpose.msra.mxu0 0
      %8307 = vmatprep.subr.bf16.mxu0 0
      %8308 = vmatpush1.bf16.xpose.msra.mxu0 0
      %8309 = vmatprep.subr.bf16.mxu0 0
      %8310 = vmatpush1.bf16.xpose.msra.mxu0 0
      %8311 = vmatprep.subr.bf16.mxu0 0
      %8312 = vmatpush1.bf16.xpose.msra.mxu0 0
      %8313 = vmatprep.subr.bf16.mxu0 0
      %8314 = vmatpush1.bf16.xpose.msra.mxu0 0
      %8315 = vmatprep.subr.bf16.mxu0 0
      %8316 = vmatpush1.bf16.xpose.msra.mxu0 0
      %8317 = vmatprep.subr.bf16.mxu0 0
      %8318 = vmatpush1.bf16.xpose.msra.mxu0 0
      %8319 = vmatprep.subr.bf16.mxu0 0
      %8320 = vmatpush1.bf16.xpose.msra.mxu0 0
      %8321 = vmatprep.subr.bf16.mxu0 0
      %8322 = vmatpush1.bf16.xpose.msra.mxu0 0
      %8323 = vmatprep.subr.bf16.mxu0 0
      %8324 = vmatpush1.bf16.xpose.msra.mxu0 0
      %8325 = vmatprep.subr.bf16.mxu0 0
      %8326 = vmatpush1.bf16.xpose.msra.mxu0 0
      %8327 = vmatprep.mubr.bf16.mxu0 0
      %8328 = vmatmul.mubr.bf16.gmra.mrb[0].mxu0 %v8290
      %v8329 = vpop.f32.mrb[0].mxu0
      %v8330 = vadd.f32 0.0, %v8329
      %v8331 = vpop.f32.mrb[0].mxu0
      %v8332 = vpop.f32.mrb[0].mxu0
      %v8333 = vpop.f32.mrb[0].mxu0
      %8334 = vdwg.mxu0
      %v8335 = vsel %vm401, %v7640, -inf
      %8336 = vmax.xlane.f32.xlu0 %v8335
      %v8337 = vpop.xlane.xlu0 %8336
      %v8338 = vsel %vm401, %v7686, -inf
      %8339 = vmax.xlane.f32.xlu0 %v8338
      %v8340 = vpop.xlane.xlu0 %8339
      %v8341 = vsel %vm401, %v7732, -inf
      %8342 = vmax.xlane.f32.xlu0 %v8341
      %v8343 = vpop.xlane.xlu0 %8342
      %v8344 = vsel %vm401, %v7778, -inf
      %8345 = vmax.xlane.f32.xlu0 %v8344
      %v8346 = vpop.xlane.xlu0 %8345
      %v8347 = vsel %vm401, %v7824, -inf
      %8348 = vmax.xlane.f32.xlu0 %v8347
      %v8349 = vpop.xlane.xlu0 %8348
      %v8350 = vsel %vm401, %v7870, -inf
      %8351 = vmax.xlane.f32.xlu0 %v8350
      %v8352 = vpop.xlane.xlu0 %8351
      %v8353 = vsel %vm401, %v7916, -inf
      %8354 = vmax.xlane.f32.xlu0 %v8353
      %v8355 = vpop.xlane.xlu0 %8354
      %v8356 = vsel %vm401, %v7962, -inf
      %8357 = vmax.xlane.f32.xlu0 %v8356
      %v8358 = vpop.xlane.xlu0 %8357
      %v8359 = vsel %vm401, %v8008, -inf
      %8360 = vmax.xlane.f32.xlu0 %v8359
      %v8361 = vpop.xlane.xlu0 %8360
      %v8362 = vsel %vm401, %v8054, -inf
      %8363 = vmax.xlane.f32.xlu0 %v8362
      %v8364 = vpop.xlane.xlu0 %8363
      %v8365 = vsel %vm401, %v8100, -inf
      %8366 = vmax.xlane.f32.xlu0 %v8365
      %v8367 = vpop.xlane.xlu0 %8366
      %v8368 = vsel %vm401, %v8146, -inf
      %8369 = vmax.xlane.f32.xlu0 %v8368
      %v8370 = vpop.xlane.xlu0 %8369
      %v8371 = vsel %vm401, %v8192, -inf
      %8372 = vmax.xlane.f32.xlu0 %v8371
      %v8373 = vpop.xlane.xlu0 %8372
      %v8374 = vsel %vm401, %v8238, -inf
      %8375 = vmax.xlane.f32.xlu0 %v8374
      %v8376 = vpop.xlane.xlu0 %8375
      %v8377 = vsel %vm401, %v8284, -inf
      %8378 = vmax.xlane.f32.xlu0 %v8377
      %v8379 = vpop.xlane.xlu0 %8378
      %v8380 = vsel %vm401, %v8330, -inf
      %8381 = vmax.xlane.f32.xlu0 %v8380
      %v8382 = vpop.xlane.xlu0 %8381
      %v8383 = vsub.f32 %v7640, %v8337
      %v8384 = vsub.f32 %v7686, %v8340
      %v8385 = vsub.f32 %v7732, %v8343
      %v8386 = vsub.f32 %v7778, %v8346
      %v8387 = vsub.f32 %v7824, %v8349
      %v8388 = vsub.f32 %v7870, %v8352
      %v8389 = vsub.f32 %v7916, %v8355
      %v8390 = vsub.f32 %v7962, %v8358
      %v8391 = vsub.f32 %v8008, %v8361
      %v8392 = vsub.f32 %v8054, %v8364
      %v8393 = vsub.f32 %v8100, %v8367
      %v8394 = vsub.f32 %v8146, %v8370
      %v8395 = vsub.f32 %v8192, %v8373
      %v8396 = vsub.f32 %v8238, %v8376
      %v8397 = vsub.f32 %v8284, %v8379
      %v8398 = vsub.f32 %v8330, %v8382
      %v8399 = vmul.f32 %v8383, 1.442695
      %v8400 = vpow.pop %v8399
      %v8401 = vmul.f32 %v8384, 1.442695
      %v8402 = vpow.pop %v8401
      %v8403 = vmul.f32 %v8385, 1.442695
      %v8404 = vpow.pop %v8403
      %v8405 = vmul.f32 %v8386, 1.442695
      %v8406 = vpow.pop %v8405
      %v8407 = vmul.f32 %v8387, 1.442695
      %v8408 = vpow.pop %v8407
      %v8409 = vmul.f32 %v8388, 1.442695
      %v8410 = vpow.pop %v8409
      %v8411 = vmul.f32 %v8389, 1.442695
      %v8412 = vpow.pop %v8411
      %v8413 = vmul.f32 %v8390, 1.442695
      %v8414 = vpow.pop %v8413
      %v8415 = vmul.f32 %v8391, 1.442695
      %v8416 = vpow.pop %v8415
      %v8417 = vmul.f32 %v8392, 1.442695
      %v8418 = vpow.pop %v8417
      %v8419 = vmul.f32 %v8393, 1.442695
      %v8420 = vpow.pop %v8419
      %v8421 = vmul.f32 %v8394, 1.442695
      %v8422 = vpow.pop %v8421
      %v8423 = vmul.f32 %v8395, 1.442695
      %v8424 = vpow.pop %v8423
      %v8425 = vmul.f32 %v8396, 1.442695
      %v8426 = vpow.pop %v8425
      %v8427 = vmul.f32 %v8397, 1.442695
      %v8428 = vpow.pop %v8427
      %v8429 = vmul.f32 %v8398, 1.442695
      %v8430 = vpow.pop %v8429
      %v8431 = vsel %vm401, %v8400, 0.0
      %8432 = vadd.xlane.f32.xlu0 %v8431
      %v8433 = vpop.xlane.xlu0 %8432
      %v8434 = vsel %vm401, %v8402, 0.0
      %8435 = vadd.xlane.f32.xlu0 %v8434
      %v8436 = vpop.xlane.xlu0 %8435
      %v8437 = vsel %vm401, %v8404, 0.0
      %8438 = vadd.xlane.f32.xlu0 %v8437
      %v8439 = vpop.xlane.xlu0 %8438
      %v8440 = vsel %vm401, %v8406, 0.0
      %8441 = vadd.xlane.f32.xlu0 %v8440
      %v8442 = vpop.xlane.xlu0 %8441
      %v8443 = vsel %vm401, %v8408, 0.0
      %8444 = vadd.xlane.f32.xlu0 %v8443
      %v8445 = vpop.xlane.xlu0 %8444
      %v8446 = vsel %vm401, %v8410, 0.0
      %8447 = vadd.xlane.f32.xlu0 %v8446
      %v8448 = vpop.xlane.xlu0 %8447
      %v8449 = vsel %vm401, %v8412, 0.0
      %8450 = vadd.xlane.f32.xlu0 %v8449
      %v8451 = vpop.xlane.xlu0 %8450
      %v8452 = vsel %vm401, %v8414, 0.0
      %8453 = vadd.xlane.f32.xlu0 %v8452
      %v8454 = vpop.xlane.xlu0 %8453
      %v8455 = vsel %vm401, %v8416, 0.0
      %8456 = vadd.xlane.f32.xlu0 %v8455
      %v8457 = vpop.xlane.xlu0 %8456
      %v8458 = vsel %vm401, %v8418, 0.0
      %8459 = vadd.xlane.f32.xlu0 %v8458
      %v8460 = vpop.xlane.xlu0 %8459
      %v8461 = vsel %vm401, %v8420, 0.0
      %8462 = vadd.xlane.f32.xlu0 %v8461
      %v8463 = vpop.xlane.xlu0 %8462
      %v8464 = vsel %vm401, %v8422, 0.0
      %8465 = vadd.xlane.f32.xlu0 %v8464
      %v8466 = vpop.xlane.xlu0 %8465
      %v8467 = vsel %vm401, %v8424, 0.0
      %8468 = vadd.xlane.f32.xlu0 %v8467
      %v8469 = vpop.xlane.xlu0 %8468
      %v8470 = vsel %vm401, %v8426, 0.0
      %8471 = vadd.xlane.f32.xlu0 %v8470
      %v8472 = vpop.xlane.xlu0 %8471
      %v8473 = vsel %vm401, %v8428, 0.0
      %8474 = vadd.xlane.f32.xlu0 %v8473
      %v8475 = vpop.xlane.xlu0 %8474
      %v8476 = vsel %vm401, %v8430, 0.0
      %8477 = vadd.xlane.f32.xlu0 %v8476
      %v8478 = vpop.xlane.xlu0 %8477
      %v8479 = vrcp.pop %v8433
      %v8480 = vrcp.pop %v8436
      %v8481 = vrcp.pop %v8439
      %v8482 = vrcp.pop %v8442
      %v8483 = vrcp.pop %v8445
      %v8484 = vrcp.pop %v8448
      %v8485 = vrcp.pop %v8451
      %v8486 = vrcp.pop %v8454
      %v8487 = vrcp.pop %v8457
      %v8488 = vrcp.pop %v8460
      %v8489 = vrcp.pop %v8463
      %v8490 = vrcp.pop %v8466
      %v8491 = vrcp.pop %v8469
      %v8492 = vrcp.pop %v8472
      %v8493 = vrcp.pop %v8475
      %v8494 = vrcp.pop %v8478
      %v8495 = vmul.f32 %v8400, %v8479
      %v8496 = vmul.f32 %v8402, %v8480
      %v8497 = vmul.f32 %v8404, %v8481
      %v8498 = vmul.f32 %v8406, %v8482
      %v8499 = vmul.f32 %v8408, %v8483
      %v8500 = vmul.f32 %v8410, %v8484
      %v8501 = vmul.f32 %v8412, %v8485
      %v8502 = vmul.f32 %v8414, %v8486
      %v8503 = vmul.f32 %v8416, %v8487
      %v8504 = vmul.f32 %v8418, %v8488
      %v8505 = vmul.f32 %v8420, %v8489
      %v8506 = vmul.f32 %v8422, %v8490
      %v8507 = vmul.f32 %v8424, %v8491
      %v8508 = vmul.f32 %v8426, %v8492
      %v8509 = vmul.f32 %v8428, %v8493
      %v8510 = vmul.f32 %v8430, %v8494
      %v8511 = vpack.c.bf16 %v8495, %v8495
      %v8512 = vpack.c.bf16 %v8496, %v8496
      %v8513 = vpack.c.bf16 %v8497, %v8497
      %v8514 = vpack.c.bf16 %v8498, %v8498
      %v8515 = vpack.c.bf16 %v8499, %v8499
      %v8516 = vpack.c.bf16 %v8500, %v8500
      %v8517 = vpack.c.bf16 %v8501, %v8501
      %v8518 = vpack.c.bf16 %v8502, %v8502
      %v8519 = vpack.c.bf16 %v8503, %v8503
      %v8520 = vpack.c.bf16 %v8504, %v8504
      %v8521 = vpack.c.bf16 %v8505, %v8505
      %v8522 = vpack.c.bf16 %v8506, %v8506
      %v8523 = vpack.c.bf16 %v8507, %v8507
      %v8524 = vpack.c.bf16 %v8508, %v8508
      %v8525 = vpack.c.bf16 %v8509, %v8509
      %v8526 = vpack.c.bf16 %v8510, %v8510
      %v8528 = vsel %vm401, %v8511, 0
      %v8531 = vsel %vm408, %v7583, 0
      %8533 = vmatprep.subr.bf16.mxu0 0
      %8534 = vmatpush1.bf16.msra.mxu0 %v8531
      %8535 = vmatprep.subr.bf16.mxu0 0
      %8536 = vmatpush1.bf16.msra.mxu0 0
      %8537 = vmatprep.subr.bf16.mxu0 0
      %8538 = vmatpush1.bf16.msra.mxu0 0
      %8539 = vmatprep.subr.bf16.mxu0 0
      %8540 = vmatpush1.bf16.msra.mxu0 0
      %8541 = vmatprep.subr.bf16.mxu0 0
      %8542 = vmatpush1.bf16.msra.mxu0 0
      %8543 = vmatprep.subr.bf16.mxu0 0
      %8544 = vmatpush1.bf16.msra.mxu0 0
      %8545 = vmatprep.subr.bf16.mxu0 0
      %8546 = vmatpush1.bf16.msra.mxu0 0
      %8547 = vmatprep.subr.bf16.mxu0 0
      %8548 = vmatpush1.bf16.msra.mxu0 0
      %8549 = vmatprep.subr.bf16.mxu0 0
      %8550 = vmatpush1.bf16.msra.mxu0 0
      %8551 = vmatprep.subr.bf16.mxu0 0
      %8552 = vmatpush1.bf16.msra.mxu0 0
      %8553 = vmatprep.subr.bf16.mxu0 0
      %8554 = vmatpush1.bf16.msra.mxu0 0
      %8555 = vmatprep.subr.bf16.mxu0 0
      %8556 = vmatpush1.bf16.msra.mxu0 0
      %8557 = vmatprep.subr.bf16.mxu0 0
      %8558 = vmatpush1.bf16.msra.mxu0 0
      %8559 = vmatprep.subr.bf16.mxu0 0
      %8560 = vmatpush1.bf16.msra.mxu0 0
      %8561 = vmatprep.subr.bf16.mxu0 0
      %8562 = vmatpush1.bf16.msra.mxu0 0
      %8563 = vmatprep.subr.bf16.mxu0 0
      %8564 = vmatpush1.bf16.msra.mxu0 0
      %8565 = vmatprep.mubr.bf16.mxu0 0
      %8566 = vmatmul.mubr.bf16.gmra.mrb[0].mxu0 %v8528
      %v8567 = vpop.f32.mrb[0].mxu0
      %v8568 = vadd.f32 0.0, %v8567
      %v8569 = vpop.f32.mrb[0].mxu0
      %v8570 = vpop.f32.mrb[0].mxu0
      %v8571 = vpop.f32.mrb[0].mxu0
      %8572 = vdwg.mxu0
      %v8574 = vsel %vm401, %v8512, 0
      %v8577 = vsel %vm408, %v7584, 0
      %8579 = vmatprep.subr.bf16.mxu0 0
      %8580 = vmatpush1.bf16.msra.mxu0 %v8577
      %8581 = vmatprep.subr.bf16.mxu0 0
      %8582 = vmatpush1.bf16.msra.mxu0 0
      %8583 = vmatprep.subr.bf16.mxu0 0
      %8584 = vmatpush1.bf16.msra.mxu0 0
      %8585 = vmatprep.subr.bf16.mxu0 0
      %8586 = vmatpush1.bf16.msra.mxu0 0
      %8587 = vmatprep.subr.bf16.mxu0 0
      %8588 = vmatpush1.bf16.msra.mxu0 0
      %8589 = vmatprep.subr.bf16.mxu0 0
      %8590 = vmatpush1.bf16.msra.mxu0 0
      %8591 = vmatprep.subr.bf16.mxu0 0
      %8592 = vmatpush1.bf16.msra.mxu0 0
      %8593 = vmatprep.subr.bf16.mxu0 0
      %8594 = vmatpush1.bf16.msra.mxu0 0
      %8595 = vmatprep.subr.bf16.mxu0 0
      %8596 = vmatpush1.bf16.msra.mxu0 0
      %8597 = vmatprep.subr.bf16.mxu0 0
      %8598 = vmatpush1.bf16.msra.mxu0 0
      %8599 = vmatprep.subr.bf16.mxu0 0
      %8600 = vmatpush1.bf16.msra.mxu0 0
      %8601 = vmatprep.subr.bf16.mxu0 0
      %8602 = vmatpush1.bf16.msra.mxu0 0
      %8603 = vmatprep.subr.bf16.mxu0 0
      %8604 = vmatpush1.bf16.msra.mxu0 0
      %8605 = vmatprep.subr.bf16.mxu0 0
      %8606 = vmatpush1.bf16.msra.mxu0 0
      %8607 = vmatprep.subr.bf16.mxu0 0
      %8608 = vmatpush1.bf16.msra.mxu0 0
      %8609 = vmatprep.subr.bf16.mxu0 0
      %8610 = vmatpush1.bf16.msra.mxu0 0
      %8611 = vmatprep.mubr.bf16.mxu0 0
      %8612 = vmatmul.mubr.bf16.gmra.mrb[0].mxu0 %v8574
      %v8613 = vpop.f32.mrb[0].mxu0
      %v8614 = vadd.f32 0.0, %v8613
      %v8615 = vpop.f32.mrb[0].mxu0
      %v8616 = vpop.f32.mrb[0].mxu0
      %v8617 = vpop.f32.mrb[0].mxu0
      %8618 = vdwg.mxu0
      %v8620 = vsel %vm401, %v8513, 0
      %v8623 = vsel %vm408, %v7585, 0
      %8625 = vmatprep.subr.bf16.mxu0 0
      %8626 = vmatpush1.bf16.msra.mxu0 %v8623
      %8627 = vmatprep.subr.bf16.mxu0 0
      %8628 = vmatpush1.bf16.msra.mxu0 0
      %8629 = vmatprep.subr.bf16.mxu0 0
      %8630 = vmatpush1.bf16.msra.mxu0 0
      %8631 = vmatprep.subr.bf16.mxu0 0
      %8632 = vmatpush1.bf16.msra.mxu0 0
      %8633 = vmatprep.subr.bf16.mxu0 0
      %8634 = vmatpush1.bf16.msra.mxu0 0
      %8635 = vmatprep.subr.bf16.mxu0 0
      %8636 = vmatpush1.bf16.msra.mxu0 0
      %8637 = vmatprep.subr.bf16.mxu0 0
      %8638 = vmatpush1.bf16.msra.mxu0 0
      %8639 = vmatprep.subr.bf16.mxu0 0
      %8640 = vmatpush1.bf16.msra.mxu0 0
      %8641 = vmatprep.subr.bf16.mxu0 0
      %8642 = vmatpush1.bf16.msra.mxu0 0
      %8643 = vmatprep.subr.bf16.mxu0 0
      %8644 = vmatpush1.bf16.msra.mxu0 0
      %8645 = vmatprep.subr.bf16.mxu0 0
      %8646 = vmatpush1.bf16.msra.mxu0 0
      %8647 = vmatprep.subr.bf16.mxu0 0
      %8648 = vmatpush1.bf16.msra.mxu0 0
      %8649 = vmatprep.subr.bf16.mxu0 0
      %8650 = vmatpush1.bf16.msra.mxu0 0
      %8651 = vmatprep.subr.bf16.mxu0 0
      %8652 = vmatpush1.bf16.msra.mxu0 0
      %8653 = vmatprep.subr.bf16.mxu0 0
      %8654 = vmatpush1.bf16.msra.mxu0 0
      %8655 = vmatprep.subr.bf16.mxu0 0
      %8656 = vmatpush1.bf16.msra.mxu0 0
      %8657 = vmatprep.mubr.bf16.mxu0 0
      %8658 = vmatmul.mubr.bf16.gmra.mrb[0].mxu0 %v8620
      %v8659 = vpop.f32.mrb[0].mxu0
      %v8660 = vadd.f32 0.0, %v8659
      %v8661 = vpop.f32.mrb[0].mxu0
      %v8662 = vpop.f32.mrb[0].mxu0
      %v8663 = vpop.f32.mrb[0].mxu0
      %8664 = vdwg.mxu0
      %v8666 = vsel %vm401, %v8514, 0
      %v8669 = vsel %vm408, %v7586, 0
      %8671 = vmatprep.subr.bf16.mxu0 0
      %8672 = vmatpush1.bf16.msra.mxu0 %v8669
      %8673 = vmatprep.subr.bf16.mxu0 0
      %8674 = vmatpush1.bf16.msra.mxu0 0
      %8675 = vmatprep.subr.bf16.mxu0 0
      %8676 = vmatpush1.bf16.msra.mxu0 0
      %8677 = vmatprep.subr.bf16.mxu0 0
      %8678 = vmatpush1.bf16.msra.mxu0 0
      %8679 = vmatprep.subr.bf16.mxu0 0
      %8680 = vmatpush1.bf16.msra.mxu0 0
      %8681 = vmatprep.subr.bf16.mxu0 0
      %8682 = vmatpush1.bf16.msra.mxu0 0
      %8683 = vmatprep.subr.bf16.mxu0 0
      %8684 = vmatpush1.bf16.msra.mxu0 0
      %8685 = vmatprep.subr.bf16.mxu0 0
      %8686 = vmatpush1.bf16.msra.mxu0 0
      %8687 = vmatprep.subr.bf16.mxu0 0
      %8688 = vmatpush1.bf16.msra.mxu0 0
      %8689 = vmatprep.subr.bf16.mxu0 0
      %8690 = vmatpush1.bf16.msra.mxu0 0
      %8691 = vmatprep.subr.bf16.mxu0 0
      %8692 = vmatpush1.bf16.msra.mxu0 0
      %8693 = vmatprep.subr.bf16.mxu0 0
      %8694 = vmatpush1.bf16.msra.mxu0 0
      %8695 = vmatprep.subr.bf16.mxu0 0
      %8696 = vmatpush1.bf16.msra.mxu0 0
      %8697 = vmatprep.subr.bf16.mxu0 0
      %8698 = vmatpush1.bf16.msra.mxu0 0
      %8699 = vmatprep.subr.bf16.mxu0 0
      %8700 = vmatpush1.bf16.msra.mxu0 0
      %8701 = vmatprep.subr.bf16.mxu0 0
      %8702 = vmatpush1.bf16.msra.mxu0 0
      %8703 = vmatprep.mubr.bf16.mxu0 0
      %8704 = vmatmul.mubr.bf16.gmra.mrb[0].mxu0 %v8666
      %v8705 = vpop.f32.mrb[0].mxu0
      %v8706 = vadd.f32 0.0, %v8705
      %v8707 = vpop.f32.mrb[0].mxu0
      %v8708 = vpop.f32.mrb[0].mxu0
      %v8709 = vpop.f32.mrb[0].mxu0
      %8710 = vdwg.mxu0
      %v8712 = vsel %vm401, %v8515, 0
      %v8715 = vsel %vm408, %v7587, 0
      %8717 = vmatprep.subr.bf16.mxu0 0
      %8718 = vmatpush1.bf16.msra.mxu0 %v8715
      %8719 = vmatprep.subr.bf16.mxu0 0
      %8720 = vmatpush1.bf16.msra.mxu0 0
      %8721 = vmatprep.subr.bf16.mxu0 0
      %8722 = vmatpush1.bf16.msra.mxu0 0
      %8723 = vmatprep.subr.bf16.mxu0 0
      %8724 = vmatpush1.bf16.msra.mxu0 0
      %8725 = vmatprep.subr.bf16.mxu0 0
      %8726 = vmatpush1.bf16.msra.mxu0 0
      %8727 = vmatprep.subr.bf16.mxu0 0
      %8728 = vmatpush1.bf16.msra.mxu0 0
      %8729 = vmatprep.subr.bf16.mxu0 0
      %8730 = vmatpush1.bf16.msra.mxu0 0
      %8731 = vmatprep.subr.bf16.mxu0 0
      %8732 = vmatpush1.bf16.msra.mxu0 0
      %8733 = vmatprep.subr.bf16.mxu0 0
      %8734 = vmatpush1.bf16.msra.mxu0 0
      %8735 = vmatprep.subr.bf16.mxu0 0
      %8736 = vmatpush1.bf16.msra.mxu0 0
      %8737 = vmatprep.subr.bf16.mxu0 0
      %8738 = vmatpush1.bf16.msra.mxu0 0
      %8739 = vmatprep.subr.bf16.mxu0 0
      %8740 = vmatpush1.bf16.msra.mxu0 0
      %8741 = vmatprep.subr.bf16.mxu0 0
      %8742 = vmatpush1.bf16.msra.mxu0 0
      %8743 = vmatprep.subr.bf16.mxu0 0
      %8744 = vmatpush1.bf16.msra.mxu0 0
      %8745 = vmatprep.subr.bf16.mxu0 0
      %8746 = vmatpush1.bf16.msra.mxu0 0
      %8747 = vmatprep.subr.bf16.mxu0 0
      %8748 = vmatpush1.bf16.msra.mxu0 0
      %8749 = vmatprep.mubr.bf16.mxu0 0
      %8750 = vmatmul.mubr.bf16.gmra.mrb[0].mxu0 %v8712
      %v8751 = vpop.f32.mrb[0].mxu0
      %v8752 = vadd.f32 0.0, %v8751
      %v8753 = vpop.f32.mrb[0].mxu0
      %v8754 = vpop.f32.mrb[0].mxu0
      %v8755 = vpop.f32.mrb[0].mxu0
      %8756 = vdwg.mxu0
      %v8758 = vsel %vm401, %v8516, 0
      %v8761 = vsel %vm408, %v7588, 0
      %8763 = vmatprep.subr.bf16.mxu0 0
      %8764 = vmatpush1.bf16.msra.mxu0 %v8761
      %8765 = vmatprep.subr.bf16.mxu0 0
      %8766 = vmatpush1.bf16.msra.mxu0 0
      %8767 = vmatprep.subr.bf16.mxu0 0
      %8768 = vmatpush1.bf16.msra.mxu0 0
      %8769 = vmatprep.subr.bf16.mxu0 0
      %8770 = vmatpush1.bf16.msra.mxu0 0
      %8771 = vmatprep.subr.bf16.mxu0 0
      %8772 = vmatpush1.bf16.msra.mxu0 0
      %8773 = vmatprep.subr.bf16.mxu0 0
      %8774 = vmatpush1.bf16.msra.mxu0 0
      %8775 = vmatprep.subr.bf16.mxu0 0
      %8776 = vmatpush1.bf16.msra.mxu0 0
      %8777 = vmatprep.subr.bf16.mxu0 0
      %8778 = vmatpush1.bf16.msra.mxu0 0
      %8779 = vmatprep.subr.bf16.mxu0 0
      %8780 = vmatpush1.bf16.msra.mxu0 0
      %8781 = vmatprep.subr.bf16.mxu0 0
      %8782 = vmatpush1.bf16.msra.mxu0 0
      %8783 = vmatprep.subr.bf16.mxu0 0
      %8784 = vmatpush1.bf16.msra.mxu0 0
      %8785 = vmatprep.subr.bf16.mxu0 0
      %8786 = vmatpush1.bf16.msra.mxu0 0
      %8787 = vmatprep.subr.bf16.mxu0 0
      %8788 = vmatpush1.bf16.msra.mxu0 0
      %8789 = vmatprep.subr.bf16.mxu0 0
      %8790 = vmatpush1.bf16.msra.mxu0 0
      %8791 = vmatprep.subr.bf16.mxu0 0
      %8792 = vmatpush1.bf16.msra.mxu0 0
      %8793 = vmatprep.subr.bf16.mxu0 0
      %8794 = vmatpush1.bf16.msra.mxu0 0
      %8795 = vmatprep.mubr.bf16.mxu0 0
      %8796 = vmatmul.mubr.bf16.gmra.mrb[0].mxu0 %v8758
      %v8797 = vpop.f32.mrb[0].mxu0
      %v8798 = vadd.f32 0.0, %v8797
      %v8799 = vpop.f32.mrb[0].mxu0
      %v8800 = vpop.f32.mrb[0].mxu0
      %v8801 = vpop.f32.mrb[0].mxu0
      %8802 = vdwg.mxu0
      %v8804 = vsel %vm401, %v8517, 0
      %v8807 = vsel %vm408, %v7589, 0
      %8809 = vmatprep.subr.bf16.mxu0 0
      %8810 = vmatpush1.bf16.msra.mxu0 %v8807
      %8811 = vmatprep.subr.bf16.mxu0 0
      %8812 = vmatpush1.bf16.msra.mxu0 0
      %8813 = vmatprep.subr.bf16.mxu0 0
      %8814 = vmatpush1.bf16.msra.mxu0 0
      %8815 = vmatprep.subr.bf16.mxu0 0
      %8816 = vmatpush1.bf16.msra.mxu0 0
      %8817 = vmatprep.subr.bf16.mxu0 0
      %8818 = vmatpush1.bf16.msra.mxu0 0
      %8819 = vmatprep.subr.bf16.mxu0 0
      %8820 = vmatpush1.bf16.msra.mxu0 0
      %8821 = vmatprep.subr.bf16.mxu0 0
      %8822 = vmatpush1.bf16.msra.mxu0 0
      %8823 = vmatprep.subr.bf16.mxu0 0
      %8824 = vmatpush1.bf16.msra.mxu0 0
      %8825 = vmatprep.subr.bf16.mxu0 0
      %8826 = vmatpush1.bf16.msra.mxu0 0
      %8827 = vmatprep.subr.bf16.mxu0 0
      %8828 = vmatpush1.bf16.msra.mxu0 0
      %8829 = vmatprep.subr.bf16.mxu0 0
      %8830 = vmatpush1.bf16.msra.mxu0 0
      %8831 = vmatprep.subr.bf16.mxu0 0
      %8832 = vmatpush1.bf16.msra.mxu0 0
      %8833 = vmatprep.subr.bf16.mxu0 0
      %8834 = vmatpush1.bf16.msra.mxu0 0
      %8835 = vmatprep.subr.bf16.mxu0 0
      %8836 = vmatpush1.bf16.msra.mxu0 0
      %8837 = vmatprep.subr.bf16.mxu0 0
      %8838 = vmatpush1.bf16.msra.mxu0 0
      %8839 = vmatprep.subr.bf16.mxu0 0
      %8840 = vmatpush1.bf16.msra.mxu0 0
      %8841 = vmatprep.mubr.bf16.mxu0 0
      %8842 = vmatmul.mubr.bf16.gmra.mrb[0].mxu0 %v8804
      %v8843 = vpop.f32.mrb[0].mxu0
      %v8844 = vadd.f32 0.0, %v8843
      %v8845 = vpop.f32.mrb[0].mxu0
      %v8846 = vpop.f32.mrb[0].mxu0
      %v8847 = vpop.f32.mrb[0].mxu0
      %8848 = vdwg.mxu0
      %v8850 = vsel %vm401, %v8518, 0
      %v8853 = vsel %vm408, %v7590, 0
      %8855 = vmatprep.subr.bf16.mxu0 0
      %8856 = vmatpush1.bf16.msra.mxu0 %v8853
      %8857 = vmatprep.subr.bf16.mxu0 0
      %8858 = vmatpush1.bf16.msra.mxu0 0
      %8859 = vmatprep.subr.bf16.mxu0 0
      %8860 = vmatpush1.bf16.msra.mxu0 0
      %8861 = vmatprep.subr.bf16.mxu0 0
      %8862 = vmatpush1.bf16.msra.mxu0 0
      %8863 = vmatprep.subr.bf16.mxu0 0
      %8864 = vmatpush1.bf16.msra.mxu0 0
      %8865 = vmatprep.subr.bf16.mxu0 0
      %8866 = vmatpush1.bf16.msra.mxu0 0
      %8867 = vmatprep.subr.bf16.mxu0 0
      %8868 = vmatpush1.bf16.msra.mxu0 0
      %8869 = vmatprep.subr.bf16.mxu0 0
      %8870 = vmatpush1.bf16.msra.mxu0 0
      %8871 = vmatprep.subr.bf16.mxu0 0
      %8872 = vmatpush1.bf16.msra.mxu0 0
      %8873 = vmatprep.subr.bf16.mxu0 0
      %8874 = vmatpush1.bf16.msra.mxu0 0
      %8875 = vmatprep.subr.bf16.mxu0 0
      %8876 = vmatpush1.bf16.msra.mxu0 0
      %8877 = vmatprep.subr.bf16.mxu0 0
      %8878 = vmatpush1.bf16.msra.mxu0 0
      %8879 = vmatprep.subr.bf16.mxu0 0
      %8880 = vmatpush1.bf16.msra.mxu0 0
      %8881 = vmatprep.subr.bf16.mxu0 0
      %8882 = vmatpush1.bf16.msra.mxu0 0
      %8883 = vmatprep.subr.bf16.mxu0 0
      %8884 = vmatpush1.bf16.msra.mxu0 0
      %8885 = vmatprep.subr.bf16.mxu0 0
      %8886 = vmatpush1.bf16.msra.mxu0 0
      %8887 = vmatprep.mubr.bf16.mxu0 0
      %8888 = vmatmul.mubr.bf16.gmra.mrb[0].mxu0 %v8850
      %v8889 = vpop.f32.mrb[0].mxu0
      %v8890 = vadd.f32 0.0, %v8889
      %v8891 = vpop.f32.mrb[0].mxu0
      %v8892 = vpop.f32.mrb[0].mxu0
      %v8893 = vpop.f32.mrb[0].mxu0
      %8894 = vdwg.mxu0
      %v8896 = vsel %vm401, %v8519, 0
      %v8899 = vsel %vm408, %v7591, 0
      %8901 = vmatprep.subr.bf16.mxu0 0
      %8902 = vmatpush1.bf16.msra.mxu0 %v8899
      %8903 = vmatprep.subr.bf16.mxu0 0
      %8904 = vmatpush1.bf16.msra.mxu0 0
      %8905 = vmatprep.subr.bf16.mxu0 0
      %8906 = vmatpush1.bf16.msra.mxu0 0
      %8907 = vmatprep.subr.bf16.mxu0 0
      %8908 = vmatpush1.bf16.msra.mxu0 0
      %8909 = vmatprep.subr.bf16.mxu0 0
      %8910 = vmatpush1.bf16.msra.mxu0 0
      %8911 = vmatprep.subr.bf16.mxu0 0
      %8912 = vmatpush1.bf16.msra.mxu0 0
      %8913 = vmatprep.subr.bf16.mxu0 0
      %8914 = vmatpush1.bf16.msra.mxu0 0
      %8915 = vmatprep.subr.bf16.mxu0 0
      %8916 = vmatpush1.bf16.msra.mxu0 0
      %8917 = vmatprep.subr.bf16.mxu0 0
      %8918 = vmatpush1.bf16.msra.mxu0 0
      %8919 = vmatprep.subr.bf16.mxu0 0
      %8920 = vmatpush1.bf16.msra.mxu0 0
      %8921 = vmatprep.subr.bf16.mxu0 0
      %8922 = vmatpush1.bf16.msra.mxu0 0
      %8923 = vmatprep.subr.bf16.mxu0 0
      %8924 = vmatpush1.bf16.msra.mxu0 0
      %8925 = vmatprep.subr.bf16.mxu0 0
      %8926 = vmatpush1.bf16.msra.mxu0 0
      %8927 = vmatprep.subr.bf16.mxu0 0
      %8928 = vmatpush1.bf16.msra.mxu0 0
      %8929 = vmatprep.subr.bf16.mxu0 0
      %8930 = vmatpush1.bf16.msra.mxu0 0
      %8931 = vmatprep.subr.bf16.mxu0 0
      %8932 = vmatpush1.bf16.msra.mxu0 0
      %8933 = vmatprep.mubr.bf16.mxu0 0
      %8934 = vmatmul.mubr.bf16.gmra.mrb[0].mxu0 %v8896
      %v8935 = vpop.f32.mrb[0].mxu0
      %v8936 = vadd.f32 0.0, %v8935
      %v8937 = vpop.f32.mrb[0].mxu0
      %v8938 = vpop.f32.mrb[0].mxu0
      %v8939 = vpop.f32.mrb[0].mxu0
      %8940 = vdwg.mxu0
      %v8942 = vsel %vm401, %v8520, 0
      %v8945 = vsel %vm408, %v7592, 0
      %8947 = vmatprep.subr.bf16.mxu0 0
      %8948 = vmatpush1.bf16.msra.mxu0 %v8945
      %8949 = vmatprep.subr.bf16.mxu0 0
      %8950 = vmatpush1.bf16.msra.mxu0 0
      %8951 = vmatprep.subr.bf16.mxu0 0
      %8952 = vmatpush1.bf16.msra.mxu0 0
      %8953 = vmatprep.subr.bf16.mxu0 0
      %8954 = vmatpush1.bf16.msra.mxu0 0
      %8955 = vmatprep.subr.bf16.mxu0 0
      %8956 = vmatpush1.bf16.msra.mxu0 0
      %8957 = vmatprep.subr.bf16.mxu0 0
      %8958 = vmatpush1.bf16.msra.mxu0 0
      %8959 = vmatprep.subr.bf16.mxu0 0
      %8960 = vmatpush1.bf16.msra.mxu0 0
      %8961 = vmatprep.subr.bf16.mxu0 0
      %8962 = vmatpush1.bf16.msra.mxu0 0
      %8963 = vmatprep.subr.bf16.mxu0 0
      %8964 = vmatpush1.bf16.msra.mxu0 0
      %8965 = vmatprep.subr.bf16.mxu0 0
      %8966 = vmatpush1.bf16.msra.mxu0 0
      %8967 = vmatprep.subr.bf16.mxu0 0
      %8968 = vmatpush1.bf16.msra.mxu0 0
      %8969 = vmatprep.subr.bf16.mxu0 0
      %8970 = vmatpush1.bf16.msra.mxu0 0
      %8971 = vmatprep.subr.bf16.mxu0 0
      %8972 = vmatpush1.bf16.msra.mxu0 0
      %8973 = vmatprep.subr.bf16.mxu0 0
      %8974 = vmatpush1.bf16.msra.mxu0 0
      %8975 = vmatprep.subr.bf16.mxu0 0
      %8976 = vmatpush1.bf16.msra.mxu0 0
      %8977 = vmatprep.subr.bf16.mxu0 0
      %8978 = vmatpush1.bf16.msra.mxu0 0
      %8979 = vmatprep.mubr.bf16.mxu0 0
      %8980 = vmatmul.mubr.bf16.gmra.mrb[0].mxu0 %v8942
      %v8981 = vpop.f32.mrb[0].mxu0
      %v8982 = vadd.f32 0.0, %v8981
      %v8983 = vpop.f32.mrb[0].mxu0
      %v8984 = vpop.f32.mrb[0].mxu0
      %v8985 = vpop.f32.mrb[0].mxu0
      %8986 = vdwg.mxu0
      %v8988 = vsel %vm401, %v8521, 0
      %v8991 = vsel %vm408, %v7593, 0
      %8993 = vmatprep.subr.bf16.mxu0 0
      %8994 = vmatpush1.bf16.msra.mxu0 %v8991
      %8995 = vmatprep.subr.bf16.mxu0 0
      %8996 = vmatpush1.bf16.msra.mxu0 0
      %8997 = vmatprep.subr.bf16.mxu0 0
      %8998 = vmatpush1.bf16.msra.mxu0 0
      %8999 = vmatprep.subr.bf16.mxu0 0
      %9000 = vmatpush1.bf16.msra.mxu0 0
      %9001 = vmatprep.subr.bf16.mxu0 0
      %9002 = vmatpush1.bf16.msra.mxu0 0
      %9003 = vmatprep.subr.bf16.mxu0 0
      %9004 = vmatpush1.bf16.msra.mxu0 0
      %9005 = vmatprep.subr.bf16.mxu0 0
      %9006 = vmatpush1.bf16.msra.mxu0 0
      %9007 = vmatprep.subr.bf16.mxu0 0
      %9008 = vmatpush1.bf16.msra.mxu0 0
      %9009 = vmatprep.subr.bf16.mxu0 0
      %9010 = vmatpush1.bf16.msra.mxu0 0
      %9011 = vmatprep.subr.bf16.mxu0 0
      %9012 = vmatpush1.bf16.msra.mxu0 0
      %9013 = vmatprep.subr.bf16.mxu0 0
      %9014 = vmatpush1.bf16.msra.mxu0 0
      %9015 = vmatprep.subr.bf16.mxu0 0
      %9016 = vmatpush1.bf16.msra.mxu0 0
      %9017 = vmatprep.subr.bf16.mxu0 0
      %9018 = vmatpush1.bf16.msra.mxu0 0
      %9019 = vmatprep.subr.bf16.mxu0 0
      %9020 = vmatpush1.bf16.msra.mxu0 0
      %9021 = vmatprep.subr.bf16.mxu0 0
      %9022 = vmatpush1.bf16.msra.mxu0 0
      %9023 = vmatprep.subr.bf16.mxu0 0
      %9024 = vmatpush1.bf16.msra.mxu0 0
      %9025 = vmatprep.mubr.bf16.mxu0 0
      %9026 = vmatmul.mubr.bf16.gmra.mrb[0].mxu0 %v8988
      %v9027 = vpop.f32.mrb[0].mxu0
      %v9028 = vadd.f32 0.0, %v9027
      %v9029 = vpop.f32.mrb[0].mxu0
      %v9030 = vpop.f32.mrb[0].mxu0
      %v9031 = vpop.f32.mrb[0].mxu0
      %9032 = vdwg.mxu0
      %v9034 = vsel %vm401, %v8522, 0
      %v9037 = vsel %vm408, %v7594, 0
      %9039 = vmatprep.subr.bf16.mxu0 0
      %9040 = vmatpush1.bf16.msra.mxu0 %v9037
      %9041 = vmatprep.subr.bf16.mxu0 0
      %9042 = vmatpush1.bf16.msra.mxu0 0
      %9043 = vmatprep.subr.bf16.mxu0 0
      %9044 = vmatpush1.bf16.msra.mxu0 0
      %9045 = vmatprep.subr.bf16.mxu0 0
      %9046 = vmatpush1.bf16.msra.mxu0 0
      %9047 = vmatprep.subr.bf16.mxu0 0
      %9048 = vmatpush1.bf16.msra.mxu0 0
      %9049 = vmatprep.subr.bf16.mxu0 0
      %9050 = vmatpush1.bf16.msra.mxu0 0
      %9051 = vmatprep.subr.bf16.mxu0 0
      %9052 = vmatpush1.bf16.msra.mxu0 0
      %9053 = vmatprep.subr.bf16.mxu0 0
      %9054 = vmatpush1.bf16.msra.mxu0 0
      %9055 = vmatprep.subr.bf16.mxu0 0
      %9056 = vmatpush1.bf16.msra.mxu0 0
      %9057 = vmatprep.subr.bf16.mxu0 0
      %9058 = vmatpush1.bf16.msra.mxu0 0
      %9059 = vmatprep.subr.bf16.mxu0 0
      %9060 = vmatpush1.bf16.msra.mxu0 0
      %9061 = vmatprep.subr.bf16.mxu0 0
      %9062 = vmatpush1.bf16.msra.mxu0 0
      %9063 = vmatprep.subr.bf16.mxu0 0
      %9064 = vmatpush1.bf16.msra.mxu0 0
      %9065 = vmatprep.subr.bf16.mxu0 0
      %9066 = vmatpush1.bf16.msra.mxu0 0
      %9067 = vmatprep.subr.bf16.mxu0 0
      %9068 = vmatpush1.bf16.msra.mxu0 0
      %9069 = vmatprep.subr.bf16.mxu0 0
      %9070 = vmatpush1.bf16.msra.mxu0 0
      %9071 = vmatprep.mubr.bf16.mxu0 0
      %9072 = vmatmul.mubr.bf16.gmra.mrb[0].mxu0 %v9034
      %v9073 = vpop.f32.mrb[0].mxu0
      %v9074 = vadd.f32 0.0, %v9073
      %v9075 = vpop.f32.mrb[0].mxu0
      %v9076 = vpop.f32.mrb[0].mxu0
      %v9077 = vpop.f32.mrb[0].mxu0
      %9078 = vdwg.mxu0
      %v9080 = vsel %vm401, %v8523, 0
      %v9083 = vsel %vm408, %v7595, 0
      %9085 = vmatprep.subr.bf16.mxu0 0
      %9086 = vmatpush1.bf16.msra.mxu0 %v9083
      %9087 = vmatprep.subr.bf16.mxu0 0
      %9088 = vmatpush1.bf16.msra.mxu0 0
      %9089 = vmatprep.subr.bf16.mxu0 0
      %9090 = vmatpush1.bf16.msra.mxu0 0
      %9091 = vmatprep.subr.bf16.mxu0 0
      %9092 = vmatpush1.bf16.msra.mxu0 0
      %9093 = vmatprep.subr.bf16.mxu0 0
      %9094 = vmatpush1.bf16.msra.mxu0 0
      %9095 = vmatprep.subr.bf16.mxu0 0
      %9096 = vmatpush1.bf16.msra.mxu0 0
      %9097 = vmatprep.subr.bf16.mxu0 0
      %9098 = vmatpush1.bf16.msra.mxu0 0
      %9099 = vmatprep.subr.bf16.mxu0 0
      %9100 = vmatpush1.bf16.msra.mxu0 0
      %9101 = vmatprep.subr.bf16.mxu0 0
      %9102 = vmatpush1.bf16.msra.mxu0 0
      %9103 = vmatprep.subr.bf16.mxu0 0
      %9104 = vmatpush1.bf16.msra.mxu0 0
      %9105 = vmatprep.subr.bf16.mxu0 0
      %9106 = vmatpush1.bf16.msra.mxu0 0
      %9107 = vmatprep.subr.bf16.mxu0 0
      %9108 = vmatpush1.bf16.msra.mxu0 0
      %9109 = vmatprep.subr.bf16.mxu0 0
      %9110 = vmatpush1.bf16.msra.mxu0 0
      %9111 = vmatprep.subr.bf16.mxu0 0
      %9112 = vmatpush1.bf16.msra.mxu0 0
      %9113 = vmatprep.subr.bf16.mxu0 0
      %9114 = vmatpush1.bf16.msra.mxu0 0
      %9115 = vmatprep.subr.bf16.mxu0 0
      %9116 = vmatpush1.bf16.msra.mxu0 0
      %9117 = vmatprep.mubr.bf16.mxu0 0
      %9118 = vmatmul.mubr.bf16.gmra.mrb[0].mxu0 %v9080
      %v9119 = vpop.f32.mrb[0].mxu0
      %v9120 = vadd.f32 0.0, %v9119
      %v9121 = vpop.f32.mrb[0].mxu0
      %v9122 = vpop.f32.mrb[0].mxu0
      %v9123 = vpop.f32.mrb[0].mxu0
      %9124 = vdwg.mxu0
      %v9126 = vsel %vm401, %v8524, 0
      %v9129 = vsel %vm408, %v7596, 0
      %9131 = vmatprep.subr.bf16.mxu0 0
      %9132 = vmatpush1.bf16.msra.mxu0 %v9129
      %9133 = vmatprep.subr.bf16.mxu0 0
      %9134 = vmatpush1.bf16.msra.mxu0 0
      %9135 = vmatprep.subr.bf16.mxu0 0
      %9136 = vmatpush1.bf16.msra.mxu0 0
      %9137 = vmatprep.subr.bf16.mxu0 0
      %9138 = vmatpush1.bf16.msra.mxu0 0
      %9139 = vmatprep.subr.bf16.mxu0 0
      %9140 = vmatpush1.bf16.msra.mxu0 0
      %9141 = vmatprep.subr.bf16.mxu0 0
      %9142 = vmatpush1.bf16.msra.mxu0 0
      %9143 = vmatprep.subr.bf16.mxu0 0
      %9144 = vmatpush1.bf16.msra.mxu0 0
      %9145 = vmatprep.subr.bf16.mxu0 0
      %9146 = vmatpush1.bf16.msra.mxu0 0
      %9147 = vmatprep.subr.bf16.mxu0 0
      %9148 = vmatpush1.bf16.msra.mxu0 0
      %9149 = vmatprep.subr.bf16.mxu0 0
      %9150 = vmatpush1.bf16.msra.mxu0 0
      %9151 = vmatprep.subr.bf16.mxu0 0
      %9152 = vmatpush1.bf16.msra.mxu0 0
      %9153 = vmatprep.subr.bf16.mxu0 0
      %9154 = vmatpush1.bf16.msra.mxu0 0
      %9155 = vmatprep.subr.bf16.mxu0 0
      %9156 = vmatpush1.bf16.msra.mxu0 0
      %9157 = vmatprep.subr.bf16.mxu0 0
      %9158 = vmatpush1.bf16.msra.mxu0 0
      %9159 = vmatprep.subr.bf16.mxu0 0
      %9160 = vmatpush1.bf16.msra.mxu0 0
      %9161 = vmatprep.subr.bf16.mxu0 0
      %9162 = vmatpush1.bf16.msra.mxu0 0
      %9163 = vmatprep.mubr.bf16.mxu0 0
      %9164 = vmatmul.mubr.bf16.gmra.mrb[0].mxu0 %v9126
      %v9165 = vpop.f32.mrb[0].mxu0
      %v9166 = vadd.f32 0.0, %v9165
      %v9167 = vpop.f32.mrb[0].mxu0
      %v9168 = vpop.f32.mrb[0].mxu0
      %v9169 = vpop.f32.mrb[0].mxu0
      %9170 = vdwg.mxu0
      %v9172 = vsel %vm401, %v8525, 0
      %v9175 = vsel %vm408, %v7597, 0
      %9177 = vmatprep.subr.bf16.mxu0 0
      %9178 = vmatpush1.bf16.msra.mxu0 %v9175
      %9179 = vmatprep.subr.bf16.mxu0 0
      %9180 = vmatpush1.bf16.msra.mxu0 0
      %9181 = vmatprep.subr.bf16.mxu0 0
      %9182 = vmatpush1.bf16.msra.mxu0 0
      %9183 = vmatprep.subr.bf16.mxu0 0
      %9184 = vmatpush1.bf16.msra.mxu0 0
      %9185 = vmatprep.subr.bf16.mxu0 0
      %9186 = vmatpush1.bf16.msra.mxu0 0
      %9187 = vmatprep.subr.bf16.mxu0 0
      %9188 = vmatpush1.bf16.msra.mxu0 0
      %9189 = vmatprep.subr.bf16.mxu0 0
      %9190 = vmatpush1.bf16.msra.mxu0 0
      %9191 = vmatprep.subr.bf16.mxu0 0
      %9192 = vmatpush1.bf16.msra.mxu0 0
      %9193 = vmatprep.subr.bf16.mxu0 0
      %9194 = vmatpush1.bf16.msra.mxu0 0
      %9195 = vmatprep.subr.bf16.mxu0 0
      %9196 = vmatpush1.bf16.msra.mxu0 0
      %9197 = vmatprep.subr.bf16.mxu0 0
      %9198 = vmatpush1.bf16.msra.mxu0 0
      %9199 = vmatprep.subr.bf16.mxu0 0
      %9200 = vmatpush1.bf16.msra.mxu0 0
      %9201 = vmatprep.subr.bf16.mxu0 0
      %9202 = vmatpush1.bf16.msra.mxu0 0
      %9203 = vmatprep.subr.bf16.mxu0 0
      %9204 = vmatpush1.bf16.msra.mxu0 0
      %9205 = vmatprep.subr.bf16.mxu0 0
      %9206 = vmatpush1.bf16.msra.mxu0 0
      %9207 = vmatprep.subr.bf16.mxu0 0
      %9208 = vmatpush1.bf16.msra.mxu0 0
      %9209 = vmatprep.mubr.bf16.mxu0 0
      %9210 = vmatmul.mubr.bf16.gmra.mrb[0].mxu0 %v9172
      %v9211 = vpop.f32.mrb[0].mxu0
      %v9212 = vadd.f32 0.0, %v9211
      %v9213 = vpop.f32.mrb[0].mxu0
      %v9214 = vpop.f32.mrb[0].mxu0
      %v9215 = vpop.f32.mrb[0].mxu0
      %9216 = vdwg.mxu0
      %v9218 = vsel %vm401, %v8526, 0
      %v9221 = vsel %vm408, %v7598, 0
      %9223 = vmatprep.subr.bf16.mxu0 0
      %9224 = vmatpush1.bf16.msra.mxu0 %v9221
      %9225 = vmatprep.subr.bf16.mxu0 0
      %9226 = vmatpush1.bf16.msra.mxu0 0
      %9227 = vmatprep.subr.bf16.mxu0 0
      %9228 = vmatpush1.bf16.msra.mxu0 0
      %9229 = vmatprep.subr.bf16.mxu0 0
      %9230 = vmatpush1.bf16.msra.mxu0 0
      %9231 = vmatprep.subr.bf16.mxu0 0
      %9232 = vmatpush1.bf16.msra.mxu0 0
      %9233 = vmatprep.subr.bf16.mxu0 0
      %9234 = vmatpush1.bf16.msra.mxu0 0
      %9235 = vmatprep.subr.bf16.mxu0 0
      %9236 = vmatpush1.bf16.msra.mxu0 0
      %9237 = vmatprep.subr.bf16.mxu0 0
      %9238 = vmatpush1.bf16.msra.mxu0 0
      %9239 = vmatprep.subr.bf16.mxu0 0
      %9240 = vmatpush1.bf16.msra.mxu0 0
      %9241 = vmatprep.subr.bf16.mxu0 0
      %9242 = vmatpush1.bf16.msra.mxu0 0
      %9243 = vmatprep.subr.bf16.mxu0 0
      %9244 = vmatpush1.bf16.msra.mxu0 0
      %9245 = vmatprep.subr.bf16.mxu0 0
      %9246 = vmatpush1.bf16.msra.mxu0 0
      %9247 = vmatprep.subr.bf16.mxu0 0
      %9248 = vmatpush1.bf16.msra.mxu0 0
      %9249 = vmatprep.subr.bf16.mxu0 0
      %9250 = vmatpush1.bf16.msra.mxu0 0
      %9251 = vmatprep.subr.bf16.mxu0 0
      %9252 = vmatpush1.bf16.msra.mxu0 0
      %9253 = vmatprep.subr.bf16.mxu0 0
      %9254 = vmatpush1.bf16.msra.mxu0 0
      %9255 = vmatprep.mubr.bf16.mxu0 0
      %9256 = vmatmul.mubr.bf16.gmra.mrb[0].mxu0 %v9218
      %v9257 = vpop.f32.mrb[0].mxu0
      %v9258 = vadd.f32 0.0, %v9257
      %v9259 = vpop.f32.mrb[0].mxu0
      %v9260 = vpop.f32.mrb[0].mxu0
      %v9261 = vpop.f32.mrb[0].mxu0
      %9262 = vdwg.mxu0
      %v9263 = vpack.c.bf16 %v8614, %v8568
      %v9264 = vpack.c.bf16 %v8706, %v8660
      %v9265 = vpack.c.bf16 %v8798, %v8752
      %v9266 = vpack.c.bf16 %v8890, %v8844
      %v9267 = vpack.c.bf16 %v8982, %v8936
      %v9268 = vpack.c.bf16 %v9074, %v9028
      %v9269 = vpack.c.bf16 %v9166, %v9120
      %v9270 = vpack.c.bf16 %v9258, %v9212
      %s9271 = scalar_lea.vmem %s4, 16
      %v9272 = vld [vmem:[%s9271] sm:$0xf]
      %v9273 = vld [vmem:[%s9271 + $0x4] sm:$0xf]
      %v9274 = vld [vmem:[%s9271 + $0x8] sm:$0xf]
      %v9275 = vld [vmem:[%s9271 + $0xc] sm:$0xf]
      %v9277 = vsel %vm401, %v9263, 0
      %v9280 = vsel %vm401, %v9264, 0
      %v9283 = vsel %vm408, %v9272, 0
      %9285 = vmatprep.subr.bf16.mxu0 0
      %9286 = vmatpush1.bf16.msra.mxu0 %v9283
      %9287 = vmatprep.subr.bf16.mxu0 0
      %9288 = vmatpush1.bf16.msra.mxu0 0
      %9289 = vmatprep.subr.bf16.mxu0 0
      %9290 = vmatpush1.bf16.msra.mxu0 0
      %9291 = vmatprep.subr.bf16.mxu0 0
      %9292 = vmatpush1.bf16.msra.mxu0 0
      %9293 = vmatprep.subr.bf16.mxu0 0
      %9294 = vmatpush1.bf16.msra.mxu0 0
      %9295 = vmatprep.subr.bf16.mxu0 0
      %9296 = vmatpush1.bf16.msra.mxu0 0
      %9297 = vmatprep.subr.bf16.mxu0 0
      %9298 = vmatpush1.bf16.msra.mxu0 0
      %9299 = vmatprep.subr.bf16.mxu0 0
      %9300 = vmatpush1.bf16.msra.mxu0 0
      %9301 = vmatprep.subr.bf16.mxu0 0
      %9302 = vmatpush1.bf16.msra.mxu0 0
      %9303 = vmatprep.subr.bf16.mxu0 0
      %9304 = vmatpush1.bf16.msra.mxu0 0
      %9305 = vmatprep.subr.bf16.mxu0 0
      %9306 = vmatpush1.bf16.msra.mxu0 0
      %9307 = vmatprep.subr.bf16.mxu0 0
      %9308 = vmatpush1.bf16.msra.mxu0 0
      %9309 = vmatprep.subr.bf16.mxu0 0
      %9310 = vmatpush1.bf16.msra.mxu0 0
      %9311 = vmatprep.subr.bf16.mxu0 0
      %9312 = vmatpush1.bf16.msra.mxu0 0
      %9313 = vmatprep.subr.bf16.mxu0 0
      %9314 = vmatpush1.bf16.msra.mxu0 0
      %9315 = vmatprep.subr.bf16.mxu0 0
      %9316 = vmatpush1.bf16.msra.mxu0 0
      %9317 = vmatprep.mubr.bf16.mxu0 0
      %9318 = vmatmul.mubr.bf16.gmra.mrb[0].mxu0 %v9277
      %v9319 = vpop.f32.mrb[0].mxu0
      %v9320 = vadd.f32 0.0, %v9319
      %v9321 = vpop.f32.mrb[0].mxu0
      %v9322 = vpop.f32.mrb[0].mxu0
      %v9323 = vadd.f32 0.0, %v9322
      %v9324 = vpop.f32.mrb[0].mxu0
      %9325 = vmatprep.mubr.bf16.mxu0 0
      %9326 = vmatmul.mubr.bf16.gmra.mrb[0].mxu0 %v9280
      %v9327 = vpop.f32.mrb[0].mxu0
      %v9328 = vadd.f32 0.0, %v9327
      %v9329 = vpop.f32.mrb[0].mxu0
      %v9330 = vpop.f32.mrb[0].mxu0
      %v9331 = vadd.f32 0.0, %v9330
      %v9332 = vpop.f32.mrb[0].mxu0
      %9333 = vdwg.mxu0
      %v9335 = vsel %vm401, %v9265, 0
      %v9338 = vsel %vm401, %v9266, 0
      %v9341 = vsel %vm408, %v9273, 0
      %9343 = vmatprep.subr.bf16.mxu0 0
      %9344 = vmatpush1.bf16.msra.mxu0 %v9341
      %9345 = vmatprep.subr.bf16.mxu0 0
      %9346 = vmatpush1.bf16.msra.mxu0 0
      %9347 = vmatprep.subr.bf16.mxu0 0
      %9348 = vmatpush1.bf16.msra.mxu0 0
      %9349 = vmatprep.subr.bf16.mxu0 0
      %9350 = vmatpush1.bf16.msra.mxu0 0
      %9351 = vmatprep.subr.bf16.mxu0 0
      %9352 = vmatpush1.bf16.msra.mxu0 0
      %9353 = vmatprep.subr.bf16.mxu0 0
      %9354 = vmatpush1.bf16.msra.mxu0 0
      %9355 = vmatprep.subr.bf16.mxu0 0
      %9356 = vmatpush1.bf16.msra.mxu0 0
      %9357 = vmatprep.subr.bf16.mxu0 0
      %9358 = vmatpush1.bf16.msra.mxu0 0
      %9359 = vmatprep.subr.bf16.mxu0 0
      %9360 = vmatpush1.bf16.msra.mxu0 0
      %9361 = vmatprep.subr.bf16.mxu0 0
      %9362 = vmatpush1.bf16.msra.mxu0 0
      %9363 = vmatprep.subr.bf16.mxu0 0
      %9364 = vmatpush1.bf16.msra.mxu0 0
      %9365 = vmatprep.subr.bf16.mxu0 0
      %9366 = vmatpush1.bf16.msra.mxu0 0
      %9367 = vmatprep.subr.bf16.mxu0 0
      %9368 = vmatpush1.bf16.msra.mxu0 0
      %9369 = vmatprep.subr.bf16.mxu0 0
      %9370 = vmatpush1.bf16.msra.mxu0 0
      %9371 = vmatprep.subr.bf16.mxu0 0
      %9372 = vmatpush1.bf16.msra.mxu0 0
      %9373 = vmatprep.subr.bf16.mxu0 0
      %9374 = vmatpush1.bf16.msra.mxu0 0
      %9375 = vmatprep.mubr.bf16.mxu0 0
      %9376 = vmatmul.mubr.bf16.gmra.mrb[0].mxu0 %v9335
      %v9377 = vpop.f32.mrb[0].mxu0
      %v9378 = vadd.f32 0.0, %v9377
      %v9379 = vpop.f32.mrb[0].mxu0
      %v9380 = vpop.f32.mrb[0].mxu0
      %v9381 = vadd.f32 0.0, %v9380
      %v9382 = vpop.f32.mrb[0].mxu0
      %9383 = vmatprep.mubr.bf16.mxu0 0
      %9384 = vmatmul.mubr.bf16.gmra.mrb[0].mxu0 %v9338
      %v9385 = vpop.f32.mrb[0].mxu0
      %v9386 = vadd.f32 0.0, %v9385
      %v9387 = vpop.f32.mrb[0].mxu0
      %v9388 = vpop.f32.mrb[0].mxu0
      %v9389 = vadd.f32 0.0, %v9388
      %v9390 = vpop.f32.mrb[0].mxu0
      %9391 = vdwg.mxu0
      %v9393 = vsel %vm401, %v9267, 0
      %v9396 = vsel %vm401, %v9268, 0
      %v9399 = vsel %vm408, %v9274, 0
      %9401 = vmatprep.subr.bf16.mxu0 0
      %9402 = vmatpush1.bf16.msra.mxu0 %v9399
      %9403 = vmatprep.subr.bf16.mxu0 0
      %9404 = vmatpush1.bf16.msra.mxu0 0
      %9405 = vmatprep.subr.bf16.mxu0 0
      %9406 = vmatpush1.bf16.msra.mxu0 0
      %9407 = vmatprep.subr.bf16.mxu0 0
      %9408 = vmatpush1.bf16.msra.mxu0 0
      %9409 = vmatprep.subr.bf16.mxu0 0
      %9410 = vmatpush1.bf16.msra.mxu0 0
      %9411 = vmatprep.subr.bf16.mxu0 0
      %9412 = vmatpush1.bf16.msra.mxu0 0
      %9413 = vmatprep.subr.bf16.mxu0 0
      %9414 = vmatpush1.bf16.msra.mxu0 0
      %9415 = vmatprep.subr.bf16.mxu0 0
      %9416 = vmatpush1.bf16.msra.mxu0 0
      %9417 = vmatprep.subr.bf16.mxu0 0
      %9418 = vmatpush1.bf16.msra.mxu0 0
      %9419 = vmatprep.subr.bf16.mxu0 0
      %9420 = vmatpush1.bf16.msra.mxu0 0
      %9421 = vmatprep.subr.bf16.mxu0 0
      %9422 = vmatpush1.bf16.msra.mxu0 0
      %9423 = vmatprep.subr.bf16.mxu0 0
      %9424 = vmatpush1.bf16.msra.mxu0 0
      %9425 = vmatprep.subr.bf16.mxu0 0
      %9426 = vmatpush1.bf16.msra.mxu0 0
      %9427 = vmatprep.subr.bf16.mxu0 0
      %9428 = vmatpush1.bf16.msra.mxu0 0
      %9429 = vmatprep.subr.bf16.mxu0 0
      %9430 = vmatpush1.bf16.msra.mxu0 0
      %9431 = vmatprep.subr.bf16.mxu0 0
      %9432 = vmatpush1.bf16.msra.mxu0 0
      %9433 = vmatprep.mubr.bf16.mxu0 0
      %9434 = vmatmul.mubr.bf16.gmra.mrb[0].mxu0 %v9393
      %v9435 = vpop.f32.mrb[0].mxu0
      %v9436 = vadd.f32 0.0, %v9435
      %v9437 = vpop.f32.mrb[0].mxu0
      %v9438 = vpop.f32.mrb[0].mxu0
      %v9439 = vadd.f32 0.0, %v9438
      %v9440 = vpop.f32.mrb[0].mxu0
      %9441 = vmatprep.mubr.bf16.mxu0 0
      %9442 = vmatmul.mubr.bf16.gmra.mrb[0].mxu0 %v9396
      %v9443 = vpop.f32.mrb[0].mxu0
      %v9444 = vadd.f32 0.0, %v9443
      %v9445 = vpop.f32.mrb[0].mxu0
      %v9446 = vpop.f32.mrb[0].mxu0
      %v9447 = vadd.f32 0.0, %v9446
      %v9448 = vpop.f32.mrb[0].mxu0
      %9449 = vdwg.mxu0
      %v9451 = vsel %vm401, %v9269, 0
      %v9454 = vsel %vm401, %v9270, 0
      %v9457 = vsel %vm408, %v9275, 0
      %9459 = vmatprep.subr.bf16.mxu0 0
      %9460 = vmatpush1.bf16.msra.mxu0 %v9457
      %9461 = vmatprep.subr.bf16.mxu0 0
      %9462 = vmatpush1.bf16.msra.mxu0 0
      %9463 = vmatprep.subr.bf16.mxu0 0
      %9464 = vmatpush1.bf16.msra.mxu0 0
      %9465 = vmatprep.subr.bf16.mxu0 0
      %9466 = vmatpush1.bf16.msra.mxu0 0
      %9467 = vmatprep.subr.bf16.mxu0 0
      %9468 = vmatpush1.bf16.msra.mxu0 0
      %9469 = vmatprep.subr.bf16.mxu0 0
      %9470 = vmatpush1.bf16.msra.mxu0 0
      %9471 = vmatprep.subr.bf16.mxu0 0
      %9472 = vmatpush1.bf16.msra.mxu0 0
      %9473 = vmatprep.subr.bf16.mxu0 0
      %9474 = vmatpush1.bf16.msra.mxu0 0
      %9475 = vmatprep.subr.bf16.mxu0 0
      %9476 = vmatpush1.bf16.msra.mxu0 0
      %9477 = vmatprep.subr.bf16.mxu0 0
      %9478 = vmatpush1.bf16.msra.mxu0 0
      %9479 = vmatprep.subr.bf16.mxu0 0
      %9480 = vmatpush1.bf16.msra.mxu0 0
      %9481 = vmatprep.subr.bf16.mxu0 0
      %9482 = vmatpush1.bf16.msra.mxu0 0
      %9483 = vmatprep.subr.bf16.mxu0 0
      %9484 = vmatpush1.bf16.msra.mxu0 0
      %9485 = vmatprep.subr.bf16.mxu0 0
      %9486 = vmatpush1.bf16.msra.mxu0 0
      %9487 = vmatprep.subr.bf16.mxu0 0
      %9488 = vmatpush1.bf16.msra.mxu0 0
      %9489 = vmatprep.subr.bf16.mxu0 0
      %9490 = vmatpush1.bf16.msra.mxu0 0
      %9491 = vmatprep.mubr.bf16.mxu0 0
      %9492 = vmatmul.mubr.bf16.gmra.mrb[0].mxu0 %v9451
      %v9493 = vpop.f32.mrb[0].mxu0
      %v9494 = vadd.f32 0.0, %v9493
      %v9495 = vpop.f32.mrb[0].mxu0
      %v9496 = vpop.f32.mrb[0].mxu0
      %v9497 = vadd.f32 0.0, %v9496
      %v9498 = vpop.f32.mrb[0].mxu0
      %9499 = vmatprep.mubr.bf16.mxu0 0
      %9500 = vmatmul.mubr.bf16.gmra.mrb[0].mxu0 %v9454
      %v9501 = vpop.f32.mrb[0].mxu0
      %v9502 = vadd.f32 0.0, %v9501
      %v9503 = vpop.f32.mrb[0].mxu0
      %v9504 = vpop.f32.mrb[0].mxu0
      %v9505 = vadd.f32 0.0, %v9504
      %v9506 = vpop.f32.mrb[0].mxu0
      %9507 = vdwg.mxu0
      %v9508 = vsel %vm486, %v9320, 0.0
      %v9509 = vsel %vm486, %v9378, 0.0
      %v9510 = vadd.f32 %v9508, %v9509
      %v9511 = vsel %vm486, %v9436, 0.0
      %v9512 = vadd.f32 %v9510, %v9511
      %v9513 = vsel %vm486, %v9494, 0.0
      %v9514 = vadd.f32 %v9512, %v9513
      %v9515 = vsel %vm486, %v9323, 0.0
      %v9516 = vsel %vm486, %v9381, 0.0
      %v9517 = vadd.f32 %v9515, %v9516
      %v9518 = vsel %vm486, %v9439, 0.0
      %v9519 = vadd.f32 %v9517, %v9518
      %v9520 = vsel %vm486, %v9497, 0.0
      %v9521 = vadd.f32 %v9519, %v9520
      %v9522 = vsel %vm486, %v9328, 0.0
      %v9523 = vsel %vm486, %v9386, 0.0
      %v9524 = vadd.f32 %v9522, %v9523
      %v9525 = vsel %vm486, %v9444, 0.0
      %v9526 = vadd.f32 %v9524, %v9525
      %v9527 = vsel %vm486, %v9502, 0.0
      %v9528 = vadd.f32 %v9526, %v9527
      %v9529 = vsel %vm486, %v9331, 0.0
      %v9530 = vsel %vm486, %v9389, 0.0
      %v9531 = vadd.f32 %v9529, %v9530
      %v9532 = vsel %vm486, %v9447, 0.0
      %v9533 = vadd.f32 %v9531, %v9532
      %v9534 = vsel %vm486, %v9505, 0.0
      %v9535 = vadd.f32 %v9533, %v9534
      %v9536 = vlaneseq
      %v9537 = vshrl.u32 %v9536, 7
      %v9538 = vsub.s32 7, %v9537
      %v9539 = vrot.slane %v392, %v9538
      %v9540 = vadd.f32 %v9514, %v9539
      %v9541 = vadd.f32 %v9521, %v9539
      %v9542 = vadd.f32 %v9528, %v9539
      %v9543 = vadd.f32 %v9535, %v9539
      %v9544 = vadd.f32 %v6193, %v9540
      %v9545 = vadd.f32 %v6194, %v9541
      %v9546 = vadd.f32 %v6195, %v9542
      %v9547 = vadd.f32 %v6196, %v9543
      %v9548 = vsel %vm486, %v9544, 0.0
      %9549 = vadd.xlane.f32.xlu0 %v9548
      %v9550 = vpop.xlane.xlu0 %9549
      %v9551 = vsel %vm486, %v9545, 0.0
      %9552 = vadd.xlane.f32.xlu0 %v9551
      %v9553 = vpop.xlane.xlu0 %9552
      %v9554 = vsel %vm486, %v9546, 0.0
      %9555 = vadd.xlane.f32.xlu0 %v9554
      %v9556 = vpop.xlane.xlu0 %9555
      %v9557 = vsel %vm486, %v9547, 0.0
      %9558 = vadd.xlane.f32.xlu0 %v9557
      %v9559 = vpop.xlane.xlu0 %9558
      %v9560 = vmul.f32 %v9550, %v3828
      %v9561 = vmul.f32 %v9553, %v3828
      %v9562 = vmul.f32 %v9556, %v3828
      %v9563 = vmul.f32 %v9559, %v3828
      %v9564 = vmul.f32 %v9544, %v9544
      %v9565 = vmul.f32 %v9545, %v9545
      %v9566 = vmul.f32 %v9546, %v9546
      %v9567 = vmul.f32 %v9547, %v9547
      %v9568 = vsel %vm486, %v9564, 0.0
      %9569 = vadd.xlane.f32.xlu0 %v9568
      %v9570 = vpop.xlane.xlu0 %9569
      %v9571 = vsel %vm486, %v9565, 0.0
      %9572 = vadd.xlane.f32.xlu0 %v9571
      %v9573 = vpop.xlane.xlu0 %9572
      %v9574 = vsel %vm486, %v9566, 0.0
      %9575 = vadd.xlane.f32.xlu0 %v9574
      %v9576 = vpop.xlane.xlu0 %9575
      %v9577 = vsel %vm486, %v9567, 0.0
      %9578 = vadd.xlane.f32.xlu0 %v9577
      %v9579 = vpop.xlane.xlu0 %9578
      %v9580 = vmul.f32 %v9570, %v3828
      %v9581 = vmul.f32 %v9573, %v3828
      %v9582 = vmul.f32 %v9576, %v3828
      %v9583 = vmul.f32 %v9579, %v3828
      %v9584 = vmul.f32 %v9560, %v9560
      %v9585 = vmul.f32 %v9561, %v9561
      %v9586 = vmul.f32 %v9562, %v9562
      %v9587 = vmul.f32 %v9563, %v9563
      %v9588 = vsub.f32 %v9580, %v9584
      %v9589 = vsub.f32 %v9581, %v9585
      %v9590 = vsub.f32 %v9582, %v9586
      %v9591 = vsub.f32 %v9583, %v9587
      %v9592 = vsub.f32 %v9544, %v9560
      %v9593 = vsub.f32 %v9545, %v9561
      %v9594 = vsub.f32 %v9546, %v9562
      %v9595 = vsub.f32 %v9547, %v9563
      %v9596 = vadd.f32 %v9588, 1e-05
      %v9597 = vadd.f32 %v9589, 1e-05
      %v9598 = vadd.f32 %v9590, 1e-05
      %v9599 = vadd.f32 %v9591, 1e-05
      %v9600 = vrsqrt.pop %v9596
      %v9601 = vrsqrt.pop %v9597
      %v9602 = vrsqrt.pop %v9598
      %v9603 = vrsqrt.pop %v9599
      %v9604 = vmul.f32 %v9592, %v9600
      %v9605 = vmul.f32 %v9593, %v9601
      %v9606 = vmul.f32 %v9594, %v9602
      %v9607 = vmul.f32 %v9595, %v9603
      %v9608 = vlaneseq
      %v9609 = vshrl.u32 %v9608, 7
      %v9610 = vsub.s32 1, %v9609
      %v9611 = vrot.slane %v393, %v9610
      %v9612 = vmul.f32 %v9604, %v9611
      %v9613 = vmul.f32 %v9605, %v9611
      %v9614 = vmul.f32 %v9606, %v9611
      %v9615 = vmul.f32 %v9607, %v9611
      %v9616 = vlaneseq
      %v9617 = vshrl.u32 %v9616, 7
      %v9618 = vsub.s32 2, %v9617
      %v9619 = vrot.slane %v393, %v9618
      %v9620 = vadd.f32 %v9612, %v9619
      %v9621 = vadd.f32 %v9613, %v9619
      %v9622 = vadd.f32 %v9614, %v9619
      %v9623 = vadd.f32 %v9615, %v9619
      %v9624 = vpack.c.bf16 %v9621, %v9620
      %v9625 = vpack.c.bf16 %v9623, %v9622
      %s9626 = scalar_lea.vmem %s5, 256
      %v9627 = vld [vmem:[%s9626] sm:$0xff]
      %v9628 = vld [vmem:[%s9626 + $0x8] sm:$0xff]
      %v9629 = vld [vmem:[%s9626 + $0x10] sm:$0xff]
      %v9630 = vld [vmem:[%s9626 + $0x18] sm:$0xff]
      %v9631 = vld [vmem:[%s9626 + $0x20] sm:$0xff]
      %v9632 = vld [vmem:[%s9626 + $0x28] sm:$0xff]
      %v9633 = vld [vmem:[%s9626 + $0x30] sm:$0xff]
      %v9634 = vld [vmem:[%s9626 + $0x38] sm:$0xff]
      %v9635 = vld [vmem:[%s9626 + $0x40] sm:$0xff]
      %v9636 = vld [vmem:[%s9626 + $0x48] sm:$0xff]
      %v9637 = vld [vmem:[%s9626 + $0x50] sm:$0xff]
      %v9638 = vld [vmem:[%s9626 + $0x58] sm:$0xff]
      %v9639 = vld [vmem:[%s9626 + $0x60] sm:$0xff]
      %v9640 = vld [vmem:[%s9626 + $0x68] sm:$0xff]
      %v9641 = vld [vmem:[%s9626 + $0x70] sm:$0xff]
      %v9642 = vld [vmem:[%s9626 + $0x78] sm:$0xff]
      %v9643 = vld [vmem:[%s9626 + $0x80] sm:$0xff]
      %v9644 = vld [vmem:[%s9626 + $0x88] sm:$0xff]
      %v9645 = vld [vmem:[%s9626 + $0x90] sm:$0xff]
      %v9646 = vld [vmem:[%s9626 + $0x98] sm:$0xff]
      %v9647 = vld [vmem:[%s9626 + $0xa0] sm:$0xff]
      %v9648 = vld [vmem:[%s9626 + $0xa8] sm:$0xff]
      %v9649 = vld [vmem:[%s9626 + $0xb0] sm:$0xff]
      %v9650 = vld [vmem:[%s9626 + $0xb8] sm:$0xff]
      %v9651 = vld [vmem:[%s9626 + $0xc0] sm:$0xff]
      %v9652 = vld [vmem:[%s9626 + $0xc8] sm:$0xff]
      %v9653 = vld [vmem:[%s9626 + $0xd0] sm:$0xff]
      %v9654 = vld [vmem:[%s9626 + $0xd8] sm:$0xff]
      %v9655 = vld [vmem:[%s9626 + $0xe0] sm:$0xff]
      %v9656 = vld [vmem:[%s9626 + $0xe8] sm:$0xff]
      %v9657 = vld [vmem:[%s9626 + $0xf0] sm:$0xff]
      %v9658 = vld [vmem:[%s9626 + $0xf8] sm:$0xff]
      %s9659 = scalar_lea.vmem %s6, 16
      %v9660 = vld [vmem:[%s9659] sm:$0xff]
      %v9661 = vld [vmem:[%s9659 + $0x8] sm:$0xff]
      %v9664 = vlaneseq
      %v9665 = vshrl.u32 %v9664, 7
      %v9666 = vsub.s32 0, %v9665
      %v9667 = vrot.slane %v9660, %v9666
      %v9668 = vlaneseq
      %v9669 = vshrl.u32 %v9668, 7
      %v9670 = vsub.s32 1, %v9669
      %v9671 = vrot.slane %v9660, %v9670
      %v9672 = vlaneseq
      %v9673 = vshrl.u32 %v9672, 7
      %v9674 = vsub.s32 2, %v9673
      %v9675 = vrot.slane %v9660, %v9674
      %v9676 = vlaneseq
      %v9677 = vshrl.u32 %v9676, 7
      %v9678 = vsub.s32 3, %v9677
      %v9679 = vrot.slane %v9660, %v9678
      %v9680 = vlaneseq
      %v9681 = vshrl.u32 %v9680, 7
      %v9682 = vsub.s32 4, %v9681
      %v9683 = vrot.slane %v9660, %v9682
      %v9684 = vlaneseq
      %v9685 = vshrl.u32 %v9684, 7
      %v9686 = vsub.s32 5, %v9685
      %v9687 = vrot.slane %v9660, %v9686
      %v9688 = vlaneseq
      %v9689 = vshrl.u32 %v9688, 7
      %v9690 = vsub.s32 6, %v9689
      %v9691 = vrot.slane %v9660, %v9690
      %v9692 = vlaneseq
      %v9693 = vshrl.u32 %v9692, 7
      %v9694 = vsub.s32 7, %v9693
      %v9695 = vrot.slane %v9660, %v9694
      %v9696 = vlaneseq
      %v9697 = vshrl.u32 %v9696, 7
      %v9698 = vsub.s32 0, %v9697
      %v9699 = vrot.slane %v9661, %v9698
      %v9700 = vlaneseq
      %v9701 = vshrl.u32 %v9700, 7
      %v9702 = vsub.s32 1, %v9701
      %v9703 = vrot.slane %v9661, %v9702
      %v9704 = vlaneseq
      %v9705 = vshrl.u32 %v9704, 7
      %v9706 = vsub.s32 2, %v9705
      %v9707 = vrot.slane %v9661, %v9706
      %v9708 = vlaneseq
      %v9709 = vshrl.u32 %v9708, 7
      %v9710 = vsub.s32 3, %v9709
      %v9711 = vrot.slane %v9661, %v9710
      %v9712 = vlaneseq
      %v9713 = vshrl.u32 %v9712, 7
      %v9714 = vsub.s32 4, %v9713
      %v9715 = vrot.slane %v9661, %v9714
      %v9716 = vlaneseq
      %v9717 = vshrl.u32 %v9716, 7
      %v9718 = vsub.s32 5, %v9717
      %v9719 = vrot.slane %v9661, %v9718
      %v9720 = vlaneseq
      %v9721 = vshrl.u32 %v9720, 7
      %v9722 = vsub.s32 6, %v9721
      %v9723 = vrot.slane %v9661, %v9722
      %v9724 = vlaneseq
      %v9725 = vshrl.u32 %v9724, 7
      %v9726 = vsub.s32 7, %v9725
      %v9727 = vrot.slane %v9661, %v9726
      %v9776 = vunpack.c.l.b16 %v9627
      %v9777 = vunpack.c.h.b16 %v9627
      %v9778 = vunpack.c.l.b16 %v9628
      %v9779 = vunpack.c.h.b16 %v9628
      %v9780 = vunpack.c.l.b16 %v9629
      %v9781 = vunpack.c.h.b16 %v9629
      %v9782 = vunpack.c.l.b16 %v9630
      %v9783 = vunpack.c.h.b16 %v9630
      %v9784 = vunpack.c.l.b16 %v9631
      %v9785 = vunpack.c.h.b16 %v9631
      %v9786 = vunpack.c.l.b16 %v9632
      %v9787 = vunpack.c.h.b16 %v9632
      %v9788 = vunpack.c.l.b16 %v9633
      %v9789 = vunpack.c.h.b16 %v9633
      %v9790 = vunpack.c.l.b16 %v9634
      %v9791 = vunpack.c.h.b16 %v9634
      %v9792 = vunpack.c.l.b16 %v9635
      %v9793 = vunpack.c.h.b16 %v9635
      %v9794 = vunpack.c.l.b16 %v9636
      %v9795 = vunpack.c.h.b16 %v9636
      %v9796 = vunpack.c.l.b16 %v9637
      %v9797 = vunpack.c.h.b16 %v9637
      %v9798 = vunpack.c.l.b16 %v9638
      %v9799 = vunpack.c.h.b16 %v9638
      %v9800 = vunpack.c.l.b16 %v9639
      %v9801 = vunpack.c.h.b16 %v9639
      %v9802 = vunpack.c.l.b16 %v9640
      %v9803 = vunpack.c.h.b16 %v9640
      %v9804 = vunpack.c.l.b16 %v9641
      %v9805 = vunpack.c.h.b16 %v9641
      %v9806 = vunpack.c.l.b16 %v9642
      %v9807 = vunpack.c.h.b16 %v9642
      %v9808 = vunpack.c.l.b16 %v9643
      %v9809 = vunpack.c.h.b16 %v9643
      %v9810 = vunpack.c.l.b16 %v9644
      %v9811 = vunpack.c.h.b16 %v9644
      %v9812 = vunpack.c.l.b16 %v9645
      %v9813 = vunpack.c.h.b16 %v9645
      %v9814 = vunpack.c.l.b16 %v9646
      %v9815 = vunpack.c.h.b16 %v9646
      %v9816 = vunpack.c.l.b16 %v9647
      %v9817 = vunpack.c.h.b16 %v9647
      %v9818 = vunpack.c.l.b16 %v9648
      %v9819 = vunpack.c.h.b16 %v9648
      %v9820 = vunpack.c.l.b16 %v9649
      %v9821 = vunpack.c.h.b16 %v9649
      %v9822 = vunpack.c.l.b16 %v9650
      %v9823 = vunpack.c.h.b16 %v9650
      %v9824 = vunpack.c.l.b16 %v9651
      %v9825 = vunpack.c.h.b16 %v9651
      %v9826 = vunpack.c.l.b16 %v9652
      %v9827 = vunpack.c.h.b16 %v9652
      %v9828 = vunpack.c.l.b16 %v9653
      %v9829 = vunpack.c.h.b16 %v9653
      %v9830 = vunpack.c.l.b16 %v9654
      %v9831 = vunpack.c.h.b16 %v9654
      %v9832 = vunpack.c.l.b16 %v9655
      %v9833 = vunpack.c.h.b16 %v9655
      %v9834 = vunpack.c.l.b16 %v9656
      %v9835 = vunpack.c.h.b16 %v9656
      %v9836 = vunpack.c.l.b16 %v9657
      %v9837 = vunpack.c.h.b16 %v9657
      %v9838 = vunpack.c.l.b16 %v9658
      %v9839 = vunpack.c.h.b16 %v9658
      %v9840 = vpack.c.b16 %v9792, %v9776
      %v9841 = vpack.c.b16 %v9793, %v9777
      %v9842 = vpack.c.b16 %v9794, %v9778
      %v9843 = vpack.c.b16 %v9795, %v9779
      %v9844 = vpack.c.b16 %v9796, %v9780
      %v9845 = vpack.c.b16 %v9797, %v9781
      %v9846 = vpack.c.b16 %v9798, %v9782
      %v9847 = vpack.c.b16 %v9799, %v9783
      %v9848 = vpack.c.b16 %v9800, %v9784
      %v9849 = vpack.c.b16 %v9801, %v9785
      %v9850 = vpack.c.b16 %v9802, %v9786
      %v9851 = vpack.c.b16 %v9803, %v9787
      %v9852 = vpack.c.b16 %v9804, %v9788
      %v9853 = vpack.c.b16 %v9805, %v9789
      %v9854 = vpack.c.b16 %v9806, %v9790
      %v9855 = vpack.c.b16 %v9807, %v9791
      %v9856 = vpack.c.b16 %v9824, %v9808
      %v9857 = vpack.c.b16 %v9825, %v9809
      %v9858 = vpack.c.b16 %v9826, %v9810
      %v9859 = vpack.c.b16 %v9827, %v9811
      %v9860 = vpack.c.b16 %v9828, %v9812
      %v9861 = vpack.c.b16 %v9829, %v9813
      %v9862 = vpack.c.b16 %v9830, %v9814
      %v9863 = vpack.c.b16 %v9831, %v9815
      %v9864 = vpack.c.b16 %v9832, %v9816
      %v9865 = vpack.c.b16 %v9833, %v9817
      %v9866 = vpack.c.b16 %v9834, %v9818
      %v9867 = vpack.c.b16 %v9835, %v9819
      %v9868 = vpack.c.b16 %v9836, %v9820
      %v9869 = vpack.c.b16 %v9837, %v9821
      %v9870 = vpack.c.b16 %v9838, %v9822
      %v9871 = vpack.c.b16 %v9839, %v9823
      %v9905 = vsel %vm486, %v9624, 0
      %v9908 = vsel %vm486, %v9625, 0
      %9910 = vmatprep.subr.bf16.mxu0 %v9841
      %9911 = vmatpush1.bf16.msra.mxu0 %v9840
      %9912 = vmatprep.subr.bf16.mxu0 %v9857
      %9913 = vmatpush1.bf16.msra.mxu0 %v9856
      %9914 = vmatprep.subr.bf16.mxu0 0
      %9915 = vmatpush1.bf16.msra.mxu0 0
      %9916 = vmatprep.subr.bf16.mxu0 0
      %9917 = vmatpush1.bf16.msra.mxu0 0
      %9918 = vmatprep.subr.bf16.mxu0 0
      %9919 = vmatpush1.bf16.msra.mxu0 0
      %9920 = vmatprep.subr.bf16.mxu0 0
      %9921 = vmatpush1.bf16.msra.mxu0 0
      %9922 = vmatprep.subr.bf16.mxu0 0
      %9923 = vmatpush1.bf16.msra.mxu0 0
      %9924 = vmatprep.subr.bf16.mxu0 0
      %9925 = vmatpush1.bf16.msra.mxu0 0
      %9926 = vmatprep.subr.bf16.mxu0 0
      %9927 = vmatpush1.bf16.msra.mxu0 0
      %9928 = vmatprep.subr.bf16.mxu0 0
      %9929 = vmatpush1.bf16.msra.mxu0 0
      %9930 = vmatprep.subr.bf16.mxu0 0
      %9931 = vmatpush1.bf16.msra.mxu0 0
      %9932 = vmatprep.subr.bf16.mxu0 0
      %9933 = vmatpush1.bf16.msra.mxu0 0
      %9934 = vmatprep.subr.bf16.mxu0 0
      %9935 = vmatpush1.bf16.msra.mxu0 0
      %9936 = vmatprep.subr.bf16.mxu0 0
      %9937 = vmatpush1.bf16.msra.mxu0 0
      %9938 = vmatprep.subr.bf16.mxu0 0
      %9939 = vmatpush1.bf16.msra.mxu0 0
      %9940 = vmatprep.subr.bf16.mxu0 0
      %9941 = vmatpush1.bf16.msra.mxu0 0
      %9942 = vmatprep.mubr.bf16.mxu0 0
      %9943 = vmatmul.mubr.bf16.gmra.mrb[0].mxu0 %v9905
      %v9944 = vpop.f32.mrb[0].mxu0
      %v9945 = vadd.f32 %v9667, %v9944
      %v9946 = vpop.f32.mrb[0].mxu0
      %v9947 = vadd.f32 %v9671, %v9946
      %v9948 = vpop.f32.mrb[0].mxu0
      %v9949 = vadd.f32 %v9667, %v9948
      %v9950 = vpop.f32.mrb[0].mxu0
      %v9951 = vadd.f32 %v9671, %v9950
      %9952 = vmatprep.mubr.bf16.mxu0 0
      %9953 = vmatmul.mubr.bf16.gmra.mrb[0].mxu0 %v9908
      %v9954 = vpop.f32.mrb[0].mxu0
      %v9955 = vadd.f32 %v9667, %v9954
      %v9956 = vpop.f32.mrb[0].mxu0
      %v9957 = vadd.f32 %v9671, %v9956
      %v9958 = vpop.f32.mrb[0].mxu0
      %v9959 = vadd.f32 %v9667, %v9958
      %v9960 = vpop.f32.mrb[0].mxu0
      %v9961 = vadd.f32 %v9671, %v9960
      %9962 = vdwg.mxu0
      %9963 = vmatprep.subr.bf16.mxu0 %v9843
      %9964 = vmatpush1.bf16.msra.mxu0 %v9842
      %9965 = vmatprep.subr.bf16.mxu0 %v9859
      %9966 = vmatpush1.bf16.msra.mxu0 %v9858
      %9967 = vmatprep.subr.bf16.mxu0 0
      %9968 = vmatpush1.bf16.msra.mxu0 0
      %9969 = vmatprep.subr.bf16.mxu0 0
      %9970 = vmatpush1.bf16.msra.mxu0 0
      %9971 = vmatprep.subr.bf16.mxu0 0
      %9972 = vmatpush1.bf16.msra.mxu0 0
      %9973 = vmatprep.subr.bf16.mxu0 0
      %9974 = vmatpush1.bf16.msra.mxu0 0
      %9975 = vmatprep.subr.bf16.mxu0 0
      %9976 = vmatpush1.bf16.msra.mxu0 0
      %9977 = vmatprep.subr.bf16.mxu0 0
      %9978 = vmatpush1.bf16.msra.mxu0 0
      %9979 = vmatprep.subr.bf16.mxu0 0
      %9980 = vmatpush1.bf16.msra.mxu0 0
      %9981 = vmatprep.subr.bf16.mxu0 0
      %9982 = vmatpush1.bf16.msra.mxu0 0
      %9983 = vmatprep.subr.bf16.mxu0 0
      %9984 = vmatpush1.bf16.msra.mxu0 0
      %9985 = vmatprep.subr.bf16.mxu0 0
      %9986 = vmatpush1.bf16.msra.mxu0 0
      %9987 = vmatprep.subr.bf16.mxu0 0
      %9988 = vmatpush1.bf16.msra.mxu0 0
      %9989 = vmatprep.subr.bf16.mxu0 0
      %9990 = vmatpush1.bf16.msra.mxu0 0
      %9991 = vmatprep.subr.bf16.mxu0 0
      %9992 = vmatpush1.bf16.msra.mxu0 0
      %9993 = vmatprep.subr.bf16.mxu0 0
      %9994 = vmatpush1.bf16.msra.mxu0 0
      %9995 = vmatprep.mubr.bf16.mxu0 0
      %9996 = vmatmul.mubr.bf16.gmra.mrb[0].mxu0 %v9905
      %v9997 = vpop.f32.mrb[0].mxu0
      %v9998 = vadd.f32 %v9675, %v9997
      %v9999 = vpop.f32.mrb[0].mxu0
      %v10000 = vadd.f32 %v9679, %v9999
      %v10001 = vpop.f32.mrb[0].mxu0
      %v10002 = vadd.f32 %v9675, %v10001
      %v10003 = vpop.f32.mrb[0].mxu0
      %v10004 = vadd.f32 %v9679, %v10003
      %10005 = vmatprep.mubr.bf16.mxu0 0
      %10006 = vmatmul.mubr.bf16.gmra.mrb[0].mxu0 %v9908
      %v10007 = vpop.f32.mrb[0].mxu0
      %v10008 = vadd.f32 %v9675, %v10007
      %v10009 = vpop.f32.mrb[0].mxu0
      %v10010 = vadd.f32 %v9679, %v10009
      %v10011 = vpop.f32.mrb[0].mxu0
      %v10012 = vadd.f32 %v9675, %v10011
      %v10013 = vpop.f32.mrb[0].mxu0
      %v10014 = vadd.f32 %v9679, %v10013
      %10015 = vdwg.mxu0
      %10016 = vmatprep.subr.bf16.mxu0 %v9845
      %10017 = vmatpush1.bf16.msra.mxu0 %v9844
      %10018 = vmatprep.subr.bf16.mxu0 %v9861
      %10019 = vmatpush1.bf16.msra.mxu0 %v9860
      %10020 = vmatprep.subr.bf16.mxu0 0
      %10021 = vmatpush1.bf16.msra.mxu0 0
      %10022 = vmatprep.subr.bf16.mxu0 0
      %10023 = vmatpush1.bf16.msra.mxu0 0
      %10024 = vmatprep.subr.bf16.mxu0 0
      %10025 = vmatpush1.bf16.msra.mxu0 0
      %10026 = vmatprep.subr.bf16.mxu0 0
      %10027 = vmatpush1.bf16.msra.mxu0 0
      %10028 = vmatprep.subr.bf16.mxu0 0
      %10029 = vmatpush1.bf16.msra.mxu0 0
      %10030 = vmatprep.subr.bf16.mxu0 0
      %10031 = vmatpush1.bf16.msra.mxu0 0
      %10032 = vmatprep.subr.bf16.mxu0 0
      %10033 = vmatpush1.bf16.msra.mxu0 0
      %10034 = vmatprep.subr.bf16.mxu0 0
      %10035 = vmatpush1.bf16.msra.mxu0 0
      %10036 = vmatprep.subr.bf16.mxu0 0
      %10037 = vmatpush1.bf16.msra.mxu0 0
      %10038 = vmatprep.subr.bf16.mxu0 0
      %10039 = vmatpush1.bf16.msra.mxu0 0
      %10040 = vmatprep.subr.bf16.mxu0 0
      %10041 = vmatpush1.bf16.msra.mxu0 0
      %10042 = vmatprep.subr.bf16.mxu0 0
      %10043 = vmatpush1.bf16.msra.mxu0 0
      %10044 = vmatprep.subr.bf16.mxu0 0
      %10045 = vmatpush1.bf16.msra.mxu0 0
      %10046 = vmatprep.subr.bf16.mxu0 0
      %10047 = vmatpush1.bf16.msra.mxu0 0
      %10048 = vmatprep.mubr.bf16.mxu0 0
      %10049 = vmatmul.mubr.bf16.gmra.mrb[0].mxu0 %v9905
      %v10050 = vpop.f32.mrb[0].mxu0
      %v10051 = vadd.f32 %v9683, %v10050
      %v10052 = vpop.f32.mrb[0].mxu0
      %v10053 = vadd.f32 %v9687, %v10052
      %v10054 = vpop.f32.mrb[0].mxu0
      %v10055 = vadd.f32 %v9683, %v10054
      %v10056 = vpop.f32.mrb[0].mxu0
      %v10057 = vadd.f32 %v9687, %v10056
      %10058 = vmatprep.mubr.bf16.mxu0 0
      %10059 = vmatmul.mubr.bf16.gmra.mrb[0].mxu0 %v9908
      %v10060 = vpop.f32.mrb[0].mxu0
      %v10061 = vadd.f32 %v9683, %v10060
      %v10062 = vpop.f32.mrb[0].mxu0
      %v10063 = vadd.f32 %v9687, %v10062
      %v10064 = vpop.f32.mrb[0].mxu0
      %v10065 = vadd.f32 %v9683, %v10064
      %v10066 = vpop.f32.mrb[0].mxu0
      %v10067 = vadd.f32 %v9687, %v10066
      %10068 = vdwg.mxu0
      %10069 = vmatprep.subr.bf16.mxu0 %v9847
      %10070 = vmatpush1.bf16.msra.mxu0 %v9846
      %10071 = vmatprep.subr.bf16.mxu0 %v9863
      %10072 = vmatpush1.bf16.msra.mxu0 %v9862
      %10073 = vmatprep.subr.bf16.mxu0 0
      %10074 = vmatpush1.bf16.msra.mxu0 0
      %10075 = vmatprep.subr.bf16.mxu0 0
      %10076 = vmatpush1.bf16.msra.mxu0 0
      %10077 = vmatprep.subr.bf16.mxu0 0
      %10078 = vmatpush1.bf16.msra.mxu0 0
      %10079 = vmatprep.subr.bf16.mxu0 0
      %10080 = vmatpush1.bf16.msra.mxu0 0
      %10081 = vmatprep.subr.bf16.mxu0 0
      %10082 = vmatpush1.bf16.msra.mxu0 0
      %10083 = vmatprep.subr.bf16.mxu0 0
      %10084 = vmatpush1.bf16.msra.mxu0 0
      %10085 = vmatprep.subr.bf16.mxu0 0
      %10086 = vmatpush1.bf16.msra.mxu0 0
      %10087 = vmatprep.subr.bf16.mxu0 0
      %10088 = vmatpush1.bf16.msra.mxu0 0
      %10089 = vmatprep.subr.bf16.mxu0 0
      %10090 = vmatpush1.bf16.msra.mxu0 0
      %10091 = vmatprep.subr.bf16.mxu0 0
      %10092 = vmatpush1.bf16.msra.mxu0 0
      %10093 = vmatprep.subr.bf16.mxu0 0
      %10094 = vmatpush1.bf16.msra.mxu0 0
      %10095 = vmatprep.subr.bf16.mxu0 0
      %10096 = vmatpush1.bf16.msra.mxu0 0
      %10097 = vmatprep.subr.bf16.mxu0 0
      %10098 = vmatpush1.bf16.msra.mxu0 0
      %10099 = vmatprep.subr.bf16.mxu0 0
      %10100 = vmatpush1.bf16.msra.mxu0 0
      %10101 = vmatprep.mubr.bf16.mxu0 0
      %10102 = vmatmul.mubr.bf16.gmra.mrb[0].mxu0 %v9905
      %v10103 = vpop.f32.mrb[0].mxu0
      %v10104 = vadd.f32 %v9691, %v10103
      %v10105 = vpop.f32.mrb[0].mxu0
      %v10106 = vadd.f32 %v9695, %v10105
      %v10107 = vpop.f32.mrb[0].mxu0
      %v10108 = vadd.f32 %v9691, %v10107
      %v10109 = vpop.f32.mrb[0].mxu0
      %v10110 = vadd.f32 %v9695, %v10109
      %10111 = vmatprep.mubr.bf16.mxu0 0
      %10112 = vmatmul.mubr.bf16.gmra.mrb[0].mxu0 %v9908
      %v10113 = vpop.f32.mrb[0].mxu0
      %v10114 = vadd.f32 %v9691, %v10113
      %v10115 = vpop.f32.mrb[0].mxu0
      %v10116 = vadd.f32 %v9695, %v10115
      %v10117 = vpop.f32.mrb[0].mxu0
      %v10118 = vadd.f32 %v9691, %v10117
      %v10119 = vpop.f32.mrb[0].mxu0
      %v10120 = vadd.f32 %v9695, %v10119
      %10121 = vdwg.mxu0
      %10122 = vmatprep.subr.bf16.mxu0 %v9849
      %10123 = vmatpush1.bf16.msra.mxu0 %v9848
      %10124 = vmatprep.subr.bf16.mxu0 %v9865
      %10125 = vmatpush1.bf16.msra.mxu0 %v9864
      %10126 = vmatprep.subr.bf16.mxu0 0
      %10127 = vmatpush1.bf16.msra.mxu0 0
      %10128 = vmatprep.subr.bf16.mxu0 0
      %10129 = vmatpush1.bf16.msra.mxu0 0
      %10130 = vmatprep.subr.bf16.mxu0 0
      %10131 = vmatpush1.bf16.msra.mxu0 0
      %10132 = vmatprep.subr.bf16.mxu0 0
      %10133 = vmatpush1.bf16.msra.mxu0 0
      %10134 = vmatprep.subr.bf16.mxu0 0
      %10135 = vmatpush1.bf16.msra.mxu0 0
      %10136 = vmatprep.subr.bf16.mxu0 0
      %10137 = vmatpush1.bf16.msra.mxu0 0
      %10138 = vmatprep.subr.bf16.mxu0 0
      %10139 = vmatpush1.bf16.msra.mxu0 0
      %10140 = vmatprep.subr.bf16.mxu0 0
      %10141 = vmatpush1.bf16.msra.mxu0 0
      %10142 = vmatprep.subr.bf16.mxu0 0
      %10143 = vmatpush1.bf16.msra.mxu0 0
      %10144 = vmatprep.subr.bf16.mxu0 0
      %10145 = vmatpush1.bf16.msra.mxu0 0
      %10146 = vmatprep.subr.bf16.mxu0 0
      %10147 = vmatpush1.bf16.msra.mxu0 0
      %10148 = vmatprep.subr.bf16.mxu0 0
      %10149 = vmatpush1.bf16.msra.mxu0 0
      %10150 = vmatprep.subr.bf16.mxu0 0
      %10151 = vmatpush1.bf16.msra.mxu0 0
      %10152 = vmatprep.subr.bf16.mxu0 0
      %10153 = vmatpush1.bf16.msra.mxu0 0
      %10154 = vmatprep.mubr.bf16.mxu0 0
      %10155 = vmatmul.mubr.bf16.gmra.mrb[0].mxu0 %v9905
      %v10156 = vpop.f32.mrb[0].mxu0
      %v10157 = vadd.f32 %v9699, %v10156
      %v10158 = vpop.f32.mrb[0].mxu0
      %v10159 = vadd.f32 %v9703, %v10158
      %v10160 = vpop.f32.mrb[0].mxu0
      %v10161 = vadd.f32 %v9699, %v10160
      %v10162 = vpop.f32.mrb[0].mxu0
      %v10163 = vadd.f32 %v9703, %v10162
      %10164 = vmatprep.mubr.bf16.mxu0 0
      %10165 = vmatmul.mubr.bf16.gmra.mrb[0].mxu0 %v9908
      %v10166 = vpop.f32.mrb[0].mxu0
      %v10167 = vadd.f32 %v9699, %v10166
      %v10168 = vpop.f32.mrb[0].mxu0
      %v10169 = vadd.f32 %v9703, %v10168
      %v10170 = vpop.f32.mrb[0].mxu0
      %v10171 = vadd.f32 %v9699, %v10170
      %v10172 = vpop.f32.mrb[0].mxu0
      %v10173 = vadd.f32 %v9703, %v10172
      %10174 = vdwg.mxu0
      %10175 = vmatprep.subr.bf16.mxu0 %v9851
      %10176 = vmatpush1.bf16.msra.mxu0 %v9850
      %10177 = vmatprep.subr.bf16.mxu0 %v9867
      %10178 = vmatpush1.bf16.msra.mxu0 %v9866
      %10179 = vmatprep.subr.bf16.mxu0 0
      %10180 = vmatpush1.bf16.msra.mxu0 0
      %10181 = vmatprep.subr.bf16.mxu0 0
      %10182 = vmatpush1.bf16.msra.mxu0 0
      %10183 = vmatprep.subr.bf16.mxu0 0
      %10184 = vmatpush1.bf16.msra.mxu0 0
      %10185 = vmatprep.subr.bf16.mxu0 0
      %10186 = vmatpush1.bf16.msra.mxu0 0
      %10187 = vmatprep.subr.bf16.mxu0 0
      %10188 = vmatpush1.bf16.msra.mxu0 0
      %10189 = vmatprep.subr.bf16.mxu0 0
      %10190 = vmatpush1.bf16.msra.mxu0 0
      %10191 = vmatprep.subr.bf16.mxu0 0
      %10192 = vmatpush1.bf16.msra.mxu0 0
      %10193 = vmatprep.subr.bf16.mxu0 0
      %10194 = vmatpush1.bf16.msra.mxu0 0
      %10195 = vmatprep.subr.bf16.mxu0 0
      %10196 = vmatpush1.bf16.msra.mxu0 0
      %10197 = vmatprep.subr.bf16.mxu0 0
      %10198 = vmatpush1.bf16.msra.mxu0 0
      %10199 = vmatprep.subr.bf16.mxu0 0
      %10200 = vmatpush1.bf16.msra.mxu0 0
      %10201 = vmatprep.subr.bf16.mxu0 0
      %10202 = vmatpush1.bf16.msra.mxu0 0
      %10203 = vmatprep.subr.bf16.mxu0 0
      %10204 = vmatpush1.bf16.msra.mxu0 0
      %10205 = vmatprep.subr.bf16.mxu0 0
      %10206 = vmatpush1.bf16.msra.mxu0 0
      %10207 = vmatprep.mubr.bf16.mxu0 0
      %10208 = vmatmul.mubr.bf16.gmra.mrb[0].mxu0 %v9905
      %v10209 = vpop.f32.mrb[0].mxu0
      %v10210 = vadd.f32 %v9707, %v10209
      %v10211 = vpop.f32.mrb[0].mxu0
      %v10212 = vadd.f32 %v9711, %v10211
      %v10213 = vpop.f32.mrb[0].mxu0
      %v10214 = vadd.f32 %v9707, %v10213
      %v10215 = vpop.f32.mrb[0].mxu0
      %v10216 = vadd.f32 %v9711, %v10215
      %10217 = vmatprep.mubr.bf16.mxu0 0
      %10218 = vmatmul.mubr.bf16.gmra.mrb[0].mxu0 %v9908
      %v10219 = vpop.f32.mrb[0].mxu0
      %v10220 = vadd.f32 %v9707, %v10219
      %v10221 = vpop.f32.mrb[0].mxu0
      %v10222 = vadd.f32 %v9711, %v10221
      %v10223 = vpop.f32.mrb[0].mxu0
      %v10224 = vadd.f32 %v9707, %v10223
      %v10225 = vpop.f32.mrb[0].mxu0
      %v10226 = vadd.f32 %v9711, %v10225
      %10227 = vdwg.mxu0
      %10228 = vmatprep.subr.bf16.mxu0 %v9853
      %10229 = vmatpush1.bf16.msra.mxu0 %v9852
      %10230 = vmatprep.subr.bf16.mxu0 %v9869
      %10231 = vmatpush1.bf16.msra.mxu0 %v9868
      %10232 = vmatprep.subr.bf16.mxu0 0
      %10233 = vmatpush1.bf16.msra.mxu0 0
      %10234 = vmatprep.subr.bf16.mxu0 0
      %10235 = vmatpush1.bf16.msra.mxu0 0
      %10236 = vmatprep.subr.bf16.mxu0 0
      %10237 = vmatpush1.bf16.msra.mxu0 0
      %10238 = vmatprep.subr.bf16.mxu0 0
      %10239 = vmatpush1.bf16.msra.mxu0 0
      %10240 = vmatprep.subr.bf16.mxu0 0
      %10241 = vmatpush1.bf16.msra.mxu0 0
      %10242 = vmatprep.subr.bf16.mxu0 0
      %10243 = vmatpush1.bf16.msra.mxu0 0
      %10244 = vmatprep.subr.bf16.mxu0 0
      %10245 = vmatpush1.bf16.msra.mxu0 0
      %10246 = vmatprep.subr.bf16.mxu0 0
      %10247 = vmatpush1.bf16.msra.mxu0 0
      %10248 = vmatprep.subr.bf16.mxu0 0
      %10249 = vmatpush1.bf16.msra.mxu0 0
      %10250 = vmatprep.subr.bf16.mxu0 0
      %10251 = vmatpush1.bf16.msra.mxu0 0
      %10252 = vmatprep.subr.bf16.mxu0 0
      %10253 = vmatpush1.bf16.msra.mxu0 0
      %10254 = vmatprep.subr.bf16.mxu0 0
      %10255 = vmatpush1.bf16.msra.mxu0 0
      %10256 = vmatprep.subr.bf16.mxu0 0
      %10257 = vmatpush1.bf16.msra.mxu0 0
      %10258 = vmatprep.subr.bf16.mxu0 0
      %10259 = vmatpush1.bf16.msra.mxu0 0
      %10260 = vmatprep.mubr.bf16.mxu0 0
      %10261 = vmatmul.mubr.bf16.gmra.mrb[0].mxu0 %v9905
      %v10262 = vpop.f32.mrb[0].mxu0
      %v10263 = vadd.f32 %v9715, %v10262
      %v10264 = vpop.f32.mrb[0].mxu0
      %v10265 = vadd.f32 %v9719, %v10264
      %v10266 = vpop.f32.mrb[0].mxu0
      %v10267 = vadd.f32 %v9715, %v10266
      %v10268 = vpop.f32.mrb[0].mxu0
      %v10269 = vadd.f32 %v9719, %v10268
      %10270 = vmatprep.mubr.bf16.mxu0 0
      %10271 = vmatmul.mubr.bf16.gmra.mrb[0].mxu0 %v9908
      %v10272 = vpop.f32.mrb[0].mxu0
      %v10273 = vadd.f32 %v9715, %v10272
      %v10274 = vpop.f32.mrb[0].mxu0
      %v10275 = vadd.f32 %v9719, %v10274
      %v10276 = vpop.f32.mrb[0].mxu0
      %v10277 = vadd.f32 %v9715, %v10276
      %v10278 = vpop.f32.mrb[0].mxu0
      %v10279 = vadd.f32 %v9719, %v10278
      %10280 = vdwg.mxu0
      %10281 = vmatprep.subr.bf16.mxu0 %v9855
      %10282 = vmatpush1.bf16.msra.mxu0 %v9854
      %10283 = vmatprep.subr.bf16.mxu0 %v9871
      %10284 = vmatpush1.bf16.msra.mxu0 %v9870
      %10285 = vmatprep.subr.bf16.mxu0 0
      %10286 = vmatpush1.bf16.msra.mxu0 0
      %10287 = vmatprep.subr.bf16.mxu0 0
      %10288 = vmatpush1.bf16.msra.mxu0 0
      %10289 = vmatprep.subr.bf16.mxu0 0
      %10290 = vmatpush1.bf16.msra.mxu0 0
      %10291 = vmatprep.subr.bf16.mxu0 0
      %10292 = vmatpush1.bf16.msra.mxu0 0
      %10293 = vmatprep.subr.bf16.mxu0 0
      %10294 = vmatpush1.bf16.msra.mxu0 0
      %10295 = vmatprep.subr.bf16.mxu0 0
      %10296 = vmatpush1.bf16.msra.mxu0 0
      %10297 = vmatprep.subr.bf16.mxu0 0
      %10298 = vmatpush1.bf16.msra.mxu0 0
      %10299 = vmatprep.subr.bf16.mxu0 0
      %10300 = vmatpush1.bf16.msra.mxu0 0
      %10301 = vmatprep.subr.bf16.mxu0 0
      %10302 = vmatpush1.bf16.msra.mxu0 0
      %10303 = vmatprep.subr.bf16.mxu0 0
      %10304 = vmatpush1.bf16.msra.mxu0 0
      %10305 = vmatprep.subr.bf16.mxu0 0
      %10306 = vmatpush1.bf16.msra.mxu0 0
      %10307 = vmatprep.subr.bf16.mxu0 0
      %10308 = vmatpush1.bf16.msra.mxu0 0
      %10309 = vmatprep.subr.bf16.mxu0 0
      %10310 = vmatpush1.bf16.msra.mxu0 0
      %10311 = vmatprep.subr.bf16.mxu0 0
      %10312 = vmatpush1.bf16.msra.mxu0 0
      %10313 = vmatprep.mubr.bf16.mxu0 0
      %10314 = vmatmul.mubr.bf16.gmra.mrb[0].mxu0 %v9905
      %v10315 = vpop.f32.mrb[0].mxu0
      %v10316 = vadd.f32 %v9723, %v10315
      %v10317 = vpop.f32.mrb[0].mxu0
      %v10318 = vadd.f32 %v9727, %v10317
      %v10319 = vpop.f32.mrb[0].mxu0
      %v10320 = vadd.f32 %v9723, %v10319
      %v10321 = vpop.f32.mrb[0].mxu0
      %v10322 = vadd.f32 %v9727, %v10321
      %10323 = vmatprep.mubr.bf16.mxu0 0
      %10324 = vmatmul.mubr.bf16.gmra.mrb[0].mxu0 %v9908
      %v10325 = vpop.f32.mrb[0].mxu0
      %v10326 = vadd.f32 %v9723, %v10325
      %v10327 = vpop.f32.mrb[0].mxu0
      %v10328 = vadd.f32 %v9727, %v10327
      %v10329 = vpop.f32.mrb[0].mxu0
      %v10330 = vadd.f32 %v9723, %v10329
      %v10331 = vpop.f32.mrb[0].mxu0
      %v10332 = vadd.f32 %v9727, %v10331
      %10333 = vdwg.mxu0
      %v10334 = vmax.f32 %v9945, 0.0
      %v10335 = vmax.f32 %v9947, 0.0
      %v10336 = vmax.f32 %v9998, 0.0
      %v10337 = vmax.f32 %v10000, 0.0
      %v10338 = vmax.f32 %v10051, 0.0
      %v10339 = vmax.f32 %v10053, 0.0
      %v10340 = vmax.f32 %v10104, 0.0
      %v10341 = vmax.f32 %v10106, 0.0
      %v10342 = vmax.f32 %v10157, 0.0
      %v10343 = vmax.f32 %v10159, 0.0
      %v10344 = vmax.f32 %v10210, 0.0
      %v10345 = vmax.f32 %v10212, 0.0
      %v10346 = vmax.f32 %v10263, 0.0
      %v10347 = vmax.f32 %v10265, 0.0
      %v10348 = vmax.f32 %v10316, 0.0
      %v10349 = vmax.f32 %v10318, 0.0
      %v10350 = vmax.f32 %v9949, 0.0
      %v10351 = vmax.f32 %v9951, 0.0
      %v10352 = vmax.f32 %v10002, 0.0
      %v10353 = vmax.f32 %v10004, 0.0
      %v10354 = vmax.f32 %v10055, 0.0
      %v10355 = vmax.f32 %v10057, 0.0
      %v10356 = vmax.f32 %v10108, 0.0
      %v10357 = vmax.f32 %v10110, 0.0
      %v10358 = vmax.f32 %v10161, 0.0
      %v10359 = vmax.f32 %v10163, 0.0
      %v10360 = vmax.f32 %v10214, 0.0
      %v10361 = vmax.f32 %v10216, 0.0
      %v10362 = vmax.f32 %v10267, 0.0
      %v10363 = vmax.f32 %v10269, 0.0
      %v10364 = vmax.f32 %v10320, 0.0
      %v10365 = vmax.f32 %v10322, 0.0
      %v10366 = vmax.f32 %v9955, 0.0
      %v10367 = vmax.f32 %v9957, 0.0
      %v10368 = vmax.f32 %v10008, 0.0
      %v10369 = vmax.f32 %v10010, 0.0
      %v10370 = vmax.f32 %v10061, 0.0
      %v10371 = vmax.f32 %v10063, 0.0
      %v10372 = vmax.f32 %v10114, 0.0
      %v10373 = vmax.f32 %v10116, 0.0
      %v10374 = vmax.f32 %v10167, 0.0
      %v10375 = vmax.f32 %v10169, 0.0
      %v10376 = vmax.f32 %v10220, 0.0
      %v10377 = vmax.f32 %v10222, 0.0
      %v10378 = vmax.f32 %v10273, 0.0
      %v10379 = vmax.f32 %v10275, 0.0
      %v10380 = vmax.f32 %v10326, 0.0
      %v10381 = vmax.f32 %v10328, 0.0
      %v10382 = vmax.f32 %v9959, 0.0
      %v10383 = vmax.f32 %v9961, 0.0
      %v10384 = vmax.f32 %v10012, 0.0
      %v10385 = vmax.f32 %v10014, 0.0
      %v10386 = vmax.f32 %v10065, 0.0
      %v10387 = vmax.f32 %v10067, 0.0
      %v10388 = vmax.f32 %v10118, 0.0
      %v10389 = vmax.f32 %v10120, 0.0
      %v10390 = vmax.f32 %v10171, 0.0
      %v10391 = vmax.f32 %v10173, 0.0
      %v10392 = vmax.f32 %v10224, 0.0
      %v10393 = vmax.f32 %v10226, 0.0
      %v10394 = vmax.f32 %v10277, 0.0
      %v10395 = vmax.f32 %v10279, 0.0
      %v10396 = vmax.f32 %v10330, 0.0
      %v10397 = vmax.f32 %v10332, 0.0
      %v10398 = vpack.c.bf16 %v10350, %v10334
      %v10399 = vpack.c.bf16 %v10351, %v10335
      %v10400 = vpack.c.bf16 %v10352, %v10336
      %v10401 = vpack.c.bf16 %v10353, %v10337
      %v10402 = vpack.c.bf16 %v10354, %v10338
      %v10403 = vpack.c.bf16 %v10355, %v10339
      %v10404 = vpack.c.bf16 %v10356, %v10340
      %v10405 = vpack.c.bf16 %v10357, %v10341
      %v10406 = vpack.c.bf16 %v10358, %v10342
      %v10407 = vpack.c.bf16 %v10359, %v10343
      %v10408 = vpack.c.bf16 %v10360, %v10344
      %v10409 = vpack.c.bf16 %v10361, %v10345
      %v10410 = vpack.c.bf16 %v10362, %v10346
      %v10411 = vpack.c.bf16 %v10363, %v10347
      %v10412 = vpack.c.bf16 %v10364, %v10348
      %v10413 = vpack.c.bf16 %v10365, %v10349
      %v10414 = vpack.c.bf16 %v10382, %v10366
      %v10415 = vpack.c.bf16 %v10383, %v10367
      %v10416 = vpack.c.bf16 %v10384, %v10368
      %v10417 = vpack.c.bf16 %v10385, %v10369
      %v10418 = vpack.c.bf16 %v10386, %v10370
      %v10419 = vpack.c.bf16 %v10387, %v10371
      %v10420 = vpack.c.bf16 %v10388, %v10372
      %v10421 = vpack.c.bf16 %v10389, %v10373
      %v10422 = vpack.c.bf16 %v10390, %v10374
      %v10423 = vpack.c.bf16 %v10391, %v10375
      %v10424 = vpack.c.bf16 %v10392, %v10376
      %v10425 = vpack.c.bf16 %v10393, %v10377
      %v10426 = vpack.c.bf16 %v10394, %v10378
      %v10427 = vpack.c.bf16 %v10395, %v10379
      %v10428 = vpack.c.bf16 %v10396, %v10380
      %v10429 = vpack.c.bf16 %v10397, %v10381
      %s10430 = scalar_lea.vmem %s7, 1024
      %v10431 = vld [vmem:[%s10430] sm:$0xf]
      %v10432 = vld [vmem:[%s10430 + $0x4] sm:$0xf]
      %v10433 = vld [vmem:[%s10430 + $0x8] sm:$0xf]
      %v10434 = vld [vmem:[%s10430 + $0xc] sm:$0xf]
      %v10435 = vld [vmem:[%s10430 + $0x10] sm:$0xf]
      %v10436 = vld [vmem:[%s10430 + $0x14] sm:$0xf]
      %v10437 = vld [vmem:[%s10430 + $0x18] sm:$0xf]
      %v10438 = vld [vmem:[%s10430 + $0x1c] sm:$0xf]
      %v10439 = vld [vmem:[%s10430 + $0x20] sm:$0xf]
      %v10440 = vld [vmem:[%s10430 + $0x24] sm:$0xf]
      %v10441 = vld [vmem:[%s10430 + $0x28] sm:$0xf]
      %v10442 = vld [vmem:[%s10430 + $0x2c] sm:$0xf]
      %v10443 = vld [vmem:[%s10430 + $0x30] sm:$0xf]
      %v10444 = vld [vmem:[%s10430 + $0x34] sm:$0xf]
      %v10445 = vld [vmem:[%s10430 + $0x38] sm:$0xf]
      %v10446 = vld [vmem:[%s10430 + $0x3c] sm:$0xf]
      %v10447 = vld [vmem:[%s10430 + $0x40] sm:$0xf]
      %v10448 = vld [vmem:[%s10430 + $0x44] sm:$0xf]
      %v10449 = vld [vmem:[%s10430 + $0x48] sm:$0xf]
      %v10450 = vld [vmem:[%s10430 + $0x4c] sm:$0xf]
      %v10451 = vld [vmem:[%s10430 + $0x50] sm:$0xf]
      %v10452 = vld [vmem:[%s10430 + $0x54] sm:$0xf]
      %v10453 = vld [vmem:[%s10430 + $0x58] sm:$0xf]
      %v10454 = vld [vmem:[%s10430 + $0x5c] sm:$0xf]
      %v10455 = vld [vmem:[%s10430 + $0x60] sm:$0xf]
      %v10456 = vld [vmem:[%s10430 + $0x64] sm:$0xf]
      %v10457 = vld [vmem:[%s10430 + $0x68] sm:$0xf]
      %v10458 = vld [vmem:[%s10430 + $0x6c] sm:$0xf]
      %v10459 = vld [vmem:[%s10430 + $0x70] sm:$0xf]
      %v10460 = vld [vmem:[%s10430 + $0x74] sm:$0xf]
      %v10461 = vld [vmem:[%s10430 + $0x78] sm:$0xf]
      %v10462 = vld [vmem:[%s10430 + $0x7c] sm:$0xf]
      %v10463 = vld [vmem:[%s10430 + $0x80] sm:$0xf]
      %v10464 = vld [vmem:[%s10430 + $0x84] sm:$0xf]
      %v10465 = vld [vmem:[%s10430 + $0x88] sm:$0xf]
      %v10466 = vld [vmem:[%s10430 + $0x8c] sm:$0xf]
      %v10467 = vld [vmem:[%s10430 + $0x90] sm:$0xf]
      %v10468 = vld [vmem:[%s10430 + $0x94] sm:$0xf]
      %v10469 = vld [vmem:[%s10430 + $0x98] sm:$0xf]
      %v10470 = vld [vmem:[%s10430 + $0x9c] sm:$0xf]
      %v10471 = vld [vmem:[%s10430 + $0xa0] sm:$0xf]
      %v10472 = vld [vmem:[%s10430 + $0xa4] sm:$0xf]
      %v10473 = vld [vmem:[%s10430 + $0xa8] sm:$0xf]
      %v10474 = vld [vmem:[%s10430 + $0xac] sm:$0xf]
      %v10475 = vld [vmem:[%s10430 + $0xb0] sm:$0xf]
      %v10476 = vld [vmem:[%s10430 + $0xb4] sm:$0xf]
      %v10477 = vld [vmem:[%s10430 + $0xb8] sm:$0xf]
      %v10478 = vld [vmem:[%s10430 + $0xbc] sm:$0xf]
      %v10479 = vld [vmem:[%s10430 + $0xc0] sm:$0xf]
      %v10480 = vld [vmem:[%s10430 + $0xc4] sm:$0xf]
      %v10481 = vld [vmem:[%s10430 + $0xc8] sm:$0xf]
      %v10482 = vld [vmem:[%s10430 + $0xcc] sm:$0xf]
      %v10483 = vld [vmem:[%s10430 + $0xd0] sm:$0xf]
      %v10484 = vld [vmem:[%s10430 + $0xd4] sm:$0xf]
      %v10485 = vld [vmem:[%s10430 + $0xd8] sm:$0xf]
      %v10486 = vld [vmem:[%s10430 + $0xdc] sm:$0xf]
      %v10487 = vld [vmem:[%s10430 + $0xe0] sm:$0xf]
      %v10488 = vld [vmem:[%s10430 + $0xe4] sm:$0xf]
      %v10489 = vld [vmem:[%s10430 + $0xe8] sm:$0xf]
      %v10490 = vld [vmem:[%s10430 + $0xec] sm:$0xf]
      %v10491 = vld [vmem:[%s10430 + $0xf0] sm:$0xf]
      %v10492 = vld [vmem:[%s10430 + $0xf4] sm:$0xf]
      %v10493 = vld [vmem:[%s10430 + $0xf8] sm:$0xf]
      %v10494 = vld [vmem:[%s10430 + $0xfc] sm:$0xf]
      %v10495 = vld [vmem:[%s10430 + $0x100] sm:$0xf]
      %v10496 = vld [vmem:[%s10430 + $0x104] sm:$0xf]
      %v10497 = vld [vmem:[%s10430 + $0x108] sm:$0xf]
      %v10498 = vld [vmem:[%s10430 + $0x10c] sm:$0xf]
      %v10499 = vld [vmem:[%s10430 + $0x110] sm:$0xf]
      %v10500 = vld [vmem:[%s10430 + $0x114] sm:$0xf]
      %v10501 = vld [vmem:[%s10430 + $0x118] sm:$0xf]
      %v10502 = vld [vmem:[%s10430 + $0x11c] sm:$0xf]
      %v10503 = vld [vmem:[%s10430 + $0x120] sm:$0xf]
      %v10504 = vld [vmem:[%s10430 + $0x124] sm:$0xf]
      %v10505 = vld [vmem:[%s10430 + $0x128] sm:$0xf]
      %v10506 = vld [vmem:[%s10430 + $0x12c] sm:$0xf]
      %v10507 = vld [vmem:[%s10430 + $0x130] sm:$0xf]
      %v10508 = vld [vmem:[%s10430 + $0x134] sm:$0xf]
      %v10509 = vld [vmem:[%s10430 + $0x138] sm:$0xf]
      %v10510 = vld [vmem:[%s10430 + $0x13c] sm:$0xf]
      %v10511 = vld [vmem:[%s10430 + $0x140] sm:$0xf]
      %v10512 = vld [vmem:[%s10430 + $0x144] sm:$0xf]
      %v10513 = vld [vmem:[%s10430 + $0x148] sm:$0xf]
      %v10514 = vld [vmem:[%s10430 + $0x14c] sm:$0xf]
      %v10515 = vld [vmem:[%s10430 + $0x150] sm:$0xf]
      %v10516 = vld [vmem:[%s10430 + $0x154] sm:$0xf]
      %v10517 = vld [vmem:[%s10430 + $0x158] sm:$0xf]
      %v10518 = vld [vmem:[%s10430 + $0x15c] sm:$0xf]
      %v10519 = vld [vmem:[%s10430 + $0x160] sm:$0xf]
      %v10520 = vld [vmem:[%s10430 + $0x164] sm:$0xf]
      %v10521 = vld [vmem:[%s10430 + $0x168] sm:$0xf]
      %v10522 = vld [vmem:[%s10430 + $0x16c] sm:$0xf]
      %v10523 = vld [vmem:[%s10430 + $0x170] sm:$0xf]
      %v10524 = vld [vmem:[%s10430 + $0x174] sm:$0xf]
      %v10525 = vld [vmem:[%s10430 + $0x178] sm:$0xf]
      %v10526 = vld [vmem:[%s10430 + $0x17c] sm:$0xf]
      %v10527 = vld [vmem:[%s10430 + $0x180] sm:$0xf]
      %v10528 = vld [vmem:[%s10430 + $0x184] sm:$0xf]
      %v10529 = vld [vmem:[%s10430 + $0x188] sm:$0xf]
      %v10530 = vld [vmem:[%s10430 + $0x18c] sm:$0xf]
      %v10531 = vld [vmem:[%s10430 + $0x190] sm:$0xf]
      %v10532 = vld [vmem:[%s10430 + $0x194] sm:$0xf]
      %v10533 = vld [vmem:[%s10430 + $0x198] sm:$0xf]
      %v10534 = vld [vmem:[%s10430 + $0x19c] sm:$0xf]
      %v10535 = vld [vmem:[%s10430 + $0x1a0] sm:$0xf]
      %v10536 = vld [vmem:[%s10430 + $0x1a4] sm:$0xf]
      %v10537 = vld [vmem:[%s10430 + $0x1a8] sm:$0xf]
      %v10538 = vld [vmem:[%s10430 + $0x1ac] sm:$0xf]
      %v10539 = vld [vmem:[%s10430 + $0x1b0] sm:$0xf]
      %v10540 = vld [vmem:[%s10430 + $0x1b4] sm:$0xf]
      %v10541 = vld [vmem:[%s10430 + $0x1b8] sm:$0xf]
      %v10542 = vld [vmem:[%s10430 + $0x1bc] sm:$0xf]
      %v10543 = vld [vmem:[%s10430 + $0x1c0] sm:$0xf]
      %v10544 = vld [vmem:[%s10430 + $0x1c4] sm:$0xf]
      %v10545 = vld [vmem:[%s10430 + $0x1c8] sm:$0xf]
      %v10546 = vld [vmem:[%s10430 + $0x1cc] sm:$0xf]
      %v10547 = vld [vmem:[%s10430 + $0x1d0] sm:$0xf]
      %v10548 = vld [vmem:[%s10430 + $0x1d4] sm:$0xf]
      %v10549 = vld [vmem:[%s10430 + $0x1d8] sm:$0xf]
      %v10550 = vld [vmem:[%s10430 + $0x1dc] sm:$0xf]
      %v10551 = vld [vmem:[%s10430 + $0x1e0] sm:$0xf]
      %v10552 = vld [vmem:[%s10430 + $0x1e4] sm:$0xf]
      %v10553 = vld [vmem:[%s10430 + $0x1e8] sm:$0xf]
      %v10554 = vld [vmem:[%s10430 + $0x1ec] sm:$0xf]
      %v10555 = vld [vmem:[%s10430 + $0x1f0] sm:$0xf]
      %v10556 = vld [vmem:[%s10430 + $0x1f4] sm:$0xf]
      %v10557 = vld [vmem:[%s10430 + $0x1f8] sm:$0xf]
      %v10558 = vld [vmem:[%s10430 + $0x1fc] sm:$0xf]
      %v10559 = vld [vmem:[%s10430 + $0x200] sm:$0xf]
      %v10560 = vld [vmem:[%s10430 + $0x204] sm:$0xf]
      %v10561 = vld [vmem:[%s10430 + $0x208] sm:$0xf]
      %v10562 = vld [vmem:[%s10430 + $0x20c] sm:$0xf]
      %v10563 = vld [vmem:[%s10430 + $0x210] sm:$0xf]
      %v10564 = vld [vmem:[%s10430 + $0x214] sm:$0xf]
      %v10565 = vld [vmem:[%s10430 + $0x218] sm:$0xf]
      %v10566 = vld [vmem:[%s10430 + $0x21c] sm:$0xf]
      %v10567 = vld [vmem:[%s10430 + $0x220] sm:$0xf]
      %v10568 = vld [vmem:[%s10430 + $0x224] sm:$0xf]
      %v10569 = vld [vmem:[%s10430 + $0x228] sm:$0xf]
      %v10570 = vld [vmem:[%s10430 + $0x22c] sm:$0xf]
      %v10571 = vld [vmem:[%s10430 + $0x230] sm:$0xf]
      %v10572 = vld [vmem:[%s10430 + $0x234] sm:$0xf]
      %v10573 = vld [vmem:[%s10430 + $0x238] sm:$0xf]
      %v10574 = vld [vmem:[%s10430 + $0x23c] sm:$0xf]
      %v10575 = vld [vmem:[%s10430 + $0x240] sm:$0xf]
      %v10576 = vld [vmem:[%s10430 + $0x244] sm:$0xf]
      %v10577 = vld [vmem:[%s10430 + $0x248] sm:$0xf]
      %v10578 = vld [vmem:[%s10430 + $0x24c] sm:$0xf]
      %v10579 = vld [vmem:[%s10430 + $0x250] sm:$0xf]
      %v10580 = vld [vmem:[%s10430 + $0x254] sm:$0xf]
      %v10581 = vld [vmem:[%s10430 + $0x258] sm:$0xf]
      %v10582 = vld [vmem:[%s10430 + $0x25c] sm:$0xf]
      %v10583 = vld [vmem:[%s10430 + $0x260] sm:$0xf]
      %v10584 = vld [vmem:[%s10430 + $0x264] sm:$0xf]
      %v10585 = vld [vmem:[%s10430 + $0x268] sm:$0xf]
      %v10586 = vld [vmem:[%s10430 + $0x26c] sm:$0xf]
      %v10587 = vld [vmem:[%s10430 + $0x270] sm:$0xf]
      %v10588 = vld [vmem:[%s10430 + $0x274] sm:$0xf]
      %v10589 = vld [vmem:[%s10430 + $0x278] sm:$0xf]
      %v10590 = vld [vmem:[%s10430 + $0x27c] sm:$0xf]
      %v10591 = vld [vmem:[%s10430 + $0x280] sm:$0xf]
      %v10592 = vld [vmem:[%s10430 + $0x284] sm:$0xf]
      %v10593 = vld [vmem:[%s10430 + $0x288] sm:$0xf]
      %v10594 = vld [vmem:[%s10430 + $0x28c] sm:$0xf]
      %v10595 = vld [vmem:[%s10430 + $0x290] sm:$0xf]
      %v10596 = vld [vmem:[%s10430 + $0x294] sm:$0xf]
      %v10597 = vld [vmem:[%s10430 + $0x298] sm:$0xf]
      %v10598 = vld [vmem:[%s10430 + $0x29c] sm:$0xf]
      %v10599 = vld [vmem:[%s10430 + $0x2a0] sm:$0xf]
      %v10600 = vld [vmem:[%s10430 + $0x2a4] sm:$0xf]
      %v10601 = vld [vmem:[%s10430 + $0x2a8] sm:$0xf]
      %v10602 = vld [vmem:[%s10430 + $0x2ac] sm:$0xf]
      %v10603 = vld [vmem:[%s10430 + $0x2b0] sm:$0xf]
      %v10604 = vld [vmem:[%s10430 + $0x2b4] sm:$0xf]
      %v10605 = vld [vmem:[%s10430 + $0x2b8] sm:$0xf]
      %v10606 = vld [vmem:[%s10430 + $0x2bc] sm:$0xf]
      %v10607 = vld [vmem:[%s10430 + $0x2c0] sm:$0xf]
      %v10608 = vld [vmem:[%s10430 + $0x2c4] sm:$0xf]
      %v10609 = vld [vmem:[%s10430 + $0x2c8] sm:$0xf]
      %v10610 = vld [vmem:[%s10430 + $0x2cc] sm:$0xf]
      %v10611 = vld [vmem:[%s10430 + $0x2d0] sm:$0xf]
      %v10612 = vld [vmem:[%s10430 + $0x2d4] sm:$0xf]
      %v10613 = vld [vmem:[%s10430 + $0x2d8] sm:$0xf]
      %v10614 = vld [vmem:[%s10430 + $0x2dc] sm:$0xf]
      %v10615 = vld [vmem:[%s10430 + $0x2e0] sm:$0xf]
      %v10616 = vld [vmem:[%s10430 + $0x2e4] sm:$0xf]
      %v10617 = vld [vmem:[%s10430 + $0x2e8] sm:$0xf]
      %v10618 = vld [vmem:[%s10430 + $0x2ec] sm:$0xf]
      %v10619 = vld [vmem:[%s10430 + $0x2f0] sm:$0xf]
      %v10620 = vld [vmem:[%s10430 + $0x2f4] sm:$0xf]
      %v10621 = vld [vmem:[%s10430 + $0x2f8] sm:$0xf]
      %v10622 = vld [vmem:[%s10430 + $0x2fc] sm:$0xf]
      %v10623 = vld [vmem:[%s10430 + $0x300] sm:$0xf]
      %v10624 = vld [vmem:[%s10430 + $0x304] sm:$0xf]
      %v10625 = vld [vmem:[%s10430 + $0x308] sm:$0xf]
      %v10626 = vld [vmem:[%s10430 + $0x30c] sm:$0xf]
      %v10627 = vld [vmem:[%s10430 + $0x310] sm:$0xf]
      %v10628 = vld [vmem:[%s10430 + $0x314] sm:$0xf]
      %v10629 = vld [vmem:[%s10430 + $0x318] sm:$0xf]
      %v10630 = vld [vmem:[%s10430 + $0x31c] sm:$0xf]
      %v10631 = vld [vmem:[%s10430 + $0x320] sm:$0xf]
      %v10632 = vld [vmem:[%s10430 + $0x324] sm:$0xf]
      %v10633 = vld [vmem:[%s10430 + $0x328] sm:$0xf]
      %v10634 = vld [vmem:[%s10430 + $0x32c] sm:$0xf]
      %v10635 = vld [vmem:[%s10430 + $0x330] sm:$0xf]
      %v10636 = vld [vmem:[%s10430 + $0x334] sm:$0xf]
      %v10637 = vld [vmem:[%s10430 + $0x338] sm:$0xf]
      %v10638 = vld [vmem:[%s10430 + $0x33c] sm:$0xf]
      %v10639 = vld [vmem:[%s10430 + $0x340] sm:$0xf]
      %v10640 = vld [vmem:[%s10430 + $0x344] sm:$0xf]
      %v10641 = vld [vmem:[%s10430 + $0x348] sm:$0xf]
      %v10642 = vld [vmem:[%s10430 + $0x34c] sm:$0xf]
      %v10643 = vld [vmem:[%s10430 + $0x350] sm:$0xf]
      %v10644 = vld [vmem:[%s10430 + $0x354] sm:$0xf]
      %v10645 = vld [vmem:[%s10430 + $0x358] sm:$0xf]
      %v10646 = vld [vmem:[%s10430 + $0x35c] sm:$0xf]
      %v10647 = vld [vmem:[%s10430 + $0x360] sm:$0xf]
      %v10648 = vld [vmem:[%s10430 + $0x364] sm:$0xf]
      %v10649 = vld [vmem:[%s10430 + $0x368] sm:$0xf]
      %v10650 = vld [vmem:[%s10430 + $0x36c] sm:$0xf]
      %v10651 = vld [vmem:[%s10430 + $0x370] sm:$0xf]
      %v10652 = vld [vmem:[%s10430 + $0x374] sm:$0xf]
      %v10653 = vld [vmem:[%s10430 + $0x378] sm:$0xf]
      %v10654 = vld [vmem:[%s10430 + $0x37c] sm:$0xf]
      %v10655 = vld [vmem:[%s10430 + $0x380] sm:$0xf]
      %v10656 = vld [vmem:[%s10430 + $0x384] sm:$0xf]
      %v10657 = vld [vmem:[%s10430 + $0x388] sm:$0xf]
      %v10658 = vld [vmem:[%s10430 + $0x38c] sm:$0xf]
      %v10659 = vld [vmem:[%s10430 + $0x390] sm:$0xf]
      %v10660 = vld [vmem:[%s10430 + $0x394] sm:$0xf]
      %v10661 = vld [vmem:[%s10430 + $0x398] sm:$0xf]
      %v10662 = vld [vmem:[%s10430 + $0x39c] sm:$0xf]
      %v10663 = vld [vmem:[%s10430 + $0x3a0] sm:$0xf]
      %v10664 = vld [vmem:[%s10430 + $0x3a4] sm:$0xf]
      %v10665 = vld [vmem:[%s10430 + $0x3a8] sm:$0xf]
      %v10666 = vld [vmem:[%s10430 + $0x3ac] sm:$0xf]
      %v10667 = vld [vmem:[%s10430 + $0x3b0] sm:$0xf]
      %v10668 = vld [vmem:[%s10430 + $0x3b4] sm:$0xf]
      %v10669 = vld [vmem:[%s10430 + $0x3b8] sm:$0xf]
      %v10670 = vld [vmem:[%s10430 + $0x3bc] sm:$0xf]
      %v10671 = vld [vmem:[%s10430 + $0x3c0] sm:$0xf]
      %v10672 = vld [vmem:[%s10430 + $0x3c4] sm:$0xf]
      %v10673 = vld [vmem:[%s10430 + $0x3c8] sm:$0xf]
      %v10674 = vld [vmem:[%s10430 + $0x3cc] sm:$0xf]
      %v10675 = vld [vmem:[%s10430 + $0x3d0] sm:$0xf]
      %v10676 = vld [vmem:[%s10430 + $0x3d4] sm:$0xf]
      %v10677 = vld [vmem:[%s10430 + $0x3d8] sm:$0xf]
      %v10678 = vld [vmem:[%s10430 + $0x3dc] sm:$0xf]
      %v10679 = vld [vmem:[%s10430 + $0x3e0] sm:$0xf]
      %v10680 = vld [vmem:[%s10430 + $0x3e4] sm:$0xf]
      %v10681 = vld [vmem:[%s10430 + $0x3e8] sm:$0xf]
      %v10682 = vld [vmem:[%s10430 + $0x3ec] sm:$0xf]
      %v10683 = vld [vmem:[%s10430 + $0x3f0] sm:$0xf]
      %v10684 = vld [vmem:[%s10430 + $0x3f4] sm:$0xf]
      %v10685 = vld [vmem:[%s10430 + $0x3f8] sm:$0xf]
      %v10686 = vld [vmem:[%s10430 + $0x3fc] sm:$0xf]
      %v10687 = vlaneseq
      %v10688 = vshrl.u32 %v10687, 7
      %v10689 = vsub.s32 0, %v10688
      %v10690 = vrot.slane %v393, %v10689
      %v10947 = vunpack.c.l.b16 %v10431
      %v10948 = vunpack.c.l.b16 %v10432
      %v10949 = vunpack.c.l.b16 %v10433
      %v10950 = vunpack.c.l.b16 %v10434
      %v10951 = vunpack.c.l.b16 %v10435
      %v10952 = vunpack.c.l.b16 %v10436
      %v10953 = vunpack.c.l.b16 %v10437
      %v10954 = vunpack.c.l.b16 %v10438
      %v10955 = vunpack.c.l.b16 %v10439
      %v10956 = vunpack.c.l.b16 %v10440
      %v10957 = vunpack.c.l.b16 %v10441
      %v10958 = vunpack.c.l.b16 %v10442
      %v10959 = vunpack.c.l.b16 %v10443
      %v10960 = vunpack.c.l.b16 %v10444
      %v10961 = vunpack.c.l.b16 %v10445
      %v10962 = vunpack.c.l.b16 %v10446
      %v10963 = vunpack.c.l.b16 %v10447
      %v10964 = vunpack.c.l.b16 %v10448
      %v10965 = vunpack.c.l.b16 %v10449
      %v10966 = vunpack.c.l.b16 %v10450
      %v10967 = vunpack.c.l.b16 %v10451
      %v10968 = vunpack.c.l.b16 %v10452
      %v10969 = vunpack.c.l.b16 %v10453
      %v10970 = vunpack.c.l.b16 %v10454
      %v10971 = vunpack.c.l.b16 %v10455
      %v10972 = vunpack.c.l.b16 %v10456
      %v10973 = vunpack.c.l.b16 %v10457
      %v10974 = vunpack.c.l.b16 %v10458
      %v10975 = vunpack.c.l.b16 %v10459
      %v10976 = vunpack.c.l.b16 %v10460
      %v10977 = vunpack.c.l.b16 %v10461
      %v10978 = vunpack.c.l.b16 %v10462
      %v10979 = vunpack.c.l.b16 %v10463
      %v10980 = vunpack.c.l.b16 %v10464
      %v10981 = vunpack.c.l.b16 %v10465
      %v10982 = vunpack.c.l.b16 %v10466
      %v10983 = vunpack.c.l.b16 %v10467
      %v10984 = vunpack.c.l.b16 %v10468
      %v10985 = vunpack.c.l.b16 %v10469
      %v10986 = vunpack.c.l.b16 %v10470
      %v10987 = vunpack.c.l.b16 %v10471
      %v10988 = vunpack.c.l.b16 %v10472
      %v10989 = vunpack.c.l.b16 %v10473
      %v10990 = vunpack.c.l.b16 %v10474
      %v10991 = vunpack.c.l.b16 %v10475
      %v10992 = vunpack.c.l.b16 %v10476
      %v10993 = vunpack.c.l.b16 %v10477
      %v10994 = vunpack.c.l.b16 %v10478
      %v10995 = vunpack.c.l.b16 %v10479
      %v10996 = vunpack.c.l.b16 %v10480
      %v10997 = vunpack.c.l.b16 %v10481
      %v10998 = vunpack.c.l.b16 %v10482
      %v10999 = vunpack.c.l.b16 %v10483
      %v11000 = vunpack.c.l.b16 %v10484
      %v11001 = vunpack.c.l.b16 %v10485
      %v11002 = vunpack.c.l.b16 %v10486
      %v11003 = vunpack.c.l.b16 %v10487
      %v11004 = vunpack.c.l.b16 %v10488
      %v11005 = vunpack.c.l.b16 %v10489
      %v11006 = vunpack.c.l.b16 %v10490
      %v11007 = vunpack.c.l.b16 %v10491
      %v11008 = vunpack.c.l.b16 %v10492
      %v11009 = vunpack.c.l.b16 %v10493
      %v11010 = vunpack.c.l.b16 %v10494
      %v11011 = vunpack.c.l.b16 %v10495
      %v11012 = vunpack.c.l.b16 %v10496
      %v11013 = vunpack.c.l.b16 %v10497
      %v11014 = vunpack.c.l.b16 %v10498
      %v11015 = vunpack.c.l.b16 %v10499
      %v11016 = vunpack.c.l.b16 %v10500
      %v11017 = vunpack.c.l.b16 %v10501
      %v11018 = vunpack.c.l.b16 %v10502
      %v11019 = vunpack.c.l.b16 %v10503
      %v11020 = vunpack.c.l.b16 %v10504
      %v11021 = vunpack.c.l.b16 %v10505
      %v11022 = vunpack.c.l.b16 %v10506
      %v11023 = vunpack.c.l.b16 %v10507
      %v11024 = vunpack.c.l.b16 %v10508
      %v11025 = vunpack.c.l.b16 %v10509
      %v11026 = vunpack.c.l.b16 %v10510
      %v11027 = vunpack.c.l.b16 %v10511
      %v11028 = vunpack.c.l.b16 %v10512
      %v11029 = vunpack.c.l.b16 %v10513
      %v11030 = vunpack.c.l.b16 %v10514
      %v11031 = vunpack.c.l.b16 %v10515
      %v11032 = vunpack.c.l.b16 %v10516
      %v11033 = vunpack.c.l.b16 %v10517
      %v11034 = vunpack.c.l.b16 %v10518
      %v11035 = vunpack.c.l.b16 %v10519
      %v11036 = vunpack.c.l.b16 %v10520
      %v11037 = vunpack.c.l.b16 %v10521
      %v11038 = vunpack.c.l.b16 %v10522
      %v11039 = vunpack.c.l.b16 %v10523
      %v11040 = vunpack.c.l.b16 %v10524
      %v11041 = vunpack.c.l.b16 %v10525
      %v11042 = vunpack.c.l.b16 %v10526
      %v11043 = vunpack.c.l.b16 %v10527
      %v11044 = vunpack.c.l.b16 %v10528
      %v11045 = vunpack.c.l.b16 %v10529
      %v11046 = vunpack.c.l.b16 %v10530
      %v11047 = vunpack.c.l.b16 %v10531
      %v11048 = vunpack.c.l.b16 %v10532
      %v11049 = vunpack.c.l.b16 %v10533
      %v11050 = vunpack.c.l.b16 %v10534
      %v11051 = vunpack.c.l.b16 %v10535
      %v11052 = vunpack.c.l.b16 %v10536
      %v11053 = vunpack.c.l.b16 %v10537
      %v11054 = vunpack.c.l.b16 %v10538
      %v11055 = vunpack.c.l.b16 %v10539
      %v11056 = vunpack.c.l.b16 %v10540
      %v11057 = vunpack.c.l.b16 %v10541
      %v11058 = vunpack.c.l.b16 %v10542
      %v11059 = vunpack.c.l.b16 %v10543
      %v11060 = vunpack.c.l.b16 %v10544
      %v11061 = vunpack.c.l.b16 %v10545
      %v11062 = vunpack.c.l.b16 %v10546
      %v11063 = vunpack.c.l.b16 %v10547
      %v11064 = vunpack.c.l.b16 %v10548
      %v11065 = vunpack.c.l.b16 %v10549
      %v11066 = vunpack.c.l.b16 %v10550
      %v11067 = vunpack.c.l.b16 %v10551
      %v11068 = vunpack.c.l.b16 %v10552
      %v11069 = vunpack.c.l.b16 %v10553
      %v11070 = vunpack.c.l.b16 %v10554
      %v11071 = vunpack.c.l.b16 %v10555
      %v11072 = vunpack.c.l.b16 %v10556
      %v11073 = vunpack.c.l.b16 %v10557
      %v11074 = vunpack.c.l.b16 %v10558
      %v11075 = vunpack.c.l.b16 %v10559
      %v11076 = vunpack.c.l.b16 %v10560
      %v11077 = vunpack.c.l.b16 %v10561
      %v11078 = vunpack.c.l.b16 %v10562
      %v11079 = vunpack.c.l.b16 %v10563
      %v11080 = vunpack.c.l.b16 %v10564
      %v11081 = vunpack.c.l.b16 %v10565
      %v11082 = vunpack.c.l.b16 %v10566
      %v11083 = vunpack.c.l.b16 %v10567
      %v11084 = vunpack.c.l.b16 %v10568
      %v11085 = vunpack.c.l.b16 %v10569
      %v11086 = vunpack.c.l.b16 %v10570
      %v11087 = vunpack.c.l.b16 %v10571
      %v11088 = vunpack.c.l.b16 %v10572
      %v11089 = vunpack.c.l.b16 %v10573
      %v11090 = vunpack.c.l.b16 %v10574
      %v11091 = vunpack.c.l.b16 %v10575
      %v11092 = vunpack.c.l.b16 %v10576
      %v11093 = vunpack.c.l.b16 %v10577
      %v11094 = vunpack.c.l.b16 %v10578
      %v11095 = vunpack.c.l.b16 %v10579
      %v11096 = vunpack.c.l.b16 %v10580
      %v11097 = vunpack.c.l.b16 %v10581
      %v11098 = vunpack.c.l.b16 %v10582
      %v11099 = vunpack.c.l.b16 %v10583
      %v11100 = vunpack.c.l.b16 %v10584
      %v11101 = vunpack.c.l.b16 %v10585
      %v11102 = vunpack.c.l.b16 %v10586
      %v11103 = vunpack.c.l.b16 %v10587
      %v11104 = vunpack.c.l.b16 %v10588
      %v11105 = vunpack.c.l.b16 %v10589
      %v11106 = vunpack.c.l.b16 %v10590
      %v11107 = vunpack.c.l.b16 %v10591
      %v11108 = vunpack.c.l.b16 %v10592
      %v11109 = vunpack.c.l.b16 %v10593
      %v11110 = vunpack.c.l.b16 %v10594
      %v11111 = vunpack.c.l.b16 %v10595
      %v11112 = vunpack.c.l.b16 %v10596
      %v11113 = vunpack.c.l.b16 %v10597
      %v11114 = vunpack.c.l.b16 %v10598
      %v11115 = vunpack.c.l.b16 %v10599
      %v11116 = vunpack.c.l.b16 %v10600
      %v11117 = vunpack.c.l.b16 %v10601
      %v11118 = vunpack.c.l.b16 %v10602
      %v11119 = vunpack.c.l.b16 %v10603
      %v11120 = vunpack.c.l.b16 %v10604
      %v11121 = vunpack.c.l.b16 %v10605
      %v11122 = vunpack.c.l.b16 %v10606
      %v11123 = vunpack.c.l.b16 %v10607
      %v11124 = vunpack.c.l.b16 %v10608
      %v11125 = vunpack.c.l.b16 %v10609
      %v11126 = vunpack.c.l.b16 %v10610
      %v11127 = vunpack.c.l.b16 %v10611
      %v11128 = vunpack.c.l.b16 %v10612
      %v11129 = vunpack.c.l.b16 %v10613
      %v11130 = vunpack.c.l.b16 %v10614
      %v11131 = vunpack.c.l.b16 %v10615
      %v11132 = vunpack.c.l.b16 %v10616
      %v11133 = vunpack.c.l.b16 %v10617
      %v11134 = vunpack.c.l.b16 %v10618
      %v11135 = vunpack.c.l.b16 %v10619
      %v11136 = vunpack.c.l.b16 %v10620
      %v11137 = vunpack.c.l.b16 %v10621
      %v11138 = vunpack.c.l.b16 %v10622
      %v11139 = vunpack.c.l.b16 %v10623
      %v11140 = vunpack.c.l.b16 %v10624
      %v11141 = vunpack.c.l.b16 %v10625
      %v11142 = vunpack.c.l.b16 %v10626
      %v11143 = vunpack.c.l.b16 %v10627
      %v11144 = vunpack.c.l.b16 %v10628
      %v11145 = vunpack.c.l.b16 %v10629
      %v11146 = vunpack.c.l.b16 %v10630
      %v11147 = vunpack.c.l.b16 %v10631
      %v11148 = vunpack.c.l.b16 %v10632
      %v11149 = vunpack.c.l.b16 %v10633
      %v11150 = vunpack.c.l.b16 %v10634
      %v11151 = vunpack.c.l.b16 %v10635
      %v11152 = vunpack.c.l.b16 %v10636
      %v11153 = vunpack.c.l.b16 %v10637
      %v11154 = vunpack.c.l.b16 %v10638
      %v11155 = vunpack.c.l.b16 %v10639
      %v11156 = vunpack.c.l.b16 %v10640
      %v11157 = vunpack.c.l.b16 %v10641
      %v11158 = vunpack.c.l.b16 %v10642
      %v11159 = vunpack.c.l.b16 %v10643
      %v11160 = vunpack.c.l.b16 %v10644
      %v11161 = vunpack.c.l.b16 %v10645
      %v11162 = vunpack.c.l.b16 %v10646
      %v11163 = vunpack.c.l.b16 %v10647
      %v11164 = vunpack.c.l.b16 %v10648
      %v11165 = vunpack.c.l.b16 %v10649
      %v11166 = vunpack.c.l.b16 %v10650
      %v11167 = vunpack.c.l.b16 %v10651
      %v11168 = vunpack.c.l.b16 %v10652
      %v11169 = vunpack.c.l.b16 %v10653
      %v11170 = vunpack.c.l.b16 %v10654
      %v11171 = vunpack.c.l.b16 %v10655
      %v11172 = vunpack.c.l.b16 %v10656
      %v11173 = vunpack.c.l.b16 %v10657
      %v11174 = vunpack.c.l.b16 %v10658
      %v11175 = vunpack.c.l.b16 %v10659
      %v11176 = vunpack.c.l.b16 %v10660
      %v11177 = vunpack.c.l.b16 %v10661
      %v11178 = vunpack.c.l.b16 %v10662
      %v11179 = vunpack.c.l.b16 %v10663
      %v11180 = vunpack.c.l.b16 %v10664
      %v11181 = vunpack.c.l.b16 %v10665
      %v11182 = vunpack.c.l.b16 %v10666
      %v11183 = vunpack.c.l.b16 %v10667
      %v11184 = vunpack.c.l.b16 %v10668
      %v11185 = vunpack.c.l.b16 %v10669
      %v11186 = vunpack.c.l.b16 %v10670
      %v11187 = vunpack.c.l.b16 %v10671
      %v11188 = vunpack.c.l.b16 %v10672
      %v11189 = vunpack.c.l.b16 %v10673
      %v11190 = vunpack.c.l.b16 %v10674
      %v11191 = vunpack.c.l.b16 %v10675
      %v11192 = vunpack.c.l.b16 %v10676
      %v11193 = vunpack.c.l.b16 %v10677
      %v11194 = vunpack.c.l.b16 %v10678
      %v11195 = vunpack.c.l.b16 %v10679
      %v11196 = vunpack.c.l.b16 %v10680
      %v11197 = vunpack.c.l.b16 %v10681
      %v11198 = vunpack.c.l.b16 %v10682
      %v11199 = vunpack.c.l.b16 %v10683
      %v11200 = vunpack.c.l.b16 %v10684
      %v11201 = vunpack.c.l.b16 %v10685
      %v11202 = vunpack.c.l.b16 %v10686
      %v11203 = vpack.c.b16 %v10948, %v10947
      %v11204 = vpack.c.b16 %v10950, %v10949
      %v11205 = vpack.c.b16 %v10952, %v10951
      %v11206 = vpack.c.b16 %v10954, %v10953
      %v11207 = vpack.c.b16 %v10956, %v10955
      %v11208 = vpack.c.b16 %v10958, %v10957
      %v11209 = vpack.c.b16 %v10960, %v10959
      %v11210 = vpack.c.b16 %v10962, %v10961
      %v11211 = vpack.c.b16 %v10964, %v10963
      %v11212 = vpack.c.b16 %v10966, %v10965
      %v11213 = vpack.c.b16 %v10968, %v10967
      %v11214 = vpack.c.b16 %v10970, %v10969
      %v11215 = vpack.c.b16 %v10972, %v10971
      %v11216 = vpack.c.b16 %v10974, %v10973
      %v11217 = vpack.c.b16 %v10976, %v10975
      %v11218 = vpack.c.b16 %v10978, %v10977
      %v11219 = vpack.c.b16 %v10980, %v10979
      %v11220 = vpack.c.b16 %v10982, %v10981
      %v11221 = vpack.c.b16 %v10984, %v10983
      %v11222 = vpack.c.b16 %v10986, %v10985
      %v11223 = vpack.c.b16 %v10988, %v10987
      %v11224 = vpack.c.b16 %v10990, %v10989
      %v11225 = vpack.c.b16 %v10992, %v10991
      %v11226 = vpack.c.b16 %v10994, %v10993
      %v11227 = vpack.c.b16 %v10996, %v10995
      %v11228 = vpack.c.b16 %v10998, %v10997
      %v11229 = vpack.c.b16 %v11000, %v10999
      %v11230 = vpack.c.b16 %v11002, %v11001
      %v11231 = vpack.c.b16 %v11004, %v11003
      %v11232 = vpack.c.b16 %v11006, %v11005
      %v11233 = vpack.c.b16 %v11008, %v11007
      %v11234 = vpack.c.b16 %v11010, %v11009
      %v11235 = vpack.c.b16 %v11012, %v11011
      %v11236 = vpack.c.b16 %v11014, %v11013
      %v11237 = vpack.c.b16 %v11016, %v11015
      %v11238 = vpack.c.b16 %v11018, %v11017
      %v11239 = vpack.c.b16 %v11020, %v11019
      %v11240 = vpack.c.b16 %v11022, %v11021
      %v11241 = vpack.c.b16 %v11024, %v11023
      %v11242 = vpack.c.b16 %v11026, %v11025
      %v11243 = vpack.c.b16 %v11028, %v11027
      %v11244 = vpack.c.b16 %v11030, %v11029
      %v11245 = vpack.c.b16 %v11032, %v11031
      %v11246 = vpack.c.b16 %v11034, %v11033
      %v11247 = vpack.c.b16 %v11036, %v11035
      %v11248 = vpack.c.b16 %v11038, %v11037
      %v11249 = vpack.c.b16 %v11040, %v11039
      %v11250 = vpack.c.b16 %v11042, %v11041
      %v11251 = vpack.c.b16 %v11044, %v11043
      %v11252 = vpack.c.b16 %v11046, %v11045
      %v11253 = vpack.c.b16 %v11048, %v11047
      %v11254 = vpack.c.b16 %v11050, %v11049
      %v11255 = vpack.c.b16 %v11052, %v11051
      %v11256 = vpack.c.b16 %v11054, %v11053
      %v11257 = vpack.c.b16 %v11056, %v11055
      %v11258 = vpack.c.b16 %v11058, %v11057
      %v11259 = vpack.c.b16 %v11060, %v11059
      %v11260 = vpack.c.b16 %v11062, %v11061
      %v11261 = vpack.c.b16 %v11064, %v11063
      %v11262 = vpack.c.b16 %v11066, %v11065
      %v11263 = vpack.c.b16 %v11068, %v11067
      %v11264 = vpack.c.b16 %v11070, %v11069
      %v11265 = vpack.c.b16 %v11072, %v11071
      %v11266 = vpack.c.b16 %v11074, %v11073
      %v11267 = vpack.c.b16 %v11076, %v11075
      %v11268 = vpack.c.b16 %v11078, %v11077
      %v11269 = vpack.c.b16 %v11080, %v11079
      %v11270 = vpack.c.b16 %v11082, %v11081
      %v11271 = vpack.c.b16 %v11084, %v11083
      %v11272 = vpack.c.b16 %v11086, %v11085
      %v11273 = vpack.c.b16 %v11088, %v11087
      %v11274 = vpack.c.b16 %v11090, %v11089
      %v11275 = vpack.c.b16 %v11092, %v11091
      %v11276 = vpack.c.b16 %v11094, %v11093
      %v11277 = vpack.c.b16 %v11096, %v11095
      %v11278 = vpack.c.b16 %v11098, %v11097
      %v11279 = vpack.c.b16 %v11100, %v11099
      %v11280 = vpack.c.b16 %v11102, %v11101
      %v11281 = vpack.c.b16 %v11104, %v11103
      %v11282 = vpack.c.b16 %v11106, %v11105
      %v11283 = vpack.c.b16 %v11108, %v11107
      %v11284 = vpack.c.b16 %v11110, %v11109
      %v11285 = vpack.c.b16 %v11112, %v11111
      %v11286 = vpack.c.b16 %v11114, %v11113
      %v11287 = vpack.c.b16 %v11116, %v11115
      %v11288 = vpack.c.b16 %v11118, %v11117
      %v11289 = vpack.c.b16 %v11120, %v11119
      %v11290 = vpack.c.b16 %v11122, %v11121
      %v11291 = vpack.c.b16 %v11124, %v11123
      %v11292 = vpack.c.b16 %v11126, %v11125
      %v11293 = vpack.c.b16 %v11128, %v11127
      %v11294 = vpack.c.b16 %v11130, %v11129
      %v11295 = vpack.c.b16 %v11132, %v11131
      %v11296 = vpack.c.b16 %v11134, %v11133
      %v11297 = vpack.c.b16 %v11136, %v11135
      %v11298 = vpack.c.b16 %v11138, %v11137
      %v11299 = vpack.c.b16 %v11140, %v11139
      %v11300 = vpack.c.b16 %v11142, %v11141
      %v11301 = vpack.c.b16 %v11144, %v11143
      %v11302 = vpack.c.b16 %v11146, %v11145
      %v11303 = vpack.c.b16 %v11148, %v11147
      %v11304 = vpack.c.b16 %v11150, %v11149
      %v11305 = vpack.c.b16 %v11152, %v11151
      %v11306 = vpack.c.b16 %v11154, %v11153
      %v11307 = vpack.c.b16 %v11156, %v11155
      %v11308 = vpack.c.b16 %v11158, %v11157
      %v11309 = vpack.c.b16 %v11160, %v11159
      %v11310 = vpack.c.b16 %v11162, %v11161
      %v11311 = vpack.c.b16 %v11164, %v11163
      %v11312 = vpack.c.b16 %v11166, %v11165
      %v11313 = vpack.c.b16 %v11168, %v11167
      %v11314 = vpack.c.b16 %v11170, %v11169
      %v11315 = vpack.c.b16 %v11172, %v11171
      %v11316 = vpack.c.b16 %v11174, %v11173
      %v11317 = vpack.c.b16 %v11176, %v11175
      %v11318 = vpack.c.b16 %v11178, %v11177
      %v11319 = vpack.c.b16 %v11180, %v11179
      %v11320 = vpack.c.b16 %v11182, %v11181
      %v11321 = vpack.c.b16 %v11184, %v11183
      %v11322 = vpack.c.b16 %v11186, %v11185
      %v11323 = vpack.c.b16 %v11188, %v11187
      %v11324 = vpack.c.b16 %v11190, %v11189
      %v11325 = vpack.c.b16 %v11192, %v11191
      %v11326 = vpack.c.b16 %v11194, %v11193
      %v11327 = vpack.c.b16 %v11196, %v11195
      %v11328 = vpack.c.b16 %v11198, %v11197
      %v11329 = vpack.c.b16 %v11200, %v11199
      %v11330 = vpack.c.b16 %v11202, %v11201
      %11459 = vmatprep.subr.bf16.mxu0 0
      %11460 = vmatpush1.bf16.msra.mxu0 %v11203
      %11461 = vmatprep.subr.bf16.mxu0 0
      %11462 = vmatpush1.bf16.msra.mxu0 %v11204
      %11463 = vmatprep.subr.bf16.mxu0 0
      %11464 = vmatpush1.bf16.msra.mxu0 %v11205
      %11465 = vmatprep.subr.bf16.mxu0 0
      %11466 = vmatpush1.bf16.msra.mxu0 %v11206
      %11467 = vmatprep.subr.bf16.mxu0 0
      %11468 = vmatpush1.bf16.msra.mxu0 %v11207
      %11469 = vmatprep.subr.bf16.mxu0 0
      %11470 = vmatpush1.bf16.msra.mxu0 %v11208
      %11471 = vmatprep.subr.bf16.mxu0 0
      %11472 = vmatpush1.bf16.msra.mxu0 %v11209
      %11473 = vmatprep.subr.bf16.mxu0 0
      %11474 = vmatpush1.bf16.msra.mxu0 %v11210
      %11475 = vmatprep.subr.bf16.mxu0 0
      %11476 = vmatpush1.bf16.msra.mxu0 %v11211
      %11477 = vmatprep.subr.bf16.mxu0 0
      %11478 = vmatpush1.bf16.msra.mxu0 %v11212
      %11479 = vmatprep.subr.bf16.mxu0 0
      %11480 = vmatpush1.bf16.msra.mxu0 %v11213
      %11481 = vmatprep.subr.bf16.mxu0 0
      %11482 = vmatpush1.bf16.msra.mxu0 %v11214
      %11483 = vmatprep.subr.bf16.mxu0 0
      %11484 = vmatpush1.bf16.msra.mxu0 %v11215
      %11485 = vmatprep.subr.bf16.mxu0 0
      %11486 = vmatpush1.bf16.msra.mxu0 %v11216
      %11487 = vmatprep.subr.bf16.mxu0 0
      %11488 = vmatpush1.bf16.msra.mxu0 %v11217
      %11489 = vmatprep.subr.bf16.mxu0 0
      %11490 = vmatpush1.bf16.msra.mxu0 %v11218
      %11491 = vmatprep.mubr.bf16.mxu0 %v10399
      %11492 = vmatmul.mubr.bf16.gmra.mrb[0].mxu0 %v10398
      %v11493 = vpop.f32.mrb[0].mxu0
      %v11494 = vadd.f32 %v10690, %v11493
      %v11495 = vpop.f32.mrb[0].mxu0
      %v11496 = vpop.f32.mrb[0].mxu0
      %v11497 = vadd.f32 %v10690, %v11496
      %v11498 = vpop.f32.mrb[0].mxu0
      %11499 = vmatprep.mubr.bf16.mxu0 %v10415
      %11500 = vmatmul.mubr.bf16.gmra.mrb[0].mxu0 %v10414
      %v11501 = vpop.f32.mrb[0].mxu0
      %v11502 = vadd.f32 %v10690, %v11501
      %v11503 = vpop.f32.mrb[0].mxu0
      %v11504 = vpop.f32.mrb[0].mxu0
      %v11505 = vadd.f32 %v10690, %v11504
      %v11506 = vpop.f32.mrb[0].mxu0
      %11507 = vdwg.mxu0
      %11508 = vmatprep.subr.bf16.mxu0 0
      %11509 = vmatpush1.bf16.msra.mxu0 %v11219
      %11510 = vmatprep.subr.bf16.mxu0 0
      %11511 = vmatpush1.bf16.msra.mxu0 %v11220
      %11512 = vmatprep.subr.bf16.mxu0 0
      %11513 = vmatpush1.bf16.msra.mxu0 %v11221
      %11514 = vmatprep.subr.bf16.mxu0 0
      %11515 = vmatpush1.bf16.msra.mxu0 %v11222
      %11516 = vmatprep.subr.bf16.mxu0 0
      %11517 = vmatpush1.bf16.msra.mxu0 %v11223
      %11518 = vmatprep.subr.bf16.mxu0 0
      %11519 = vmatpush1.bf16.msra.mxu0 %v11224
      %11520 = vmatprep.subr.bf16.mxu0 0
      %11521 = vmatpush1.bf16.msra.mxu0 %v11225
      %11522 = vmatprep.subr.bf16.mxu0 0
      %11523 = vmatpush1.bf16.msra.mxu0 %v11226
      %11524 = vmatprep.subr.bf16.mxu0 0
      %11525 = vmatpush1.bf16.msra.mxu0 %v11227
      %11526 = vmatprep.subr.bf16.mxu0 0
      %11527 = vmatpush1.bf16.msra.mxu0 %v11228
      %11528 = vmatprep.subr.bf16.mxu0 0
      %11529 = vmatpush1.bf16.msra.mxu0 %v11229
      %11530 = vmatprep.subr.bf16.mxu0 0
      %11531 = vmatpush1.bf16.msra.mxu0 %v11230
      %11532 = vmatprep.subr.bf16.mxu0 0
      %11533 = vmatpush1.bf16.msra.mxu0 %v11231
      %11534 = vmatprep.subr.bf16.mxu0 0
      %11535 = vmatpush1.bf16.msra.mxu0 %v11232
      %11536 = vmatprep.subr.bf16.mxu0 0
      %11537 = vmatpush1.bf16.msra.mxu0 %v11233
      %11538 = vmatprep.subr.bf16.mxu0 0
      %11539 = vmatpush1.bf16.msra.mxu0 %v11234
      %11540 = vmatprep.mubr.bf16.mxu0 %v10401
      %11541 = vmatmul.mubr.bf16.gmra.mrb[0].mxu0 %v10400
      %v11542 = vpop.f32.mrb[0].mxu0
      %v11543 = vadd.f32 %v11494, %v11542
      %v11544 = vpop.f32.mrb[0].mxu0
      %v11545 = vpop.f32.mrb[0].mxu0
      %v11546 = vadd.f32 %v11497, %v11545
      %v11547 = vpop.f32.mrb[0].mxu0
      %11548 = vmatprep.mubr.bf16.mxu0 %v10417
      %11549 = vmatmul.mubr.bf16.gmra.mrb[0].mxu0 %v10416
      %v11550 = vpop.f32.mrb[0].mxu0
      %v11551 = vadd.f32 %v11502, %v11550
      %v11552 = vpop.f32.mrb[0].mxu0
      %v11553 = vpop.f32.mrb[0].mxu0
      %v11554 = vadd.f32 %v11505, %v11553
      %v11555 = vpop.f32.mrb[0].mxu0
      %11556 = vdwg.mxu0
      %11557 = vmatprep.subr.bf16.mxu0 0
      %11558 = vmatpush1.bf16.msra.mxu0 %v11235
      %11559 = vmatprep.subr.bf16.mxu0 0
      %11560 = vmatpush1.bf16.msra.mxu0 %v11236
      %11561 = vmatprep.subr.bf16.mxu0 0
      %11562 = vmatpush1.bf16.msra.mxu0 %v11237
      %11563 = vmatprep.subr.bf16.mxu0 0
      %11564 = vmatpush1.bf16.msra.mxu0 %v11238
      %11565 = vmatprep.subr.bf16.mxu0 0
      %11566 = vmatpush1.bf16.msra.mxu0 %v11239
      %11567 = vmatprep.subr.bf16.mxu0 0
      %11568 = vmatpush1.bf16.msra.mxu0 %v11240
      %11569 = vmatprep.subr.bf16.mxu0 0
      %11570 = vmatpush1.bf16.msra.mxu0 %v11241
      %11571 = vmatprep.subr.bf16.mxu0 0
      %11572 = vmatpush1.bf16.msra.mxu0 %v11242
      %11573 = vmatprep.subr.bf16.mxu0 0
      %11574 = vmatpush1.bf16.msra.mxu0 %v11243
      %11575 = vmatprep.subr.bf16.mxu0 0
      %11576 = vmatpush1.bf16.msra.mxu0 %v11244
      %11577 = vmatprep.subr.bf16.mxu0 0
      %11578 = vmatpush1.bf16.msra.mxu0 %v11245
      %11579 = vmatprep.subr.bf16.mxu0 0
      %11580 = vmatpush1.bf16.msra.mxu0 %v11246
      %11581 = vmatprep.subr.bf16.mxu0 0
      %11582 = vmatpush1.bf16.msra.mxu0 %v11247
      %11583 = vmatprep.subr.bf16.mxu0 0
      %11584 = vmatpush1.bf16.msra.mxu0 %v11248
      %11585 = vmatprep.subr.bf16.mxu0 0
      %11586 = vmatpush1.bf16.msra.mxu0 %v11249
      %11587 = vmatprep.subr.bf16.mxu0 0
      %11588 = vmatpush1.bf16.msra.mxu0 %v11250
      %11589 = vmatprep.mubr.bf16.mxu0 %v10403
      %11590 = vmatmul.mubr.bf16.gmra.mrb[0].mxu0 %v10402
      %v11591 = vpop.f32.mrb[0].mxu0
      %v11592 = vadd.f32 %v11543, %v11591
      %v11593 = vpop.f32.mrb[0].mxu0
      %v11594 = vpop.f32.mrb[0].mxu0
      %v11595 = vadd.f32 %v11546, %v11594
      %v11596 = vpop.f32.mrb[0].mxu0
      %11597 = vmatprep.mubr.bf16.mxu0 %v10419
      %11598 = vmatmul.mubr.bf16.gmra.mrb[0].mxu0 %v10418
      %v11599 = vpop.f32.mrb[0].mxu0
      %v11600 = vadd.f32 %v11551, %v11599
      %v11601 = vpop.f32.mrb[0].mxu0
      %v11602 = vpop.f32.mrb[0].mxu0
      %v11603 = vadd.f32 %v11554, %v11602
      %v11604 = vpop.f32.mrb[0].mxu0
      %11605 = vdwg.mxu0
      %11606 = vmatprep.subr.bf16.mxu0 0
      %11607 = vmatpush1.bf16.msra.mxu0 %v11251
      %11608 = vmatprep.subr.bf16.mxu0 0
      %11609 = vmatpush1.bf16.msra.mxu0 %v11252
      %11610 = vmatprep.subr.bf16.mxu0 0
      %11611 = vmatpush1.bf16.msra.mxu0 %v11253
      %11612 = vmatprep.subr.bf16.mxu0 0
      %11613 = vmatpush1.bf16.msra.mxu0 %v11254
      %11614 = vmatprep.subr.bf16.mxu0 0
      %11615 = vmatpush1.bf16.msra.mxu0 %v11255
      %11616 = vmatprep.subr.bf16.mxu0 0
      %11617 = vmatpush1.bf16.msra.mxu0 %v11256
      %11618 = vmatprep.subr.bf16.mxu0 0
      %11619 = vmatpush1.bf16.msra.mxu0 %v11257
      %11620 = vmatprep.subr.bf16.mxu0 0
      %11621 = vmatpush1.bf16.msra.mxu0 %v11258
      %11622 = vmatprep.subr.bf16.mxu0 0
      %11623 = vmatpush1.bf16.msra.mxu0 %v11259
      %11624 = vmatprep.subr.bf16.mxu0 0
      %11625 = vmatpush1.bf16.msra.mxu0 %v11260
      %11626 = vmatprep.subr.bf16.mxu0 0
      %11627 = vmatpush1.bf16.msra.mxu0 %v11261
      %11628 = vmatprep.subr.bf16.mxu0 0
      %11629 = vmatpush1.bf16.msra.mxu0 %v11262
      %11630 = vmatprep.subr.bf16.mxu0 0
      %11631 = vmatpush1.bf16.msra.mxu0 %v11263
      %11632 = vmatprep.subr.bf16.mxu0 0
      %11633 = vmatpush1.bf16.msra.mxu0 %v11264
      %11634 = vmatprep.subr.bf16.mxu0 0
      %11635 = vmatpush1.bf16.msra.mxu0 %v11265
      %11636 = vmatprep.subr.bf16.mxu0 0
      %11637 = vmatpush1.bf16.msra.mxu0 %v11266
      %11638 = vmatprep.mubr.bf16.mxu0 %v10405
      %11639 = vmatmul.mubr.bf16.gmra.mrb[0].mxu0 %v10404
      %v11640 = vpop.f32.mrb[0].mxu0
      %v11641 = vadd.f32 %v11592, %v11640
      %v11642 = vpop.f32.mrb[0].mxu0
      %v11643 = vpop.f32.mrb[0].mxu0
      %v11644 = vadd.f32 %v11595, %v11643
      %v11645 = vpop.f32.mrb[0].mxu0
      %11646 = vmatprep.mubr.bf16.mxu0 %v10421
      %11647 = vmatmul.mubr.bf16.gmra.mrb[0].mxu0 %v10420
      %v11648 = vpop.f32.mrb[0].mxu0
      %v11649 = vadd.f32 %v11600, %v11648
      %v11650 = vpop.f32.mrb[0].mxu0
      %v11651 = vpop.f32.mrb[0].mxu0
      %v11652 = vadd.f32 %v11603, %v11651
      %v11653 = vpop.f32.mrb[0].mxu0
      %11654 = vdwg.mxu0
      %11655 = vmatprep.subr.bf16.mxu0 0
      %11656 = vmatpush1.bf16.msra.mxu0 %v11267
      %11657 = vmatprep.subr.bf16.mxu0 0
      %11658 = vmatpush1.bf16.msra.mxu0 %v11268
      %11659 = vmatprep.subr.bf16.mxu0 0
      %11660 = vmatpush1.bf16.msra.mxu0 %v11269
      %11661 = vmatprep.subr.bf16.mxu0 0
      %11662 = vmatpush1.bf16.msra.mxu0 %v11270
      %11663 = vmatprep.subr.bf16.mxu0 0
      %11664 = vmatpush1.bf16.msra.mxu0 %v11271
      %11665 = vmatprep.subr.bf16.mxu0 0
      %11666 = vmatpush1.bf16.msra.mxu0 %v11272
      %11667 = vmatprep.subr.bf16.mxu0 0
      %11668 = vmatpush1.bf16.msra.mxu0 %v11273
      %11669 = vmatprep.subr.bf16.mxu0 0
      %11670 = vmatpush1.bf16.msra.mxu0 %v11274
      %11671 = vmatprep.subr.bf16.mxu0 0
      %11672 = vmatpush1.bf16.msra.mxu0 %v11275
      %11673 = vmatprep.subr.bf16.mxu0 0
      %11674 = vmatpush1.bf16.msra.mxu0 %v11276
      %11675 = vmatprep.subr.bf16.mxu0 0
      %11676 = vmatpush1.bf16.msra.mxu0 %v11277
      %11677 = vmatprep.subr.bf16.mxu0 0
      %11678 = vmatpush1.bf16.msra.mxu0 %v11278
      %11679 = vmatprep.subr.bf16.mxu0 0
      %11680 = vmatpush1.bf16.msra.mxu0 %v11279
      %11681 = vmatprep.subr.bf16.mxu0 0
      %11682 = vmatpush1.bf16.msra.mxu0 %v11280
      %11683 = vmatprep.subr.bf16.mxu0 0
      %11684 = vmatpush1.bf16.msra.mxu0 %v11281
      %11685 = vmatprep.subr.bf16.mxu0 0
      %11686 = vmatpush1.bf16.msra.mxu0 %v11282
      %11687 = vmatprep.mubr.bf16.mxu0 %v10407
      %11688 = vmatmul.mubr.bf16.gmra.mrb[0].mxu0 %v10406
      %v11689 = vpop.f32.mrb[0].mxu0
      %v11690 = vadd.f32 %v11641, %v11689
      %v11691 = vpop.f32.mrb[0].mxu0
      %v11692 = vpop.f32.mrb[0].mxu0
      %v11693 = vadd.f32 %v11644, %v11692
      %v11694 = vpop.f32.mrb[0].mxu0
      %11695 = vmatprep.mubr.bf16.mxu0 %v10423
      %11696 = vmatmul.mubr.bf16.gmra.mrb[0].mxu0 %v10422
      %v11697 = vpop.f32.mrb[0].mxu0
      %v11698 = vadd.f32 %v11649, %v11697
      %v11699 = vpop.f32.mrb[0].mxu0
      %v11700 = vpop.f32.mrb[0].mxu0
      %v11701 = vadd.f32 %v11652, %v11700
      %v11702 = vpop.f32.mrb[0].mxu0
      %11703 = vdwg.mxu0
      %11704 = vmatprep.subr.bf16.mxu0 0
      %11705 = vmatpush1.bf16.msra.mxu0 %v11283
      %11706 = vmatprep.subr.bf16.mxu0 0
      %11707 = vmatpush1.bf16.msra.mxu0 %v11284
      %11708 = vmatprep.subr.bf16.mxu0 0
      %11709 = vmatpush1.bf16.msra.mxu0 %v11285
      %11710 = vmatprep.subr.bf16.mxu0 0
      %11711 = vmatpush1.bf16.msra.mxu0 %v11286
      %11712 = vmatprep.subr.bf16.mxu0 0
      %11713 = vmatpush1.bf16.msra.mxu0 %v11287
      %11714 = vmatprep.subr.bf16.mxu0 0
      %11715 = vmatpush1.bf16.msra.mxu0 %v11288
      %11716 = vmatprep.subr.bf16.mxu0 0
      %11717 = vmatpush1.bf16.msra.mxu0 %v11289
      %11718 = vmatprep.subr.bf16.mxu0 0
      %11719 = vmatpush1.bf16.msra.mxu0 %v11290
      %11720 = vmatprep.subr.bf16.mxu0 0
      %11721 = vmatpush1.bf16.msra.mxu0 %v11291
      %11722 = vmatprep.subr.bf16.mxu0 0
      %11723 = vmatpush1.bf16.msra.mxu0 %v11292
      %11724 = vmatprep.subr.bf16.mxu0 0
      %11725 = vmatpush1.bf16.msra.mxu0 %v11293
      %11726 = vmatprep.subr.bf16.mxu0 0
      %11727 = vmatpush1.bf16.msra.mxu0 %v11294
      %11728 = vmatprep.subr.bf16.mxu0 0
      %11729 = vmatpush1.bf16.msra.mxu0 %v11295
      %11730 = vmatprep.subr.bf16.mxu0 0
      %11731 = vmatpush1.bf16.msra.mxu0 %v11296
      %11732 = vmatprep.subr.bf16.mxu0 0
      %11733 = vmatpush1.bf16.msra.mxu0 %v11297
      %11734 = vmatprep.subr.bf16.mxu0 0
      %11735 = vmatpush1.bf16.msra.mxu0 %v11298
      %11736 = vmatprep.mubr.bf16.mxu0 %v10409
      %11737 = vmatmul.mubr.bf16.gmra.mrb[0].mxu0 %v10408
      %v11738 = vpop.f32.mrb[0].mxu0
      %v11739 = vadd.f32 %v11690, %v11738
      %v11740 = vpop.f32.mrb[0].mxu0
      %v11741 = vpop.f32.mrb[0].mxu0
      %v11742 = vadd.f32 %v11693, %v11741
      %v11743 = vpop.f32.mrb[0].mxu0
      %11744 = vmatprep.mubr.bf16.mxu0 %v10425
      %11745 = vmatmul.mubr.bf16.gmra.mrb[0].mxu0 %v10424
      %v11746 = vpop.f32.mrb[0].mxu0
      %v11747 = vadd.f32 %v11698, %v11746
      %v11748 = vpop.f32.mrb[0].mxu0
      %v11749 = vpop.f32.mrb[0].mxu0
      %v11750 = vadd.f32 %v11701, %v11749
      %v11751 = vpop.f32.mrb[0].mxu0
      %11752 = vdwg.mxu0
      %11753 = vmatprep.subr.bf16.mxu0 0
      %11754 = vmatpush1.bf16.msra.mxu0 %v11299
      %11755 = vmatprep.subr.bf16.mxu0 0
      %11756 = vmatpush1.bf16.msra.mxu0 %v11300
      %11757 = vmatprep.subr.bf16.mxu0 0
      %11758 = vmatpush1.bf16.msra.mxu0 %v11301
      %11759 = vmatprep.subr.bf16.mxu0 0
      %11760 = vmatpush1.bf16.msra.mxu0 %v11302
      %11761 = vmatprep.subr.bf16.mxu0 0
      %11762 = vmatpush1.bf16.msra.mxu0 %v11303
      %11763 = vmatprep.subr.bf16.mxu0 0
      %11764 = vmatpush1.bf16.msra.mxu0 %v11304
      %11765 = vmatprep.subr.bf16.mxu0 0
      %11766 = vmatpush1.bf16.msra.mxu0 %v11305
      %11767 = vmatprep.subr.bf16.mxu0 0
      %11768 = vmatpush1.bf16.msra.mxu0 %v11306
      %11769 = vmatprep.subr.bf16.mxu0 0
      %11770 = vmatpush1.bf16.msra.mxu0 %v11307
      %11771 = vmatprep.subr.bf16.mxu0 0
      %11772 = vmatpush1.bf16.msra.mxu0 %v11308
      %11773 = vmatprep.subr.bf16.mxu0 0
      %11774 = vmatpush1.bf16.msra.mxu0 %v11309
      %11775 = vmatprep.subr.bf16.mxu0 0
      %11776 = vmatpush1.bf16.msra.mxu0 %v11310
      %11777 = vmatprep.subr.bf16.mxu0 0
      %11778 = vmatpush1.bf16.msra.mxu0 %v11311
      %11779 = vmatprep.subr.bf16.mxu0 0
      %11780 = vmatpush1.bf16.msra.mxu0 %v11312
      %11781 = vmatprep.subr.bf16.mxu0 0
      %11782 = vmatpush1.bf16.msra.mxu0 %v11313
      %11783 = vmatprep.subr.bf16.mxu0 0
      %11784 = vmatpush1.bf16.msra.mxu0 %v11314
      %11785 = vmatprep.mubr.bf16.mxu0 %v10411
      %11786 = vmatmul.mubr.bf16.gmra.mrb[0].mxu0 %v10410
      %v11787 = vpop.f32.mrb[0].mxu0
      %v11788 = vadd.f32 %v11739, %v11787
      %v11789 = vpop.f32.mrb[0].mxu0
      %v11790 = vpop.f32.mrb[0].mxu0
      %v11791 = vadd.f32 %v11742, %v11790
      %v11792 = vpop.f32.mrb[0].mxu0
      %11793 = vmatprep.mubr.bf16.mxu0 %v10427
      %11794 = vmatmul.mubr.bf16.gmra.mrb[0].mxu0 %v10426
      %v11795 = vpop.f32.mrb[0].mxu0
      %v11796 = vadd.f32 %v11747, %v11795
      %v11797 = vpop.f32.mrb[0].mxu0
      %v11798 = vpop.f32.mrb[0].mxu0
      %v11799 = vadd.f32 %v11750, %v11798
      %v11800 = vpop.f32.mrb[0].mxu0
      %11801 = vdwg.mxu0
      %11802 = vmatprep.subr.bf16.mxu0 0
      %11803 = vmatpush1.bf16.msra.mxu0 %v11315
      %11804 = vmatprep.subr.bf16.mxu0 0
      %11805 = vmatpush1.bf16.msra.mxu0 %v11316
      %11806 = vmatprep.subr.bf16.mxu0 0
      %11807 = vmatpush1.bf16.msra.mxu0 %v11317
      %11808 = vmatprep.subr.bf16.mxu0 0
      %11809 = vmatpush1.bf16.msra.mxu0 %v11318
      %11810 = vmatprep.subr.bf16.mxu0 0
      %11811 = vmatpush1.bf16.msra.mxu0 %v11319
      %11812 = vmatprep.subr.bf16.mxu0 0
      %11813 = vmatpush1.bf16.msra.mxu0 %v11320
      %11814 = vmatprep.subr.bf16.mxu0 0
      %11815 = vmatpush1.bf16.msra.mxu0 %v11321
      %11816 = vmatprep.subr.bf16.mxu0 0
      %11817 = vmatpush1.bf16.msra.mxu0 %v11322
      %11818 = vmatprep.subr.bf16.mxu0 0
      %11819 = vmatpush1.bf16.msra.mxu0 %v11323
      %11820 = vmatprep.subr.bf16.mxu0 0
      %11821 = vmatpush1.bf16.msra.mxu0 %v11324
      %11822 = vmatprep.subr.bf16.mxu0 0
      %11823 = vmatpush1.bf16.msra.mxu0 %v11325
      %11824 = vmatprep.subr.bf16.mxu0 0
      %11825 = vmatpush1.bf16.msra.mxu0 %v11326
      %11826 = vmatprep.subr.bf16.mxu0 0
      %11827 = vmatpush1.bf16.msra.mxu0 %v11327
      %11828 = vmatprep.subr.bf16.mxu0 0
      %11829 = vmatpush1.bf16.msra.mxu0 %v11328
      %11830 = vmatprep.subr.bf16.mxu0 0
      %11831 = vmatpush1.bf16.msra.mxu0 %v11329
      %11832 = vmatprep.subr.bf16.mxu0 0
      %11833 = vmatpush1.bf16.msra.mxu0 %v11330
      %11834 = vmatprep.mubr.bf16.mxu0 %v10413
      %11835 = vmatmul.mubr.bf16.gmra.mrb[0].mxu0 %v10412
      %v11836 = vpop.f32.mrb[0].mxu0
      %v11837 = vadd.f32 %v11788, %v11836
      %v11838 = vpop.f32.mrb[0].mxu0
      %v11839 = vpop.f32.mrb[0].mxu0
      %v11840 = vadd.f32 %v11791, %v11839
      %v11841 = vpop.f32.mrb[0].mxu0
      %11842 = vmatprep.mubr.bf16.mxu0 %v10429
      %11843 = vmatmul.mubr.bf16.gmra.mrb[0].mxu0 %v10428
      %v11844 = vpop.f32.mrb[0].mxu0
      %v11845 = vadd.f32 %v11796, %v11844
      %v11846 = vpop.f32.mrb[0].mxu0
      %v11847 = vpop.f32.mrb[0].mxu0
      %v11848 = vadd.f32 %v11799, %v11847
      %v11849 = vpop.f32.mrb[0].mxu0
      %11850 = vdwg.mxu0
      %v11851 = vadd.f32 %v9620, %v11837
      %v11852 = vadd.f32 %v9621, %v11840
      %v11853 = vadd.f32 %v9622, %v11845
      %v11854 = vadd.f32 %v9623, %v11848
      %v11855 = vsel %vm486, %v11851, 0.0
      %11856 = vadd.xlane.f32.xlu0 %v11855
      %v11857 = vpop.xlane.xlu0 %11856
      %v11858 = vsel %vm486, %v11852, 0.0
      %11859 = vadd.xlane.f32.xlu0 %v11858
      %v11860 = vpop.xlane.xlu0 %11859
      %v11861 = vsel %vm486, %v11853, 0.0
      %11862 = vadd.xlane.f32.xlu0 %v11861
      %v11863 = vpop.xlane.xlu0 %11862
      %v11864 = vsel %vm486, %v11854, 0.0
      %11865 = vadd.xlane.f32.xlu0 %v11864
      %v11866 = vpop.xlane.xlu0 %11865
      %v11867 = vmul.f32 %v11857, %v3828
      %v11868 = vmul.f32 %v11860, %v3828
      %v11869 = vmul.f32 %v11863, %v3828
      %v11870 = vmul.f32 %v11866, %v3828
      %v11871 = vmul.f32 %v11851, %v11851
      %v11872 = vmul.f32 %v11852, %v11852
      %v11873 = vmul.f32 %v11853, %v11853
      %v11874 = vmul.f32 %v11854, %v11854
      %v11875 = vsel %vm486, %v11871, 0.0
      %11876 = vadd.xlane.f32.xlu0 %v11875
      %v11877 = vpop.xlane.xlu0 %11876
      %v11878 = vsel %vm486, %v11872, 0.0
      %11879 = vadd.xlane.f32.xlu0 %v11878
      %v11880 = vpop.xlane.xlu0 %11879
      %v11881 = vsel %vm486, %v11873, 0.0
      %11882 = vadd.xlane.f32.xlu0 %v11881
      %v11883 = vpop.xlane.xlu0 %11882
      %v11884 = vsel %vm486, %v11874, 0.0
      %11885 = vadd.xlane.f32.xlu0 %v11884
      %v11886 = vpop.xlane.xlu0 %11885
      %v11887 = vmul.f32 %v11877, %v3828
      %v11888 = vmul.f32 %v11880, %v3828
      %v11889 = vmul.f32 %v11883, %v3828
      %v11890 = vmul.f32 %v11886, %v3828
      %v11891 = vmul.f32 %v11867, %v11867
      %v11892 = vmul.f32 %v11868, %v11868
      %v11893 = vmul.f32 %v11869, %v11869
      %v11894 = vmul.f32 %v11870, %v11870
      %v11895 = vsub.f32 %v11887, %v11891
      %v11896 = vsub.f32 %v11888, %v11892
      %v11897 = vsub.f32 %v11889, %v11893
      %v11898 = vsub.f32 %v11890, %v11894
      %v11899 = vsub.f32 %v11851, %v11867
      %v11900 = vsub.f32 %v11852, %v11868
      %v11901 = vsub.f32 %v11853, %v11869
      %v11902 = vsub.f32 %v11854, %v11870
      %v11903 = vadd.f32 %v11895, 1e-05
      %v11904 = vadd.f32 %v11896, 1e-05
      %v11905 = vadd.f32 %v11897, 1e-05
      %v11906 = vadd.f32 %v11898, 1e-05
      %v11907 = vrsqrt.pop %v11903
      %v11908 = vrsqrt.pop %v11904
      %v11909 = vrsqrt.pop %v11905
      %v11910 = vrsqrt.pop %v11906
      %v11911 = vmul.f32 %v11899, %v11907
      %v11912 = vmul.f32 %v11900, %v11908
      %v11913 = vmul.f32 %v11901, %v11909
      %v11914 = vmul.f32 %v11902, %v11910
      %v11915 = vlaneseq
      %v11916 = vshrl.u32 %v11915, 7
      %v11917 = vsub.s32 3, %v11916
      %v11918 = vrot.slane %v393, %v11917
      %v11919 = vmul.f32 %v11911, %v11918
      %v11920 = vmul.f32 %v11912, %v11918
      %v11921 = vmul.f32 %v11913, %v11918
      %v11922 = vmul.f32 %v11914, %v11918
      %v11923 = vlaneseq
      %v11924 = vshrl.u32 %v11923, 7
      %v11925 = vsub.s32 4, %v11924
      %v11926 = vrot.slane %v393, %v11925
      %v11927 = vadd.f32 %v11919, %v11926
      %v11928 = vadd.f32 %v11920, %v11926
      %v11929 = vadd.f32 %v11921, %v11926
      %v11930 = vadd.f32 %v11922, %v11926
      %v11931 = vsel %vm486, %v11927, 0.0
      %v11932 = vrot.slane %v11931, 4
      %v11933 = vadd.f32 %v11931, %v11932
      %v11934 = vrot.slane %v11933, 2
      %v11935 = vadd.f32 %v11933, %v11934
      %v11936 = vrot.slane %v11935, 1
      %v11937 = vadd.f32 %v11935, %v11936
      %v11938 = vsel %vm486, %v11928, 0.0
      %v11939 = vrot.slane %v11938, 4
      %v11940 = vadd.f32 %v11938, %v11939
      %v11941 = vrot.slane %v11940, 2
      %v11942 = vadd.f32 %v11940, %v11941
      %v11943 = vrot.slane %v11942, 1
      %v11944 = vadd.f32 %v11942, %v11943
      %v11945 = vsel %vm486, %v11929, 0.0
      %v11946 = vrot.slane %v11945, 4
      %v11947 = vadd.f32 %v11945, %v11946
      %v11948 = vrot.slane %v11947, 2
      %v11949 = vadd.f32 %v11947, %v11948
      %v11950 = vrot.slane %v11949, 1
      %v11951 = vadd.f32 %v11949, %v11950
      %v11952 = vsel %vm486, %v11930, 0.0
      %v11953 = vrot.slane %v11952, 4
      %v11954 = vadd.f32 %v11952, %v11953
      %v11955 = vrot.slane %v11954, 2
      %v11956 = vadd.f32 %v11954, %v11955
      %v11957 = vrot.slane %v11956, 1
      %v11958 = vadd.f32 %v11956, %v11957
      %v11959 = vpack.c.bf16 %v11937, %v11937
      %v11960 = vpack.c.bf16 %v11944, %v11944
      %v11961 = vpack.c.bf16 %v11951, %v11951
      %v11962 = vpack.c.bf16 %v11958, %v11958
      %v11963 = vld [vmem:[%s9] sm:$0xf]
      %v11964 = vld [vmem:[%s9 + $0x4] sm:$0xf]
      %v11965 = vld [vmem:[%s9 + $0x8] sm:$0xf]
      %v11966 = vld [vmem:[%s9 + $0xc] sm:$0xf]
      %v11967 = vld [vmem:[%s10] sm:$0x1]
      %v11969 = vlaneseq
      %v11970 = vshrl.u32 %v11969, 7
      %v11971 = vsub.s32 0, %v11970
      %v11972 = vrot.slane %v11967, %v11971
      %v11978 = vunpack.c.l.b16 %v11959
      %v11979 = vunpack.c.l.b16 %v11960
      %v11980 = vunpack.c.l.b16 %v11961
      %v11981 = vunpack.c.l.b16 %v11962
      %vm11982 = vcmask 1041409
      %v11983 = vsel %vm11982, %v11979, %v11978
      %vm11984 = vcmask 1042434
      %v11985 = vsel %vm11984, %v11980, %v11983
      %vm11986 = vcmask 1043459
      %v11987 = vsel %vm11986, %v11981, %v11985
      %v11988 = vpack.c.b16 %v11987, %v11987
      %v11993 = vunpack.c.l.b16 %v11963
      %v11994 = vunpack.c.l.b16 %v11964
      %v11995 = vunpack.c.l.b16 %v11965
      %v11996 = vunpack.c.l.b16 %v11966
      %v11997 = vpack.c.b16 %v11994, %v11993
      %v11998 = vpack.c.b16 %v11996, %v11995
      %v12002 = vsel %vm486, %v11988, 0
      %12004 = vmatprep.subr.bf16.mxu0 0
      %12005 = vmatpush1.bf16.msra.mxu0 %v11997
      %12006 = vmatprep.subr.bf16.mxu0 0
      %12007 = vmatpush1.bf16.msra.mxu0 %v11998
      %12008 = vmatprep.subr.bf16.mxu0 0
      %12009 = vmatpush1.bf16.msra.mxu0 0
      %12010 = vmatprep.subr.bf16.mxu0 0
      %12011 = vmatpush1.bf16.msra.mxu0 0
      %12012 = vmatprep.subr.bf16.mxu0 0
      %12013 = vmatpush1.bf16.msra.mxu0 0
      %12014 = vmatprep.subr.bf16.mxu0 0
      %12015 = vmatpush1.bf16.msra.mxu0 0
      %12016 = vmatprep.subr.bf16.mxu0 0
      %12017 = vmatpush1.bf16.msra.mxu0 0
      %12018 = vmatprep.subr.bf16.mxu0 0
      %12019 = vmatpush1.bf16.msra.mxu0 0
      %12020 = vmatprep.subr.bf16.mxu0 0
      %12021 = vmatpush1.bf16.msra.mxu0 0
      %12022 = vmatprep.subr.bf16.mxu0 0
      %12023 = vmatpush1.bf16.msra.mxu0 0
      %12024 = vmatprep.subr.bf16.mxu0 0
      %12025 = vmatpush1.bf16.msra.mxu0 0
      %12026 = vmatprep.subr.bf16.mxu0 0
      %12027 = vmatpush1.bf16.msra.mxu0 0
      %12028 = vmatprep.subr.bf16.mxu0 0
      %12029 = vmatpush1.bf16.msra.mxu0 0
      %12030 = vmatprep.subr.bf16.mxu0 0
      %12031 = vmatpush1.bf16.msra.mxu0 0
      %12032 = vmatprep.subr.bf16.mxu0 0
      %12033 = vmatpush1.bf16.msra.mxu0 0
      %12034 = vmatprep.subr.bf16.mxu0 0
      %12035 = vmatpush1.bf16.msra.mxu0 0
      %12036 = vmatprep.mubr.bf16.mxu0 0
      %12037 = vmatmul.mubr.bf16.gmra.mrb[0].mxu0 %v12002
      %v12038 = vpop.f32.mrb[0].mxu0
      %v12039 = vadd.f32 %v11972, %v12038
      %v12040 = vpop.f32.mrb[0].mxu0
      %v12041 = vpop.f32.mrb[0].mxu0
      %v12042 = vpop.f32.mrb[0].mxu0
      %12043 = vdwg.mxu0
      %vm12044 = vcmask 27648
      %12045 = vst.msk [vmem:[%s386] sm:$0xf] %vm12044, %v12039
      %p12046 = scmp.lt.s32.totalorder %s22, 1
      %s12047 = scalar_select %p12046, %s22, 1
      %s12048 = smul.addr %s12047, 4
      %s12049 = scalar_lea.vmem %s11, %s12048
      // Predicated region
      $region65: #{classical_transformer_forward.1} parent=63 // pred_check
        %p12050 = pneg %p276
      $region66: #{classical_transformer_forward.1} parent=63 // pred_check_branch
        %12052 = sbr.rel (%p12050) target = $region68
      $region67: #{classical_transformer_forward.1} parent=63 // pred_region
        _
      $region68: #{classical_transformer_forward.1} parent=63 // pred_fallthru
        _
    $region64: #{classical_transformer_forward.1} parent=5 // pred_fallthru
      _
    %p12053 = scmp.le.s32.totalorder 2, %s17
    // Predicated region
    $region69: #{classical_transformer_forward.1} parent=5 // pred_check
      %p12054 = pneg %p12053
    $region70: #{classical_transformer_forward.1} parent=5 // pred_check_branch
      %12056 = sbr.rel (%p12054) target = $region72
    $region71: #{classical_transformer_forward.1} parent=5 // pred_region
      %s12057 = ssub.s32 %s17, 2
      // Predicated region
      $region73: #{classical_transformer_forward.1} parent=71 // pred_check
        %p12058 = pneg %p282
      $region74: #{classical_transformer_forward.1} parent=71 // pred_check_branch
        %12060 = sbr.rel (%p12058) target = $region76
      $region75: #{classical_transformer_forward.1} parent=71 // pred_region
        %p12061 = scmp.lt.s32.totalorder %s23, 1
        %s12062 = scalar_select %p12061, %s23, 1
        %s12063 = smul.addr %s12062, 4
        %s12064 = scalar_lea.vmem %s11, %s12063
      $region76: #{classical_transformer_forward.1} parent=71 // pred_fallthru
        _
    $region72: #{classical_transformer_forward.1} parent=5 // pred_fallthru
      _
  $region6: #{classical_transformer_forward.1} parent=0 // loop_footer
    %s21 = sadd.s32 1, %s17
  $region7: #{classical_transformer_forward.1} parent=0 // loop_footer_branch
    %16 = sbr.rel target = $region3
  $region8: #{classical_transformer_forward.1} parent=0 // loop_exit
    _

</llo_original>
